<compile_context>
chip_gen: v5e
topology: v5e:2x2
jax: 0.10.0
libtpu: 0.0.40
codegen_flags: <defaults>
</compile_context>

<pallas_src>
import functools

import numpy as np
import jax
import jax.numpy as jnp
from jax.experimental import pallas as pl
from jax.experimental.pallas import tpu as pltpu

LANE = 128  # TPU vreg lane width; each GRU gate block is padded to this many lanes.
VMEM_SPEC = pl.BlockSpec(memory_space=pltpu.MemorySpace.VMEM)


# ----------------------------------------------------------------------------
# Fused forward kernel
# ----------------------------------------------------------------------------
def _make_fused_kernel(B, T, M, Lg, Le):
    """Build the fused GraphRNN forward kernel for static (B, T, M, Lg, Le)."""
    N = B * T
    P = LANE

    def gru_stack(x_steps, h0_list, layer_refs):
        # x_steps:    python list (length = #steps) of (batch, feat) activations.
        # h0_list:    per-layer initial hidden state, each (batch, P); lanes >= H are zero.
        # layer_refs: per-layer (w_ih, w_hh, b_ih, b_hh) VMEM refs, gate-padded to 3*P lanes
        #             with PyTorch gate order [r, z, n].
        # Returns the per-step hidden states of the top layer (each (batch, P)).
        for (w_ih, w_hh, b_ih, b_hh), h0 in zip(layer_refs, h0_list):
            bi = b_ih[...]
            bh = b_hh[...]
            h = h0
            outs = []
            for x_t in x_steps:
                gi = jnp.dot(x_t, w_ih[...], preferred_element_type=jnp.float32) + bi
                gh = jnp.dot(h, w_hh[...], preferred_element_type=jnp.float32) + bh
                # vreg-aligned gate slices (each gate block is exactly one 128-lane block)
                r = jax.nn.sigmoid(gi[:, 0:P] + gh[:, 0:P])
                z = jax.nn.sigmoid(gi[:, P:2 * P] + gh[:, P:2 * P])
                n = jnp.tanh(gi[:, 2 * P:3 * P] + r * gh[:, 2 * P:3 * P])
                h = (1.0 - z) * n + z * h  # padded lanes stay exactly zero
                outs.append(h)
            x_steps = outs
        return x_steps

    def kernel(*refs):
        *in_refs, out_ref = refs
        it = iter(in_refs)
        x_ref = next(it)      # (T, B, M)  time-major padded adjacency-vector sequences
        e_ref = next(it)      # (N, M)     padded grouped edge sequences, rows in (t, b) order
        mask_ref = next(it)   # (N, 1)     1.0 where t < length[b], else 0.0
        adj_w, adj_b = next(it), next(it)
        graph_layers = [tuple(next(it) for _ in range(4)) for _ in range(Lg)]
        g2e_w1, g2e_b1, g2e_w2, g2e_b2 = next(it), next(it), next(it), next(it)
        ee_w, ee_b = next(it), next(it)
        edge_layers = [tuple(next(it) for _ in range(4)) for _ in range(Le)]
        ed_w1, ed_b1, ed_w2, ed_b2 = next(it), next(it), next(it), next(it)

        # ---- adj_embedding fused into the per-step graph-GRU inputs ------------------
        aw = adj_w[...]
        ab = adj_b[...]
        x_steps = [
            jnp.maximum(jnp.dot(x_ref[t], aw, preferred_element_type=jnp.float32) + ab, 0.0)
            for t in range(T)
        ]

        # ---- graph-level GRU (Lg layers); hidden state lane-padded to P --------------
        h0_graph = [jnp.zeros((B, P), jnp.float32) for _ in range(Lg)]
        gh_steps = gru_stack(x_steps, h0_graph, graph_layers)          # T x (B, P)

        # ---- graph_output_to_edge_hidden MLP, applied per step -----------------------
        w1, b1 = g2e_w1[...], g2e_b1[...]
        w2, b2 = g2e_w2[...], g2e_b2[...]
        ehs_steps = []
        for h_t in gh_steps:
            mid = jnp.maximum(jnp.dot(h_t, w1, preferred_element_type=jnp.float32) + b1, 0.0)
            ehs_steps.append(jnp.dot(mid, w2, preferred_element_type=jnp.float32) + b2)
        ehs = jnp.concatenate(ehs_steps, axis=0)                       # (N, P), (t, b) rows

        # ---- edge_embedding + edge-level GRU over the M edge slots -------------------
        ew, eb = ee_w[...], ee_b[...]
        e_all = e_ref[...]                                             # (N, M)
        e_steps = [
            jnp.maximum(e_all[:, m:m + 1] * ew + eb, 0.0)              # Linear(1, Ee) + ReLU
            for m in range(M)
        ]
        # Layer 0 of the edge GRU is initialised with the per-node edge-hidden state,
        # remaining Le-1 layers with zeros (matches the PyTorch cat of zeros).
        h0_edge = [ehs] + [jnp.zeros((N, P), jnp.float32) for _ in range(Le - 1)]
        eh_steps = gru_stack(e_steps, h0_edge, edge_layers)            # M x (N, P)

        # ---- edge_decoder + length mask; assemble the (N, M) output block in VMEM ----
        # TODO(synk): packed-sequence sort/interleave is replaced by padded compute plus
        # this length mask (identical values for the returned padded output).
        dw1, db1 = ed_w1[...], ed_b1[...]
        dw2, db2 = ed_w2[...], ed_b2[...]
        mask = mask_ref[...]                                           # (N, 1)
        for m, h_m in enumerate(eh_steps):
            mid = jnp.maximum(jnp.dot(h_m, dw1, preferred_element_type=jnp.float32) + db1, 0.0)
            logit = jnp.sum(mid * dw2, axis=-1, keepdims=True) + db2   # Linear(Ee, 1)
            out_ref[:, m:m + 1] = jax.nn.sigmoid(logit) * mask

    return kernel


# ----------------------------------------------------------------------------
# Forward wrapper (thin XLA shell around the single fused pallas_call)
# ----------------------------------------------------------------------------
def graphrnn_forward(cfg, kernel_weights, graph_input_sequences, input_length,
                     edge_seqs_padded, max_len):
    """
    graph_input_sequences: (B, T, M) float32 padded adjacency-vector sequences.
    input_length:          (B,)      number of valid nodes per graph.
    edge_seqs_padded:      (B, T, M) padded grouped edge sequences (SOS=1, last edge dropped).
    max_len:               static python int = max(input_length); keeps the final trim static.
    Returns (B, max_len, M) edge probabilities, zeroed past each graph's length
    (same values as pad_packed_sequence on the packed PyTorch output).
    """
    B, T, M = graph_input_sequences.shape
    N = B * T

    # Only the *raw* (B, T, M) inputs are re-laid-out here (a few hundred bytes, fused by
    # XLA); all inter-stage activations stay inside the fused kernel, so the old per-stage
    # HBM transposes are gone.
    x_tm = jnp.transpose(graph_input_sequences, (1, 0, 2))              # (T, B, M)
    e_tb = jnp.transpose(edge_seqs_padded, (1, 0, 2)).reshape(N, M)     # (N, M), (t, b) rows
    lengths = jnp.asarray(input_length, jnp.int32)
    mask = (jnp.arange(T, dtype=jnp.int32)[:, None] < lengths[None, :]).astype(jnp.float32)
    mask = mask.reshape(N, 1)                                           # (N, 1), (t, b) rows

    kernel = _make_fused_kernel(B, T, M, cfg["Lg"], cfg["Le"])
    fused = pl.pallas_call(
        kernel,
        out_shape=jax.ShapeDtypeStruct((N, M), jnp.float32),
        in_specs=[VMEM_SPEC] * (3 + len(kernel_weights)),
        out_specs=VMEM_SPEC,
    )
    out = fused(x_tm, e_tb, mask, *kernel_weights)                      # (N, M), (t, b) rows
    out = jnp.transpose(out.reshape(T, B, M), (1, 0, 2))                # (B, T, M)
    return out[:, :max_len, :]


# ----------------------------------------------------------------------------
# Parameters: natural (PyTorch-like) shapes + lane-padded packing for the kernel
# ----------------------------------------------------------------------------
def _uniform(key, shape, scale=0.1):
    return jax.random.uniform(key, shape, jnp.float32, -scale, scale)


def init_params(key, cfg):
    """Natural-shape parameters (transposed PyTorch layout); used by the pure-JAX reference."""
    M, Eg, Hg, Lg = cfg["M"], cfg["Eg"], cfg["Hg"], cfg["Lg"]
    Ee, He, Le = cfg["Ee"], cfg["He"], cfg["Le"]
    ks = iter(jax.random.split(key, 40))
    u = lambda shape: _uniform(next(ks), shape)

    def gru(num_layers, in_size, hidden):
        layers = []
        for l in range(num_layers):
            i = in_size if l == 0 else hidden
            layers.append((u((i, 3 * hidden)), u((hidden, 3 * hidden)),
                           u((1, 3 * hidden)), u((1, 3 * hidden))))
        return layers

    return {
        "adj_w": u((M, Eg)), "adj_b": u((1, Eg)),
        "graph_gru": gru(Lg, Eg, Hg),
        "g2e_w1": u((Hg, Eg)), "g2e_b1": u((1, Eg)),
        "g2e_w2": u((Eg, He)), "g2e_b2": u((1, He)),
        "ee_w": u((1, Ee)), "ee_b": u((1, Ee)),
        "edge_gru": gru(Le, Ee, He),
        "ed_w1": u((He, Ee)), "ed_b1": u((1, Ee)),
        "ed_w2": u((1, Ee)), "ed_b2": u((1, 1)),
    }


def _pad_rows(a, rows):
    return jnp.zeros((rows, a.shape[1]), jnp.float32).at[:a.shape[0], :].set(a)


def _pad_cols(a, cols):
    return jnp.zeros((a.shape[0], cols), jnp.float32).at[:, :a.shape[1]].set(a)


def _pad_gates(w, rows, hidden):
    """(in, 3H) with gate order [r|z|n] -> (rows, 3*LANE); gate g lives in lanes [g*LANE, g*LANE+H)."""
    out = jnp.zeros((rows, 3 * LANE), jnp.float32)
    for g in range(3):
        out = out.at[:w.shape[0], g * LANE:g * LANE + hidden].set(
            w[:, g * hidden:(g + 1) * hidden])
    return out


def pack_kernel_weights(nat, cfg):
    """Flatten + lane-pad the natural parameters into the fused kernel's argument list."""
    Hg, He = cfg["Hg"], cfg["He"]
    assert max(Hg, He) <= LANE
    w = [nat["adj_w"], nat["adj_b"]]
    for l, (w_ih, w_hh, b_ih, b_hh) in enumerate(nat["graph_gru"]):
        rows_ih = w_ih.shape[0] if l == 0 else LANE   # layers >= 1 consume the P-padded hidden
        w += [_pad_gates(w_ih, rows_ih, Hg), _pad_gates(w_hh, LANE, Hg),
              _pad_gates(b_ih, 1, Hg), _pad_gates(b_hh, 1, Hg)]
    w += [_pad_rows(nat["g2e_w1"], LANE), nat["g2e_b1"],
          _pad_cols(nat["g2e_w2"], LANE), _pad_cols(nat["g2e_b2"], LANE)]
    w += [nat["ee_w"], nat["ee_b"]]
    for l, (w_ih, w_hh, b_ih, b_hh) in enumerate(nat["edge_gru"]):
        rows_ih = w_ih.shape[0] if l == 0 else LANE
        w += [_pad_gates(w_ih, rows_ih, He), _pad_gates(w_hh, LANE, He),
              _pad_gates(b_ih, 1, He), _pad_gates(b_hh, 1, He)]
    w += [_pad_rows(nat["ed_w1"], LANE), nat["ed_b1"], nat["ed_w2"], nat["ed_b2"]]
    return w


# ----------------------------------------------------------------------------
# Pure-JAX reference (unpadded weights) for a numerical sanity check
# ----------------------------------------------------------------------------
def reference_forward(nat, cfg, x, input_length, e, max_len):
    B, T, M = x.shape
    Hg, He, Lg, Le = cfg["Hg"], cfg["He"], cfg["Lg"], cfg["Le"]
    hi = jax.lax.Precision.HIGHEST
    dot = lambda a, b: jnp.dot(a, b, precision=hi)

    def gru(x_steps, h0_list, layers, H):
        for (w_ih, w_hh, b_ih, b_hh), h0 in zip(layers, h0_list):
            h = h0
            outs = []
            for x_t in x_steps:
                gi = dot(x_t, w_ih) + b_ih
                gh = dot(h, w_hh) + b_hh
                r = jax.nn.sigmoid(gi[:, :H] + gh[:, :H])
                z = jax.nn.sigmoid(gi[:, H:2 * H] + gh[:, H:2 * H])
                n = jnp.tanh(gi[:, 2 * H:] + r * gh[:, 2 * H:])
                h = (1.0 - z) * n + z * h
                outs.append(h)
            x_steps = outs
        return x_steps

    xe = jnp.maximum(dot(x, nat["adj_w"]) + nat["adj_b"], 0.0)                 # (B, T, Eg)
    gh_steps = gru([xe[:, t, :] for t in range(T)],
                   [jnp.zeros((B, Hg), jnp.float32)] * Lg, nat["graph_gru"], Hg)
    gh = jnp.stack(gh_steps, axis=1)                                           # (B, T, Hg)
    ehs = dot(jnp.maximum(dot(gh, nat["g2e_w1"]) + nat["g2e_b1"], 0.0),
              nat["g2e_w2"]) + nat["g2e_b2"]                                   # (B, T, He)
    ehs2 = ehs.reshape(B * T, He)
    e2 = e.reshape(B * T, M)
    e_steps = [jnp.maximum(e2[:, m:m + 1] * nat["ee_w"] + nat["ee_b"], 0.0) for m in range(M)]
    h0_edge = [ehs2] + [jnp.zeros((B * T, He), jnp.float32)] * (Le - 1)
    eh_steps = gru(e_steps, h0_edge, nat["edge_gru"], He)
    cols = []
    for h_m in eh_steps:
        mid = jnp.maximum(dot(h_m, nat["ed_w1"]) + nat["ed_b1"], 0.0)
        cols.append(jax.nn.sigmoid(jnp.sum(mid * nat["ed_w2"], axis=-1, keepdims=True)
                                   + nat["ed_b2"]))
    probs = jnp.concatenate(cols, axis=1).reshape(B, T, M)
    lengths = jnp.asarray(input_length, jnp.int32)
    mask = (jnp.arange(T)[None, :] < lengths[:, None]).astype(jnp.float32)
    return (probs * mask[:, :, None])[:, :max_len, :]


# ----------------------------------------------------------------------------
# Main
# ----------------------------------------------------------------------------
if __name__ == "__main__":
    cfg = dict(M=8, Eg=16, Hg=32, Lg=2, Ee=8, He=16, Le=2)
    B, T = 2, 6
    M = cfg["M"]

    key = jax.random.PRNGKey(0)
    k_params, k_x, k_y = jax.random.split(key, 3)

    nat = init_params(k_params, cfg)
    kernel_weights = pack_kernel_weights(nat, cfg)

    # graph input sequences: (B, T, M) binary adjacency vectors (padded)
    graph_input_sequences = jax.random.bernoulli(k_x, 0.5, (B, T, M)).astype(jnp.float32)
    input_length = np.array([6, 4], dtype=np.int32)

    # padded form of get_grouped_edge_sequences_from_y: SOS=1 prepended, last edge dropped
    y_padded = jax.random.bernoulli(k_y, 0.5, (B, T, M)).astype(jnp.float32)
    sos = jnp.ones((B, T, 1), jnp.float32)
    edge_seqs_padded = jnp.concatenate([sos, y_padded[:, :, :-1]], axis=-1)    # (B, T, M)

    max_len = int(input_length.max())   # host-side static value, no device sync in forward

    fwd = jax.jit(functools.partial(graphrnn_forward, cfg), static_argnums=(4,))
    out = fwd(kernel_weights, graph_input_sequences, input_length, edge_seqs_padded, max_len)
    out = jax.block_until_ready(out)

    assert out.shape == (B, max_len, M), out.shape
    assert bool(jnp.all(jnp.isfinite(out)))

    ref = reference_forward(nat, cfg, graph_input_sequences, input_length,
                            edge_seqs_padded, max_len)
    np.testing.assert_allclose(np.asarray(out), np.asarray(ref), rtol=0.0, atol=1e-2)

    print("KERNEL_OK")
</pallas_src>

<mosaic_0001>
module attributes {stable_mosaic.version = 11 : i64} {
  func.func @kernel(%arg0: memref<6x2x8xf32, #tpu.memory_space<vmem>>, %arg1: memref<12x8xf32, #tpu.memory_space<vmem>>, %arg2: memref<12x1xf32, #tpu.memory_space<vmem>>, %arg3: memref<8x16xf32, #tpu.memory_space<vmem>>, %arg4: memref<1x16xf32, #tpu.memory_space<vmem>>, %arg5: memref<16x384xf32, #tpu.memory_space<vmem>>, %arg6: memref<128x384xf32, #tpu.memory_space<vmem>>, %arg7: memref<1x384xf32, #tpu.memory_space<vmem>>, %arg8: memref<1x384xf32, #tpu.memory_space<vmem>>, %arg9: memref<128x384xf32, #tpu.memory_space<vmem>>, %arg10: memref<128x384xf32, #tpu.memory_space<vmem>>, %arg11: memref<1x384xf32, #tpu.memory_space<vmem>>, %arg12: memref<1x384xf32, #tpu.memory_space<vmem>>, %arg13: memref<128x16xf32, #tpu.memory_space<vmem>>, %arg14: memref<1x16xf32, #tpu.memory_space<vmem>>, %arg15: memref<16x128xf32, #tpu.memory_space<vmem>>, %arg16: memref<1x128xf32, #tpu.memory_space<vmem>>, %arg17: memref<1x8xf32, #tpu.memory_space<vmem>>, %arg18: memref<1x8xf32, #tpu.memory_space<vmem>>, %arg19: memref<8x384xf32, #tpu.memory_space<vmem>>, %arg20: memref<128x384xf32, #tpu.memory_space<vmem>>, %arg21: memref<1x384xf32, #tpu.memory_space<vmem>>, %arg22: memref<1x384xf32, #tpu.memory_space<vmem>>, %arg23: memref<128x384xf32, #tpu.memory_space<vmem>>, %arg24: memref<128x384xf32, #tpu.memory_space<vmem>>, %arg25: memref<1x384xf32, #tpu.memory_space<vmem>>, %arg26: memref<1x384xf32, #tpu.memory_space<vmem>>, %arg27: memref<128x8xf32, #tpu.memory_space<vmem>>, %arg28: memref<1x8xf32, #tpu.memory_space<vmem>>, %arg29: memref<1x8xf32, #tpu.memory_space<vmem>>, %arg30: memref<1x1xf32, #tpu.memory_space<vmem>>, %arg31: memref<12x8xf32, #tpu.memory_space<vmem>>) attributes {dimension_semantics = [], scalar_prefetch = 0 : i64, scratch_operands = 0 : i64, tpu.core_type = #tpu.core_type<tc>} {
    %c0 = arith.constant 0 : index
    %c0_0 = arith.constant 0 : index
    %0 = vector.load %arg3[%c0, %c0_0] : memref<8x16xf32, #tpu.memory_space<vmem>>, vector<8x16xf32>
    %c0_1 = arith.constant 0 : index
    %c0_2 = arith.constant 0 : index
    %1 = vector.load %arg4[%c0_1, %c0_2] : memref<1x16xf32, #tpu.memory_space<vmem>>, vector<1x16xf32>
    %c0_3 = arith.constant 0 : index
    %c0_4 = arith.constant 0 : index
    %c0_5 = arith.constant 0 : index
    %2 = vector.load %arg0[%c0_3, %c0_4, %c0_5] : memref<6x2x8xf32, #tpu.memory_space<vmem>>, vector<1x2x8xf32>
    %3 = vector.shape_cast %2 : vector<1x2x8xf32> to vector<2x8xf32>
    %cst = arith.constant dense<0.000000e+00> : vector<2x16xf32>
    %4 = tpu.matmul %3, %0, %cst {dimension_numbers = #tpu.dot_dimension_numbers<[1], [0], [0], [1], [0, 0, 1, 1], [], []>} : vector<2x8xf32>, vector<8x16xf32>, vector<2x16xf32> -> vector<2x16xf32>
    %5 = vector.broadcast %1 : vector<1x16xf32> to vector<2x16xf32>
    %6 = arith.addf %4, %5 : vector<2x16xf32>
    %cst_6 = arith.constant 0.000000e+00 : f32
    %7 = vector.broadcast %cst_6 : f32 to vector<2x16xf32>
    %8 = arith.maximumf %6, %7 : vector<2x16xf32>
    %c1 = arith.constant 1 : index
    %c0_7 = arith.constant 0 : index
    %c0_8 = arith.constant 0 : index
    %9 = vector.load %arg0[%c1, %c0_7, %c0_8] : memref<6x2x8xf32, #tpu.memory_space<vmem>>, vector<1x2x8xf32>
    %10 = vector.shape_cast %9 : vector<1x2x8xf32> to vector<2x8xf32>
    %cst_9 = arith.constant dense<0.000000e+00> : vector<2x16xf32>
    %11 = tpu.matmul %10, %0, %cst_9 {dimension_numbers = #tpu.dot_dimension_numbers<[1], [0], [0], [1], [0, 0, 1, 1], [], []>} : vector<2x8xf32>, vector<8x16xf32>, vector<2x16xf32> -> vector<2x16xf32>
    %12 = vector.broadcast %1 : vector<1x16xf32> to vector<2x16xf32>
    %13 = arith.addf %11, %12 : vector<2x16xf32>
    %cst_10 = arith.constant 0.000000e+00 : f32
    %14 = vector.broadcast %cst_10 : f32 to vector<2x16xf32>
    %15 = arith.maximumf %13, %14 : vector<2x16xf32>
    %c2 = arith.constant 2 : index
    %c0_11 = arith.constant 0 : index
    %c0_12 = arith.constant 0 : index
    %16 = vector.load %arg0[%c2, %c0_11, %c0_12] : memref<6x2x8xf32, #tpu.memory_space<vmem>>, vector<1x2x8xf32>
    %17 = vector.shape_cast %16 : vector<1x2x8xf32> to vector<2x8xf32>
    %cst_13 = arith.constant dense<0.000000e+00> : vector<2x16xf32>
    %18 = tpu.matmul %17, %0, %cst_13 {dimension_numbers = #tpu.dot_dimension_numbers<[1], [0], [0], [1], [0, 0, 1, 1], [], []>} : vector<2x8xf32>, vector<8x16xf32>, vector<2x16xf32> -> vector<2x16xf32>
    %19 = vector.broadcast %1 : vector<1x16xf32> to vector<2x16xf32>
    %20 = arith.addf %18, %19 : vector<2x16xf32>
    %cst_14 = arith.constant 0.000000e+00 : f32
    %21 = vector.broadcast %cst_14 : f32 to vector<2x16xf32>
    %22 = arith.maximumf %20, %21 : vector<2x16xf32>
    %c3 = arith.constant 3 : index
    %c0_15 = arith.constant 0 : index
    %c0_16 = arith.constant 0 : index
    %23 = vector.load %arg0[%c3, %c0_15, %c0_16] : memref<6x2x8xf32, #tpu.memory_space<vmem>>, vector<1x2x8xf32>
    %24 = vector.shape_cast %23 : vector<1x2x8xf32> to vector<2x8xf32>
    %cst_17 = arith.constant dense<0.000000e+00> : vector<2x16xf32>
    %25 = tpu.matmul %24, %0, %cst_17 {dimension_numbers = #tpu.dot_dimension_numbers<[1], [0], [0], [1], [0, 0, 1, 1], [], []>} : vector<2x8xf32>, vector<8x16xf32>, vector<2x16xf32> -> vector<2x16xf32>
    %26 = vector.broadcast %1 : vector<1x16xf32> to vector<2x16xf32>
    %27 = arith.addf %25, %26 : vector<2x16xf32>
    %cst_18 = arith.constant 0.000000e+00 : f32
    %28 = vector.broadcast %cst_18 : f32 to vector<2x16xf32>
    %29 = arith.maximumf %27, %28 : vector<2x16xf32>
    %c4 = arith.constant 4 : index
    %c0_19 = arith.constant 0 : index
    %c0_20 = arith.constant 0 : index
    %30 = vector.load %arg0[%c4, %c0_19, %c0_20] : memref<6x2x8xf32, #tpu.memory_space<vmem>>, vector<1x2x8xf32>
    %31 = vector.shape_cast %30 : vector<1x2x8xf32> to vector<2x8xf32>
    %cst_21 = arith.constant dense<0.000000e+00> : vector<2x16xf32>
    %32 = tpu.matmul %31, %0, %cst_21 {dimension_numbers = #tpu.dot_dimension_numbers<[1], [0], [0], [1], [0, 0, 1, 1], [], []>} : vector<2x8xf32>, vector<8x16xf32>, vector<2x16xf32> -> vector<2x16xf32>
    %33 = vector.broadcast %1 : vector<1x16xf32> to vector<2x16xf32>
    %34 = arith.addf %32, %33 : vector<2x16xf32>
    %cst_22 = arith.constant 0.000000e+00 : f32
    %35 = vector.broadcast %cst_22 : f32 to vector<2x16xf32>
    %36 = arith.maximumf %34, %35 : vector<2x16xf32>
    %c5 = arith.constant 5 : index
    %c0_23 = arith.constant 0 : index
    %c0_24 = arith.constant 0 : index
    %37 = vector.load %arg0[%c5, %c0_23, %c0_24] : memref<6x2x8xf32, #tpu.memory_space<vmem>>, vector<1x2x8xf32>
    %38 = vector.shape_cast %37 : vector<1x2x8xf32> to vector<2x8xf32>
    %cst_25 = arith.constant dense<0.000000e+00> : vector<2x16xf32>
    %39 = tpu.matmul %38, %0, %cst_25 {dimension_numbers = #tpu.dot_dimension_numbers<[1], [0], [0], [1], [0, 0, 1, 1], [], []>} : vector<2x8xf32>, vector<8x16xf32>, vector<2x16xf32> -> vector<2x16xf32>
    %40 = vector.broadcast %1 : vector<1x16xf32> to vector<2x16xf32>
    %41 = arith.addf %39, %40 : vector<2x16xf32>
    %cst_26 = arith.constant 0.000000e+00 : f32
    %42 = vector.broadcast %cst_26 : f32 to vector<2x16xf32>
    %43 = arith.maximumf %41, %42 : vector<2x16xf32>
    %cst_27 = arith.constant 0.000000e+00 : f32
    %44 = vector.broadcast %cst_27 : f32 to vector<2x128xf32>
    %cst_28 = arith.constant 0.000000e+00 : f32
    %45 = vector.broadcast %cst_28 : f32 to vector<2x128xf32>
    %c0_29 = arith.constant 0 : index
    %c0_30 = arith.constant 0 : index
    %46 = vector.load %arg7[%c0_29, %c0_30] : memref<1x384xf32, #tpu.memory_space<vmem>>, vector<1x384xf32>
    %c0_31 = arith.constant 0 : index
    %c0_32 = arith.constant 0 : index
    %47 = vector.load %arg8[%c0_31, %c0_32] : memref<1x384xf32, #tpu.memory_space<vmem>>, vector<1x384xf32>
    %c0_33 = arith.constant 0 : index
    %c0_34 = arith.constant 0 : index
    %48 = vector.load %arg5[%c0_33, %c0_34] : memref<16x384xf32, #tpu.memory_space<vmem>>, vector<16x384xf32>
    %cst_35 = arith.constant dense<0.000000e+00> : vector<2x384xf32>
    %49 = tpu.matmul %8, %48, %cst_35 {dimension_numbers = #tpu.dot_dimension_numbers<[1], [0], [0], [1], [0, 0, 1, 1], [], []>} : vector<2x16xf32>, vector<16x384xf32>, vector<2x384xf32> -> vector<2x384xf32>
    %50 = vector.broadcast %46 : vector<1x384xf32> to vector<2x384xf32>
    %51 = arith.addf %49, %50 : vector<2x384xf32>
    %c0_36 = arith.constant 0 : index
    %c0_37 = arith.constant 0 : index
    %52 = vector.load %arg6[%c0_36, %c0_37] : memref<128x384xf32, #tpu.memory_space<vmem>>, vector<128x384xf32>
    %cst_38 = arith.constant dense<0.000000e+00> : vector<2x384xf32>
    %53 = tpu.matmul %44, %52, %cst_38 {dimension_numbers = #tpu.dot_dimension_numbers<[1], [0], [0], [1], [0, 0, 1, 1], [], []>} : vector<2x128xf32>, vector<128x384xf32>, vector<2x384xf32> -> vector<2x384xf32>
    %54 = vector.broadcast %47 : vector<1x384xf32> to vector<2x384xf32>
    %55 = arith.addf %53, %54 : vector<2x384xf32>
    %56 = vector.extract_strided_slice %51 {offsets = [0, 0], sizes = [2, 128], strides = [1, 1]} : vector<2x384xf32> to vector<2x128xf32>
    %57 = vector.extract_strided_slice %55 {offsets = [0, 0], sizes = [2, 128], strides = [1, 1]} : vector<2x384xf32> to vector<2x128xf32>
    %58 = arith.addf %56, %57 : vector<2x128xf32>
    %59 = arith.negf %58 : vector<2x128xf32>
    %60 = math.exp %59 : vector<2x128xf32>
    %cst_39 = arith.constant 1.000000e+00 : f32
    %61 = vector.broadcast %cst_39 : f32 to vector<2x128xf32>
    %62 = arith.addf %61, %60 : vector<2x128xf32>
    %63 = arith.divf %61, %62 : vector<2x128xf32>
    %64 = vector.extract_strided_slice %51 {offsets = [0, 128], sizes = [2, 128], strides = [1, 1]} : vector<2x384xf32> to vector<2x128xf32>
    %65 = vector.extract_strided_slice %55 {offsets = [0, 128], sizes = [2, 128], strides = [1, 1]} : vector<2x384xf32> to vector<2x128xf32>
    %66 = arith.addf %64, %65 : vector<2x128xf32>
    %67 = arith.negf %66 : vector<2x128xf32>
    %68 = math.exp %67 : vector<2x128xf32>
    %cst_40 = arith.constant 1.000000e+00 : f32
    %69 = vector.broadcast %cst_40 : f32 to vector<2x128xf32>
    %70 = arith.addf %69, %68 : vector<2x128xf32>
    %71 = arith.divf %69, %70 : vector<2x128xf32>
    %72 = vector.extract_strided_slice %51 {offsets = [0, 256], sizes = [2, 128], strides = [1, 1]} : vector<2x384xf32> to vector<2x128xf32>
    %73 = vector.extract_strided_slice %55 {offsets = [0, 256], sizes = [2, 128], strides = [1, 1]} : vector<2x384xf32> to vector<2x128xf32>
    %74 = arith.mulf %63, %73 : vector<2x128xf32>
    %75 = arith.addf %72, %74 : vector<2x128xf32>
    %76 = math.tanh %75 : vector<2x128xf32>
    %cst_41 = arith.constant 1.000000e+00 : f32
    %77 = vector.broadcast %cst_41 : f32 to vector<2x128xf32>
    %78 = arith.subf %77, %71 : vector<2x128xf32>
    %79 = arith.mulf %78, %76 : vector<2x128xf32>
    %80 = arith.mulf %71, %44 : vector<2x128xf32>
    %81 = arith.addf %79, %80 : vector<2x128xf32>
    %c0_42 = arith.constant 0 : index
    %c0_43 = arith.constant 0 : index
    %82 = vector.load %arg5[%c0_42, %c0_43] : memref<16x384xf32, #tpu.memory_space<vmem>>, vector<16x384xf32>
    %cst_44 = arith.constant dense<0.000000e+00> : vector<2x384xf32>
    %83 = tpu.matmul %15, %82, %cst_44 {dimension_numbers = #tpu.dot_dimension_numbers<[1], [0], [0], [1], [0, 0, 1, 1], [], []>} : vector<2x16xf32>, vector<16x384xf32>, vector<2x384xf32> -> vector<2x384xf32>
    %84 = vector.broadcast %46 : vector<1x384xf32> to vector<2x384xf32>
    %85 = arith.addf %83, %84 : vector<2x384xf32>
    %c0_45 = arith.constant 0 : index
    %c0_46 = arith.constant 0 : index
    %86 = vector.load %arg6[%c0_45, %c0_46] : memref<128x384xf32, #tpu.memory_space<vmem>>, vector<128x384xf32>
    %cst_47 = arith.constant dense<0.000000e+00> : vector<2x384xf32>
    %87 = tpu.matmul %81, %86, %cst_47 {dimension_numbers = #tpu.dot_dimension_numbers<[1], [0], [0], [1], [0, 0, 1, 1], [], []>} : vector<2x128xf32>, vector<128x384xf32>, vector<2x384xf32> -> vector<2x384xf32>
    %88 = vector.broadcast %47 : vector<1x384xf32> to vector<2x384xf32>
    %89 = arith.addf %87, %88 : vector<2x384xf32>
    %90 = vector.extract_strided_slice %85 {offsets = [0, 0], sizes = [2, 128], strides = [1, 1]} : vector<2x384xf32> to vector<2x128xf32>
    %91 = vector.extract_strided_slice %89 {offsets = [0, 0], sizes = [2, 128], strides = [1, 1]} : vector<2x384xf32> to vector<2x128xf32>
    %92 = arith.addf %90, %91 : vector<2x128xf32>
    %93 = arith.negf %92 : vector<2x128xf32>
    %94 = math.exp %93 : vector<2x128xf32>
    %cst_48 = arith.constant 1.000000e+00 : f32
    %95 = vector.broadcast %cst_48 : f32 to vector<2x128xf32>
    %96 = arith.addf %95, %94 : vector<2x128xf32>
    %97 = arith.divf %95, %96 : vector<2x128xf32>
    %98 = vector.extract_strided_slice %85 {offsets = [0, 128], sizes = [2, 128], strides = [1, 1]} : vector<2x384xf32> to vector<2x128xf32>
    %99 = vector.extract_strided_slice %89 {offsets = [0, 128], sizes = [2, 128], strides = [1, 1]} : vector<2x384xf32> to vector<2x128xf32>
    %100 = arith.addf %98, %99 : vector<2x128xf32>
    %101 = arith.negf %100 : vector<2x128xf32>
    %102 = math.exp %101 : vector<2x128xf32>
    %cst_49 = arith.constant 1.000000e+00 : f32
    %103 = vector.broadcast %cst_49 : f32 to vector<2x128xf32>
    %104 = arith.addf %103, %102 : vector<2x128xf32>
    %105 = arith.divf %103, %104 : vector<2x128xf32>
    %106 = vector.extract_strided_slice %85 {offsets = [0, 256], sizes = [2, 128], strides = [1, 1]} : vector<2x384xf32> to vector<2x128xf32>
    %107 = vector.extract_strided_slice %89 {offsets = [0, 256], sizes = [2, 128], strides = [1, 1]} : vector<2x384xf32> to vector<2x128xf32>
    %108 = arith.mulf %97, %107 : vector<2x128xf32>
    %109 = arith.addf %106, %108 : vector<2x128xf32>
    %110 = math.tanh %109 : vector<2x128xf32>
    %cst_50 = arith.constant 1.000000e+00 : f32
    %111 = vector.broadcast %cst_50 : f32 to vector<2x128xf32>
    %112 = arith.subf %111, %105 : vector<2x128xf32>
    %113 = arith.mulf %112, %110 : vector<2x128xf32>
    %114 = arith.mulf %105, %81 : vector<2x128xf32>
    %115 = arith.addf %113, %114 : vector<2x128xf32>
    %c0_51 = arith.constant 0 : index
    %c0_52 = arith.constant 0 : index
    %116 = vector.load %arg5[%c0_51, %c0_52] : memref<16x384xf32, #tpu.memory_space<vmem>>, vector<16x384xf32>
    %cst_53 = arith.constant dense<0.000000e+00> : vector<2x384xf32>
    %117 = tpu.matmul %22, %116, %cst_53 {dimension_numbers = #tpu.dot_dimension_numbers<[1], [0], [0], [1], [0, 0, 1, 1], [], []>} : vector<2x16xf32>, vector<16x384xf32>, vector<2x384xf32> -> vector<2x384xf32>
    %118 = vector.broadcast %46 : vector<1x384xf32> to vector<2x384xf32>
    %119 = arith.addf %117, %118 : vector<2x384xf32>
    %c0_54 = arith.constant 0 : index
    %c0_55 = arith.constant 0 : index
    %120 = vector.load %arg6[%c0_54, %c0_55] : memref<128x384xf32, #tpu.memory_space<vmem>>, vector<128x384xf32>
    %cst_56 = arith.constant dense<0.000000e+00> : vector<2x384xf32>
    %121 = tpu.matmul %115, %120, %cst_56 {dimension_numbers = #tpu.dot_dimension_numbers<[1], [0], [0], [1], [0, 0, 1, 1], [], []>} : vector<2x128xf32>, vector<128x384xf32>, vector<2x384xf32> -> vector<2x384xf32>
    %122 = vector.broadcast %47 : vector<1x384xf32> to vector<2x384xf32>
    %123 = arith.addf %121, %122 : vector<2x384xf32>
    %124 = vector.extract_strided_slice %119 {offsets = [0, 0], sizes = [2, 128], strides = [1, 1]} : vector<2x384xf32> to vector<2x128xf32>
    %125 = vector.extract_strided_slice %123 {offsets = [0, 0], sizes = [2, 128], strides = [1, 1]} : vector<2x384xf32> to vector<2x128xf32>
    %126 = arith.addf %124, %125 : vector<2x128xf32>
    %127 = arith.negf %126 : vector<2x128xf32>
    %128 = math.exp %127 : vector<2x128xf32>
    %cst_57 = arith.constant 1.000000e+00 : f32
    %129 = vector.broadcast %cst_57 : f32 to vector<2x128xf32>
    %130 = arith.addf %129, %128 : vector<2x128xf32>
    %131 = arith.divf %129, %130 : vector<2x128xf32>
    %132 = vector.extract_strided_slice %119 {offsets = [0, 128], sizes = [2, 128], strides = [1, 1]} : vector<2x384xf32> to vector<2x128xf32>
    %133 = vector.extract_strided_slice %123 {offsets = [0, 128], sizes = [2, 128], strides = [1, 1]} : vector<2x384xf32> to vector<2x128xf32>
    %134 = arith.addf %132, %133 : vector<2x128xf32>
    %135 = arith.negf %134 : vector<2x128xf32>
    %136 = math.exp %135 : vector<2x128xf32>
    %cst_58 = arith.constant 1.000000e+00 : f32
    %137 = vector.broadcast %cst_58 : f32 to vector<2x128xf32>
    %138 = arith.addf %137, %136 : vector<2x128xf32>
    %139 = arith.divf %137, %138 : vector<2x128xf32>
    %140 = vector.extract_strided_slice %119 {offsets = [0, 256], sizes = [2, 128], strides = [1, 1]} : vector<2x384xf32> to vector<2x128xf32>
    %141 = vector.extract_strided_slice %123 {offsets = [0, 256], sizes = [2, 128], strides = [1, 1]} : vector<2x384xf32> to vector<2x128xf32>
    %142 = arith.mulf %131, %141 : vector<2x128xf32>
    %143 = arith.addf %140, %142 : vector<2x128xf32>
    %144 = math.tanh %143 : vector<2x128xf32>
    %cst_59 = arith.constant 1.000000e+00 : f32
    %145 = vector.broadcast %cst_59 : f32 to vector<2x128xf32>
    %146 = arith.subf %145, %139 : vector<2x128xf32>
    %147 = arith.mulf %146, %144 : vector<2x128xf32>
    %148 = arith.mulf %139, %115 : vector<2x128xf32>
    %149 = arith.addf %147, %148 : vector<2x128xf32>
    %c0_60 = arith.constant 0 : index
    %c0_61 = arith.constant 0 : index
    %150 = vector.load %arg5[%c0_60, %c0_61] : memref<16x384xf32, #tpu.memory_space<vmem>>, vector<16x384xf32>
    %cst_62 = arith.constant dense<0.000000e+00> : vector<2x384xf32>
    %151 = tpu.matmul %29, %150, %cst_62 {dimension_numbers = #tpu.dot_dimension_numbers<[1], [0], [0], [1], [0, 0, 1, 1], [], []>} : vector<2x16xf32>, vector<16x384xf32>, vector<2x384xf32> -> vector<2x384xf32>
    %152 = vector.broadcast %46 : vector<1x384xf32> to vector<2x384xf32>
    %153 = arith.addf %151, %152 : vector<2x384xf32>
    %c0_63 = arith.constant 0 : index
    %c0_64 = arith.constant 0 : index
    %154 = vector.load %arg6[%c0_63, %c0_64] : memref<128x384xf32, #tpu.memory_space<vmem>>, vector<128x384xf32>
    %cst_65 = arith.constant dense<0.000000e+00> : vector<2x384xf32>
    %155 = tpu.matmul %149, %154, %cst_65 {dimension_numbers = #tpu.dot_dimension_numbers<[1], [0], [0], [1], [0, 0, 1, 1], [], []>} : vector<2x128xf32>, vector<128x384xf32>, vector<2x384xf32> -> vector<2x384xf32>
    %156 = vector.broadcast %47 : vector<1x384xf32> to vector<2x384xf32>
    %157 = arith.addf %155, %156 : vector<2x384xf32>
    %158 = vector.extract_strided_slice %153 {offsets = [0, 0], sizes = [2, 128], strides = [1, 1]} : vector<2x384xf32> to vector<2x128xf32>
    %159 = vector.extract_strided_slice %157 {offsets = [0, 0], sizes = [2, 128], strides = [1, 1]} : vector<2x384xf32> to vector<2x128xf32>
    %160 = arith.addf %158, %159 : vector<2x128xf32>
    %161 = arith.negf %160 : vector<2x128xf32>
    %162 = math.exp %161 : vector<2x128xf32>
    %cst_66 = arith.constant 1.000000e+00 : f32
    %163 = vector.broadcast %cst_66 : f32 to vector<2x128xf32>
    %164 = arith.addf %163, %162 : vector<2x128xf32>
    %165 = arith.divf %163, %164 : vector<2x128xf32>
    %166 = vector.extract_strided_slice %153 {offsets = [0, 128], sizes = [2, 128], strides = [1, 1]} : vector<2x384xf32> to vector<2x128xf32>
    %167 = vector.extract_strided_slice %157 {offsets = [0, 128], sizes = [2, 128], strides = [1, 1]} : vector<2x384xf32> to vector<2x128xf32>
    %168 = arith.addf %166, %167 : vector<2x128xf32>
    %169 = arith.negf %168 : vector<2x128xf32>
    %170 = math.exp %169 : vector<2x128xf32>
    %cst_67 = arith.constant 1.000000e+00 : f32
    %171 = vector.broadcast %cst_67 : f32 to vector<2x128xf32>
    %172 = arith.addf %171, %170 : vector<2x128xf32>
    %173 = arith.divf %171, %172 : vector<2x128xf32>
    %174 = vector.extract_strided_slice %153 {offsets = [0, 256], sizes = [2, 128], strides = [1, 1]} : vector<2x384xf32> to vector<2x128xf32>
    %175 = vector.extract_strided_slice %157 {offsets = [0, 256], sizes = [2, 128], strides = [1, 1]} : vector<2x384xf32> to vector<2x128xf32>
    %176 = arith.mulf %165, %175 : vector<2x128xf32>
    %177 = arith.addf %174, %176 : vector<2x128xf32>
    %178 = math.tanh %177 : vector<2x128xf32>
    %cst_68 = arith.constant 1.000000e+00 : f32
    %179 = vector.broadcast %cst_68 : f32 to vector<2x128xf32>
    %180 = arith.subf %179, %173 : vector<2x128xf32>
    %181 = arith.mulf %180, %178 : vector<2x128xf32>
    %182 = arith.mulf %173, %149 : vector<2x128xf32>
    %183 = arith.addf %181, %182 : vector<2x128xf32>
    %c0_69 = arith.constant 0 : index
    %c0_70 = arith.constant 0 : index
    %184 = vector.load %arg5[%c0_69, %c0_70] : memref<16x384xf32, #tpu.memory_space<vmem>>, vector<16x384xf32>
    %cst_71 = arith.constant dense<0.000000e+00> : vector<2x384xf32>
    %185 = tpu.matmul %36, %184, %cst_71 {dimension_numbers = #tpu.dot_dimension_numbers<[1], [0], [0], [1], [0, 0, 1, 1], [], []>} : vector<2x16xf32>, vector<16x384xf32>, vector<2x384xf32> -> vector<2x384xf32>
    %186 = vector.broadcast %46 : vector<1x384xf32> to vector<2x384xf32>
    %187 = arith.addf %185, %186 : vector<2x384xf32>
    %c0_72 = arith.constant 0 : index
    %c0_73 = arith.constant 0 : index
    %188 = vector.load %arg6[%c0_72, %c0_73] : memref<128x384xf32, #tpu.memory_space<vmem>>, vector<128x384xf32>
    %cst_74 = arith.constant dense<0.000000e+00> : vector<2x384xf32>
    %189 = tpu.matmul %183, %188, %cst_74 {dimension_numbers = #tpu.dot_dimension_numbers<[1], [0], [0], [1], [0, 0, 1, 1], [], []>} : vector<2x128xf32>, vector<128x384xf32>, vector<2x384xf32> -> vector<2x384xf32>
    %190 = vector.broadcast %47 : vector<1x384xf32> to vector<2x384xf32>
    %191 = arith.addf %189, %190 : vector<2x384xf32>
    %192 = vector.extract_strided_slice %187 {offsets = [0, 0], sizes = [2, 128], strides = [1, 1]} : vector<2x384xf32> to vector<2x128xf32>
    %193 = vector.extract_strided_slice %191 {offsets = [0, 0], sizes = [2, 128], strides = [1, 1]} : vector<2x384xf32> to vector<2x128xf32>
    %194 = arith.addf %192, %193 : vector<2x128xf32>
    %195 = arith.negf %194 : vector<2x128xf32>
    %196 = math.exp %195 : vector<2x128xf32>
    %cst_75 = arith.constant 1.000000e+00 : f32
    %197 = vector.broadcast %cst_75 : f32 to vector<2x128xf32>
    %198 = arith.addf %197, %196 : vector<2x128xf32>
    %199 = arith.divf %197, %198 : vector<2x128xf32>
    %200 = vector.extract_strided_slice %187 {offsets = [0, 128], sizes = [2, 128], strides = [1, 1]} : vector<2x384xf32> to vector<2x128xf32>
    %201 = vector.extract_strided_slice %191 {offsets = [0, 128], sizes = [2, 128], strides = [1, 1]} : vector<2x384xf32> to vector<2x128xf32>
    %202 = arith.addf %200, %201 : vector<2x128xf32>
    %203 = arith.negf %202 : vector<2x128xf32>
    %204 = math.exp %203 : vector<2x128xf32>
    %cst_76 = arith.constant 1.000000e+00 : f32
    %205 = vector.broadcast %cst_76 : f32 to vector<2x128xf32>
    %206 = arith.addf %205, %204 : vector<2x128xf32>
    %207 = arith.divf %205, %206 : vector<2x128xf32>
    %208 = vector.extract_strided_slice %187 {offsets = [0, 256], sizes = [2, 128], strides = [1, 1]} : vector<2x384xf32> to vector<2x128xf32>
    %209 = vector.extract_strided_slice %191 {offsets = [0, 256], sizes = [2, 128], strides = [1, 1]} : vector<2x384xf32> to vector<2x128xf32>
    %210 = arith.mulf %199, %209 : vector<2x128xf32>
    %211 = arith.addf %208, %210 : vector<2x128xf32>
    %212 = math.tanh %211 : vector<2x128xf32>
    %cst_77 = arith.constant 1.000000e+00 : f32
    %213 = vector.broadcast %cst_77 : f32 to vector<2x128xf32>
    %214 = arith.subf %213, %207 : vector<2x128xf32>
    %215 = arith.mulf %214, %212 : vector<2x128xf32>
    %216 = arith.mulf %207, %183 : vector<2x128xf32>
    %217 = arith.addf %215, %216 : vector<2x128xf32>
    %c0_78 = arith.constant 0 : index
    %c0_79 = arith.constant 0 : index
    %218 = vector.load %arg5[%c0_78, %c0_79] : memref<16x384xf32, #tpu.memory_space<vmem>>, vector<16x384xf32>
    %cst_80 = arith.constant dense<0.000000e+00> : vector<2x384xf32>
    %219 = tpu.matmul %43, %218, %cst_80 {dimension_numbers = #tpu.dot_dimension_numbers<[1], [0], [0], [1], [0, 0, 1, 1], [], []>} : vector<2x16xf32>, vector<16x384xf32>, vector<2x384xf32> -> vector<2x384xf32>
    %220 = vector.broadcast %46 : vector<1x384xf32> to vector<2x384xf32>
    %221 = arith.addf %219, %220 : vector<2x384xf32>
    %c0_81 = arith.constant 0 : index
    %c0_82 = arith.constant 0 : index
    %222 = vector.load %arg6[%c0_81, %c0_82] : memref<128x384xf32, #tpu.memory_space<vmem>>, vector<128x384xf32>
    %cst_83 = arith.constant dense<0.000000e+00> : vector<2x384xf32>
    %223 = tpu.matmul %217, %222, %cst_83 {dimension_numbers = #tpu.dot_dimension_numbers<[1], [0], [0], [1], [0, 0, 1, 1], [], []>} : vector<2x128xf32>, vector<128x384xf32>, vector<2x384xf32> -> vector<2x384xf32>
    %224 = vector.broadcast %47 : vector<1x384xf32> to vector<2x384xf32>
    %225 = arith.addf %223, %224 : vector<2x384xf32>
    %226 = vector.extract_strided_slice %221 {offsets = [0, 0], sizes = [2, 128], strides = [1, 1]} : vector<2x384xf32> to vector<2x128xf32>
    %227 = vector.extract_strided_slice %225 {offsets = [0, 0], sizes = [2, 128], strides = [1, 1]} : vector<2x384xf32> to vector<2x128xf32>
    %228 = arith.addf %226, %227 : vector<2x128xf32>
    %229 = arith.negf %228 : vector<2x128xf32>
    %230 = math.exp %229 : vector<2x128xf32>
    %cst_84 = arith.constant 1.000000e+00 : f32
    %231 = vector.broadcast %cst_84 : f32 to vector<2x128xf32>
    %232 = arith.addf %231, %230 : vector<2x128xf32>
    %233 = arith.divf %231, %232 : vector<2x128xf32>
    %234 = vector.extract_strided_slice %221 {offsets = [0, 128], sizes = [2, 128], strides = [1, 1]} : vector<2x384xf32> to vector<2x128xf32>
    %235 = vector.extract_strided_slice %225 {offsets = [0, 128], sizes = [2, 128], strides = [1, 1]} : vector<2x384xf32> to vector<2x128xf32>
    %236 = arith.addf %234, %235 : vector<2x128xf32>
    %237 = arith.negf %236 : vector<2x128xf32>
    %238 = math.exp %237 : vector<2x128xf32>
    %cst_85 = arith.constant 1.000000e+00 : f32
    %239 = vector.broadcast %cst_85 : f32 to vector<2x128xf32>
    %240 = arith.addf %239, %238 : vector<2x128xf32>
    %241 = arith.divf %239, %240 : vector<2x128xf32>
    %242 = vector.extract_strided_slice %221 {offsets = [0, 256], sizes = [2, 128], strides = [1, 1]} : vector<2x384xf32> to vector<2x128xf32>
    %243 = vector.extract_strided_slice %225 {offsets = [0, 256], sizes = [2, 128], strides = [1, 1]} : vector<2x384xf32> to vector<2x128xf32>
    %244 = arith.mulf %233, %243 : vector<2x128xf32>
    %245 = arith.addf %242, %244 : vector<2x128xf32>
    %246 = math.tanh %245 : vector<2x128xf32>
    %cst_86 = arith.constant 1.000000e+00 : f32
    %247 = vector.broadcast %cst_86 : f32 to vector<2x128xf32>
    %248 = arith.subf %247, %241 : vector<2x128xf32>
    %249 = arith.mulf %248, %246 : vector<2x128xf32>
    %250 = arith.mulf %241, %217 : vector<2x128xf32>
    %251 = arith.addf %249, %250 : vector<2x128xf32>
    %c0_87 = arith.constant 0 : index
    %c0_88 = arith.constant 0 : index
    %252 = vector.load %arg11[%c0_87, %c0_88] : memref<1x384xf32, #tpu.memory_space<vmem>>, vector<1x384xf32>
    %c0_89 = arith.constant 0 : index
    %c0_90 = arith.constant 0 : index
    %253 = vector.load %arg12[%c0_89, %c0_90] : memref<1x384xf32, #tpu.memory_space<vmem>>, vector<1x384xf32>
    %c0_91 = arith.constant 0 : index
    %c0_92 = arith.constant 0 : index
    %254 = vector.load %arg9[%c0_91, %c0_92] : memref<128x384xf32, #tpu.memory_space<vmem>>, vector<128x384xf32>
    %cst_93 = arith.constant dense<0.000000e+00> : vector<2x384xf32>
    %255 = tpu.matmul %81, %254, %cst_93 {dimension_numbers = #tpu.dot_dimension_numbers<[1], [0], [0], [1], [0, 0, 1, 1], [], []>} : vector<2x128xf32>, vector<128x384xf32>, vector<2x384xf32> -> vector<2x384xf32>
    %256 = vector.broadcast %252 : vector<1x384xf32> to vector<2x384xf32>
    %257 = arith.addf %255, %256 : vector<2x384xf32>
    %c0_94 = arith.constant 0 : index
    %c0_95 = arith.constant 0 : index
    %258 = vector.load %arg10[%c0_94, %c0_95] : memref<128x384xf32, #tpu.memory_space<vmem>>, vector<128x384xf32>
    %cst_96 = arith.constant dense<0.000000e+00> : vector<2x384xf32>
    %259 = tpu.matmul %45, %258, %cst_96 {dimension_numbers = #tpu.dot_dimension_numbers<[1], [0], [0], [1], [0, 0, 1, 1], [], []>} : vector<2x128xf32>, vector<128x384xf32>, vector<2x384xf32> -> vector<2x384xf32>
    %260 = vector.broadcast %253 : vector<1x384xf32> to vector<2x384xf32>
    %261 = arith.addf %259, %260 : vector<2x384xf32>
    %262 = vector.extract_strided_slice %257 {offsets = [0, 0], sizes = [2, 128], strides = [1, 1]} : vector<2x384xf32> to vector<2x128xf32>
    %263 = vector.extract_strided_slice %261 {offsets = [0, 0], sizes = [2, 128], strides = [1, 1]} : vector<2x384xf32> to vector<2x128xf32>
    %264 = arith.addf %262, %263 : vector<2x128xf32>
    %265 = arith.negf %264 : vector<2x128xf32>
    %266 = math.exp %265 : vector<2x128xf32>
    %cst_97 = arith.constant 1.000000e+00 : f32
    %267 = vector.broadcast %cst_97 : f32 to vector<2x128xf32>
    %268 = arith.addf %267, %266 : vector<2x128xf32>
    %269 = arith.divf %267, %268 : vector<2x128xf32>
    %270 = vector.extract_strided_slice %257 {offsets = [0, 128], sizes = [2, 128], strides = [1, 1]} : vector<2x384xf32> to vector<2x128xf32>
    %271 = vector.extract_strided_slice %261 {offsets = [0, 128], sizes = [2, 128], strides = [1, 1]} : vector<2x384xf32> to vector<2x128xf32>
    %272 = arith.addf %270, %271 : vector<2x128xf32>
    %273 = arith.negf %272 : vector<2x128xf32>
    %274 = math.exp %273 : vector<2x128xf32>
    %cst_98 = arith.constant 1.000000e+00 : f32
    %275 = vector.broadcast %cst_98 : f32 to vector<2x128xf32>
    %276 = arith.addf %275, %274 : vector<2x128xf32>
    %277 = arith.divf %275, %276 : vector<2x128xf32>
    %278 = vector.extract_strided_slice %257 {offsets = [0, 256], sizes = [2, 128], strides = [1, 1]} : vector<2x384xf32> to vector<2x128xf32>
    %279 = vector.extract_strided_slice %261 {offsets = [0, 256], sizes = [2, 128], strides = [1, 1]} : vector<2x384xf32> to vector<2x128xf32>
    %280 = arith.mulf %269, %279 : vector<2x128xf32>
    %281 = arith.addf %278, %280 : vector<2x128xf32>
    %282 = math.tanh %281 : vector<2x128xf32>
    %cst_99 = arith.constant 1.000000e+00 : f32
    %283 = vector.broadcast %cst_99 : f32 to vector<2x128xf32>
    %284 = arith.subf %283, %277 : vector<2x128xf32>
    %285 = arith.mulf %284, %282 : vector<2x128xf32>
    %286 = arith.mulf %277, %45 : vector<2x128xf32>
    %287 = arith.addf %285, %286 : vector<2x128xf32>
    %c0_100 = arith.constant 0 : index
    %c0_101 = arith.constant 0 : index
    %288 = vector.load %arg9[%c0_100, %c0_101] : memref<128x384xf32, #tpu.memory_space<vmem>>, vector<128x384xf32>
    %cst_102 = arith.constant dense<0.000000e+00> : vector<2x384xf32>
    %289 = tpu.matmul %115, %288, %cst_102 {dimension_numbers = #tpu.dot_dimension_numbers<[1], [0], [0], [1], [0, 0, 1, 1], [], []>} : vector<2x128xf32>, vector<128x384xf32>, vector<2x384xf32> -> vector<2x384xf32>
    %290 = vector.broadcast %252 : vector<1x384xf32> to vector<2x384xf32>
    %291 = arith.addf %289, %290 : vector<2x384xf32>
    %c0_103 = arith.constant 0 : index
    %c0_104 = arith.constant 0 : index
    %292 = vector.load %arg10[%c0_103, %c0_104] : memref<128x384xf32, #tpu.memory_space<vmem>>, vector<128x384xf32>
    %cst_105 = arith.constant dense<0.000000e+00> : vector<2x384xf32>
    %293 = tpu.matmul %287, %292, %cst_105 {dimension_numbers = #tpu.dot_dimension_numbers<[1], [0], [0], [1], [0, 0, 1, 1], [], []>} : vector<2x128xf32>, vector<128x384xf32>, vector<2x384xf32> -> vector<2x384xf32>
    %294 = vector.broadcast %253 : vector<1x384xf32> to vector<2x384xf32>
    %295 = arith.addf %293, %294 : vector<2x384xf32>
    %296 = vector.extract_strided_slice %291 {offsets = [0, 0], sizes = [2, 128], strides = [1, 1]} : vector<2x384xf32> to vector<2x128xf32>
    %297 = vector.extract_strided_slice %295 {offsets = [0, 0], sizes = [2, 128], strides = [1, 1]} : vector<2x384xf32> to vector<2x128xf32>
    %298 = arith.addf %296, %297 : vector<2x128xf32>
    %299 = arith.negf %298 : vector<2x128xf32>
    %300 = math.exp %299 : vector<2x128xf32>
    %cst_106 = arith.constant 1.000000e+00 : f32
    %301 = vector.broadcast %cst_106 : f32 to vector<2x128xf32>
    %302 = arith.addf %301, %300 : vector<2x128xf32>
    %303 = arith.divf %301, %302 : vector<2x128xf32>
    %304 = vector.extract_strided_slice %291 {offsets = [0, 128], sizes = [2, 128], strides = [1, 1]} : vector<2x384xf32> to vector<2x128xf32>
    %305 = vector.extract_strided_slice %295 {offsets = [0, 128], sizes = [2, 128], strides = [1, 1]} : vector<2x384xf32> to vector<2x128xf32>
    %306 = arith.addf %304, %305 : vector<2x128xf32>
    %307 = arith.negf %306 : vector<2x128xf32>
    %308 = math.exp %307 : vector<2x128xf32>
    %cst_107 = arith.constant 1.000000e+00 : f32
    %309 = vector.broadcast %cst_107 : f32 to vector<2x128xf32>
    %310 = arith.addf %309, %308 : vector<2x128xf32>
    %311 = arith.divf %309, %310 : vector<2x128xf32>
    %312 = vector.extract_strided_slice %291 {offsets = [0, 256], sizes = [2, 128], strides = [1, 1]} : vector<2x384xf32> to vector<2x128xf32>
    %313 = vector.extract_strided_slice %295 {offsets = [0, 256], sizes = [2, 128], strides = [1, 1]} : vector<2x384xf32> to vector<2x128xf32>
    %314 = arith.mulf %303, %313 : vector<2x128xf32>
    %315 = arith.addf %312, %314 : vector<2x128xf32>
    %316 = math.tanh %315 : vector<2x128xf32>
    %cst_108 = arith.constant 1.000000e+00 : f32
    %317 = vector.broadcast %cst_108 : f32 to vector<2x128xf32>
    %318 = arith.subf %317, %311 : vector<2x128xf32>
    %319 = arith.mulf %318, %316 : vector<2x128xf32>
    %320 = arith.mulf %311, %287 : vector<2x128xf32>
    %321 = arith.addf %319, %320 : vector<2x128xf32>
    %c0_109 = arith.constant 0 : index
    %c0_110 = arith.constant 0 : index
    %322 = vector.load %arg9[%c0_109, %c0_110] : memref<128x384xf32, #tpu.memory_space<vmem>>, vector<128x384xf32>
    %cst_111 = arith.constant dense<0.000000e+00> : vector<2x384xf32>
    %323 = tpu.matmul %149, %322, %cst_111 {dimension_numbers = #tpu.dot_dimension_numbers<[1], [0], [0], [1], [0, 0, 1, 1], [], []>} : vector<2x128xf32>, vector<128x384xf32>, vector<2x384xf32> -> vector<2x384xf32>
    %324 = vector.broadcast %252 : vector<1x384xf32> to vector<2x384xf32>
    %325 = arith.addf %323, %324 : vector<2x384xf32>
    %c0_112 = arith.constant 0 : index
    %c0_113 = arith.constant 0 : index
    %326 = vector.load %arg10[%c0_112, %c0_113] : memref<128x384xf32, #tpu.memory_space<vmem>>, vector<128x384xf32>
    %cst_114 = arith.constant dense<0.000000e+00> : vector<2x384xf32>
    %327 = tpu.matmul %321, %326, %cst_114 {dimension_numbers = #tpu.dot_dimension_numbers<[1], [0], [0], [1], [0, 0, 1, 1], [], []>} : vector<2x128xf32>, vector<128x384xf32>, vector<2x384xf32> -> vector<2x384xf32>
    %328 = vector.broadcast %253 : vector<1x384xf32> to vector<2x384xf32>
    %329 = arith.addf %327, %328 : vector<2x384xf32>
    %330 = vector.extract_strided_slice %325 {offsets = [0, 0], sizes = [2, 128], strides = [1, 1]} : vector<2x384xf32> to vector<2x128xf32>
    %331 = vector.extract_strided_slice %329 {offsets = [0, 0], sizes = [2, 128], strides = [1, 1]} : vector<2x384xf32> to vector<2x128xf32>
    %332 = arith.addf %330, %331 : vector<2x128xf32>
    %333 = arith.negf %332 : vector<2x128xf32>
    %334 = math.exp %333 : vector<2x128xf32>
    %cst_115 = arith.constant 1.000000e+00 : f32
    %335 = vector.broadcast %cst_115 : f32 to vector<2x128xf32>
    %336 = arith.addf %335, %334 : vector<2x128xf32>
    %337 = arith.divf %335, %336 : vector<2x128xf32>
    %338 = vector.extract_strided_slice %325 {offsets = [0, 128], sizes = [2, 128], strides = [1, 1]} : vector<2x384xf32> to vector<2x128xf32>
    %339 = vector.extract_strided_slice %329 {offsets = [0, 128], sizes = [2, 128], strides = [1, 1]} : vector<2x384xf32> to vector<2x128xf32>
    %340 = arith.addf %338, %339 : vector<2x128xf32>
    %341 = arith.negf %340 : vector<2x128xf32>
    %342 = math.exp %341 : vector<2x128xf32>
    %cst_116 = arith.constant 1.000000e+00 : f32
    %343 = vector.broadcast %cst_116 : f32 to vector<2x128xf32>
    %344 = arith.addf %343, %342 : vector<2x128xf32>
    %345 = arith.divf %343, %344 : vector<2x128xf32>
    %346 = vector.extract_strided_slice %325 {offsets = [0, 256], sizes = [2, 128], strides = [1, 1]} : vector<2x384xf32> to vector<2x128xf32>
    %347 = vector.extract_strided_slice %329 {offsets = [0, 256], sizes = [2, 128], strides = [1, 1]} : vector<2x384xf32> to vector<2x128xf32>
    %348 = arith.mulf %337, %347 : vector<2x128xf32>
    %349 = arith.addf %346, %348 : vector<2x128xf32>
    %350 = math.tanh %349 : vector<2x128xf32>
    %cst_117 = arith.constant 1.000000e+00 : f32
    %351 = vector.broadcast %cst_117 : f32 to vector<2x128xf32>
    %352 = arith.subf %351, %345 : vector<2x128xf32>
    %353 = arith.mulf %352, %350 : vector<2x128xf32>
    %354 = arith.mulf %345, %321 : vector<2x128xf32>
    %355 = arith.addf %353, %354 : vector<2x128xf32>
    %c0_118 = arith.constant 0 : index
    %c0_119 = arith.constant 0 : index
    %356 = vector.load %arg9[%c0_118, %c0_119] : memref<128x384xf32, #tpu.memory_space<vmem>>, vector<128x384xf32>
    %cst_120 = arith.constant dense<0.000000e+00> : vector<2x384xf32>
    %357 = tpu.matmul %183, %356, %cst_120 {dimension_numbers = #tpu.dot_dimension_numbers<[1], [0], [0], [1], [0, 0, 1, 1], [], []>} : vector<2x128xf32>, vector<128x384xf32>, vector<2x384xf32> -> vector<2x384xf32>
    %358 = vector.broadcast %252 : vector<1x384xf32> to vector<2x384xf32>
    %359 = arith.addf %357, %358 : vector<2x384xf32>
    %c0_121 = arith.constant 0 : index
    %c0_122 = arith.constant 0 : index
    %360 = vector.load %arg10[%c0_121, %c0_122] : memref<128x384xf32, #tpu.memory_space<vmem>>, vector<128x384xf32>
    %cst_123 = arith.constant dense<0.000000e+00> : vector<2x384xf32>
    %361 = tpu.matmul %355, %360, %cst_123 {dimension_numbers = #tpu.dot_dimension_numbers<[1], [0], [0], [1], [0, 0, 1, 1], [], []>} : vector<2x128xf32>, vector<128x384xf32>, vector<2x384xf32> -> vector<2x384xf32>
    %362 = vector.broadcast %253 : vector<1x384xf32> to vector<2x384xf32>
    %363 = arith.addf %361, %362 : vector<2x384xf32>
    %364 = vector.extract_strided_slice %359 {offsets = [0, 0], sizes = [2, 128], strides = [1, 1]} : vector<2x384xf32> to vector<2x128xf32>
    %365 = vector.extract_strided_slice %363 {offsets = [0, 0], sizes = [2, 128], strides = [1, 1]} : vector<2x384xf32> to vector<2x128xf32>
    %366 = arith.addf %364, %365 : vector<2x128xf32>
    %367 = arith.negf %366 : vector<2x128xf32>
    %368 = math.exp %367 : vector<2x128xf32>
    %cst_124 = arith.constant 1.000000e+00 : f32
    %369 = vector.broadcast %cst_124 : f32 to vector<2x128xf32>
    %370 = arith.addf %369, %368 : vector<2x128xf32>
    %371 = arith.divf %369, %370 : vector<2x128xf32>
    %372 = vector.extract_strided_slice %359 {offsets = [0, 128], sizes = [2, 128], strides = [1, 1]} : vector<2x384xf32> to vector<2x128xf32>
    %373 = vector.extract_strided_slice %363 {offsets = [0, 128], sizes = [2, 128], strides = [1, 1]} : vector<2x384xf32> to vector<2x128xf32>
    %374 = arith.addf %372, %373 : vector<2x128xf32>
    %375 = arith.negf %374 : vector<2x128xf32>
    %376 = math.exp %375 : vector<2x128xf32>
    %cst_125 = arith.constant 1.000000e+00 : f32
    %377 = vector.broadcast %cst_125 : f32 to vector<2x128xf32>
    %378 = arith.addf %377, %376 : vector<2x128xf32>
    %379 = arith.divf %377, %378 : vector<2x128xf32>
    %380 = vector.extract_strided_slice %359 {offsets = [0, 256], sizes = [2, 128], strides = [1, 1]} : vector<2x384xf32> to vector<2x128xf32>
    %381 = vector.extract_strided_slice %363 {offsets = [0, 256], sizes = [2, 128], strides = [1, 1]} : vector<2x384xf32> to vector<2x128xf32>
    %382 = arith.mulf %371, %381 : vector<2x128xf32>
    %383 = arith.addf %380, %382 : vector<2x128xf32>
    %384 = math.tanh %383 : vector<2x128xf32>
    %cst_126 = arith.constant 1.000000e+00 : f32
    %385 = vector.broadcast %cst_126 : f32 to vector<2x128xf32>
    %386 = arith.subf %385, %379 : vector<2x128xf32>
    %387 = arith.mulf %386, %384 : vector<2x128xf32>
    %388 = arith.mulf %379, %355 : vector<2x128xf32>
    %389 = arith.addf %387, %388 : vector<2x128xf32>
    %c0_127 = arith.constant 0 : index
    %c0_128 = arith.constant 0 : index
    %390 = vector.load %arg9[%c0_127, %c0_128] : memref<128x384xf32, #tpu.memory_space<vmem>>, vector<128x384xf32>
    %cst_129 = arith.constant dense<0.000000e+00> : vector<2x384xf32>
    %391 = tpu.matmul %217, %390, %cst_129 {dimension_numbers = #tpu.dot_dimension_numbers<[1], [0], [0], [1], [0, 0, 1, 1], [], []>} : vector<2x128xf32>, vector<128x384xf32>, vector<2x384xf32> -> vector<2x384xf32>
    %392 = vector.broadcast %252 : vector<1x384xf32> to vector<2x384xf32>
    %393 = arith.addf %391, %392 : vector<2x384xf32>
    %c0_130 = arith.constant 0 : index
    %c0_131 = arith.constant 0 : index
    %394 = vector.load %arg10[%c0_130, %c0_131] : memref<128x384xf32, #tpu.memory_space<vmem>>, vector<128x384xf32>
    %cst_132 = arith.constant dense<0.000000e+00> : vector<2x384xf32>
    %395 = tpu.matmul %389, %394, %cst_132 {dimension_numbers = #tpu.dot_dimension_numbers<[1], [0], [0], [1], [0, 0, 1, 1], [], []>} : vector<2x128xf32>, vector<128x384xf32>, vector<2x384xf32> -> vector<2x384xf32>
    %396 = vector.broadcast %253 : vector<1x384xf32> to vector<2x384xf32>
    %397 = arith.addf %395, %396 : vector<2x384xf32>
    %398 = vector.extract_strided_slice %393 {offsets = [0, 0], sizes = [2, 128], strides = [1, 1]} : vector<2x384xf32> to vector<2x128xf32>
    %399 = vector.extract_strided_slice %397 {offsets = [0, 0], sizes = [2, 128], strides = [1, 1]} : vector<2x384xf32> to vector<2x128xf32>
    %400 = arith.addf %398, %399 : vector<2x128xf32>
    %401 = arith.negf %400 : vector<2x128xf32>
    %402 = math.exp %401 : vector<2x128xf32>
    %cst_133 = arith.constant 1.000000e+00 : f32
    %403 = vector.broadcast %cst_133 : f32 to vector<2x128xf32>
    %404 = arith.addf %403, %402 : vector<2x128xf32>
    %405 = arith.divf %403, %404 : vector<2x128xf32>
    %406 = vector.extract_strided_slice %393 {offsets = [0, 128], sizes = [2, 128], strides = [1, 1]} : vector<2x384xf32> to vector<2x128xf32>
    %407 = vector.extract_strided_slice %397 {offsets = [0, 128], sizes = [2, 128], strides = [1, 1]} : vector<2x384xf32> to vector<2x128xf32>
    %408 = arith.addf %406, %407 : vector<2x128xf32>
    %409 = arith.negf %408 : vector<2x128xf32>
    %410 = math.exp %409 : vector<2x128xf32>
    %cst_134 = arith.constant 1.000000e+00 : f32
    %411 = vector.broadcast %cst_134 : f32 to vector<2x128xf32>
    %412 = arith.addf %411, %410 : vector<2x128xf32>
    %413 = arith.divf %411, %412 : vector<2x128xf32>
    %414 = vector.extract_strided_slice %393 {offsets = [0, 256], sizes = [2, 128], strides = [1, 1]} : vector<2x384xf32> to vector<2x128xf32>
    %415 = vector.extract_strided_slice %397 {offsets = [0, 256], sizes = [2, 128], strides = [1, 1]} : vector<2x384xf32> to vector<2x128xf32>
    %416 = arith.mulf %405, %415 : vector<2x128xf32>
    %417 = arith.addf %414, %416 : vector<2x128xf32>
    %418 = math.tanh %417 : vector<2x128xf32>
    %cst_135 = arith.constant 1.000000e+00 : f32
    %419 = vector.broadcast %cst_135 : f32 to vector<2x128xf32>
    %420 = arith.subf %419, %413 : vector<2x128xf32>
    %421 = arith.mulf %420, %418 : vector<2x128xf32>
    %422 = arith.mulf %413, %389 : vector<2x128xf32>
    %423 = arith.addf %421, %422 : vector<2x128xf32>
    %c0_136 = arith.constant 0 : index
    %c0_137 = arith.constant 0 : index
    %424 = vector.load %arg9[%c0_136, %c0_137] : memref<128x384xf32, #tpu.memory_space<vmem>>, vector<128x384xf32>
    %cst_138 = arith.constant dense<0.000000e+00> : vector<2x384xf32>
    %425 = tpu.matmul %251, %424, %cst_138 {dimension_numbers = #tpu.dot_dimension_numbers<[1], [0], [0], [1], [0, 0, 1, 1], [], []>} : vector<2x128xf32>, vector<128x384xf32>, vector<2x384xf32> -> vector<2x384xf32>
    %426 = vector.broadcast %252 : vector<1x384xf32> to vector<2x384xf32>
    %427 = arith.addf %425, %426 : vector<2x384xf32>
    %c0_139 = arith.constant 0 : index
    %c0_140 = arith.constant 0 : index
    %428 = vector.load %arg10[%c0_139, %c0_140] : memref<128x384xf32, #tpu.memory_space<vmem>>, vector<128x384xf32>
    %cst_141 = arith.constant dense<0.000000e+00> : vector<2x384xf32>
    %429 = tpu.matmul %423, %428, %cst_141 {dimension_numbers = #tpu.dot_dimension_numbers<[1], [0], [0], [1], [0, 0, 1, 1], [], []>} : vector<2x128xf32>, vector<128x384xf32>, vector<2x384xf32> -> vector<2x384xf32>
    %430 = vector.broadcast %253 : vector<1x384xf32> to vector<2x384xf32>
    %431 = arith.addf %429, %430 : vector<2x384xf32>
    %432 = vector.extract_strided_slice %427 {offsets = [0, 0], sizes = [2, 128], strides = [1, 1]} : vector<2x384xf32> to vector<2x128xf32>
    %433 = vector.extract_strided_slice %431 {offsets = [0, 0], sizes = [2, 128], strides = [1, 1]} : vector<2x384xf32> to vector<2x128xf32>
    %434 = arith.addf %432, %433 : vector<2x128xf32>
    %435 = arith.negf %434 : vector<2x128xf32>
    %436 = math.exp %435 : vector<2x128xf32>
    %cst_142 = arith.constant 1.000000e+00 : f32
    %437 = vector.broadcast %cst_142 : f32 to vector<2x128xf32>
    %438 = arith.addf %437, %436 : vector<2x128xf32>
    %439 = arith.divf %437, %438 : vector<2x128xf32>
    %440 = vector.extract_strided_slice %427 {offsets = [0, 128], sizes = [2, 128], strides = [1, 1]} : vector<2x384xf32> to vector<2x128xf32>
    %441 = vector.extract_strided_slice %431 {offsets = [0, 128], sizes = [2, 128], strides = [1, 1]} : vector<2x384xf32> to vector<2x128xf32>
    %442 = arith.addf %440, %441 : vector<2x128xf32>
    %443 = arith.negf %442 : vector<2x128xf32>
    %444 = math.exp %443 : vector<2x128xf32>
    %cst_143 = arith.constant 1.000000e+00 : f32
    %445 = vector.broadcast %cst_143 : f32 to vector<2x128xf32>
    %446 = arith.addf %445, %444 : vector<2x128xf32>
    %447 = arith.divf %445, %446 : vector<2x128xf32>
    %448 = vector.extract_strided_slice %427 {offsets = [0, 256], sizes = [2, 128], strides = [1, 1]} : vector<2x384xf32> to vector<2x128xf32>
    %449 = vector.extract_strided_slice %431 {offsets = [0, 256], sizes = [2, 128], strides = [1, 1]} : vector<2x384xf32> to vector<2x128xf32>
    %450 = arith.mulf %439, %449 : vector<2x128xf32>
    %451 = arith.addf %448, %450 : vector<2x128xf32>
    %452 = math.tanh %451 : vector<2x128xf32>
    %cst_144 = arith.constant 1.000000e+00 : f32
    %453 = vector.broadcast %cst_144 : f32 to vector<2x128xf32>
    %454 = arith.subf %453, %447 : vector<2x128xf32>
    %455 = arith.mulf %454, %452 : vector<2x128xf32>
    %456 = arith.mulf %447, %423 : vector<2x128xf32>
    %457 = arith.addf %455, %456 : vector<2x128xf32>
    %c0_145 = arith.constant 0 : index
    %c0_146 = arith.constant 0 : index
    %458 = vector.load %arg13[%c0_145, %c0_146] : memref<128x16xf32, #tpu.memory_space<vmem>>, vector<128x16xf32>
    %c0_147 = arith.constant 0 : index
    %c0_148 = arith.constant 0 : index
    %459 = vector.load %arg14[%c0_147, %c0_148] : memref<1x16xf32, #tpu.memory_space<vmem>>, vector<1x16xf32>
    %c0_149 = arith.constant 0 : index
    %c0_150 = arith.constant 0 : index
    %460 = vector.load %arg15[%c0_149, %c0_150] : memref<16x128xf32, #tpu.memory_space<vmem>>, vector<16x128xf32>
    %c0_151 = arith.constant 0 : index
    %c0_152 = arith.constant 0 : index
    %461 = vector.load %arg16[%c0_151, %c0_152] : memref<1x128xf32, #tpu.memory_space<vmem>>, vector<1x128xf32>
    %cst_153 = arith.constant dense<0.000000e+00> : vector<2x16xf32>
    %462 = tpu.matmul %287, %458, %cst_153 {dimension_numbers = #tpu.dot_dimension_numbers<[1], [0], [0], [1], [0, 0, 1, 1], [], []>} : vector<2x128xf32>, vector<128x16xf32>, vector<2x16xf32> -> vector<2x16xf32>
    %463 = vector.broadcast %459 : vector<1x16xf32> to vector<2x16xf32>
    %464 = arith.addf %462, %463 : vector<2x16xf32>
    %cst_154 = arith.constant 0.000000e+00 : f32
    %465 = vector.broadcast %cst_154 : f32 to vector<2x16xf32>
    %466 = arith.maximumf %464, %465 : vector<2x16xf32>
    %cst_155 = arith.constant dense<0.000000e+00> : vector<2x128xf32>
    %467 = tpu.matmul %466, %460, %cst_155 {dimension_numbers = #tpu.dot_dimension_numbers<[1], [0], [0], [1], [0, 0, 1, 1], [], []>} : vector<2x16xf32>, vector<16x128xf32>, vector<2x128xf32> -> vector<2x128xf32>
    %468 = vector.broadcast %461 : vector<1x128xf32> to vector<2x128xf32>
    %469 = arith.addf %467, %468 : vector<2x128xf32>
    %cst_156 = arith.constant dense<0.000000e+00> : vector<2x16xf32>
    %470 = tpu.matmul %321, %458, %cst_156 {dimension_numbers = #tpu.dot_dimension_numbers<[1], [0], [0], [1], [0, 0, 1, 1], [], []>} : vector<2x128xf32>, vector<128x16xf32>, vector<2x16xf32> -> vector<2x16xf32>
    %471 = vector.broadcast %459 : vector<1x16xf32> to vector<2x16xf32>
    %472 = arith.addf %470, %471 : vector<2x16xf32>
    %cst_157 = arith.constant 0.000000e+00 : f32
    %473 = vector.broadcast %cst_157 : f32 to vector<2x16xf32>
    %474 = arith.maximumf %472, %473 : vector<2x16xf32>
    %cst_158 = arith.constant dense<0.000000e+00> : vector<2x128xf32>
    %475 = tpu.matmul %474, %460, %cst_158 {dimension_numbers = #tpu.dot_dimension_numbers<[1], [0], [0], [1], [0, 0, 1, 1], [], []>} : vector<2x16xf32>, vector<16x128xf32>, vector<2x128xf32> -> vector<2x128xf32>
    %476 = vector.broadcast %461 : vector<1x128xf32> to vector<2x128xf32>
    %477 = arith.addf %475, %476 : vector<2x128xf32>
    %cst_159 = arith.constant dense<0.000000e+00> : vector<2x16xf32>
    %478 = tpu.matmul %355, %458, %cst_159 {dimension_numbers = #tpu.dot_dimension_numbers<[1], [0], [0], [1], [0, 0, 1, 1], [], []>} : vector<2x128xf32>, vector<128x16xf32>, vector<2x16xf32> -> vector<2x16xf32>
    %479 = vector.broadcast %459 : vector<1x16xf32> to vector<2x16xf32>
    %480 = arith.addf %478, %479 : vector<2x16xf32>
    %cst_160 = arith.constant 0.000000e+00 : f32
    %481 = vector.broadcast %cst_160 : f32 to vector<2x16xf32>
    %482 = arith.maximumf %480, %481 : vector<2x16xf32>
    %cst_161 = arith.constant dense<0.000000e+00> : vector<2x128xf32>
    %483 = tpu.matmul %482, %460, %cst_161 {dimension_numbers = #tpu.dot_dimension_numbers<[1], [0], [0], [1], [0, 0, 1, 1], [], []>} : vector<2x16xf32>, vector<16x128xf32>, vector<2x128xf32> -> vector<2x128xf32>
    %484 = vector.broadcast %461 : vector<1x128xf32> to vector<2x128xf32>
    %485 = arith.addf %483, %484 : vector<2x128xf32>
    %cst_162 = arith.constant dense<0.000000e+00> : vector<2x16xf32>
    %486 = tpu.matmul %389, %458, %cst_162 {dimension_numbers = #tpu.dot_dimension_numbers<[1], [0], [0], [1], [0, 0, 1, 1], [], []>} : vector<2x128xf32>, vector<128x16xf32>, vector<2x16xf32> -> vector<2x16xf32>
    %487 = vector.broadcast %459 : vector<1x16xf32> to vector<2x16xf32>
    %488 = arith.addf %486, %487 : vector<2x16xf32>
    %cst_163 = arith.constant 0.000000e+00 : f32
    %489 = vector.broadcast %cst_163 : f32 to vector<2x16xf32>
    %490 = arith.maximumf %488, %489 : vector<2x16xf32>
    %cst_164 = arith.constant dense<0.000000e+00> : vector<2x128xf32>
    %491 = tpu.matmul %490, %460, %cst_164 {dimension_numbers = #tpu.dot_dimension_numbers<[1], [0], [0], [1], [0, 0, 1, 1], [], []>} : vector<2x16xf32>, vector<16x128xf32>, vector<2x128xf32> -> vector<2x128xf32>
    %492 = vector.broadcast %461 : vector<1x128xf32> to vector<2x128xf32>
    %493 = arith.addf %491, %492 : vector<2x128xf32>
    %cst_165 = arith.constant dense<0.000000e+00> : vector<2x16xf32>
    %494 = tpu.matmul %423, %458, %cst_165 {dimension_numbers = #tpu.dot_dimension_numbers<[1], [0], [0], [1], [0, 0, 1, 1], [], []>} : vector<2x128xf32>, vector<128x16xf32>, vector<2x16xf32> -> vector<2x16xf32>
    %495 = vector.broadcast %459 : vector<1x16xf32> to vector<2x16xf32>
    %496 = arith.addf %494, %495 : vector<2x16xf32>
    %cst_166 = arith.constant 0.000000e+00 : f32
    %497 = vector.broadcast %cst_166 : f32 to vector<2x16xf32>
    %498 = arith.maximumf %496, %497 : vector<2x16xf32>
    %cst_167 = arith.constant dense<0.000000e+00> : vector<2x128xf32>
    %499 = tpu.matmul %498, %460, %cst_167 {dimension_numbers = #tpu.dot_dimension_numbers<[1], [0], [0], [1], [0, 0, 1, 1], [], []>} : vector<2x16xf32>, vector<16x128xf32>, vector<2x128xf32> -> vector<2x128xf32>
    %500 = vector.broadcast %461 : vector<1x128xf32> to vector<2x128xf32>
    %501 = arith.addf %499, %500 : vector<2x128xf32>
    %cst_168 = arith.constant dense<0.000000e+00> : vector<2x16xf32>
    %502 = tpu.matmul %457, %458, %cst_168 {dimension_numbers = #tpu.dot_dimension_numbers<[1], [0], [0], [1], [0, 0, 1, 1], [], []>} : vector<2x128xf32>, vector<128x16xf32>, vector<2x16xf32> -> vector<2x16xf32>
    %503 = vector.broadcast %459 : vector<1x16xf32> to vector<2x16xf32>
    %504 = arith.addf %502, %503 : vector<2x16xf32>
    %cst_169 = arith.constant 0.000000e+00 : f32
    %505 = vector.broadcast %cst_169 : f32 to vector<2x16xf32>
    %506 = arith.maximumf %504, %505 : vector<2x16xf32>
    %cst_170 = arith.constant dense<0.000000e+00> : vector<2x128xf32>
    %507 = tpu.matmul %506, %460, %cst_170 {dimension_numbers = #tpu.dot_dimension_numbers<[1], [0], [0], [1], [0, 0, 1, 1], [], []>} : vector<2x16xf32>, vector<16x128xf32>, vector<2x128xf32> -> vector<2x128xf32>
    %508 = vector.broadcast %461 : vector<1x128xf32> to vector<2x128xf32>
    %509 = arith.addf %507, %508 : vector<2x128xf32>
    %510 = tpu.concatenate %469, %477, %485, %493, %501, %509 in 0 : vector<2x128xf32>, vector<2x128xf32>, vector<2x128xf32>, vector<2x128xf32>, vector<2x128xf32>, vector<2x128xf32> -> vector<12x128xf32>
    %c0_171 = arith.constant 0 : index
    %c0_172 = arith.constant 0 : index
    %511 = vector.load %arg17[%c0_171, %c0_172] : memref<1x8xf32, #tpu.memory_space<vmem>>, vector<1x8xf32>
    %c0_173 = arith.constant 0 : index
    %c0_174 = arith.constant 0 : index
    %512 = vector.load %arg18[%c0_173, %c0_174] : memref<1x8xf32, #tpu.memory_space<vmem>>, vector<1x8xf32>
    %c0_175 = arith.constant 0 : index
    %c0_176 = arith.constant 0 : index
    %513 = vector.load %arg1[%c0_175, %c0_176] : memref<12x8xf32, #tpu.memory_space<vmem>>, vector<12x8xf32>
    %514 = vector.extract_strided_slice %513 {offsets = [0, 0], sizes = [12, 1], strides = [1, 1]} : vector<12x8xf32> to vector<12x1xf32>
    %515 = vector.broadcast %514 : vector<12x1xf32> to vector<12x8xf32>
    %516 = vector.broadcast %511 : vector<1x8xf32> to vector<12x8xf32>
    %517 = arith.mulf %515, %516 : vector<12x8xf32>
    %518 = vector.broadcast %512 : vector<1x8xf32> to vector<12x8xf32>
    %519 = arith.addf %517, %518 : vector<12x8xf32>
    %cst_177 = arith.constant 0.000000e+00 : f32
    %520 = vector.broadcast %cst_177 : f32 to vector<12x8xf32>
    %521 = arith.maximumf %519, %520 : vector<12x8xf32>
    %522 = vector.extract_strided_slice %513 {offsets = [0, 1], sizes = [12, 1], strides = [1, 1]} : vector<12x8xf32> to vector<12x1xf32>
    %523 = vector.broadcast %522 : vector<12x1xf32> to vector<12x8xf32>
    %524 = vector.broadcast %511 : vector<1x8xf32> to vector<12x8xf32>
    %525 = arith.mulf %523, %524 : vector<12x8xf32>
    %526 = vector.broadcast %512 : vector<1x8xf32> to vector<12x8xf32>
    %527 = arith.addf %525, %526 : vector<12x8xf32>
    %cst_178 = arith.constant 0.000000e+00 : f32
    %528 = vector.broadcast %cst_178 : f32 to vector<12x8xf32>
    %529 = arith.maximumf %527, %528 : vector<12x8xf32>
    %530 = vector.extract_strided_slice %513 {offsets = [0, 2], sizes = [12, 1], strides = [1, 1]} : vector<12x8xf32> to vector<12x1xf32>
    %531 = vector.broadcast %530 : vector<12x1xf32> to vector<12x8xf32>
    %532 = vector.broadcast %511 : vector<1x8xf32> to vector<12x8xf32>
    %533 = arith.mulf %531, %532 : vector<12x8xf32>
    %534 = vector.broadcast %512 : vector<1x8xf32> to vector<12x8xf32>
    %535 = arith.addf %533, %534 : vector<12x8xf32>
    %cst_179 = arith.constant 0.000000e+00 : f32
    %536 = vector.broadcast %cst_179 : f32 to vector<12x8xf32>
    %537 = arith.maximumf %535, %536 : vector<12x8xf32>
    %538 = vector.extract_strided_slice %513 {offsets = [0, 3], sizes = [12, 1], strides = [1, 1]} : vector<12x8xf32> to vector<12x1xf32>
    %539 = vector.broadcast %538 : vector<12x1xf32> to vector<12x8xf32>
    %540 = vector.broadcast %511 : vector<1x8xf32> to vector<12x8xf32>
    %541 = arith.mulf %539, %540 : vector<12x8xf32>
    %542 = vector.broadcast %512 : vector<1x8xf32> to vector<12x8xf32>
    %543 = arith.addf %541, %542 : vector<12x8xf32>
    %cst_180 = arith.constant 0.000000e+00 : f32
    %544 = vector.broadcast %cst_180 : f32 to vector<12x8xf32>
    %545 = arith.maximumf %543, %544 : vector<12x8xf32>
    %546 = vector.extract_strided_slice %513 {offsets = [0, 4], sizes = [12, 1], strides = [1, 1]} : vector<12x8xf32> to vector<12x1xf32>
    %547 = vector.broadcast %546 : vector<12x1xf32> to vector<12x8xf32>
    %548 = vector.broadcast %511 : vector<1x8xf32> to vector<12x8xf32>
    %549 = arith.mulf %547, %548 : vector<12x8xf32>
    %550 = vector.broadcast %512 : vector<1x8xf32> to vector<12x8xf32>
    %551 = arith.addf %549, %550 : vector<12x8xf32>
    %cst_181 = arith.constant 0.000000e+00 : f32
    %552 = vector.broadcast %cst_181 : f32 to vector<12x8xf32>
    %553 = arith.maximumf %551, %552 : vector<12x8xf32>
    %554 = vector.extract_strided_slice %513 {offsets = [0, 5], sizes = [12, 1], strides = [1, 1]} : vector<12x8xf32> to vector<12x1xf32>
    %555 = vector.broadcast %554 : vector<12x1xf32> to vector<12x8xf32>
    %556 = vector.broadcast %511 : vector<1x8xf32> to vector<12x8xf32>
    %557 = arith.mulf %555, %556 : vector<12x8xf32>
    %558 = vector.broadcast %512 : vector<1x8xf32> to vector<12x8xf32>
    %559 = arith.addf %557, %558 : vector<12x8xf32>
    %cst_182 = arith.constant 0.000000e+00 : f32
    %560 = vector.broadcast %cst_182 : f32 to vector<12x8xf32>
    %561 = arith.maximumf %559, %560 : vector<12x8xf32>
    %562 = vector.extract_strided_slice %513 {offsets = [0, 6], sizes = [12, 1], strides = [1, 1]} : vector<12x8xf32> to vector<12x1xf32>
    %563 = vector.broadcast %562 : vector<12x1xf32> to vector<12x8xf32>
    %564 = vector.broadcast %511 : vector<1x8xf32> to vector<12x8xf32>
    %565 = arith.mulf %563, %564 : vector<12x8xf32>
    %566 = vector.broadcast %512 : vector<1x8xf32> to vector<12x8xf32>
    %567 = arith.addf %565, %566 : vector<12x8xf32>
    %cst_183 = arith.constant 0.000000e+00 : f32
    %568 = vector.broadcast %cst_183 : f32 to vector<12x8xf32>
    %569 = arith.maximumf %567, %568 : vector<12x8xf32>
    %570 = vector.extract_strided_slice %513 {offsets = [0, 7], sizes = [12, 1], strides = [1, 1]} : vector<12x8xf32> to vector<12x1xf32>
    %571 = vector.broadcast %570 : vector<12x1xf32> to vector<12x8xf32>
    %572 = vector.broadcast %511 : vector<1x8xf32> to vector<12x8xf32>
    %573 = arith.mulf %571, %572 : vector<12x8xf32>
    %574 = vector.broadcast %512 : vector<1x8xf32> to vector<12x8xf32>
    %575 = arith.addf %573, %574 : vector<12x8xf32>
    %cst_184 = arith.constant 0.000000e+00 : f32
    %576 = vector.broadcast %cst_184 : f32 to vector<12x8xf32>
    %577 = arith.maximumf %575, %576 : vector<12x8xf32>
    %cst_185 = arith.constant 0.000000e+00 : f32
    %578 = vector.broadcast %cst_185 : f32 to vector<12x128xf32>
    %c0_186 = arith.constant 0 : index
    %c0_187 = arith.constant 0 : index
    %579 = vector.load %arg21[%c0_186, %c0_187] : memref<1x384xf32, #tpu.memory_space<vmem>>, vector<1x384xf32>
    %c0_188 = arith.constant 0 : index
    %c0_189 = arith.constant 0 : index
    %580 = vector.load %arg22[%c0_188, %c0_189] : memref<1x384xf32, #tpu.memory_space<vmem>>, vector<1x384xf32>
    %c0_190 = arith.constant 0 : index
    %c0_191 = arith.constant 0 : index
    %581 = vector.load %arg19[%c0_190, %c0_191] : memref<8x384xf32, #tpu.memory_space<vmem>>, vector<8x384xf32>
    %cst_192 = arith.constant dense<0.000000e+00> : vector<12x384xf32>
    %582 = tpu.matmul %521, %581, %cst_192 {dimension_numbers = #tpu.dot_dimension_numbers<[1], [0], [0], [1], [0, 0, 1, 1], [], []>} : vector<12x8xf32>, vector<8x384xf32>, vector<12x384xf32> -> vector<12x384xf32>
    %583 = vector.broadcast %579 : vector<1x384xf32> to vector<12x384xf32>
    %584 = arith.addf %582, %583 : vector<12x384xf32>
    %c0_193 = arith.constant 0 : index
    %c0_194 = arith.constant 0 : index
    %585 = vector.load %arg20[%c0_193, %c0_194] : memref<128x384xf32, #tpu.memory_space<vmem>>, vector<128x384xf32>
    %cst_195 = arith.constant dense<0.000000e+00> : vector<12x384xf32>
    %586 = tpu.matmul %510, %585, %cst_195 {dimension_numbers = #tpu.dot_dimension_numbers<[1], [0], [0], [1], [0, 0, 1, 1], [], []>} : vector<12x128xf32>, vector<128x384xf32>, vector<12x384xf32> -> vector<12x384xf32>
    %587 = vector.broadcast %580 : vector<1x384xf32> to vector<12x384xf32>
    %588 = arith.addf %586, %587 : vector<12x384xf32>
    %589 = vector.extract_strided_slice %584 {offsets = [0, 0], sizes = [12, 128], strides = [1, 1]} : vector<12x384xf32> to vector<12x128xf32>
    %590 = vector.extract_strided_slice %588 {offsets = [0, 0], sizes = [12, 128], strides = [1, 1]} : vector<12x384xf32> to vector<12x128xf32>
    %591 = arith.addf %589, %590 : vector<12x128xf32>
    %592 = arith.negf %591 : vector<12x128xf32>
    %593 = math.exp %592 : vector<12x128xf32>
    %cst_196 = arith.constant 1.000000e+00 : f32
    %594 = vector.broadcast %cst_196 : f32 to vector<12x128xf32>
    %595 = arith.addf %594, %593 : vector<12x128xf32>
    %596 = arith.divf %594, %595 : vector<12x128xf32>
    %597 = vector.extract_strided_slice %584 {offsets = [0, 128], sizes = [12, 128], strides = [1, 1]} : vector<12x384xf32> to vector<12x128xf32>
    %598 = vector.extract_strided_slice %588 {offsets = [0, 128], sizes = [12, 128], strides = [1, 1]} : vector<12x384xf32> to vector<12x128xf32>
    %599 = arith.addf %597, %598 : vector<12x128xf32>
    %600 = arith.negf %599 : vector<12x128xf32>
    %601 = math.exp %600 : vector<12x128xf32>
    %cst_197 = arith.constant 1.000000e+00 : f32
    %602 = vector.broadcast %cst_197 : f32 to vector<12x128xf32>
    %603 = arith.addf %602, %601 : vector<12x128xf32>
    %604 = arith.divf %602, %603 : vector<12x128xf32>
    %605 = vector.extract_strided_slice %584 {offsets = [0, 256], sizes = [12, 128], strides = [1, 1]} : vector<12x384xf32> to vector<12x128xf32>
    %606 = vector.extract_strided_slice %588 {offsets = [0, 256], sizes = [12, 128], strides = [1, 1]} : vector<12x384xf32> to vector<12x128xf32>
    %607 = arith.mulf %596, %606 : vector<12x128xf32>
    %608 = arith.addf %605, %607 : vector<12x128xf32>
    %609 = math.tanh %608 : vector<12x128xf32>
    %cst_198 = arith.constant 1.000000e+00 : f32
    %610 = vector.broadcast %cst_198 : f32 to vector<12x128xf32>
    %611 = arith.subf %610, %604 : vector<12x128xf32>
    %612 = arith.mulf %611, %609 : vector<12x128xf32>
    %613 = arith.mulf %604, %510 : vector<12x128xf32>
    %614 = arith.addf %612, %613 : vector<12x128xf32>
    %c0_199 = arith.constant 0 : index
    %c0_200 = arith.constant 0 : index
    %615 = vector.load %arg19[%c0_199, %c0_200] : memref<8x384xf32, #tpu.memory_space<vmem>>, vector<8x384xf32>
    %cst_201 = arith.constant dense<0.000000e+00> : vector<12x384xf32>
    %616 = tpu.matmul %529, %615, %cst_201 {dimension_numbers = #tpu.dot_dimension_numbers<[1], [0], [0], [1], [0, 0, 1, 1], [], []>} : vector<12x8xf32>, vector<8x384xf32>, vector<12x384xf32> -> vector<12x384xf32>
    %617 = vector.broadcast %579 : vector<1x384xf32> to vector<12x384xf32>
    %618 = arith.addf %616, %617 : vector<12x384xf32>
    %c0_202 = arith.constant 0 : index
    %c0_203 = arith.constant 0 : index
    %619 = vector.load %arg20[%c0_202, %c0_203] : memref<128x384xf32, #tpu.memory_space<vmem>>, vector<128x384xf32>
    %cst_204 = arith.constant dense<0.000000e+00> : vector<12x384xf32>
    %620 = tpu.matmul %614, %619, %cst_204 {dimension_numbers = #tpu.dot_dimension_numbers<[1], [0], [0], [1], [0, 0, 1, 1], [], []>} : vector<12x128xf32>, vector<128x384xf32>, vector<12x384xf32> -> vector<12x384xf32>
    %621 = vector.broadcast %580 : vector<1x384xf32> to vector<12x384xf32>
    %622 = arith.addf %620, %621 : vector<12x384xf32>
    %623 = vector.extract_strided_slice %618 {offsets = [0, 0], sizes = [12, 128], strides = [1, 1]} : vector<12x384xf32> to vector<12x128xf32>
    %624 = vector.extract_strided_slice %622 {offsets = [0, 0], sizes = [12, 128], strides = [1, 1]} : vector<12x384xf32> to vector<12x128xf32>
    %625 = arith.addf %623, %624 : vector<12x128xf32>
    %626 = arith.negf %625 : vector<12x128xf32>
    %627 = math.exp %626 : vector<12x128xf32>
    %cst_205 = arith.constant 1.000000e+00 : f32
    %628 = vector.broadcast %cst_205 : f32 to vector<12x128xf32>
    %629 = arith.addf %628, %627 : vector<12x128xf32>
    %630 = arith.divf %628, %629 : vector<12x128xf32>
    %631 = vector.extract_strided_slice %618 {offsets = [0, 128], sizes = [12, 128], strides = [1, 1]} : vector<12x384xf32> to vector<12x128xf32>
    %632 = vector.extract_strided_slice %622 {offsets = [0, 128], sizes = [12, 128], strides = [1, 1]} : vector<12x384xf32> to vector<12x128xf32>
    %633 = arith.addf %631, %632 : vector<12x128xf32>
    %634 = arith.negf %633 : vector<12x128xf32>
    %635 = math.exp %634 : vector<12x128xf32>
    %cst_206 = arith.constant 1.000000e+00 : f32
    %636 = vector.broadcast %cst_206 : f32 to vector<12x128xf32>
    %637 = arith.addf %636, %635 : vector<12x128xf32>
    %638 = arith.divf %636, %637 : vector<12x128xf32>
    %639 = vector.extract_strided_slice %618 {offsets = [0, 256], sizes = [12, 128], strides = [1, 1]} : vector<12x384xf32> to vector<12x128xf32>
    %640 = vector.extract_strided_slice %622 {offsets = [0, 256], sizes = [12, 128], strides = [1, 1]} : vector<12x384xf32> to vector<12x128xf32>
    %641 = arith.mulf %630, %640 : vector<12x128xf32>
    %642 = arith.addf %639, %641 : vector<12x128xf32>
    %643 = math.tanh %642 : vector<12x128xf32>
    %cst_207 = arith.constant 1.000000e+00 : f32
    %644 = vector.broadcast %cst_207 : f32 to vector<12x128xf32>
    %645 = arith.subf %644, %638 : vector<12x128xf32>
    %646 = arith.mulf %645, %643 : vector<12x128xf32>
    %647 = arith.mulf %638, %614 : vector<12x128xf32>
    %648 = arith.addf %646, %647 : vector<12x128xf32>
    %c0_208 = arith.constant 0 : index
    %c0_209 = arith.constant 0 : index
    %649 = vector.load %arg19[%c0_208, %c0_209] : memref<8x384xf32, #tpu.memory_space<vmem>>, vector<8x384xf32>
    %cst_210 = arith.constant dense<0.000000e+00> : vector<12x384xf32>
    %650 = tpu.matmul %537, %649, %cst_210 {dimension_numbers = #tpu.dot_dimension_numbers<[1], [0], [0], [1], [0, 0, 1, 1], [], []>} : vector<12x8xf32>, vector<8x384xf32>, vector<12x384xf32> -> vector<12x384xf32>
    %651 = vector.broadcast %579 : vector<1x384xf32> to vector<12x384xf32>
    %652 = arith.addf %650, %651 : vector<12x384xf32>
    %c0_211 = arith.constant 0 : index
    %c0_212 = arith.constant 0 : index
    %653 = vector.load %arg20[%c0_211, %c0_212] : memref<128x384xf32, #tpu.memory_space<vmem>>, vector<128x384xf32>
    %cst_213 = arith.constant dense<0.000000e+00> : vector<12x384xf32>
    %654 = tpu.matmul %648, %653, %cst_213 {dimension_numbers = #tpu.dot_dimension_numbers<[1], [0], [0], [1], [0, 0, 1, 1], [], []>} : vector<12x128xf32>, vector<128x384xf32>, vector<12x384xf32> -> vector<12x384xf32>
    %655 = vector.broadcast %580 : vector<1x384xf32> to vector<12x384xf32>
    %656 = arith.addf %654, %655 : vector<12x384xf32>
    %657 = vector.extract_strided_slice %652 {offsets = [0, 0], sizes = [12, 128], strides = [1, 1]} : vector<12x384xf32> to vector<12x128xf32>
    %658 = vector.extract_strided_slice %656 {offsets = [0, 0], sizes = [12, 128], strides = [1, 1]} : vector<12x384xf32> to vector<12x128xf32>
    %659 = arith.addf %657, %658 : vector<12x128xf32>
    %660 = arith.negf %659 : vector<12x128xf32>
    %661 = math.exp %660 : vector<12x128xf32>
    %cst_214 = arith.constant 1.000000e+00 : f32
    %662 = vector.broadcast %cst_214 : f32 to vector<12x128xf32>
    %663 = arith.addf %662, %661 : vector<12x128xf32>
    %664 = arith.divf %662, %663 : vector<12x128xf32>
    %665 = vector.extract_strided_slice %652 {offsets = [0, 128], sizes = [12, 128], strides = [1, 1]} : vector<12x384xf32> to vector<12x128xf32>
    %666 = vector.extract_strided_slice %656 {offsets = [0, 128], sizes = [12, 128], strides = [1, 1]} : vector<12x384xf32> to vector<12x128xf32>
    %667 = arith.addf %665, %666 : vector<12x128xf32>
    %668 = arith.negf %667 : vector<12x128xf32>
    %669 = math.exp %668 : vector<12x128xf32>
    %cst_215 = arith.constant 1.000000e+00 : f32
    %670 = vector.broadcast %cst_215 : f32 to vector<12x128xf32>
    %671 = arith.addf %670, %669 : vector<12x128xf32>
    %672 = arith.divf %670, %671 : vector<12x128xf32>
    %673 = vector.extract_strided_slice %652 {offsets = [0, 256], sizes = [12, 128], strides = [1, 1]} : vector<12x384xf32> to vector<12x128xf32>
    %674 = vector.extract_strided_slice %656 {offsets = [0, 256], sizes = [12, 128], strides = [1, 1]} : vector<12x384xf32> to vector<12x128xf32>
    %675 = arith.mulf %664, %674 : vector<12x128xf32>
    %676 = arith.addf %673, %675 : vector<12x128xf32>
    %677 = math.tanh %676 : vector<12x128xf32>
    %cst_216 = arith.constant 1.000000e+00 : f32
    %678 = vector.broadcast %cst_216 : f32 to vector<12x128xf32>
    %679 = arith.subf %678, %672 : vector<12x128xf32>
    %680 = arith.mulf %679, %677 : vector<12x128xf32>
    %681 = arith.mulf %672, %648 : vector<12x128xf32>
    %682 = arith.addf %680, %681 : vector<12x128xf32>
    %c0_217 = arith.constant 0 : index
    %c0_218 = arith.constant 0 : index
    %683 = vector.load %arg19[%c0_217, %c0_218] : memref<8x384xf32, #tpu.memory_space<vmem>>, vector<8x384xf32>
    %cst_219 = arith.constant dense<0.000000e+00> : vector<12x384xf32>
    %684 = tpu.matmul %545, %683, %cst_219 {dimension_numbers = #tpu.dot_dimension_numbers<[1], [0], [0], [1], [0, 0, 1, 1], [], []>} : vector<12x8xf32>, vector<8x384xf32>, vector<12x384xf32> -> vector<12x384xf32>
    %685 = vector.broadcast %579 : vector<1x384xf32> to vector<12x384xf32>
    %686 = arith.addf %684, %685 : vector<12x384xf32>
    %c0_220 = arith.constant 0 : index
    %c0_221 = arith.constant 0 : index
    %687 = vector.load %arg20[%c0_220, %c0_221] : memref<128x384xf32, #tpu.memory_space<vmem>>, vector<128x384xf32>
    %cst_222 = arith.constant dense<0.000000e+00> : vector<12x384xf32>
    %688 = tpu.matmul %682, %687, %cst_222 {dimension_numbers = #tpu.dot_dimension_numbers<[1], [0], [0], [1], [0, 0, 1, 1], [], []>} : vector<12x128xf32>, vector<128x384xf32>, vector<12x384xf32> -> vector<12x384xf32>
    %689 = vector.broadcast %580 : vector<1x384xf32> to vector<12x384xf32>
    %690 = arith.addf %688, %689 : vector<12x384xf32>
    %691 = vector.extract_strided_slice %686 {offsets = [0, 0], sizes = [12, 128], strides = [1, 1]} : vector<12x384xf32> to vector<12x128xf32>
    %692 = vector.extract_strided_slice %690 {offsets = [0, 0], sizes = [12, 128], strides = [1, 1]} : vector<12x384xf32> to vector<12x128xf32>
    %693 = arith.addf %691, %692 : vector<12x128xf32>
    %694 = arith.negf %693 : vector<12x128xf32>
    %695 = math.exp %694 : vector<12x128xf32>
    %cst_223 = arith.constant 1.000000e+00 : f32
    %696 = vector.broadcast %cst_223 : f32 to vector<12x128xf32>
    %697 = arith.addf %696, %695 : vector<12x128xf32>
    %698 = arith.divf %696, %697 : vector<12x128xf32>
    %699 = vector.extract_strided_slice %686 {offsets = [0, 128], sizes = [12, 128], strides = [1, 1]} : vector<12x384xf32> to vector<12x128xf32>
    %700 = vector.extract_strided_slice %690 {offsets = [0, 128], sizes = [12, 128], strides = [1, 1]} : vector<12x384xf32> to vector<12x128xf32>
    %701 = arith.addf %699, %700 : vector<12x128xf32>
    %702 = arith.negf %701 : vector<12x128xf32>
    %703 = math.exp %702 : vector<12x128xf32>
    %cst_224 = arith.constant 1.000000e+00 : f32
    %704 = vector.broadcast %cst_224 : f32 to vector<12x128xf32>
    %705 = arith.addf %704, %703 : vector<12x128xf32>
    %706 = arith.divf %704, %705 : vector<12x128xf32>
    %707 = vector.extract_strided_slice %686 {offsets = [0, 256], sizes = [12, 128], strides = [1, 1]} : vector<12x384xf32> to vector<12x128xf32>
    %708 = vector.extract_strided_slice %690 {offsets = [0, 256], sizes = [12, 128], strides = [1, 1]} : vector<12x384xf32> to vector<12x128xf32>
    %709 = arith.mulf %698, %708 : vector<12x128xf32>
    %710 = arith.addf %707, %709 : vector<12x128xf32>
    %711 = math.tanh %710 : vector<12x128xf32>
    %cst_225 = arith.constant 1.000000e+00 : f32
    %712 = vector.broadcast %cst_225 : f32 to vector<12x128xf32>
    %713 = arith.subf %712, %706 : vector<12x128xf32>
    %714 = arith.mulf %713, %711 : vector<12x128xf32>
    %715 = arith.mulf %706, %682 : vector<12x128xf32>
    %716 = arith.addf %714, %715 : vector<12x128xf32>
    %c0_226 = arith.constant 0 : index
    %c0_227 = arith.constant 0 : index
    %717 = vector.load %arg19[%c0_226, %c0_227] : memref<8x384xf32, #tpu.memory_space<vmem>>, vector<8x384xf32>
    %cst_228 = arith.constant dense<0.000000e+00> : vector<12x384xf32>
    %718 = tpu.matmul %553, %717, %cst_228 {dimension_numbers = #tpu.dot_dimension_numbers<[1], [0], [0], [1], [0, 0, 1, 1], [], []>} : vector<12x8xf32>, vector<8x384xf32>, vector<12x384xf32> -> vector<12x384xf32>
    %719 = vector.broadcast %579 : vector<1x384xf32> to vector<12x384xf32>
    %720 = arith.addf %718, %719 : vector<12x384xf32>
    %c0_229 = arith.constant 0 : index
    %c0_230 = arith.constant 0 : index
    %721 = vector.load %arg20[%c0_229, %c0_230] : memref<128x384xf32, #tpu.memory_space<vmem>>, vector<128x384xf32>
    %cst_231 = arith.constant dense<0.000000e+00> : vector<12x384xf32>
    %722 = tpu.matmul %716, %721, %cst_231 {dimension_numbers = #tpu.dot_dimension_numbers<[1], [0], [0], [1], [0, 0, 1, 1], [], []>} : vector<12x128xf32>, vector<128x384xf32>, vector<12x384xf32> -> vector<12x384xf32>
    %723 = vector.broadcast %580 : vector<1x384xf32> to vector<12x384xf32>
    %724 = arith.addf %722, %723 : vector<12x384xf32>
    %725 = vector.extract_strided_slice %720 {offsets = [0, 0], sizes = [12, 128], strides = [1, 1]} : vector<12x384xf32> to vector<12x128xf32>
    %726 = vector.extract_strided_slice %724 {offsets = [0, 0], sizes = [12, 128], strides = [1, 1]} : vector<12x384xf32> to vector<12x128xf32>
    %727 = arith.addf %725, %726 : vector<12x128xf32>
    %728 = arith.negf %727 : vector<12x128xf32>
    %729 = math.exp %728 : vector<12x128xf32>
    %cst_232 = arith.constant 1.000000e+00 : f32
    %730 = vector.broadcast %cst_232 : f32 to vector<12x128xf32>
    %731 = arith.addf %730, %729 : vector<12x128xf32>
    %732 = arith.divf %730, %731 : vector<12x128xf32>
    %733 = vector.extract_strided_slice %720 {offsets = [0, 128], sizes = [12, 128], strides = [1, 1]} : vector<12x384xf32> to vector<12x128xf32>
    %734 = vector.extract_strided_slice %724 {offsets = [0, 128], sizes = [12, 128], strides = [1, 1]} : vector<12x384xf32> to vector<12x128xf32>
    %735 = arith.addf %733, %734 : vector<12x128xf32>
    %736 = arith.negf %735 : vector<12x128xf32>
    %737 = math.exp %736 : vector<12x128xf32>
    %cst_233 = arith.constant 1.000000e+00 : f32
    %738 = vector.broadcast %cst_233 : f32 to vector<12x128xf32>
    %739 = arith.addf %738, %737 : vector<12x128xf32>
    %740 = arith.divf %738, %739 : vector<12x128xf32>
    %741 = vector.extract_strided_slice %720 {offsets = [0, 256], sizes = [12, 128], strides = [1, 1]} : vector<12x384xf32> to vector<12x128xf32>
    %742 = vector.extract_strided_slice %724 {offsets = [0, 256], sizes = [12, 128], strides = [1, 1]} : vector<12x384xf32> to vector<12x128xf32>
    %743 = arith.mulf %732, %742 : vector<12x128xf32>
    %744 = arith.addf %741, %743 : vector<12x128xf32>
    %745 = math.tanh %744 : vector<12x128xf32>
    %cst_234 = arith.constant 1.000000e+00 : f32
    %746 = vector.broadcast %cst_234 : f32 to vector<12x128xf32>
    %747 = arith.subf %746, %740 : vector<12x128xf32>
    %748 = arith.mulf %747, %745 : vector<12x128xf32>
    %749 = arith.mulf %740, %716 : vector<12x128xf32>
    %750 = arith.addf %748, %749 : vector<12x128xf32>
    %c0_235 = arith.constant 0 : index
    %c0_236 = arith.constant 0 : index
    %751 = vector.load %arg19[%c0_235, %c0_236] : memref<8x384xf32, #tpu.memory_space<vmem>>, vector<8x384xf32>
    %cst_237 = arith.constant dense<0.000000e+00> : vector<12x384xf32>
    %752 = tpu.matmul %561, %751, %cst_237 {dimension_numbers = #tpu.dot_dimension_numbers<[1], [0], [0], [1], [0, 0, 1, 1], [], []>} : vector<12x8xf32>, vector<8x384xf32>, vector<12x384xf32> -> vector<12x384xf32>
    %753 = vector.broadcast %579 : vector<1x384xf32> to vector<12x384xf32>
    %754 = arith.addf %752, %753 : vector<12x384xf32>
    %c0_238 = arith.constant 0 : index
    %c0_239 = arith.constant 0 : index
    %755 = vector.load %arg20[%c0_238, %c0_239] : memref<128x384xf32, #tpu.memory_space<vmem>>, vector<128x384xf32>
    %cst_240 = arith.constant dense<0.000000e+00> : vector<12x384xf32>
    %756 = tpu.matmul %750, %755, %cst_240 {dimension_numbers = #tpu.dot_dimension_numbers<[1], [0], [0], [1], [0, 0, 1, 1], [], []>} : vector<12x128xf32>, vector<128x384xf32>, vector<12x384xf32> -> vector<12x384xf32>
    %757 = vector.broadcast %580 : vector<1x384xf32> to vector<12x384xf32>
    %758 = arith.addf %756, %757 : vector<12x384xf32>
    %759 = vector.extract_strided_slice %754 {offsets = [0, 0], sizes = [12, 128], strides = [1, 1]} : vector<12x384xf32> to vector<12x128xf32>
    %760 = vector.extract_strided_slice %758 {offsets = [0, 0], sizes = [12, 128], strides = [1, 1]} : vector<12x384xf32> to vector<12x128xf32>
    %761 = arith.addf %759, %760 : vector<12x128xf32>
    %762 = arith.negf %761 : vector<12x128xf32>
    %763 = math.exp %762 : vector<12x128xf32>
    %cst_241 = arith.constant 1.000000e+00 : f32
    %764 = vector.broadcast %cst_241 : f32 to vector<12x128xf32>
    %765 = arith.addf %764, %763 : vector<12x128xf32>
    %766 = arith.divf %764, %765 : vector<12x128xf32>
    %767 = vector.extract_strided_slice %754 {offsets = [0, 128], sizes = [12, 128], strides = [1, 1]} : vector<12x384xf32> to vector<12x128xf32>
    %768 = vector.extract_strided_slice %758 {offsets = [0, 128], sizes = [12, 128], strides = [1, 1]} : vector<12x384xf32> to vector<12x128xf32>
    %769 = arith.addf %767, %768 : vector<12x128xf32>
    %770 = arith.negf %769 : vector<12x128xf32>
    %771 = math.exp %770 : vector<12x128xf32>
    %cst_242 = arith.constant 1.000000e+00 : f32
    %772 = vector.broadcast %cst_242 : f32 to vector<12x128xf32>
    %773 = arith.addf %772, %771 : vector<12x128xf32>
    %774 = arith.divf %772, %773 : vector<12x128xf32>
    %775 = vector.extract_strided_slice %754 {offsets = [0, 256], sizes = [12, 128], strides = [1, 1]} : vector<12x384xf32> to vector<12x128xf32>
    %776 = vector.extract_strided_slice %758 {offsets = [0, 256], sizes = [12, 128], strides = [1, 1]} : vector<12x384xf32> to vector<12x128xf32>
    %777 = arith.mulf %766, %776 : vector<12x128xf32>
    %778 = arith.addf %775, %777 : vector<12x128xf32>
    %779 = math.tanh %778 : vector<12x128xf32>
    %cst_243 = arith.constant 1.000000e+00 : f32
    %780 = vector.broadcast %cst_243 : f32 to vector<12x128xf32>
    %781 = arith.subf %780, %774 : vector<12x128xf32>
    %782 = arith.mulf %781, %779 : vector<12x128xf32>
    %783 = arith.mulf %774, %750 : vector<12x128xf32>
    %784 = arith.addf %782, %783 : vector<12x128xf32>
    %c0_244 = arith.constant 0 : index
    %c0_245 = arith.constant 0 : index
    %785 = vector.load %arg19[%c0_244, %c0_245] : memref<8x384xf32, #tpu.memory_space<vmem>>, vector<8x384xf32>
    %cst_246 = arith.constant dense<0.000000e+00> : vector<12x384xf32>
    %786 = tpu.matmul %569, %785, %cst_246 {dimension_numbers = #tpu.dot_dimension_numbers<[1], [0], [0], [1], [0, 0, 1, 1], [], []>} : vector<12x8xf32>, vector<8x384xf32>, vector<12x384xf32> -> vector<12x384xf32>
    %787 = vector.broadcast %579 : vector<1x384xf32> to vector<12x384xf32>
    %788 = arith.addf %786, %787 : vector<12x384xf32>
    %c0_247 = arith.constant 0 : index
    %c0_248 = arith.constant 0 : index
    %789 = vector.load %arg20[%c0_247, %c0_248] : memref<128x384xf32, #tpu.memory_space<vmem>>, vector<128x384xf32>
    %cst_249 = arith.constant dense<0.000000e+00> : vector<12x384xf32>
    %790 = tpu.matmul %784, %789, %cst_249 {dimension_numbers = #tpu.dot_dimension_numbers<[1], [0], [0], [1], [0, 0, 1, 1], [], []>} : vector<12x128xf32>, vector<128x384xf32>, vector<12x384xf32> -> vector<12x384xf32>
    %791 = vector.broadcast %580 : vector<1x384xf32> to vector<12x384xf32>
    %792 = arith.addf %790, %791 : vector<12x384xf32>
    %793 = vector.extract_strided_slice %788 {offsets = [0, 0], sizes = [12, 128], strides = [1, 1]} : vector<12x384xf32> to vector<12x128xf32>
    %794 = vector.extract_strided_slice %792 {offsets = [0, 0], sizes = [12, 128], strides = [1, 1]} : vector<12x384xf32> to vector<12x128xf32>
    %795 = arith.addf %793, %794 : vector<12x128xf32>
    %796 = arith.negf %795 : vector<12x128xf32>
    %797 = math.exp %796 : vector<12x128xf32>
    %cst_250 = arith.constant 1.000000e+00 : f32
    %798 = vector.broadcast %cst_250 : f32 to vector<12x128xf32>
    %799 = arith.addf %798, %797 : vector<12x128xf32>
    %800 = arith.divf %798, %799 : vector<12x128xf32>
    %801 = vector.extract_strided_slice %788 {offsets = [0, 128], sizes = [12, 128], strides = [1, 1]} : vector<12x384xf32> to vector<12x128xf32>
    %802 = vector.extract_strided_slice %792 {offsets = [0, 128], sizes = [12, 128], strides = [1, 1]} : vector<12x384xf32> to vector<12x128xf32>
    %803 = arith.addf %801, %802 : vector<12x128xf32>
    %804 = arith.negf %803 : vector<12x128xf32>
    %805 = math.exp %804 : vector<12x128xf32>
    %cst_251 = arith.constant 1.000000e+00 : f32
    %806 = vector.broadcast %cst_251 : f32 to vector<12x128xf32>
    %807 = arith.addf %806, %805 : vector<12x128xf32>
    %808 = arith.divf %806, %807 : vector<12x128xf32>
    %809 = vector.extract_strided_slice %788 {offsets = [0, 256], sizes = [12, 128], strides = [1, 1]} : vector<12x384xf32> to vector<12x128xf32>
    %810 = vector.extract_strided_slice %792 {offsets = [0, 256], sizes = [12, 128], strides = [1, 1]} : vector<12x384xf32> to vector<12x128xf32>
    %811 = arith.mulf %800, %810 : vector<12x128xf32>
    %812 = arith.addf %809, %811 : vector<12x128xf32>
    %813 = math.tanh %812 : vector<12x128xf32>
    %cst_252 = arith.constant 1.000000e+00 : f32
    %814 = vector.broadcast %cst_252 : f32 to vector<12x128xf32>
    %815 = arith.subf %814, %808 : vector<12x128xf32>
    %816 = arith.mulf %815, %813 : vector<12x128xf32>
    %817 = arith.mulf %808, %784 : vector<12x128xf32>
    %818 = arith.addf %816, %817 : vector<12x128xf32>
    %c0_253 = arith.constant 0 : index
    %c0_254 = arith.constant 0 : index
    %819 = vector.load %arg19[%c0_253, %c0_254] : memref<8x384xf32, #tpu.memory_space<vmem>>, vector<8x384xf32>
    %cst_255 = arith.constant dense<0.000000e+00> : vector<12x384xf32>
    %820 = tpu.matmul %577, %819, %cst_255 {dimension_numbers = #tpu.dot_dimension_numbers<[1], [0], [0], [1], [0, 0, 1, 1], [], []>} : vector<12x8xf32>, vector<8x384xf32>, vector<12x384xf32> -> vector<12x384xf32>
    %821 = vector.broadcast %579 : vector<1x384xf32> to vector<12x384xf32>
    %822 = arith.addf %820, %821 : vector<12x384xf32>
    %c0_256 = arith.constant 0 : index
    %c0_257 = arith.constant 0 : index
    %823 = vector.load %arg20[%c0_256, %c0_257] : memref<128x384xf32, #tpu.memory_space<vmem>>, vector<128x384xf32>
    %cst_258 = arith.constant dense<0.000000e+00> : vector<12x384xf32>
    %824 = tpu.matmul %818, %823, %cst_258 {dimension_numbers = #tpu.dot_dimension_numbers<[1], [0], [0], [1], [0, 0, 1, 1], [], []>} : vector<12x128xf32>, vector<128x384xf32>, vector<12x384xf32> -> vector<12x384xf32>
    %825 = vector.broadcast %580 : vector<1x384xf32> to vector<12x384xf32>
    %826 = arith.addf %824, %825 : vector<12x384xf32>
    %827 = vector.extract_strided_slice %822 {offsets = [0, 0], sizes = [12, 128], strides = [1, 1]} : vector<12x384xf32> to vector<12x128xf32>
    %828 = vector.extract_strided_slice %826 {offsets = [0, 0], sizes = [12, 128], strides = [1, 1]} : vector<12x384xf32> to vector<12x128xf32>
    %829 = arith.addf %827, %828 : vector<12x128xf32>
    %830 = arith.negf %829 : vector<12x128xf32>
    %831 = math.exp %830 : vector<12x128xf32>
    %cst_259 = arith.constant 1.000000e+00 : f32
    %832 = vector.broadcast %cst_259 : f32 to vector<12x128xf32>
    %833 = arith.addf %832, %831 : vector<12x128xf32>
    %834 = arith.divf %832, %833 : vector<12x128xf32>
    %835 = vector.extract_strided_slice %822 {offsets = [0, 128], sizes = [12, 128], strides = [1, 1]} : vector<12x384xf32> to vector<12x128xf32>
    %836 = vector.extract_strided_slice %826 {offsets = [0, 128], sizes = [12, 128], strides = [1, 1]} : vector<12x384xf32> to vector<12x128xf32>
    %837 = arith.addf %835, %836 : vector<12x128xf32>
    %838 = arith.negf %837 : vector<12x128xf32>
    %839 = math.exp %838 : vector<12x128xf32>
    %cst_260 = arith.constant 1.000000e+00 : f32
    %840 = vector.broadcast %cst_260 : f32 to vector<12x128xf32>
    %841 = arith.addf %840, %839 : vector<12x128xf32>
    %842 = arith.divf %840, %841 : vector<12x128xf32>
    %843 = vector.extract_strided_slice %822 {offsets = [0, 256], sizes = [12, 128], strides = [1, 1]} : vector<12x384xf32> to vector<12x128xf32>
    %844 = vector.extract_strided_slice %826 {offsets = [0, 256], sizes = [12, 128], strides = [1, 1]} : vector<12x384xf32> to vector<12x128xf32>
    %845 = arith.mulf %834, %844 : vector<12x128xf32>
    %846 = arith.addf %843, %845 : vector<12x128xf32>
    %847 = math.tanh %846 : vector<12x128xf32>
    %cst_261 = arith.constant 1.000000e+00 : f32
    %848 = vector.broadcast %cst_261 : f32 to vector<12x128xf32>
    %849 = arith.subf %848, %842 : vector<12x128xf32>
    %850 = arith.mulf %849, %847 : vector<12x128xf32>
    %851 = arith.mulf %842, %818 : vector<12x128xf32>
    %852 = arith.addf %850, %851 : vector<12x128xf32>
    %c0_262 = arith.constant 0 : index
    %c0_263 = arith.constant 0 : index
    %853 = vector.load %arg25[%c0_262, %c0_263] : memref<1x384xf32, #tpu.memory_space<vmem>>, vector<1x384xf32>
    %c0_264 = arith.constant 0 : index
    %c0_265 = arith.constant 0 : index
    %854 = vector.load %arg26[%c0_264, %c0_265] : memref<1x384xf32, #tpu.memory_space<vmem>>, vector<1x384xf32>
    %c0_266 = arith.constant 0 : index
    %c0_267 = arith.constant 0 : index
    %855 = vector.load %arg23[%c0_266, %c0_267] : memref<128x384xf32, #tpu.memory_space<vmem>>, vector<128x384xf32>
    %cst_268 = arith.constant dense<0.000000e+00> : vector<12x384xf32>
    %856 = tpu.matmul %614, %855, %cst_268 {dimension_numbers = #tpu.dot_dimension_numbers<[1], [0], [0], [1], [0, 0, 1, 1], [], []>} : vector<12x128xf32>, vector<128x384xf32>, vector<12x384xf32> -> vector<12x384xf32>
    %857 = vector.broadcast %853 : vector<1x384xf32> to vector<12x384xf32>
    %858 = arith.addf %856, %857 : vector<12x384xf32>
    %c0_269 = arith.constant 0 : index
    %c0_270 = arith.constant 0 : index
    %859 = vector.load %arg24[%c0_269, %c0_270] : memref<128x384xf32, #tpu.memory_space<vmem>>, vector<128x384xf32>
    %cst_271 = arith.constant dense<0.000000e+00> : vector<12x384xf32>
    %860 = tpu.matmul %578, %859, %cst_271 {dimension_numbers = #tpu.dot_dimension_numbers<[1], [0], [0], [1], [0, 0, 1, 1], [], []>} : vector<12x128xf32>, vector<128x384xf32>, vector<12x384xf32> -> vector<12x384xf32>
    %861 = vector.broadcast %854 : vector<1x384xf32> to vector<12x384xf32>
    %862 = arith.addf %860, %861 : vector<12x384xf32>
    %863 = vector.extract_strided_slice %858 {offsets = [0, 0], sizes = [12, 128], strides = [1, 1]} : vector<12x384xf32> to vector<12x128xf32>
    %864 = vector.extract_strided_slice %862 {offsets = [0, 0], sizes = [12, 128], strides = [1, 1]} : vector<12x384xf32> to vector<12x128xf32>
    %865 = arith.addf %863, %864 : vector<12x128xf32>
    %866 = arith.negf %865 : vector<12x128xf32>
    %867 = math.exp %866 : vector<12x128xf32>
    %cst_272 = arith.constant 1.000000e+00 : f32
    %868 = vector.broadcast %cst_272 : f32 to vector<12x128xf32>
    %869 = arith.addf %868, %867 : vector<12x128xf32>
    %870 = arith.divf %868, %869 : vector<12x128xf32>
    %871 = vector.extract_strided_slice %858 {offsets = [0, 128], sizes = [12, 128], strides = [1, 1]} : vector<12x384xf32> to vector<12x128xf32>
    %872 = vector.extract_strided_slice %862 {offsets = [0, 128], sizes = [12, 128], strides = [1, 1]} : vector<12x384xf32> to vector<12x128xf32>
    %873 = arith.addf %871, %872 : vector<12x128xf32>
    %874 = arith.negf %873 : vector<12x128xf32>
    %875 = math.exp %874 : vector<12x128xf32>
    %cst_273 = arith.constant 1.000000e+00 : f32
    %876 = vector.broadcast %cst_273 : f32 to vector<12x128xf32>
    %877 = arith.addf %876, %875 : vector<12x128xf32>
    %878 = arith.divf %876, %877 : vector<12x128xf32>
    %879 = vector.extract_strided_slice %858 {offsets = [0, 256], sizes = [12, 128], strides = [1, 1]} : vector<12x384xf32> to vector<12x128xf32>
    %880 = vector.extract_strided_slice %862 {offsets = [0, 256], sizes = [12, 128], strides = [1, 1]} : vector<12x384xf32> to vector<12x128xf32>
    %881 = arith.mulf %870, %880 : vector<12x128xf32>
    %882 = arith.addf %879, %881 : vector<12x128xf32>
    %883 = math.tanh %882 : vector<12x128xf32>
    %cst_274 = arith.constant 1.000000e+00 : f32
    %884 = vector.broadcast %cst_274 : f32 to vector<12x128xf32>
    %885 = arith.subf %884, %878 : vector<12x128xf32>
    %886 = arith.mulf %885, %883 : vector<12x128xf32>
    %887 = arith.mulf %878, %578 : vector<12x128xf32>
    %888 = arith.addf %886, %887 : vector<12x128xf32>
    %c0_275 = arith.constant 0 : index
    %c0_276 = arith.constant 0 : index
    %889 = vector.load %arg23[%c0_275, %c0_276] : memref<128x384xf32, #tpu.memory_space<vmem>>, vector<128x384xf32>
    %cst_277 = arith.constant dense<0.000000e+00> : vector<12x384xf32>
    %890 = tpu.matmul %648, %889, %cst_277 {dimension_numbers = #tpu.dot_dimension_numbers<[1], [0], [0], [1], [0, 0, 1, 1], [], []>} : vector<12x128xf32>, vector<128x384xf32>, vector<12x384xf32> -> vector<12x384xf32>
    %891 = vector.broadcast %853 : vector<1x384xf32> to vector<12x384xf32>
    %892 = arith.addf %890, %891 : vector<12x384xf32>
    %c0_278 = arith.constant 0 : index
    %c0_279 = arith.constant 0 : index
    %893 = vector.load %arg24[%c0_278, %c0_279] : memref<128x384xf32, #tpu.memory_space<vmem>>, vector<128x384xf32>
    %cst_280 = arith.constant dense<0.000000e+00> : vector<12x384xf32>
    %894 = tpu.matmul %888, %893, %cst_280 {dimension_numbers = #tpu.dot_dimension_numbers<[1], [0], [0], [1], [0, 0, 1, 1], [], []>} : vector<12x128xf32>, vector<128x384xf32>, vector<12x384xf32> -> vector<12x384xf32>
    %895 = vector.broadcast %854 : vector<1x384xf32> to vector<12x384xf32>
    %896 = arith.addf %894, %895 : vector<12x384xf32>
    %897 = vector.extract_strided_slice %892 {offsets = [0, 0], sizes = [12, 128], strides = [1, 1]} : vector<12x384xf32> to vector<12x128xf32>
    %898 = vector.extract_strided_slice %896 {offsets = [0, 0], sizes = [12, 128], strides = [1, 1]} : vector<12x384xf32> to vector<12x128xf32>
    %899 = arith.addf %897, %898 : vector<12x128xf32>
    %900 = arith.negf %899 : vector<12x128xf32>
    %901 = math.exp %900 : vector<12x128xf32>
    %cst_281 = arith.constant 1.000000e+00 : f32
    %902 = vector.broadcast %cst_281 : f32 to vector<12x128xf32>
    %903 = arith.addf %902, %901 : vector<12x128xf32>
    %904 = arith.divf %902, %903 : vector<12x128xf32>
    %905 = vector.extract_strided_slice %892 {offsets = [0, 128], sizes = [12, 128], strides = [1, 1]} : vector<12x384xf32> to vector<12x128xf32>
    %906 = vector.extract_strided_slice %896 {offsets = [0, 128], sizes = [12, 128], strides = [1, 1]} : vector<12x384xf32> to vector<12x128xf32>
    %907 = arith.addf %905, %906 : vector<12x128xf32>
    %908 = arith.negf %907 : vector<12x128xf32>
    %909 = math.exp %908 : vector<12x128xf32>
    %cst_282 = arith.constant 1.000000e+00 : f32
    %910 = vector.broadcast %cst_282 : f32 to vector<12x128xf32>
    %911 = arith.addf %910, %909 : vector<12x128xf32>
    %912 = arith.divf %910, %911 : vector<12x128xf32>
    %913 = vector.extract_strided_slice %892 {offsets = [0, 256], sizes = [12, 128], strides = [1, 1]} : vector<12x384xf32> to vector<12x128xf32>
    %914 = vector.extract_strided_slice %896 {offsets = [0, 256], sizes = [12, 128], strides = [1, 1]} : vector<12x384xf32> to vector<12x128xf32>
    %915 = arith.mulf %904, %914 : vector<12x128xf32>
    %916 = arith.addf %913, %915 : vector<12x128xf32>
    %917 = math.tanh %916 : vector<12x128xf32>
    %cst_283 = arith.constant 1.000000e+00 : f32
    %918 = vector.broadcast %cst_283 : f32 to vector<12x128xf32>
    %919 = arith.subf %918, %912 : vector<12x128xf32>
    %920 = arith.mulf %919, %917 : vector<12x128xf32>
    %921 = arith.mulf %912, %888 : vector<12x128xf32>
    %922 = arith.addf %920, %921 : vector<12x128xf32>
    %c0_284 = arith.constant 0 : index
    %c0_285 = arith.constant 0 : index
    %923 = vector.load %arg23[%c0_284, %c0_285] : memref<128x384xf32, #tpu.memory_space<vmem>>, vector<128x384xf32>
    %cst_286 = arith.constant dense<0.000000e+00> : vector<12x384xf32>
    %924 = tpu.matmul %682, %923, %cst_286 {dimension_numbers = #tpu.dot_dimension_numbers<[1], [0], [0], [1], [0, 0, 1, 1], [], []>} : vector<12x128xf32>, vector<128x384xf32>, vector<12x384xf32> -> vector<12x384xf32>
    %925 = vector.broadcast %853 : vector<1x384xf32> to vector<12x384xf32>
    %926 = arith.addf %924, %925 : vector<12x384xf32>
    %c0_287 = arith.constant 0 : index
    %c0_288 = arith.constant 0 : index
    %927 = vector.load %arg24[%c0_287, %c0_288] : memref<128x384xf32, #tpu.memory_space<vmem>>, vector<128x384xf32>
    %cst_289 = arith.constant dense<0.000000e+00> : vector<12x384xf32>
    %928 = tpu.matmul %922, %927, %cst_289 {dimension_numbers = #tpu.dot_dimension_numbers<[1], [0], [0], [1], [0, 0, 1, 1], [], []>} : vector<12x128xf32>, vector<128x384xf32>, vector<12x384xf32> -> vector<12x384xf32>
    %929 = vector.broadcast %854 : vector<1x384xf32> to vector<12x384xf32>
    %930 = arith.addf %928, %929 : vector<12x384xf32>
    %931 = vector.extract_strided_slice %926 {offsets = [0, 0], sizes = [12, 128], strides = [1, 1]} : vector<12x384xf32> to vector<12x128xf32>
    %932 = vector.extract_strided_slice %930 {offsets = [0, 0], sizes = [12, 128], strides = [1, 1]} : vector<12x384xf32> to vector<12x128xf32>
    %933 = arith.addf %931, %932 : vector<12x128xf32>
    %934 = arith.negf %933 : vector<12x128xf32>
    %935 = math.exp %934 : vector<12x128xf32>
    %cst_290 = arith.constant 1.000000e+00 : f32
    %936 = vector.broadcast %cst_290 : f32 to vector<12x128xf32>
    %937 = arith.addf %936, %935 : vector<12x128xf32>
    %938 = arith.divf %936, %937 : vector<12x128xf32>
    %939 = vector.extract_strided_slice %926 {offsets = [0, 128], sizes = [12, 128], strides = [1, 1]} : vector<12x384xf32> to vector<12x128xf32>
    %940 = vector.extract_strided_slice %930 {offsets = [0, 128], sizes = [12, 128], strides = [1, 1]} : vector<12x384xf32> to vector<12x128xf32>
    %941 = arith.addf %939, %940 : vector<12x128xf32>
    %942 = arith.negf %941 : vector<12x128xf32>
    %943 = math.exp %942 : vector<12x128xf32>
    %cst_291 = arith.constant 1.000000e+00 : f32
    %944 = vector.broadcast %cst_291 : f32 to vector<12x128xf32>
    %945 = arith.addf %944, %943 : vector<12x128xf32>
    %946 = arith.divf %944, %945 : vector<12x128xf32>
    %947 = vector.extract_strided_slice %926 {offsets = [0, 256], sizes = [12, 128], strides = [1, 1]} : vector<12x384xf32> to vector<12x128xf32>
    %948 = vector.extract_strided_slice %930 {offsets = [0, 256], sizes = [12, 128], strides = [1, 1]} : vector<12x384xf32> to vector<12x128xf32>
    %949 = arith.mulf %938, %948 : vector<12x128xf32>
    %950 = arith.addf %947, %949 : vector<12x128xf32>
    %951 = math.tanh %950 : vector<12x128xf32>
    %cst_292 = arith.constant 1.000000e+00 : f32
    %952 = vector.broadcast %cst_292 : f32 to vector<12x128xf32>
    %953 = arith.subf %952, %946 : vector<12x128xf32>
    %954 = arith.mulf %953, %951 : vector<12x128xf32>
    %955 = arith.mulf %946, %922 : vector<12x128xf32>
    %956 = arith.addf %954, %955 : vector<12x128xf32>
    %c0_293 = arith.constant 0 : index
    %c0_294 = arith.constant 0 : index
    %957 = vector.load %arg23[%c0_293, %c0_294] : memref<128x384xf32, #tpu.memory_space<vmem>>, vector<128x384xf32>
    %cst_295 = arith.constant dense<0.000000e+00> : vector<12x384xf32>
    %958 = tpu.matmul %716, %957, %cst_295 {dimension_numbers = #tpu.dot_dimension_numbers<[1], [0], [0], [1], [0, 0, 1, 1], [], []>} : vector<12x128xf32>, vector<128x384xf32>, vector<12x384xf32> -> vector<12x384xf32>
    %959 = vector.broadcast %853 : vector<1x384xf32> to vector<12x384xf32>
    %960 = arith.addf %958, %959 : vector<12x384xf32>
    %c0_296 = arith.constant 0 : index
    %c0_297 = arith.constant 0 : index
    %961 = vector.load %arg24[%c0_296, %c0_297] : memref<128x384xf32, #tpu.memory_space<vmem>>, vector<128x384xf32>
    %cst_298 = arith.constant dense<0.000000e+00> : vector<12x384xf32>
    %962 = tpu.matmul %956, %961, %cst_298 {dimension_numbers = #tpu.dot_dimension_numbers<[1], [0], [0], [1], [0, 0, 1, 1], [], []>} : vector<12x128xf32>, vector<128x384xf32>, vector<12x384xf32> -> vector<12x384xf32>
    %963 = vector.broadcast %854 : vector<1x384xf32> to vector<12x384xf32>
    %964 = arith.addf %962, %963 : vector<12x384xf32>
    %965 = vector.extract_strided_slice %960 {offsets = [0, 0], sizes = [12, 128], strides = [1, 1]} : vector<12x384xf32> to vector<12x128xf32>
    %966 = vector.extract_strided_slice %964 {offsets = [0, 0], sizes = [12, 128], strides = [1, 1]} : vector<12x384xf32> to vector<12x128xf32>
    %967 = arith.addf %965, %966 : vector<12x128xf32>
    %968 = arith.negf %967 : vector<12x128xf32>
    %969 = math.exp %968 : vector<12x128xf32>
    %cst_299 = arith.constant 1.000000e+00 : f32
    %970 = vector.broadcast %cst_299 : f32 to vector<12x128xf32>
    %971 = arith.addf %970, %969 : vector<12x128xf32>
    %972 = arith.divf %970, %971 : vector<12x128xf32>
    %973 = vector.extract_strided_slice %960 {offsets = [0, 128], sizes = [12, 128], strides = [1, 1]} : vector<12x384xf32> to vector<12x128xf32>
    %974 = vector.extract_strided_slice %964 {offsets = [0, 128], sizes = [12, 128], strides = [1, 1]} : vector<12x384xf32> to vector<12x128xf32>
    %975 = arith.addf %973, %974 : vector<12x128xf32>
    %976 = arith.negf %975 : vector<12x128xf32>
    %977 = math.exp %976 : vector<12x128xf32>
    %cst_300 = arith.constant 1.000000e+00 : f32
    %978 = vector.broadcast %cst_300 : f32 to vector<12x128xf32>
    %979 = arith.addf %978, %977 : vector<12x128xf32>
    %980 = arith.divf %978, %979 : vector<12x128xf32>
    %981 = vector.extract_strided_slice %960 {offsets = [0, 256], sizes = [12, 128], strides = [1, 1]} : vector<12x384xf32> to vector<12x128xf32>
    %982 = vector.extract_strided_slice %964 {offsets = [0, 256], sizes = [12, 128], strides = [1, 1]} : vector<12x384xf32> to vector<12x128xf32>
    %983 = arith.mulf %972, %982 : vector<12x128xf32>
    %984 = arith.addf %981, %983 : vector<12x128xf32>
    %985 = math.tanh %984 : vector<12x128xf32>
    %cst_301 = arith.constant 1.000000e+00 : f32
    %986 = vector.broadcast %cst_301 : f32 to vector<12x128xf32>
    %987 = arith.subf %986, %980 : vector<12x128xf32>
    %988 = arith.mulf %987, %985 : vector<12x128xf32>
    %989 = arith.mulf %980, %956 : vector<12x128xf32>
    %990 = arith.addf %988, %989 : vector<12x128xf32>
    %c0_302 = arith.constant 0 : index
    %c0_303 = arith.constant 0 : index
    %991 = vector.load %arg23[%c0_302, %c0_303] : memref<128x384xf32, #tpu.memory_space<vmem>>, vector<128x384xf32>
    %cst_304 = arith.constant dense<0.000000e+00> : vector<12x384xf32>
    %992 = tpu.matmul %750, %991, %cst_304 {dimension_numbers = #tpu.dot_dimension_numbers<[1], [0], [0], [1], [0, 0, 1, 1], [], []>} : vector<12x128xf32>, vector<128x384xf32>, vector<12x384xf32> -> vector<12x384xf32>
    %993 = vector.broadcast %853 : vector<1x384xf32> to vector<12x384xf32>
    %994 = arith.addf %992, %993 : vector<12x384xf32>
    %c0_305 = arith.constant 0 : index
    %c0_306 = arith.constant 0 : index
    %995 = vector.load %arg24[%c0_305, %c0_306] : memref<128x384xf32, #tpu.memory_space<vmem>>, vector<128x384xf32>
    %cst_307 = arith.constant dense<0.000000e+00> : vector<12x384xf32>
    %996 = tpu.matmul %990, %995, %cst_307 {dimension_numbers = #tpu.dot_dimension_numbers<[1], [0], [0], [1], [0, 0, 1, 1], [], []>} : vector<12x128xf32>, vector<128x384xf32>, vector<12x384xf32> -> vector<12x384xf32>
    %997 = vector.broadcast %854 : vector<1x384xf32> to vector<12x384xf32>
    %998 = arith.addf %996, %997 : vector<12x384xf32>
    %999 = vector.extract_strided_slice %994 {offsets = [0, 0], sizes = [12, 128], strides = [1, 1]} : vector<12x384xf32> to vector<12x128xf32>
    %1000 = vector.extract_strided_slice %998 {offsets = [0, 0], sizes = [12, 128], strides = [1, 1]} : vector<12x384xf32> to vector<12x128xf32>
    %1001 = arith.addf %999, %1000 : vector<12x128xf32>
    %1002 = arith.negf %1001 : vector<12x128xf32>
    %1003 = math.exp %1002 : vector<12x128xf32>
    %cst_308 = arith.constant 1.000000e+00 : f32
    %1004 = vector.broadcast %cst_308 : f32 to vector<12x128xf32>
    %1005 = arith.addf %1004, %1003 : vector<12x128xf32>
    %1006 = arith.divf %1004, %1005 : vector<12x128xf32>
    %1007 = vector.extract_strided_slice %994 {offsets = [0, 128], sizes = [12, 128], strides = [1, 1]} : vector<12x384xf32> to vector<12x128xf32>
    %1008 = vector.extract_strided_slice %998 {offsets = [0, 128], sizes = [12, 128], strides = [1, 1]} : vector<12x384xf32> to vector<12x128xf32>
    %1009 = arith.addf %1007, %1008 : vector<12x128xf32>
    %1010 = arith.negf %1009 : vector<12x128xf32>
    %1011 = math.exp %1010 : vector<12x128xf32>
    %cst_309 = arith.constant 1.000000e+00 : f32
    %1012 = vector.broadcast %cst_309 : f32 to vector<12x128xf32>
    %1013 = arith.addf %1012, %1011 : vector<12x128xf32>
    %1014 = arith.divf %1012, %1013 : vector<12x128xf32>
    %1015 = vector.extract_strided_slice %994 {offsets = [0, 256], sizes = [12, 128], strides = [1, 1]} : vector<12x384xf32> to vector<12x128xf32>
    %1016 = vector.extract_strided_slice %998 {offsets = [0, 256], sizes = [12, 128], strides = [1, 1]} : vector<12x384xf32> to vector<12x128xf32>
    %1017 = arith.mulf %1006, %1016 : vector<12x128xf32>
    %1018 = arith.addf %1015, %1017 : vector<12x128xf32>
    %1019 = math.tanh %1018 : vector<12x128xf32>
    %cst_310 = arith.constant 1.000000e+00 : f32
    %1020 = vector.broadcast %cst_310 : f32 to vector<12x128xf32>
    %1021 = arith.subf %1020, %1014 : vector<12x128xf32>
    %1022 = arith.mulf %1021, %1019 : vector<12x128xf32>
    %1023 = arith.mulf %1014, %990 : vector<12x128xf32>
    %1024 = arith.addf %1022, %1023 : vector<12x128xf32>
    %c0_311 = arith.constant 0 : index
    %c0_312 = arith.constant 0 : index
    %1025 = vector.load %arg23[%c0_311, %c0_312] : memref<128x384xf32, #tpu.memory_space<vmem>>, vector<128x384xf32>
    %cst_313 = arith.constant dense<0.000000e+00> : vector<12x384xf32>
    %1026 = tpu.matmul %784, %1025, %cst_313 {dimension_numbers = #tpu.dot_dimension_numbers<[1], [0], [0], [1], [0, 0, 1, 1], [], []>} : vector<12x128xf32>, vector<128x384xf32>, vector<12x384xf32> -> vector<12x384xf32>
    %1027 = vector.broadcast %853 : vector<1x384xf32> to vector<12x384xf32>
    %1028 = arith.addf %1026, %1027 : vector<12x384xf32>
    %c0_314 = arith.constant 0 : index
    %c0_315 = arith.constant 0 : index
    %1029 = vector.load %arg24[%c0_314, %c0_315] : memref<128x384xf32, #tpu.memory_space<vmem>>, vector<128x384xf32>
    %cst_316 = arith.constant dense<0.000000e+00> : vector<12x384xf32>
    %1030 = tpu.matmul %1024, %1029, %cst_316 {dimension_numbers = #tpu.dot_dimension_numbers<[1], [0], [0], [1], [0, 0, 1, 1], [], []>} : vector<12x128xf32>, vector<128x384xf32>, vector<12x384xf32> -> vector<12x384xf32>
    %1031 = vector.broadcast %854 : vector<1x384xf32> to vector<12x384xf32>
    %1032 = arith.addf %1030, %1031 : vector<12x384xf32>
    %1033 = vector.extract_strided_slice %1028 {offsets = [0, 0], sizes = [12, 128], strides = [1, 1]} : vector<12x384xf32> to vector<12x128xf32>
    %1034 = vector.extract_strided_slice %1032 {offsets = [0, 0], sizes = [12, 128], strides = [1, 1]} : vector<12x384xf32> to vector<12x128xf32>
    %1035 = arith.addf %1033, %1034 : vector<12x128xf32>
    %1036 = arith.negf %1035 : vector<12x128xf32>
    %1037 = math.exp %1036 : vector<12x128xf32>
    %cst_317 = arith.constant 1.000000e+00 : f32
    %1038 = vector.broadcast %cst_317 : f32 to vector<12x128xf32>
    %1039 = arith.addf %1038, %1037 : vector<12x128xf32>
    %1040 = arith.divf %1038, %1039 : vector<12x128xf32>
    %1041 = vector.extract_strided_slice %1028 {offsets = [0, 128], sizes = [12, 128], strides = [1, 1]} : vector<12x384xf32> to vector<12x128xf32>
    %1042 = vector.extract_strided_slice %1032 {offsets = [0, 128], sizes = [12, 128], strides = [1, 1]} : vector<12x384xf32> to vector<12x128xf32>
    %1043 = arith.addf %1041, %1042 : vector<12x128xf32>
    %1044 = arith.negf %1043 : vector<12x128xf32>
    %1045 = math.exp %1044 : vector<12x128xf32>
    %cst_318 = arith.constant 1.000000e+00 : f32
    %1046 = vector.broadcast %cst_318 : f32 to vector<12x128xf32>
    %1047 = arith.addf %1046, %1045 : vector<12x128xf32>
    %1048 = arith.divf %1046, %1047 : vector<12x128xf32>
    %1049 = vector.extract_strided_slice %1028 {offsets = [0, 256], sizes = [12, 128], strides = [1, 1]} : vector<12x384xf32> to vector<12x128xf32>
    %1050 = vector.extract_strided_slice %1032 {offsets = [0, 256], sizes = [12, 128], strides = [1, 1]} : vector<12x384xf32> to vector<12x128xf32>
    %1051 = arith.mulf %1040, %1050 : vector<12x128xf32>
    %1052 = arith.addf %1049, %1051 : vector<12x128xf32>
    %1053 = math.tanh %1052 : vector<12x128xf32>
    %cst_319 = arith.constant 1.000000e+00 : f32
    %1054 = vector.broadcast %cst_319 : f32 to vector<12x128xf32>
    %1055 = arith.subf %1054, %1048 : vector<12x128xf32>
    %1056 = arith.mulf %1055, %1053 : vector<12x128xf32>
    %1057 = arith.mulf %1048, %1024 : vector<12x128xf32>
    %1058 = arith.addf %1056, %1057 : vector<12x128xf32>
    %c0_320 = arith.constant 0 : index
    %c0_321 = arith.constant 0 : index
    %1059 = vector.load %arg23[%c0_320, %c0_321] : memref<128x384xf32, #tpu.memory_space<vmem>>, vector<128x384xf32>
    %cst_322 = arith.constant dense<0.000000e+00> : vector<12x384xf32>
    %1060 = tpu.matmul %818, %1059, %cst_322 {dimension_numbers = #tpu.dot_dimension_numbers<[1], [0], [0], [1], [0, 0, 1, 1], [], []>} : vector<12x128xf32>, vector<128x384xf32>, vector<12x384xf32> -> vector<12x384xf32>
    %1061 = vector.broadcast %853 : vector<1x384xf32> to vector<12x384xf32>
    %1062 = arith.addf %1060, %1061 : vector<12x384xf32>
    %c0_323 = arith.constant 0 : index
    %c0_324 = arith.constant 0 : index
    %1063 = vector.load %arg24[%c0_323, %c0_324] : memref<128x384xf32, #tpu.memory_space<vmem>>, vector<128x384xf32>
    %cst_325 = arith.constant dense<0.000000e+00> : vector<12x384xf32>
    %1064 = tpu.matmul %1058, %1063, %cst_325 {dimension_numbers = #tpu.dot_dimension_numbers<[1], [0], [0], [1], [0, 0, 1, 1], [], []>} : vector<12x128xf32>, vector<128x384xf32>, vector<12x384xf32> -> vector<12x384xf32>
    %1065 = vector.broadcast %854 : vector<1x384xf32> to vector<12x384xf32>
    %1066 = arith.addf %1064, %1065 : vector<12x384xf32>
    %1067 = vector.extract_strided_slice %1062 {offsets = [0, 0], sizes = [12, 128], strides = [1, 1]} : vector<12x384xf32> to vector<12x128xf32>
    %1068 = vector.extract_strided_slice %1066 {offsets = [0, 0], sizes = [12, 128], strides = [1, 1]} : vector<12x384xf32> to vector<12x128xf32>
    %1069 = arith.addf %1067, %1068 : vector<12x128xf32>
    %1070 = arith.negf %1069 : vector<12x128xf32>
    %1071 = math.exp %1070 : vector<12x128xf32>
    %cst_326 = arith.constant 1.000000e+00 : f32
    %1072 = vector.broadcast %cst_326 : f32 to vector<12x128xf32>
    %1073 = arith.addf %1072, %1071 : vector<12x128xf32>
    %1074 = arith.divf %1072, %1073 : vector<12x128xf32>
    %1075 = vector.extract_strided_slice %1062 {offsets = [0, 128], sizes = [12, 128], strides = [1, 1]} : vector<12x384xf32> to vector<12x128xf32>
    %1076 = vector.extract_strided_slice %1066 {offsets = [0, 128], sizes = [12, 128], strides = [1, 1]} : vector<12x384xf32> to vector<12x128xf32>
    %1077 = arith.addf %1075, %1076 : vector<12x128xf32>
    %1078 = arith.negf %1077 : vector<12x128xf32>
    %1079 = math.exp %1078 : vector<12x128xf32>
    %cst_327 = arith.constant 1.000000e+00 : f32
    %1080 = vector.broadcast %cst_327 : f32 to vector<12x128xf32>
    %1081 = arith.addf %1080, %1079 : vector<12x128xf32>
    %1082 = arith.divf %1080, %1081 : vector<12x128xf32>
    %1083 = vector.extract_strided_slice %1062 {offsets = [0, 256], sizes = [12, 128], strides = [1, 1]} : vector<12x384xf32> to vector<12x128xf32>
    %1084 = vector.extract_strided_slice %1066 {offsets = [0, 256], sizes = [12, 128], strides = [1, 1]} : vector<12x384xf32> to vector<12x128xf32>
    %1085 = arith.mulf %1074, %1084 : vector<12x128xf32>
    %1086 = arith.addf %1083, %1085 : vector<12x128xf32>
    %1087 = math.tanh %1086 : vector<12x128xf32>
    %cst_328 = arith.constant 1.000000e+00 : f32
    %1088 = vector.broadcast %cst_328 : f32 to vector<12x128xf32>
    %1089 = arith.subf %1088, %1082 : vector<12x128xf32>
    %1090 = arith.mulf %1089, %1087 : vector<12x128xf32>
    %1091 = arith.mulf %1082, %1058 : vector<12x128xf32>
    %1092 = arith.addf %1090, %1091 : vector<12x128xf32>
    %c0_329 = arith.constant 0 : index
    %c0_330 = arith.constant 0 : index
    %1093 = vector.load %arg23[%c0_329, %c0_330] : memref<128x384xf32, #tpu.memory_space<vmem>>, vector<128x384xf32>
    %cst_331 = arith.constant dense<0.000000e+00> : vector<12x384xf32>
    %1094 = tpu.matmul %852, %1093, %cst_331 {dimension_numbers = #tpu.dot_dimension_numbers<[1], [0], [0], [1], [0, 0, 1, 1], [], []>} : vector<12x128xf32>, vector<128x384xf32>, vector<12x384xf32> -> vector<12x384xf32>
    %1095 = vector.broadcast %853 : vector<1x384xf32> to vector<12x384xf32>
    %1096 = arith.addf %1094, %1095 : vector<12x384xf32>
    %c0_332 = arith.constant 0 : index
    %c0_333 = arith.constant 0 : index
    %1097 = vector.load %arg24[%c0_332, %c0_333] : memref<128x384xf32, #tpu.memory_space<vmem>>, vector<128x384xf32>
    %cst_334 = arith.constant dense<0.000000e+00> : vector<12x384xf32>
    %1098 = tpu.matmul %1092, %1097, %cst_334 {dimension_numbers = #tpu.dot_dimension_numbers<[1], [0], [0], [1], [0, 0, 1, 1], [], []>} : vector<12x128xf32>, vector<128x384xf32>, vector<12x384xf32> -> vector<12x384xf32>
    %1099 = vector.broadcast %854 : vector<1x384xf32> to vector<12x384xf32>
    %1100 = arith.addf %1098, %1099 : vector<12x384xf32>
    %1101 = vector.extract_strided_slice %1096 {offsets = [0, 0], sizes = [12, 128], strides = [1, 1]} : vector<12x384xf32> to vector<12x128xf32>
    %1102 = vector.extract_strided_slice %1100 {offsets = [0, 0], sizes = [12, 128], strides = [1, 1]} : vector<12x384xf32> to vector<12x128xf32>
    %1103 = arith.addf %1101, %1102 : vector<12x128xf32>
    %1104 = arith.negf %1103 : vector<12x128xf32>
    %1105 = math.exp %1104 : vector<12x128xf32>
    %cst_335 = arith.constant 1.000000e+00 : f32
    %1106 = vector.broadcast %cst_335 : f32 to vector<12x128xf32>
    %1107 = arith.addf %1106, %1105 : vector<12x128xf32>
    %1108 = arith.divf %1106, %1107 : vector<12x128xf32>
    %1109 = vector.extract_strided_slice %1096 {offsets = [0, 128], sizes = [12, 128], strides = [1, 1]} : vector<12x384xf32> to vector<12x128xf32>
    %1110 = vector.extract_strided_slice %1100 {offsets = [0, 128], sizes = [12, 128], strides = [1, 1]} : vector<12x384xf32> to vector<12x128xf32>
    %1111 = arith.addf %1109, %1110 : vector<12x128xf32>
    %1112 = arith.negf %1111 : vector<12x128xf32>
    %1113 = math.exp %1112 : vector<12x128xf32>
    %cst_336 = arith.constant 1.000000e+00 : f32
    %1114 = vector.broadcast %cst_336 : f32 to vector<12x128xf32>
    %1115 = arith.addf %1114, %1113 : vector<12x128xf32>
    %1116 = arith.divf %1114, %1115 : vector<12x128xf32>
    %1117 = vector.extract_strided_slice %1096 {offsets = [0, 256], sizes = [12, 128], strides = [1, 1]} : vector<12x384xf32> to vector<12x128xf32>
    %1118 = vector.extract_strided_slice %1100 {offsets = [0, 256], sizes = [12, 128], strides = [1, 1]} : vector<12x384xf32> to vector<12x128xf32>
    %1119 = arith.mulf %1108, %1118 : vector<12x128xf32>
    %1120 = arith.addf %1117, %1119 : vector<12x128xf32>
    %1121 = math.tanh %1120 : vector<12x128xf32>
    %cst_337 = arith.constant 1.000000e+00 : f32
    %1122 = vector.broadcast %cst_337 : f32 to vector<12x128xf32>
    %1123 = arith.subf %1122, %1116 : vector<12x128xf32>
    %1124 = arith.mulf %1123, %1121 : vector<12x128xf32>
    %1125 = arith.mulf %1116, %1092 : vector<12x128xf32>
    %1126 = arith.addf %1124, %1125 : vector<12x128xf32>
    %c0_338 = arith.constant 0 : index
    %c0_339 = arith.constant 0 : index
    %1127 = vector.load %arg27[%c0_338, %c0_339] : memref<128x8xf32, #tpu.memory_space<vmem>>, vector<128x8xf32>
    %c0_340 = arith.constant 0 : index
    %c0_341 = arith.constant 0 : index
    %1128 = vector.load %arg28[%c0_340, %c0_341] : memref<1x8xf32, #tpu.memory_space<vmem>>, vector<1x8xf32>
    %c0_342 = arith.constant 0 : index
    %c0_343 = arith.constant 0 : index
    %1129 = vector.load %arg29[%c0_342, %c0_343] : memref<1x8xf32, #tpu.memory_space<vmem>>, vector<1x8xf32>
    %c0_344 = arith.constant 0 : index
    %c0_345 = arith.constant 0 : index
    %1130 = vector.load %arg30[%c0_344, %c0_345] : memref<1x1xf32, #tpu.memory_space<vmem>>, vector<1x1xf32>
    %c0_346 = arith.constant 0 : index
    %c0_347 = arith.constant 0 : index
    %1131 = vector.load %arg2[%c0_346, %c0_347] : memref<12x1xf32, #tpu.memory_space<vmem>>, vector<12x1xf32>
    %cst_348 = arith.constant dense<0.000000e+00> : vector<12x8xf32>
    %1132 = tpu.matmul %888, %1127, %cst_348 {dimension_numbers = #tpu.dot_dimension_numbers<[1], [0], [0], [1], [0, 0, 1, 1], [], []>} : vector<12x128xf32>, vector<128x8xf32>, vector<12x8xf32> -> vector<12x8xf32>
    %1133 = vector.broadcast %1128 : vector<1x8xf32> to vector<12x8xf32>
    %1134 = arith.addf %1132, %1133 : vector<12x8xf32>
    %cst_349 = arith.constant 0.000000e+00 : f32
    %1135 = vector.broadcast %cst_349 : f32 to vector<12x8xf32>
    %1136 = arith.maximumf %1134, %1135 : vector<12x8xf32>
    %1137 = vector.broadcast %1129 : vector<1x8xf32> to vector<12x8xf32>
    %1138 = arith.mulf %1136, %1137 : vector<12x8xf32>
    %cst_350 = arith.constant dense<0.000000e+00> : vector<12xf32>
    %1139 = vector.multi_reduction <add>, %1138, %cst_350 [1] : vector<12x8xf32> to vector<12xf32>
    %1140 = vector.shape_cast %1139 : vector<12xf32> to vector<12x1xf32>
    %1141 = vector.broadcast %1130 : vector<1x1xf32> to vector<12x1xf32>
    %1142 = arith.addf %1140, %1141 : vector<12x1xf32>
    %1143 = arith.negf %1142 : vector<12x1xf32>
    %1144 = math.exp %1143 : vector<12x1xf32>
    %cst_351 = arith.constant 1.000000e+00 : f32
    %1145 = vector.broadcast %cst_351 : f32 to vector<12x1xf32>
    %1146 = arith.addf %1145, %1144 : vector<12x1xf32>
    %1147 = arith.divf %1145, %1146 : vector<12x1xf32>
    %1148 = arith.mulf %1147, %1131 : vector<12x1xf32>
    %c0_352 = arith.constant 0 : index
    %c0_353 = arith.constant 0 : index
    %1149 = vector.load %arg31[%c0_352, %c0_353] : memref<12x8xf32, #tpu.memory_space<vmem>>, vector<12x1xf32>
    tpu.vector_store %arg31[%c0_352, %c0_353], %1148 {strides = array<i32>} : memref<12x8xf32, #tpu.memory_space<vmem>>, vector<12x1xf32>,
    %cst_354 = arith.constant dense<0.000000e+00> : vector<12x8xf32>
    %1150 = tpu.matmul %922, %1127, %cst_354 {dimension_numbers = #tpu.dot_dimension_numbers<[1], [0], [0], [1], [0, 0, 1, 1], [], []>} : vector<12x128xf32>, vector<128x8xf32>, vector<12x8xf32> -> vector<12x8xf32>
    %1151 = vector.broadcast %1128 : vector<1x8xf32> to vector<12x8xf32>
    %1152 = arith.addf %1150, %1151 : vector<12x8xf32>
    %cst_355 = arith.constant 0.000000e+00 : f32
    %1153 = vector.broadcast %cst_355 : f32 to vector<12x8xf32>
    %1154 = arith.maximumf %1152, %1153 : vector<12x8xf32>
    %1155 = vector.broadcast %1129 : vector<1x8xf32> to vector<12x8xf32>
    %1156 = arith.mulf %1154, %1155 : vector<12x8xf32>
    %cst_356 = arith.constant dense<0.000000e+00> : vector<12xf32>
    %1157 = vector.multi_reduction <add>, %1156, %cst_356 [1] : vector<12x8xf32> to vector<12xf32>
    %1158 = vector.shape_cast %1157 : vector<12xf32> to vector<12x1xf32>
    %1159 = vector.broadcast %1130 : vector<1x1xf32> to vector<12x1xf32>
    %1160 = arith.addf %1158, %1159 : vector<12x1xf32>
    %1161 = arith.negf %1160 : vector<12x1xf32>
    %1162 = math.exp %1161 : vector<12x1xf32>
    %cst_357 = arith.constant 1.000000e+00 : f32
    %1163 = vector.broadcast %cst_357 : f32 to vector<12x1xf32>
    %1164 = arith.addf %1163, %1162 : vector<12x1xf32>
    %1165 = arith.divf %1163, %1164 : vector<12x1xf32>
    %1166 = arith.mulf %1165, %1131 : vector<12x1xf32>
    %c0_358 = arith.constant 0 : index
    %c1_359 = arith.constant 1 : index
    %1167 = vector.load %arg31[%c0_358, %c1_359] : memref<12x8xf32, #tpu.memory_space<vmem>>, vector<12x1xf32>
    tpu.vector_store %arg31[%c0_358, %c1_359], %1166 {strides = array<i32>} : memref<12x8xf32, #tpu.memory_space<vmem>>, vector<12x1xf32>,
    %cst_360 = arith.constant dense<0.000000e+00> : vector<12x8xf32>
    %1168 = tpu.matmul %956, %1127, %cst_360 {dimension_numbers = #tpu.dot_dimension_numbers<[1], [0], [0], [1], [0, 0, 1, 1], [], []>} : vector<12x128xf32>, vector<128x8xf32>, vector<12x8xf32> -> vector<12x8xf32>
    %1169 = vector.broadcast %1128 : vector<1x8xf32> to vector<12x8xf32>
    %1170 = arith.addf %1168, %1169 : vector<12x8xf32>
    %cst_361 = arith.constant 0.000000e+00 : f32
    %1171 = vector.broadcast %cst_361 : f32 to vector<12x8xf32>
    %1172 = arith.maximumf %1170, %1171 : vector<12x8xf32>
    %1173 = vector.broadcast %1129 : vector<1x8xf32> to vector<12x8xf32>
    %1174 = arith.mulf %1172, %1173 : vector<12x8xf32>
    %cst_362 = arith.constant dense<0.000000e+00> : vector<12xf32>
    %1175 = vector.multi_reduction <add>, %1174, %cst_362 [1] : vector<12x8xf32> to vector<12xf32>
    %1176 = vector.shape_cast %1175 : vector<12xf32> to vector<12x1xf32>
    %1177 = vector.broadcast %1130 : vector<1x1xf32> to vector<12x1xf32>
    %1178 = arith.addf %1176, %1177 : vector<12x1xf32>
    %1179 = arith.negf %1178 : vector<12x1xf32>
    %1180 = math.exp %1179 : vector<12x1xf32>
    %cst_363 = arith.constant 1.000000e+00 : f32
    %1181 = vector.broadcast %cst_363 : f32 to vector<12x1xf32>
    %1182 = arith.addf %1181, %1180 : vector<12x1xf32>
    %1183 = arith.divf %1181, %1182 : vector<12x1xf32>
    %1184 = arith.mulf %1183, %1131 : vector<12x1xf32>
    %c0_364 = arith.constant 0 : index
    %c2_365 = arith.constant 2 : index
    %1185 = vector.load %arg31[%c0_364, %c2_365] : memref<12x8xf32, #tpu.memory_space<vmem>>, vector<12x1xf32>
    tpu.vector_store %arg31[%c0_364, %c2_365], %1184 {strides = array<i32>} : memref<12x8xf32, #tpu.memory_space<vmem>>, vector<12x1xf32>,
    %cst_366 = arith.constant dense<0.000000e+00> : vector<12x8xf32>
    %1186 = tpu.matmul %990, %1127, %cst_366 {dimension_numbers = #tpu.dot_dimension_numbers<[1], [0], [0], [1], [0, 0, 1, 1], [], []>} : vector<12x128xf32>, vector<128x8xf32>, vector<12x8xf32> -> vector<12x8xf32>
    %1187 = vector.broadcast %1128 : vector<1x8xf32> to vector<12x8xf32>
    %1188 = arith.addf %1186, %1187 : vector<12x8xf32>
    %cst_367 = arith.constant 0.000000e+00 : f32
    %1189 = vector.broadcast %cst_367 : f32 to vector<12x8xf32>
    %1190 = arith.maximumf %1188, %1189 : vector<12x8xf32>
    %1191 = vector.broadcast %1129 : vector<1x8xf32> to vector<12x8xf32>
    %1192 = arith.mulf %1190, %1191 : vector<12x8xf32>
    %cst_368 = arith.constant dense<0.000000e+00> : vector<12xf32>
    %1193 = vector.multi_reduction <add>, %1192, %cst_368 [1] : vector<12x8xf32> to vector<12xf32>
    %1194 = vector.shape_cast %1193 : vector<12xf32> to vector<12x1xf32>
    %1195 = vector.broadcast %1130 : vector<1x1xf32> to vector<12x1xf32>
    %1196 = arith.addf %1194, %1195 : vector<12x1xf32>
    %1197 = arith.negf %1196 : vector<12x1xf32>
    %1198 = math.exp %1197 : vector<12x1xf32>
    %cst_369 = arith.constant 1.000000e+00 : f32
    %1199 = vector.broadcast %cst_369 : f32 to vector<12x1xf32>
    %1200 = arith.addf %1199, %1198 : vector<12x1xf32>
    %1201 = arith.divf %1199, %1200 : vector<12x1xf32>
    %1202 = arith.mulf %1201, %1131 : vector<12x1xf32>
    %c0_370 = arith.constant 0 : index
    %c3_371 = arith.constant 3 : index
    %1203 = vector.load %arg31[%c0_370, %c3_371] : memref<12x8xf32, #tpu.memory_space<vmem>>, vector<12x1xf32>
    tpu.vector_store %arg31[%c0_370, %c3_371], %1202 {strides = array<i32>} : memref<12x8xf32, #tpu.memory_space<vmem>>, vector<12x1xf32>,
    %cst_372 = arith.constant dense<0.000000e+00> : vector<12x8xf32>
    %1204 = tpu.matmul %1024, %1127, %cst_372 {dimension_numbers = #tpu.dot_dimension_numbers<[1], [0], [0], [1], [0, 0, 1, 1], [], []>} : vector<12x128xf32>, vector<128x8xf32>, vector<12x8xf32> -> vector<12x8xf32>
    %1205 = vector.broadcast %1128 : vector<1x8xf32> to vector<12x8xf32>
    %1206 = arith.addf %1204, %1205 : vector<12x8xf32>
    %cst_373 = arith.constant 0.000000e+00 : f32
    %1207 = vector.broadcast %cst_373 : f32 to vector<12x8xf32>
    %1208 = arith.maximumf %1206, %1207 : vector<12x8xf32>
    %1209 = vector.broadcast %1129 : vector<1x8xf32> to vector<12x8xf32>
    %1210 = arith.mulf %1208, %1209 : vector<12x8xf32>
    %cst_374 = arith.constant dense<0.000000e+00> : vector<12xf32>
    %1211 = vector.multi_reduction <add>, %1210, %cst_374 [1] : vector<12x8xf32> to vector<12xf32>
    %1212 = vector.shape_cast %1211 : vector<12xf32> to vector<12x1xf32>
    %1213 = vector.broadcast %1130 : vector<1x1xf32> to vector<12x1xf32>
    %1214 = arith.addf %1212, %1213 : vector<12x1xf32>
    %1215 = arith.negf %1214 : vector<12x1xf32>
    %1216 = math.exp %1215 : vector<12x1xf32>
    %cst_375 = arith.constant 1.000000e+00 : f32
    %1217 = vector.broadcast %cst_375 : f32 to vector<12x1xf32>
    %1218 = arith.addf %1217, %1216 : vector<12x1xf32>
    %1219 = arith.divf %1217, %1218 : vector<12x1xf32>
    %1220 = arith.mulf %1219, %1131 : vector<12x1xf32>
    %c0_376 = arith.constant 0 : index
    %c4_377 = arith.constant 4 : index
    %1221 = vector.load %arg31[%c0_376, %c4_377] : memref<12x8xf32, #tpu.memory_space<vmem>>, vector<12x1xf32>
    tpu.vector_store %arg31[%c0_376, %c4_377], %1220 {strides = array<i32>} : memref<12x8xf32, #tpu.memory_space<vmem>>, vector<12x1xf32>,
    %cst_378 = arith.constant dense<0.000000e+00> : vector<12x8xf32>
    %1222 = tpu.matmul %1058, %1127, %cst_378 {dimension_numbers = #tpu.dot_dimension_numbers<[1], [0], [0], [1], [0, 0, 1, 1], [], []>} : vector<12x128xf32>, vector<128x8xf32>, vector<12x8xf32> -> vector<12x8xf32>
    %1223 = vector.broadcast %1128 : vector<1x8xf32> to vector<12x8xf32>
    %1224 = arith.addf %1222, %1223 : vector<12x8xf32>
    %cst_379 = arith.constant 0.000000e+00 : f32
    %1225 = vector.broadcast %cst_379 : f32 to vector<12x8xf32>
    %1226 = arith.maximumf %1224, %1225 : vector<12x8xf32>
    %1227 = vector.broadcast %1129 : vector<1x8xf32> to vector<12x8xf32>
    %1228 = arith.mulf %1226, %1227 : vector<12x8xf32>
    %cst_380 = arith.constant dense<0.000000e+00> : vector<12xf32>
    %1229 = vector.multi_reduction <add>, %1228, %cst_380 [1] : vector<12x8xf32> to vector<12xf32>
    %1230 = vector.shape_cast %1229 : vector<12xf32> to vector<12x1xf32>
    %1231 = vector.broadcast %1130 : vector<1x1xf32> to vector<12x1xf32>
    %1232 = arith.addf %1230, %1231 : vector<12x1xf32>
    %1233 = arith.negf %1232 : vector<12x1xf32>
    %1234 = math.exp %1233 : vector<12x1xf32>
    %cst_381 = arith.constant 1.000000e+00 : f32
    %1235 = vector.broadcast %cst_381 : f32 to vector<12x1xf32>
    %1236 = arith.addf %1235, %1234 : vector<12x1xf32>
    %1237 = arith.divf %1235, %1236 : vector<12x1xf32>
    %1238 = arith.mulf %1237, %1131 : vector<12x1xf32>
    %c0_382 = arith.constant 0 : index
    %c5_383 = arith.constant 5 : index
    %1239 = vector.load %arg31[%c0_382, %c5_383] : memref<12x8xf32, #tpu.memory_space<vmem>>, vector<12x1xf32>
    tpu.vector_store %arg31[%c0_382, %c5_383], %1238 {strides = array<i32>} : memref<12x8xf32, #tpu.memory_space<vmem>>, vector<12x1xf32>,
    %cst_384 = arith.constant dense<0.000000e+00> : vector<12x8xf32>
    %1240 = tpu.matmul %1092, %1127, %cst_384 {dimension_numbers = #tpu.dot_dimension_numbers<[1], [0], [0], [1], [0, 0, 1, 1], [], []>} : vector<12x128xf32>, vector<128x8xf32>, vector<12x8xf32> -> vector<12x8xf32>
    %1241 = vector.broadcast %1128 : vector<1x8xf32> to vector<12x8xf32>
    %1242 = arith.addf %1240, %1241 : vector<12x8xf32>
    %cst_385 = arith.constant 0.000000e+00 : f32
    %1243 = vector.broadcast %cst_385 : f32 to vector<12x8xf32>
    %1244 = arith.maximumf %1242, %1243 : vector<12x8xf32>
    %1245 = vector.broadcast %1129 : vector<1x8xf32> to vector<12x8xf32>
    %1246 = arith.mulf %1244, %1245 : vector<12x8xf32>
    %cst_386 = arith.constant dense<0.000000e+00> : vector<12xf32>
    %1247 = vector.multi_reduction <add>, %1246, %cst_386 [1] : vector<12x8xf32> to vector<12xf32>
    %1248 = vector.shape_cast %1247 : vector<12xf32> to vector<12x1xf32>
    %1249 = vector.broadcast %1130 : vector<1x1xf32> to vector<12x1xf32>
    %1250 = arith.addf %1248, %1249 : vector<12x1xf32>
    %1251 = arith.negf %1250 : vector<12x1xf32>
    %1252 = math.exp %1251 : vector<12x1xf32>
    %cst_387 = arith.constant 1.000000e+00 : f32
    %1253 = vector.broadcast %cst_387 : f32 to vector<12x1xf32>
    %1254 = arith.addf %1253, %1252 : vector<12x1xf32>
    %1255 = arith.divf %1253, %1254 : vector<12x1xf32>
    %1256 = arith.mulf %1255, %1131 : vector<12x1xf32>
    %c0_388 = arith.constant 0 : index
    %c6 = arith.constant 6 : index
    %1257 = vector.load %arg31[%c0_388, %c6] : memref<12x8xf32, #tpu.memory_space<vmem>>, vector<12x1xf32>
    tpu.vector_store %arg31[%c0_388, %c6], %1256 {strides = array<i32>} : memref<12x8xf32, #tpu.memory_space<vmem>>, vector<12x1xf32>,
    %cst_389 = arith.constant dense<0.000000e+00> : vector<12x8xf32>
    %1258 = tpu.matmul %1126, %1127, %cst_389 {dimension_numbers = #tpu.dot_dimension_numbers<[1], [0], [0], [1], [0, 0, 1, 1], [], []>} : vector<12x128xf32>, vector<128x8xf32>, vector<12x8xf32> -> vector<12x8xf32>
    %1259 = vector.broadcast %1128 : vector<1x8xf32> to vector<12x8xf32>
    %1260 = arith.addf %1258, %1259 : vector<12x8xf32>
    %cst_390 = arith.constant 0.000000e+00 : f32
    %1261 = vector.broadcast %cst_390 : f32 to vector<12x8xf32>
    %1262 = arith.maximumf %1260, %1261 : vector<12x8xf32>
    %1263 = vector.broadcast %1129 : vector<1x8xf32> to vector<12x8xf32>
    %1264 = arith.mulf %1262, %1263 : vector<12x8xf32>
    %cst_391 = arith.constant dense<0.000000e+00> : vector<12xf32>
    %1265 = vector.multi_reduction <add>, %1264, %cst_391 [1] : vector<12x8xf32> to vector<12xf32>
    %1266 = vector.shape_cast %1265 : vector<12xf32> to vector<12x1xf32>
    %1267 = vector.broadcast %1130 : vector<1x1xf32> to vector<12x1xf32>
    %1268 = arith.addf %1266, %1267 : vector<12x1xf32>
    %1269 = arith.negf %1268 : vector<12x1xf32>
    %1270 = math.exp %1269 : vector<12x1xf32>
    %cst_392 = arith.constant 1.000000e+00 : f32
    %1271 = vector.broadcast %cst_392 : f32 to vector<12x1xf32>
    %1272 = arith.addf %1271, %1270 : vector<12x1xf32>
    %1273 = arith.divf %1271, %1272 : vector<12x1xf32>
    %1274 = arith.mulf %1273, %1131 : vector<12x1xf32>
    %c0_393 = arith.constant 0 : index
    %c7 = arith.constant 7 : index
    %1275 = vector.load %arg31[%c0_393, %c7] : memref<12x8xf32, #tpu.memory_space<vmem>>, vector<12x1xf32>
    tpu.vector_store %arg31[%c0_393, %c7], %1274 {strides = array<i32>} : memref<12x8xf32, #tpu.memory_space<vmem>>, vector<12x1xf32>,
    return
  }
}

</mosaic_0001>

<llo_original>
// kernel: graphrnn_forward.1
$region0: #{graphrnn_forward.1}
  #allocation0 [shape = 'u32[]', space=smem, size = 0x4, offset = 0x4, fixed_abs, tag = 'smem constant byte address 0x4 - core index']
  #allocation1 [shape = 'u32[72,128]{1,0:T(1,128)}', space=vmem, size = 0x9000, scoped, tag = 'internal scratch']
  #allocation2 [shape = 'f32[1,1]{1,0:T(1,128)S(1)}', space=vmem, size = 0x200, scoped, tag = 'scoped memory for graphrnn_forward.1']
  %s0 = inlined_call_operand.smem [shape: u32[32], index: -1, kind: input, shape index: {}]
  %s1 = sld [smem:[%s0]]
  %s2 = scalar_lea.smem %s0, 1
  %s3 = sld [smem:[%s2]]
  %s4 = scalar_lea.smem %s0, 2
  %s5 = sld [smem:[%s4]]
  %s6 = scalar_lea.smem %s0, 3
  %s7 = sld [smem:[%s6]]
  %s8 = scalar_lea.smem %s0, 4
  %s9 = sld [smem:[%s8]]
  %s10 = scalar_lea.smem %s0, 5
  %s11 = sld [smem:[%s10]]
  %s12 = scalar_lea.smem %s0, 6
  %s13 = sld [smem:[%s12]]
  %s14 = scalar_lea.smem %s0, 7
  %s15 = sld [smem:[%s14]]
  %s16 = scalar_lea.smem %s0, 8
  %s17 = sld [smem:[%s16]]
  %s18 = scalar_lea.smem %s0, 9
  %s19 = sld [smem:[%s18]]
  %s20 = scalar_lea.smem %s0, 10
  %s21 = sld [smem:[%s20]]
  %s22 = scalar_lea.smem %s0, 11
  %s23 = sld [smem:[%s22]]
  %s24 = scalar_lea.smem %s0, 12
  %s25 = sld [smem:[%s24]]
  %s26 = scalar_lea.smem %s0, 13
  %s27 = sld [smem:[%s26]]
  %s28 = scalar_lea.smem %s0, 14
  %s29 = sld [smem:[%s28]]
  %s30 = scalar_lea.smem %s0, 15
  %s31 = sld [smem:[%s30]]
  %s32 = scalar_lea.smem %s0, 16
  %s33 = sld [smem:[%s32]]
  %s34 = scalar_lea.smem %s0, 17
  %s35 = sld [smem:[%s34]]
  %s36 = scalar_lea.smem %s0, 18
  %s37 = sld [smem:[%s36]]
  %s38 = scalar_lea.smem %s0, 19
  %s39 = sld [smem:[%s38]]
  %s40 = scalar_lea.smem %s0, 20
  %s41 = sld [smem:[%s40]]
  %s42 = scalar_lea.smem %s0, 21
  %s43 = sld [smem:[%s42]]
  %s44 = scalar_lea.smem %s0, 22
  %s45 = sld [smem:[%s44]]
  %s46 = scalar_lea.smem %s0, 23
  %s47 = sld [smem:[%s46]]
  %s48 = scalar_lea.smem %s0, 24
  %s49 = sld [smem:[%s48]]
  %s50 = scalar_lea.smem %s0, 25
  %s51 = sld [smem:[%s50]]
  %s52 = scalar_lea.smem %s0, 26
  %s53 = sld [smem:[%s52]]
  %s54 = scalar_lea.smem %s0, 27
  %s55 = sld [smem:[%s54]]
  %s56 = scalar_lea.smem %s0, 28
  %s57 = sld [smem:[%s56]]
  %s58 = scalar_lea.smem %s0, 29
  %s59 = sld [smem:[%s58]]
  %s60 = scalar_lea.smem %s0, 30
  %s61 = sld [smem:[%s60]]
  %s62 = scalar_lea.smem %s0, 31
  %s63 = sld [smem:[%s62]]
  %s64 = sld [smem:[#allocation0]]
  $region158: #{graphrnn_forward.1} parent=0
    _
  %s66 = ssub.s32 1, %s64
  %s67 = scalar_select 0, %s66, %s64
  %v68 = vstv %s61
  %69 = vst [vmem:[#allocation2] sm:$0x1] %v68
  $region1: #{graphrnn_forward.1} parent=0
    #allocation3 [shape = 'u8[196608]{0}', space=vmem, size = 0x30000, scoped, tag = 'input window, operand 6, single buffered']
    #allocation4 [shape = 's32[1]{0}', space=sflag, size = 0x4, scoped, tag = 'scoped memory for graphrnn_forward.1']
    #allocation5 [shape = 'u8[196608]{0}', space=vmem, size = 0x30000, scoped, tag = 'input window, operand 9, single buffered']
    #allocation6 [shape = 's32[1]{0}', space=sflag, size = 0x4, scoped, tag = 'scoped memory for graphrnn_forward.1']
    #allocation7 [shape = 'u8[196608]{0}', space=vmem, size = 0x30000, scoped, tag = 'input window, operand 10, single buffered']
    #allocation8 [shape = 'u8[196608]{0}', space=vmem, size = 0x30000, scoped, tag = 'input window, operand 20, single buffered']
    #allocation9 [shape = 's32[1]{0}', space=sflag, size = 0x4, scoped, tag = 'scoped memory for graphrnn_forward.1']
    #allocation10 [shape = 'u8[196608]{0}', space=vmem, size = 0x30000, scoped, tag = 'input window, operand 23, single buffered']
    #allocation11 [shape = 'u8[196608]{0}', space=vmem, size = 0x30000, scoped, tag = 'input window, operand 24, single buffered']
    #allocation12 [shape = 's32[1]{0}', space=sflag, size = 0x4, scoped, tag = 'scoped memory for graphrnn_forward.1']
    %70 = vsyncpa [#allocation4], 0
    %71 = vsyncpa [#allocation6], 0
    %72 = vsyncpa [#allocation9], 0
    %73 = vsyncpa [#allocation12], 0
    // Predicated region
    $region2: #{graphrnn_forward.1} parent=1 // pred_check
      _
    $region3: #{graphrnn_forward.1} parent=1 // pred_check_branch
      %75 = sbr.rel (0) target = $region5
    $region4: #{graphrnn_forward.1} parent=1 // pred_region
      _
    $region5: #{graphrnn_forward.1} parent=1 // pred_fallthru
      _
    // Predicated region
    $region6: #{graphrnn_forward.1} parent=1 // pred_check
      _
    $region7: #{graphrnn_forward.1} parent=1 // pred_check_branch
      %77 = sbr.rel (0) target = $region9
    $region8: #{graphrnn_forward.1} parent=1 // pred_region
      _
    $region9: #{graphrnn_forward.1} parent=1 // pred_fallthru
      _
    // Predicated region
    $region10: #{graphrnn_forward.1} parent=1 // pred_check
      _
    $region11: #{graphrnn_forward.1} parent=1 // pred_check_branch
      %79 = sbr.rel (0) target = $region13
    $region12: #{graphrnn_forward.1} parent=1 // pred_region
      _
    $region13: #{graphrnn_forward.1} parent=1 // pred_fallthru
      _
    // Predicated region
    $region14: #{graphrnn_forward.1} parent=1 // pred_check
      _
    $region15: #{graphrnn_forward.1} parent=1 // pred_check_branch
      %81 = sbr.rel (0) target = $region17
    $region16: #{graphrnn_forward.1} parent=1 // pred_region
      _
    $region17: #{graphrnn_forward.1} parent=1 // pred_fallthru
      _
    // Predicated region
    $region18: #{graphrnn_forward.1} parent=1 // pred_check
      _
    $region19: #{graphrnn_forward.1} parent=1 // pred_check_branch
      %83 = sbr.rel (0) target = $region21
    $region20: #{graphrnn_forward.1} parent=1 // pred_region
      _
    $region21: #{graphrnn_forward.1} parent=1 // pred_fallthru
      _
    // Predicated region
    $region22: #{graphrnn_forward.1} parent=1 // pred_check
      _
    $region23: #{graphrnn_forward.1} parent=1 // pred_check_branch
      %85 = sbr.rel (0) target = $region25
    $region24: #{graphrnn_forward.1} parent=1 // pred_region
      _
    $region25: #{graphrnn_forward.1} parent=1 // pred_fallthru
      _
    // Predicated region
    $region26: #{graphrnn_forward.1} parent=1 // pred_check
      _
    $region27: #{graphrnn_forward.1} parent=1 // pred_check_branch
      %87 = sbr.rel (0) target = $region29
    $region28: #{graphrnn_forward.1} parent=1 // pred_region
      %89 = vsyncadd [#allocation4], 0
      %s90 = sshll.u32 %s13, 4
      %s91 = int_to_ptr.hbm [resolvable:$true] %s90
      %s92 = sshll.u32 [#allocation3], 4
      %s93 = int_to_ptr.vmem [resolvable:$true] %s92
      %98 = dma.hbm_to_vmem [thread:$0]  %s91, 6144, %s93, [#allocation4], 384, 384, 24
    $region29: #{graphrnn_forward.1} parent=1 // pred_fallthru
      _
    // Predicated region
    $region30: #{graphrnn_forward.1} parent=1 // pred_check
      _
    $region31: #{graphrnn_forward.1} parent=1 // pred_check_branch
      %100 = sbr.rel (0) target = $region33
    $region32: #{graphrnn_forward.1} parent=1 // pred_region
      _
    $region33: #{graphrnn_forward.1} parent=1 // pred_fallthru
      _
    // Predicated region
    $region34: #{graphrnn_forward.1} parent=1 // pred_check
      _
    $region35: #{graphrnn_forward.1} parent=1 // pred_check_branch
      %102 = sbr.rel (0) target = $region37
    $region36: #{graphrnn_forward.1} parent=1 // pred_region
      _
    $region37: #{graphrnn_forward.1} parent=1 // pred_fallthru
      _
    // Predicated region
    $region38: #{graphrnn_forward.1} parent=1 // pred_check
      _
    $region39: #{graphrnn_forward.1} parent=1 // pred_check_branch
      %104 = sbr.rel (0) target = $region41
    $region40: #{graphrnn_forward.1} parent=1 // pred_region
      %106 = vsyncadd [#allocation6], 0
      %s107 = sshll.u32 %s19, 4
      %s108 = int_to_ptr.hbm [resolvable:$true] %s107
      %s109 = sshll.u32 [#allocation5], 4
      %s110 = int_to_ptr.vmem [resolvable:$true] %s109
      %115 = dma.hbm_to_vmem [thread:$0]  %s108, 6144, %s110, [#allocation6], 384, 384, 24
    $region41: #{graphrnn_forward.1} parent=1 // pred_fallthru
      _
    // Predicated region
    $region42: #{graphrnn_forward.1} parent=1 // pred_check
      _
    $region43: #{graphrnn_forward.1} parent=1 // pred_check_branch
      %117 = sbr.rel (0) target = $region45
    $region44: #{graphrnn_forward.1} parent=1 // pred_region
      %119 = vsyncadd [#allocation6], 0
      %s120 = sshll.u32 %s21, 4
      %s121 = int_to_ptr.hbm [resolvable:$true] %s120
      %s122 = sshll.u32 [#allocation7], 4
      %s123 = int_to_ptr.vmem [resolvable:$true] %s122
      %128 = dma.hbm_to_vmem [thread:$0]  %s121, 6144, %s123, [#allocation6], 384, 384, 24
    $region45: #{graphrnn_forward.1} parent=1 // pred_fallthru
      _
    // Predicated region
    $region46: #{graphrnn_forward.1} parent=1 // pred_check
      _
    $region47: #{graphrnn_forward.1} parent=1 // pred_check_branch
      %130 = sbr.rel (0) target = $region49
    $region48: #{graphrnn_forward.1} parent=1 // pred_region
      _
    $region49: #{graphrnn_forward.1} parent=1 // pred_fallthru
      _
    // Predicated region
    $region50: #{graphrnn_forward.1} parent=1 // pred_check
      _
    $region51: #{graphrnn_forward.1} parent=1 // pred_check_branch
      %132 = sbr.rel (0) target = $region53
    $region52: #{graphrnn_forward.1} parent=1 // pred_region
      _
    $region53: #{graphrnn_forward.1} parent=1 // pred_fallthru
      _
    // Predicated region
    $region54: #{graphrnn_forward.1} parent=1 // pred_check
      _
    $region55: #{graphrnn_forward.1} parent=1 // pred_check_branch
      %134 = sbr.rel (0) target = $region57
    $region56: #{graphrnn_forward.1} parent=1 // pred_region
      _
    $region57: #{graphrnn_forward.1} parent=1 // pred_fallthru
      _
    // Predicated region
    $region58: #{graphrnn_forward.1} parent=1 // pred_check
      _
    $region59: #{graphrnn_forward.1} parent=1 // pred_check_branch
      %136 = sbr.rel (0) target = $region61
    $region60: #{graphrnn_forward.1} parent=1 // pred_region
      _
    $region61: #{graphrnn_forward.1} parent=1 // pred_fallthru
      _
    // Predicated region
    $region62: #{graphrnn_forward.1} parent=1 // pred_check
      _
    $region63: #{graphrnn_forward.1} parent=1 // pred_check_branch
      %138 = sbr.rel (0) target = $region65
    $region64: #{graphrnn_forward.1} parent=1 // pred_region
      _
    $region65: #{graphrnn_forward.1} parent=1 // pred_fallthru
      _
    // Predicated region
    $region66: #{graphrnn_forward.1} parent=1 // pred_check
      _
    $region67: #{graphrnn_forward.1} parent=1 // pred_check_branch
      %140 = sbr.rel (0) target = $region69
    $region68: #{graphrnn_forward.1} parent=1 // pred_region
      _
    $region69: #{graphrnn_forward.1} parent=1 // pred_fallthru
      _
    // Predicated region
    $region70: #{graphrnn_forward.1} parent=1 // pred_check
      _
    $region71: #{graphrnn_forward.1} parent=1 // pred_check_branch
      %142 = sbr.rel (0) target = $region73
    $region72: #{graphrnn_forward.1} parent=1 // pred_region
      _
    $region73: #{graphrnn_forward.1} parent=1 // pred_fallthru
      _
    // Predicated region
    $region74: #{graphrnn_forward.1} parent=1 // pred_check
      _
    $region75: #{graphrnn_forward.1} parent=1 // pred_check_branch
      %144 = sbr.rel (0) target = $region77
    $region76: #{graphrnn_forward.1} parent=1 // pred_region
      _
    $region77: #{graphrnn_forward.1} parent=1 // pred_fallthru
      _
    // Predicated region
    $region78: #{graphrnn_forward.1} parent=1 // pred_check
      _
    $region79: #{graphrnn_forward.1} parent=1 // pred_check_branch
      %146 = sbr.rel (0) target = $region81
    $region80: #{graphrnn_forward.1} parent=1 // pred_region
      _
    $region81: #{graphrnn_forward.1} parent=1 // pred_fallthru
      _
    // Predicated region
    $region82: #{graphrnn_forward.1} parent=1 // pred_check
      _
    $region83: #{graphrnn_forward.1} parent=1 // pred_check_branch
      %148 = sbr.rel (0) target = $region85
    $region84: #{graphrnn_forward.1} parent=1 // pred_region
      %150 = vsyncadd [#allocation9], 0
      %s151 = sshll.u32 %s41, 4
      %s152 = int_to_ptr.hbm [resolvable:$true] %s151
      %s153 = sshll.u32 [#allocation8], 4
      %s154 = int_to_ptr.vmem [resolvable:$true] %s153
      %159 = dma.hbm_to_vmem [thread:$0]  %s152, 6144, %s154, [#allocation9], 384, 384, 24
    $region85: #{graphrnn_forward.1} parent=1 // pred_fallthru
      _
    // Predicated region
    $region86: #{graphrnn_forward.1} parent=1 // pred_check
      _
    $region87: #{graphrnn_forward.1} parent=1 // pred_check_branch
      %161 = sbr.rel (0) target = $region89
    $region88: #{graphrnn_forward.1} parent=1 // pred_region
      _
    $region89: #{graphrnn_forward.1} parent=1 // pred_fallthru
      _
    // Predicated region
    $region90: #{graphrnn_forward.1} parent=1 // pred_check
      _
    $region91: #{graphrnn_forward.1} parent=1 // pred_check_branch
      %163 = sbr.rel (0) target = $region93
    $region92: #{graphrnn_forward.1} parent=1 // pred_region
      _
    $region93: #{graphrnn_forward.1} parent=1 // pred_fallthru
      _
    // Predicated region
    $region94: #{graphrnn_forward.1} parent=1 // pred_check
      _
    $region95: #{graphrnn_forward.1} parent=1 // pred_check_branch
      %165 = sbr.rel (0) target = $region97
    $region96: #{graphrnn_forward.1} parent=1 // pred_region
      %167 = vsyncadd [#allocation9], 0
      %s168 = sshll.u32 %s47, 4
      %s169 = int_to_ptr.hbm [resolvable:$true] %s168
      %s170 = sshll.u32 [#allocation10], 4
      %s171 = int_to_ptr.vmem [resolvable:$true] %s170
      %176 = dma.hbm_to_vmem [thread:$0]  %s169, 6144, %s171, [#allocation9], 384, 384, 24
    $region97: #{graphrnn_forward.1} parent=1 // pred_fallthru
      _
    // Predicated region
    $region98: #{graphrnn_forward.1} parent=1 // pred_check
      _
    $region99: #{graphrnn_forward.1} parent=1 // pred_check_branch
      %178 = sbr.rel (0) target = $region101
    $region100: #{graphrnn_forward.1} parent=1 // pred_region
      %180 = vsyncadd [#allocation12], 0
      %s181 = sshll.u32 %s49, 4
      %s182 = int_to_ptr.hbm [resolvable:$true] %s181
      %s183 = sshll.u32 [#allocation11], 4
      %s184 = int_to_ptr.vmem [resolvable:$true] %s183
      %189 = dma.hbm_to_vmem [thread:$0]  %s182, 6144, %s184, [#allocation12], 384, 384, 24
    $region101: #{graphrnn_forward.1} parent=1 // pred_fallthru
      _
    // Predicated region
    $region102: #{graphrnn_forward.1} parent=1 // pred_check
      _
    $region103: #{graphrnn_forward.1} parent=1 // pred_check_branch
      %191 = sbr.rel (0) target = $region105
    $region104: #{graphrnn_forward.1} parent=1 // pred_region
      _
    $region105: #{graphrnn_forward.1} parent=1 // pred_fallthru
      _
    // Predicated region
    $region106: #{graphrnn_forward.1} parent=1 // pred_check
      _
    $region107: #{graphrnn_forward.1} parent=1 // pred_check_branch
      %193 = sbr.rel (0) target = $region109
    $region108: #{graphrnn_forward.1} parent=1 // pred_region
      _
    $region109: #{graphrnn_forward.1} parent=1 // pred_fallthru
      _
    // Predicated region
    $region110: #{graphrnn_forward.1} parent=1 // pred_check
      _
    $region111: #{graphrnn_forward.1} parent=1 // pred_check_branch
      %195 = sbr.rel (0) target = $region113
    $region112: #{graphrnn_forward.1} parent=1 // pred_region
      _
    $region113: #{graphrnn_forward.1} parent=1 // pred_fallthru
      _
    // Predicated region
    $region114: #{graphrnn_forward.1} parent=1 // pred_check
      _
    $region115: #{graphrnn_forward.1} parent=1 // pred_check_branch
      %197 = sbr.rel (0) target = $region117
    $region116: #{graphrnn_forward.1} parent=1 // pred_region
      _
    $region117: #{graphrnn_forward.1} parent=1 // pred_fallthru
      _
    // Predicated region
    $region118: #{graphrnn_forward.1} parent=1 // pred_check
      _
    $region119: #{graphrnn_forward.1} parent=1 // pred_check_branch
      %199 = sbr.rel (0) target = $region121
    $region120: #{graphrnn_forward.1} parent=1 // pred_region
      _
    $region121: #{graphrnn_forward.1} parent=1 // pred_fallthru
      _
    // Predicated region
    $region122: #{graphrnn_forward.1} parent=1 // pred_check
      _
    $region123: #{graphrnn_forward.1} parent=1 // pred_check_branch
      %201 = sbr.rel (0) target = $region125
    $region124: #{graphrnn_forward.1} parent=1 // pred_region
      _
    $region125: #{graphrnn_forward.1} parent=1 // pred_fallthru
      _
    // Predicated region
    $region126: #{graphrnn_forward.1} parent=1 // pred_check
      _
    $region127: #{graphrnn_forward.1} parent=1 // pred_check_branch
      %203 = sbr.rel (0) target = $region129
    $region128: #{graphrnn_forward.1} parent=1 // pred_region
      %205 = dma.done [#allocation4], 6144
    $region129: #{graphrnn_forward.1} parent=1 // pred_fallthru
      _
    // Predicated region
    $region130: #{graphrnn_forward.1} parent=1 // pred_check
      _
    $region131: #{graphrnn_forward.1} parent=1 // pred_check_branch
      %207 = sbr.rel (0) target = $region133
    $region132: #{graphrnn_forward.1} parent=1 // pred_region
      %209 = dma.done [#allocation6], 6144
    $region133: #{graphrnn_forward.1} parent=1 // pred_fallthru
      _
    // Predicated region
    $region134: #{graphrnn_forward.1} parent=1 // pred_check
      _
    $region135: #{graphrnn_forward.1} parent=1 // pred_check_branch
      %211 = sbr.rel (0) target = $region137
    $region136: #{graphrnn_forward.1} parent=1 // pred_region
      %213 = dma.done [#allocation6], 6144
    $region137: #{graphrnn_forward.1} parent=1 // pred_fallthru
      _
    // Predicated region
    $region138: #{graphrnn_forward.1} parent=1 // pred_check
      _
    $region139: #{graphrnn_forward.1} parent=1 // pred_check_branch
      %215 = sbr.rel (0) target = $region141
    $region140: #{graphrnn_forward.1} parent=1 // pred_region
      %217 = dma.done [#allocation9], 6144
    $region141: #{graphrnn_forward.1} parent=1 // pred_fallthru
      _
    // Predicated region
    $region142: #{graphrnn_forward.1} parent=1 // pred_check
      _
    $region143: #{graphrnn_forward.1} parent=1 // pred_check_branch
      %219 = sbr.rel (0) target = $region145
    $region144: #{graphrnn_forward.1} parent=1 // pred_region
      %221 = dma.done [#allocation9], 6144
    $region145: #{graphrnn_forward.1} parent=1 // pred_fallthru
      _
    // Predicated region
    $region146: #{graphrnn_forward.1} parent=1 // pred_check
      _
    $region147: #{graphrnn_forward.1} parent=1 // pred_check_branch
      %223 = sbr.rel (0) target = $region149
    $region148: #{graphrnn_forward.1} parent=1 // pred_region
      %225 = dma.done [#allocation12], 6144
    $region149: #{graphrnn_forward.1} parent=1 // pred_fallthru
      _
    %v226 = vld [vmem:[%s7] sm:$0xff]
    %v227 = vld [vmem:[%s9] sm:$0x1]
    %v228 = vld [vmem:[%s1] sm:$0x3]
    %v230 = vperm.slane %v227, 0
    %vm232 = vcmask 64512
    %v234 = vsel %vm232, %v228, 0
    %236 = vmatpush.msra.mxu0 0.0
    %237 = vmatpush.msra.mxu0 0.0
    %238 = vmatpush.msra.mxu0 0.0
    %239 = vmatpush.msra.mxu0 0.0
    %240 = vmatpush.msra.mxu0 0.0
    %241 = vmatpush.msra.mxu0 0.0
    %242 = vmatpush.msra.mxu0 0.0
    %243 = vmatpush.msra.mxu0 0.0
    %244 = vmatpush.msra.mxu0 0.0
    %245 = vmatpush.msra.mxu0 0.0
    %246 = vmatpush.msra.mxu0 0.0
    %247 = vmatpush.msra.mxu0 0.0
    %248 = vmatpush.msra.mxu0 0.0
    %249 = vmatpush.msra.mxu0 0.0
    %250 = vmatpush.msra.mxu0 0.0
    %251 = vmatpush.msra.mxu0 %v226
    %252 = vmatmul.f32.gmra.mxu0 %v234
    %v253 = vpop.f32.mrf.mxu0
    %v254 = vadd.f32 %v230, %v253
    %255 = vdwg.mxu0
    %v256 = vmax.f32 %v254, 0.0
    %s257 = scalar_lea.vmem %s1, 2
    %v258 = vld [vmem:[%s257] sm:$0x3]
    %v260 = vsel %vm232, %v258, 0
    %262 = vmatpush.msra.mxu0 0.0
    %263 = vmatpush.msra.mxu0 0.0
    %264 = vmatpush.msra.mxu0 0.0
    %265 = vmatpush.msra.mxu0 0.0
    %266 = vmatpush.msra.mxu0 0.0
    %267 = vmatpush.msra.mxu0 0.0
    %268 = vmatpush.msra.mxu0 0.0
    %269 = vmatpush.msra.mxu0 0.0
    %270 = vmatpush.msra.mxu0 0.0
    %271 = vmatpush.msra.mxu0 0.0
    %272 = vmatpush.msra.mxu0 0.0
    %273 = vmatpush.msra.mxu0 0.0
    %274 = vmatpush.msra.mxu0 0.0
    %275 = vmatpush.msra.mxu0 0.0
    %276 = vmatpush.msra.mxu0 0.0
    %277 = vmatpush.msra.mxu0 %v226
    %278 = vmatmul.f32.gmra.mxu0 %v260
    %v279 = vpop.f32.mrf.mxu0
    %v280 = vadd.f32 %v230, %v279
    %281 = vdwg.mxu0
    %v282 = vmax.f32 %v280, 0.0
    %s283 = scalar_lea.vmem %s1, 4
    %v284 = vld [vmem:[%s283] sm:$0x3]
    %v286 = vsel %vm232, %v284, 0
    %288 = vmatpush.msra.mxu0 0.0
    %289 = vmatpush.msra.mxu0 0.0
    %290 = vmatpush.msra.mxu0 0.0
    %291 = vmatpush.msra.mxu0 0.0
    %292 = vmatpush.msra.mxu0 0.0
    %293 = vmatpush.msra.mxu0 0.0
    %294 = vmatpush.msra.mxu0 0.0
    %295 = vmatpush.msra.mxu0 0.0
    %296 = vmatpush.msra.mxu0 0.0
    %297 = vmatpush.msra.mxu0 0.0
    %298 = vmatpush.msra.mxu0 0.0
    %299 = vmatpush.msra.mxu0 0.0
    %300 = vmatpush.msra.mxu0 0.0
    %301 = vmatpush.msra.mxu0 0.0
    %302 = vmatpush.msra.mxu0 0.0
    %303 = vmatpush.msra.mxu0 %v226
    %304 = vmatmul.f32.gmra.mxu0 %v286
    %v305 = vpop.f32.mrf.mxu0
    %v306 = vadd.f32 %v230, %v305
    %307 = vdwg.mxu0
    %v308 = vmax.f32 %v306, 0.0
    %s309 = scalar_lea.vmem %s1, 6
    %v310 = vld [vmem:[%s309] sm:$0x3]
    %v312 = vsel %vm232, %v310, 0
    %314 = vmatpush.msra.mxu0 0.0
    %315 = vmatpush.msra.mxu0 0.0
    %316 = vmatpush.msra.mxu0 0.0
    %317 = vmatpush.msra.mxu0 0.0
    %318 = vmatpush.msra.mxu0 0.0
    %319 = vmatpush.msra.mxu0 0.0
    %320 = vmatpush.msra.mxu0 0.0
    %321 = vmatpush.msra.mxu0 0.0
    %322 = vmatpush.msra.mxu0 0.0
    %323 = vmatpush.msra.mxu0 0.0
    %324 = vmatpush.msra.mxu0 0.0
    %325 = vmatpush.msra.mxu0 0.0
    %326 = vmatpush.msra.mxu0 0.0
    %327 = vmatpush.msra.mxu0 0.0
    %328 = vmatpush.msra.mxu0 0.0
    %329 = vmatpush.msra.mxu0 %v226
    %330 = vmatmul.f32.gmra.mxu0 %v312
    %v331 = vpop.f32.mrf.mxu0
    %v332 = vadd.f32 %v230, %v331
    %333 = vdwg.mxu0
    %v334 = vmax.f32 %v332, 0.0
    %s335 = scalar_lea.vmem %s1, 8
    %v336 = vld [vmem:[%s335] sm:$0x3]
    %v338 = vsel %vm232, %v336, 0
    %340 = vmatpush.msra.mxu0 0.0
    %341 = vmatpush.msra.mxu0 0.0
    %342 = vmatpush.msra.mxu0 0.0
    %343 = vmatpush.msra.mxu0 0.0
    %344 = vmatpush.msra.mxu0 0.0
    %345 = vmatpush.msra.mxu0 0.0
    %346 = vmatpush.msra.mxu0 0.0
    %347 = vmatpush.msra.mxu0 0.0
    %348 = vmatpush.msra.mxu0 0.0
    %349 = vmatpush.msra.mxu0 0.0
    %350 = vmatpush.msra.mxu0 0.0
    %351 = vmatpush.msra.mxu0 0.0
    %352 = vmatpush.msra.mxu0 0.0
    %353 = vmatpush.msra.mxu0 0.0
    %354 = vmatpush.msra.mxu0 0.0
    %355 = vmatpush.msra.mxu0 %v226
    %356 = vmatmul.f32.gmra.mxu0 %v338
    %v357 = vpop.f32.mrf.mxu0
    %v358 = vadd.f32 %v230, %v357
    %359 = vdwg.mxu0
    %v360 = vmax.f32 %v358, 0.0
    %s361 = scalar_lea.vmem %s1, 10
    %v362 = vld [vmem:[%s361] sm:$0x3]
    %v364 = vsel %vm232, %v362, 0
    %366 = vmatpush.msra.mxu0 0.0
    %367 = vmatpush.msra.mxu0 0.0
    %368 = vmatpush.msra.mxu0 0.0
    %369 = vmatpush.msra.mxu0 0.0
    %370 = vmatpush.msra.mxu0 0.0
    %371 = vmatpush.msra.mxu0 0.0
    %372 = vmatpush.msra.mxu0 0.0
    %373 = vmatpush.msra.mxu0 0.0
    %374 = vmatpush.msra.mxu0 0.0
    %375 = vmatpush.msra.mxu0 0.0
    %376 = vmatpush.msra.mxu0 0.0
    %377 = vmatpush.msra.mxu0 0.0
    %378 = vmatpush.msra.mxu0 0.0
    %379 = vmatpush.msra.mxu0 0.0
    %380 = vmatpush.msra.mxu0 0.0
    %381 = vmatpush.msra.mxu0 %v226
    %382 = vmatmul.f32.gmra.mxu0 %v364
    %v383 = vpop.f32.mrf.mxu0
    %v384 = vadd.f32 %v230, %v383
    %385 = vdwg.mxu0
    %v386 = vmax.f32 %v384, 0.0
    %v387 = vld [vmem:[%s15] sm:$0x7]
    %v388 = vld [vmem:[%s17] sm:$0x7]
    %v389 = vld [vmem:[%s11] sm:$0xff]
    %v390 = vld [vmem:[%s11 + $0x8] sm:$0xff]
    %v391 = vld [vmem:[%s11 + $0x10] sm:$0xff]
    %v392 = vld [vmem:[%s11 + $0x18] sm:$0xff]
    %v393 = vld [vmem:[%s11 + $0x20] sm:$0xff]
    %v394 = vld [vmem:[%s11 + $0x28] sm:$0xff]
    %v396 = vperm.slane %v387, 0
    %v397 = vperm.slane %v387, 1
    %v398 = vperm.slane %v387, 2
    %vm402 = vcmask 130048
    %v404 = vsel %vm402, %v256, 0
    %406 = vmatpush.msra.mxu0 0.0
    %407 = vmatpush.msra.mxu0 0.0
    %408 = vmatpush.msra.mxu0 0.0
    %409 = vmatpush.msra.mxu0 0.0
    %410 = vmatpush.msra.mxu0 0.0
    %411 = vmatpush.msra.mxu0 0.0
    %412 = vmatpush.msra.mxu0 0.0
    %413 = vmatpush.msra.mxu0 0.0
    %414 = vmatpush.msra.mxu0 0.0
    %415 = vmatpush.msra.mxu0 0.0
    %416 = vmatpush.msra.mxu0 0.0
    %417 = vmatpush.msra.mxu0 0.0
    %418 = vmatpush.msra.mxu0 0.0
    %419 = vmatpush.msra.mxu0 0.0
    %420 = vmatpush.msra.mxu0 %v392
    %421 = vmatpush.msra.mxu0 %v389
    %422 = vmatmul.f32.gmra.mxu0 %v404
    %v423 = vpop.f32.mrf.mxu0
    %v424 = vadd.f32 %v396, %v423
    %425 = vdwg.mxu0
    %426 = vmatpush.msra.mxu0 0.0
    %427 = vmatpush.msra.mxu0 0.0
    %428 = vmatpush.msra.mxu0 0.0
    %429 = vmatpush.msra.mxu0 0.0
    %430 = vmatpush.msra.mxu0 0.0
    %431 = vmatpush.msra.mxu0 0.0
    %432 = vmatpush.msra.mxu0 0.0
    %433 = vmatpush.msra.mxu0 0.0
    %434 = vmatpush.msra.mxu0 0.0
    %435 = vmatpush.msra.mxu0 0.0
    %436 = vmatpush.msra.mxu0 0.0
    %437 = vmatpush.msra.mxu0 0.0
    %438 = vmatpush.msra.mxu0 0.0
    %439 = vmatpush.msra.mxu0 0.0
    %440 = vmatpush.msra.mxu0 %v393
    %441 = vmatpush.msra.mxu0 %v390
    %442 = vmatmul.f32.gmra.mxu0 %v404
    %v443 = vpop.f32.mrf.mxu0
    %v444 = vadd.f32 %v397, %v443
    %445 = vdwg.mxu0
    %446 = vmatpush.msra.mxu0 0.0
    %447 = vmatpush.msra.mxu0 0.0
    %448 = vmatpush.msra.mxu0 0.0
    %449 = vmatpush.msra.mxu0 0.0
    %450 = vmatpush.msra.mxu0 0.0
    %451 = vmatpush.msra.mxu0 0.0
    %452 = vmatpush.msra.mxu0 0.0
    %453 = vmatpush.msra.mxu0 0.0
    %454 = vmatpush.msra.mxu0 0.0
    %455 = vmatpush.msra.mxu0 0.0
    %456 = vmatpush.msra.mxu0 0.0
    %457 = vmatpush.msra.mxu0 0.0
    %458 = vmatpush.msra.mxu0 0.0
    %459 = vmatpush.msra.mxu0 0.0
    %460 = vmatpush.msra.mxu0 %v394
    %461 = vmatpush.msra.mxu0 %v391
    %462 = vmatmul.f32.gmra.mxu0 %v404
    %v463 = vpop.f32.mrf.mxu0
    %v464 = vadd.f32 %v398, %v463
    %465 = vdwg.mxu0
    %v466 = vld [vmem:[#allocation3] sm:$0xff]
    %v467 = vld [vmem:[#allocation3 + $0x8] sm:$0xff]
    %v468 = vld [vmem:[#allocation3 + $0x10] sm:$0xff]
    %v469 = vld [vmem:[#allocation3 + $0x18] sm:$0xff]
    %v470 = vld [vmem:[#allocation3 + $0x20] sm:$0xff]
    %v471 = vld [vmem:[#allocation3 + $0x28] sm:$0xff]
    %v472 = vld [vmem:[#allocation3 + $0x30] sm:$0xff]
    %v473 = vld [vmem:[#allocation3 + $0x38] sm:$0xff]
    %v474 = vld [vmem:[#allocation3 + $0x40] sm:$0xff]
    %v475 = vld [vmem:[#allocation3 + $0x48] sm:$0xff]
    %v476 = vld [vmem:[#allocation3 + $0x50] sm:$0xff]
    %v477 = vld [vmem:[#allocation3 + $0x58] sm:$0xff]
    %v478 = vld [vmem:[#allocation3 + $0x60] sm:$0xff]
    %v479 = vld [vmem:[#allocation3 + $0x68] sm:$0xff]
    %v480 = vld [vmem:[#allocation3 + $0x70] sm:$0xff]
    %v481 = vld [vmem:[#allocation3 + $0x78] sm:$0xff]
    %v482 = vld [vmem:[#allocation3 + $0x80] sm:$0xff]
    %v483 = vld [vmem:[#allocation3 + $0x88] sm:$0xff]
    %v484 = vld [vmem:[#allocation3 + $0x90] sm:$0xff]
    %v485 = vld [vmem:[#allocation3 + $0x98] sm:$0xff]
    %v486 = vld [vmem:[#allocation3 + $0xa0] sm:$0xff]
    %v487 = vld [vmem:[#allocation3 + $0xa8] sm:$0xff]
    %v488 = vld [vmem:[#allocation3 + $0xb0] sm:$0xff]
    %v489 = vld [vmem:[#allocation3 + $0xb8] sm:$0xff]
    %v490 = vld [vmem:[#allocation3 + $0xc0] sm:$0xff]
    %v491 = vld [vmem:[#allocation3 + $0xc8] sm:$0xff]
    %v492 = vld [vmem:[#allocation3 + $0xd0] sm:$0xff]
    %v493 = vld [vmem:[#allocation3 + $0xd8] sm:$0xff]
    %v494 = vld [vmem:[#allocation3 + $0xe0] sm:$0xff]
    %v495 = vld [vmem:[#allocation3 + $0xe8] sm:$0xff]
    %v496 = vld [vmem:[#allocation3 + $0xf0] sm:$0xff]
    %v497 = vld [vmem:[#allocation3 + $0xf8] sm:$0xff]
    %v498 = vld [vmem:[#allocation3 + $0x100] sm:$0xff]
    %v499 = vld [vmem:[#allocation3 + $0x108] sm:$0xff]
    %v500 = vld [vmem:[#allocation3 + $0x110] sm:$0xff]
    %v501 = vld [vmem:[#allocation3 + $0x118] sm:$0xff]
    %v502 = vld [vmem:[#allocation3 + $0x120] sm:$0xff]
    %v503 = vld [vmem:[#allocation3 + $0x128] sm:$0xff]
    %v504 = vld [vmem:[#allocation3 + $0x130] sm:$0xff]
    %v505 = vld [vmem:[#allocation3 + $0x138] sm:$0xff]
    %v506 = vld [vmem:[#allocation3 + $0x140] sm:$0xff]
    %v507 = vld [vmem:[#allocation3 + $0x148] sm:$0xff]
    %v508 = vld [vmem:[#allocation3 + $0x150] sm:$0xff]
    %v509 = vld [vmem:[#allocation3 + $0x158] sm:$0xff]
    %v510 = vld [vmem:[#allocation3 + $0x160] sm:$0xff]
    %v511 = vld [vmem:[#allocation3 + $0x168] sm:$0xff]
    %v512 = vld [vmem:[#allocation3 + $0x170] sm:$0xff]
    %v513 = vld [vmem:[#allocation3 + $0x178] sm:$0xff]
    %v515 = vperm.slane %v388, 0
    %v516 = vperm.slane %v388, 1
    %v517 = vperm.slane %v388, 2
    %521 = vmatpush.msra.mxu0 %v511
    %522 = vmatpush.msra.mxu0 %v508
    %523 = vmatpush.msra.mxu0 %v505
    %524 = vmatpush.msra.mxu0 %v502
    %525 = vmatpush.msra.mxu0 %v499
    %526 = vmatpush.msra.mxu0 %v496
    %527 = vmatpush.msra.mxu0 %v493
    %528 = vmatpush.msra.mxu0 %v490
    %529 = vmatpush.msra.mxu0 %v487
    %530 = vmatpush.msra.mxu0 %v484
    %531 = vmatpush.msra.mxu0 %v481
    %532 = vmatpush.msra.mxu0 %v478
    %533 = vmatpush.msra.mxu0 %v475
    %534 = vmatpush.msra.mxu0 %v472
    %535 = vmatpush.msra.mxu0 %v469
    %536 = vmatpush.msra.mxu0 %v466
    %537 = vmatmul.f32.gmra.mxu0 0.0
    %v538 = vpop.f32.mrf.mxu0
    %v539 = vadd.f32 %v515, %v538
    %540 = vdwg.mxu0
    %541 = vmatpush.msra.mxu0 %v512
    %542 = vmatpush.msra.mxu0 %v509
    %543 = vmatpush.msra.mxu0 %v506
    %544 = vmatpush.msra.mxu0 %v503
    %545 = vmatpush.msra.mxu0 %v500
    %546 = vmatpush.msra.mxu0 %v497
    %547 = vmatpush.msra.mxu0 %v494
    %548 = vmatpush.msra.mxu0 %v491
    %549 = vmatpush.msra.mxu0 %v488
    %550 = vmatpush.msra.mxu0 %v485
    %551 = vmatpush.msra.mxu0 %v482
    %552 = vmatpush.msra.mxu0 %v479
    %553 = vmatpush.msra.mxu0 %v476
    %554 = vmatpush.msra.mxu0 %v473
    %555 = vmatpush.msra.mxu0 %v470
    %556 = vmatpush.msra.mxu0 %v467
    %557 = vmatmul.f32.gmra.mxu0 0.0
    %v558 = vpop.f32.mrf.mxu0
    %v559 = vadd.f32 %v516, %v558
    %560 = vdwg.mxu0
    %561 = vmatpush.msra.mxu0 %v513
    %562 = vmatpush.msra.mxu0 %v510
    %563 = vmatpush.msra.mxu0 %v507
    %564 = vmatpush.msra.mxu0 %v504
    %565 = vmatpush.msra.mxu0 %v501
    %566 = vmatpush.msra.mxu0 %v498
    %567 = vmatpush.msra.mxu0 %v495
    %568 = vmatpush.msra.mxu0 %v492
    %569 = vmatpush.msra.mxu0 %v489
    %570 = vmatpush.msra.mxu0 %v486
    %571 = vmatpush.msra.mxu0 %v483
    %572 = vmatpush.msra.mxu0 %v480
    %573 = vmatpush.msra.mxu0 %v477
    %574 = vmatpush.msra.mxu0 %v474
    %575 = vmatpush.msra.mxu0 %v471
    %576 = vmatpush.msra.mxu0 %v468
    %577 = vmatmul.f32.gmra.mxu0 0.0
    %v578 = vpop.f32.mrf.mxu0
    %v579 = vadd.f32 %v517, %v578
    %580 = vdwg.mxu0
    %v581 = vadd.f32 %v424, %v539
    %v582 = vxor.u32 %v581, 2147483648
    %v583 = vmul.f32 %v582, 1.442695
    %v584 = vpow.pop %v583
    %v585 = vadd.f32 %v584, 1.0
    %v586 = vrcp.pop %v585
    %v587 = vmul.f32 %v585, %v586
    %v588 = vsub.f32 1.0, %v587
    %v589 = vmul.f32 %v586, %v588
    %v590 = vadd.f32 %v586, %v589
    %vm591 = vweird.f32 %v585
    %vm592 = vweird.f32 %v586
    %vm593 = vmor %vm591, %vm592
    %v594 = vsel %vm593, %v586, %v590
    %v595 = vand.u32 2147483647, %v585
    %vm596 = vcmp.eq.f32.partialorder %v595, 8.507059e+37
    %v597 = vand.u32 %v585, 2147483648
    %v598 = vor.u32 1.1754944e-38, %v597
    %v599 = vsel %vm596, %v598, %v594
    %v600 = vmul.f32 1.0, %v599
    %v601 = vadd.f32 %v444, %v559
    %v602 = vxor.u32 %v601, 2147483648
    %v603 = vmul.f32 %v602, 1.442695
    %v604 = vpow.pop %v603
    %v605 = vadd.f32 %v604, 1.0
    %v606 = vrcp.pop %v605
    %v607 = vmul.f32 %v605, %v606
    %v608 = vsub.f32 1.0, %v607
    %v609 = vmul.f32 %v606, %v608
    %v610 = vadd.f32 %v606, %v609
    %vm611 = vweird.f32 %v605
    %vm612 = vweird.f32 %v606
    %vm613 = vmor %vm611, %vm612
    %v614 = vsel %vm613, %v606, %v610
    %v615 = vand.u32 2147483647, %v605
    %vm616 = vcmp.eq.f32.partialorder %v615, 8.507059e+37
    %v617 = vand.u32 %v605, 2147483648
    %v618 = vor.u32 1.1754944e-38, %v617
    %v619 = vsel %vm616, %v618, %v614
    %v620 = vmul.f32 1.0, %v619
    %v621 = vmul.f32 %v600, %v579
    %v622 = vadd.f32 %v464, %v621
    %v623 = vtanh.pop %v622
    %v624 = vsub.f32 1.0, %v620
    %v625 = vmul.f32 %v624, %v623
    %v626 = vmul.f32 %v620, 0.0
    %v627 = vadd.f32 %v625, %v626
    %v629 = vsel %vm402, %v282, 0
    %631 = vmatpush.msra.mxu0 0.0
    %632 = vmatpush.msra.mxu0 0.0
    %633 = vmatpush.msra.mxu0 0.0
    %634 = vmatpush.msra.mxu0 0.0
    %635 = vmatpush.msra.mxu0 0.0
    %636 = vmatpush.msra.mxu0 0.0
    %637 = vmatpush.msra.mxu0 0.0
    %638 = vmatpush.msra.mxu0 0.0
    %639 = vmatpush.msra.mxu0 0.0
    %640 = vmatpush.msra.mxu0 0.0
    %641 = vmatpush.msra.mxu0 0.0
    %642 = vmatpush.msra.mxu0 0.0
    %643 = vmatpush.msra.mxu0 0.0
    %644 = vmatpush.msra.mxu0 0.0
    %645 = vmatpush.msra.mxu0 %v392
    %646 = vmatpush.msra.mxu0 %v389
    %647 = vmatmul.f32.gmra.mxu0 %v629
    %v648 = vpop.f32.mrf.mxu0
    %v649 = vadd.f32 %v396, %v648
    %650 = vdwg.mxu0
    %651 = vmatpush.msra.mxu0 0.0
    %652 = vmatpush.msra.mxu0 0.0
    %653 = vmatpush.msra.mxu0 0.0
    %654 = vmatpush.msra.mxu0 0.0
    %655 = vmatpush.msra.mxu0 0.0
    %656 = vmatpush.msra.mxu0 0.0
    %657 = vmatpush.msra.mxu0 0.0
    %658 = vmatpush.msra.mxu0 0.0
    %659 = vmatpush.msra.mxu0 0.0
    %660 = vmatpush.msra.mxu0 0.0
    %661 = vmatpush.msra.mxu0 0.0
    %662 = vmatpush.msra.mxu0 0.0
    %663 = vmatpush.msra.mxu0 0.0
    %664 = vmatpush.msra.mxu0 0.0
    %665 = vmatpush.msra.mxu0 %v393
    %666 = vmatpush.msra.mxu0 %v390
    %667 = vmatmul.f32.gmra.mxu0 %v629
    %v668 = vpop.f32.mrf.mxu0
    %v669 = vadd.f32 %v397, %v668
    %670 = vdwg.mxu0
    %671 = vmatpush.msra.mxu0 0.0
    %672 = vmatpush.msra.mxu0 0.0
    %673 = vmatpush.msra.mxu0 0.0
    %674 = vmatpush.msra.mxu0 0.0
    %675 = vmatpush.msra.mxu0 0.0
    %676 = vmatpush.msra.mxu0 0.0
    %677 = vmatpush.msra.mxu0 0.0
    %678 = vmatpush.msra.mxu0 0.0
    %679 = vmatpush.msra.mxu0 0.0
    %680 = vmatpush.msra.mxu0 0.0
    %681 = vmatpush.msra.mxu0 0.0
    %682 = vmatpush.msra.mxu0 0.0
    %683 = vmatpush.msra.mxu0 0.0
    %684 = vmatpush.msra.mxu0 0.0
    %685 = vmatpush.msra.mxu0 %v394
    %686 = vmatpush.msra.mxu0 %v391
    %687 = vmatmul.f32.gmra.mxu0 %v629
    %v688 = vpop.f32.mrf.mxu0
    %v689 = vadd.f32 %v398, %v688
    %690 = vdwg.mxu0
    %691 = vmatpush.msra.mxu0 %v511
    %692 = vmatpush.msra.mxu0 %v508
    %693 = vmatpush.msra.mxu0 %v505
    %694 = vmatpush.msra.mxu0 %v502
    %695 = vmatpush.msra.mxu0 %v499
    %696 = vmatpush.msra.mxu0 %v496
    %697 = vmatpush.msra.mxu0 %v493
    %698 = vmatpush.msra.mxu0 %v490
    %699 = vmatpush.msra.mxu0 %v487
    %700 = vmatpush.msra.mxu0 %v484
    %701 = vmatpush.msra.mxu0 %v481
    %702 = vmatpush.msra.mxu0 %v478
    %703 = vmatpush.msra.mxu0 %v475
    %704 = vmatpush.msra.mxu0 %v472
    %705 = vmatpush.msra.mxu0 %v469
    %706 = vmatpush.msra.mxu0 %v466
    %707 = vmatmul.f32.gmra.mxu0 %v627
    %v708 = vpop.f32.mrf.mxu0
    %v709 = vadd.f32 %v515, %v708
    %710 = vdwg.mxu0
    %711 = vmatpush.msra.mxu0 %v512
    %712 = vmatpush.msra.mxu0 %v509
    %713 = vmatpush.msra.mxu0 %v506
    %714 = vmatpush.msra.mxu0 %v503
    %715 = vmatpush.msra.mxu0 %v500
    %716 = vmatpush.msra.mxu0 %v497
    %717 = vmatpush.msra.mxu0 %v494
    %718 = vmatpush.msra.mxu0 %v491
    %719 = vmatpush.msra.mxu0 %v488
    %720 = vmatpush.msra.mxu0 %v485
    %721 = vmatpush.msra.mxu0 %v482
    %722 = vmatpush.msra.mxu0 %v479
    %723 = vmatpush.msra.mxu0 %v476
    %724 = vmatpush.msra.mxu0 %v473
    %725 = vmatpush.msra.mxu0 %v470
    %726 = vmatpush.msra.mxu0 %v467
    %727 = vmatmul.f32.gmra.mxu0 %v627
    %v728 = vpop.f32.mrf.mxu0
    %v729 = vadd.f32 %v516, %v728
    %730 = vdwg.mxu0
    %731 = vmatpush.msra.mxu0 %v513
    %732 = vmatpush.msra.mxu0 %v510
    %733 = vmatpush.msra.mxu0 %v507
    %734 = vmatpush.msra.mxu0 %v504
    %735 = vmatpush.msra.mxu0 %v501
    %736 = vmatpush.msra.mxu0 %v498
    %737 = vmatpush.msra.mxu0 %v495
    %738 = vmatpush.msra.mxu0 %v492
    %739 = vmatpush.msra.mxu0 %v489
    %740 = vmatpush.msra.mxu0 %v486
    %741 = vmatpush.msra.mxu0 %v483
    %742 = vmatpush.msra.mxu0 %v480
    %743 = vmatpush.msra.mxu0 %v477
    %744 = vmatpush.msra.mxu0 %v474
    %745 = vmatpush.msra.mxu0 %v471
    %746 = vmatpush.msra.mxu0 %v468
    %747 = vmatmul.f32.gmra.mxu0 %v627
    %v748 = vpop.f32.mrf.mxu0
    %v749 = vadd.f32 %v517, %v748
    %750 = vdwg.mxu0
    %v751 = vadd.f32 %v649, %v709
    %v752 = vxor.u32 %v751, 2147483648
    %v753 = vmul.f32 %v752, 1.442695
    %v754 = vpow.pop %v753
    %v755 = vadd.f32 %v754, 1.0
    %v756 = vrcp.pop %v755
    %v757 = vmul.f32 %v755, %v756
    %v758 = vsub.f32 1.0, %v757
    %v759 = vmul.f32 %v756, %v758
    %v760 = vadd.f32 %v756, %v759
    %vm761 = vweird.f32 %v755
    %vm762 = vweird.f32 %v756
    %vm763 = vmor %vm761, %vm762
    %v764 = vsel %vm763, %v756, %v760
    %v765 = vand.u32 2147483647, %v755
    %vm766 = vcmp.eq.f32.partialorder %v765, 8.507059e+37
    %v767 = vand.u32 %v755, 2147483648
    %v768 = vor.u32 1.1754944e-38, %v767
    %v769 = vsel %vm766, %v768, %v764
    %v770 = vmul.f32 1.0, %v769
    %v771 = vadd.f32 %v669, %v729
    %v772 = vxor.u32 %v771, 2147483648
    %v773 = vmul.f32 %v772, 1.442695
    %v774 = vpow.pop %v773
    %v775 = vadd.f32 %v774, 1.0
    %v776 = vrcp.pop %v775
    %v777 = vmul.f32 %v775, %v776
    %v778 = vsub.f32 1.0, %v777
    %v779 = vmul.f32 %v776, %v778
    %v780 = vadd.f32 %v776, %v779
    %vm781 = vweird.f32 %v775
    %vm782 = vweird.f32 %v776
    %vm783 = vmor %vm781, %vm782
    %v784 = vsel %vm783, %v776, %v780
    %v785 = vand.u32 2147483647, %v775
    %vm786 = vcmp.eq.f32.partialorder %v785, 8.507059e+37
    %v787 = vand.u32 %v775, 2147483648
    %v788 = vor.u32 1.1754944e-38, %v787
    %v789 = vsel %vm786, %v788, %v784
    %v790 = vmul.f32 1.0, %v789
    %v791 = vmul.f32 %v770, %v749
    %v792 = vadd.f32 %v689, %v791
    %v793 = vtanh.pop %v792
    %v794 = vsub.f32 1.0, %v790
    %v795 = vmul.f32 %v794, %v793
    %v796 = vmul.f32 %v790, %v627
    %v797 = vadd.f32 %v795, %v796
    %v799 = vsel %vm402, %v308, 0
    %801 = vmatpush.msra.mxu0 0.0
    %802 = vmatpush.msra.mxu0 0.0
    %803 = vmatpush.msra.mxu0 0.0
    %804 = vmatpush.msra.mxu0 0.0
    %805 = vmatpush.msra.mxu0 0.0
    %806 = vmatpush.msra.mxu0 0.0
    %807 = vmatpush.msra.mxu0 0.0
    %808 = vmatpush.msra.mxu0 0.0
    %809 = vmatpush.msra.mxu0 0.0
    %810 = vmatpush.msra.mxu0 0.0
    %811 = vmatpush.msra.mxu0 0.0
    %812 = vmatpush.msra.mxu0 0.0
    %813 = vmatpush.msra.mxu0 0.0
    %814 = vmatpush.msra.mxu0 0.0
    %815 = vmatpush.msra.mxu0 %v392
    %816 = vmatpush.msra.mxu0 %v389
    %817 = vmatmul.f32.gmra.mxu0 %v799
    %v818 = vpop.f32.mrf.mxu0
    %v819 = vadd.f32 %v396, %v818
    %820 = vdwg.mxu0
    %821 = vmatpush.msra.mxu0 0.0
    %822 = vmatpush.msra.mxu0 0.0
    %823 = vmatpush.msra.mxu0 0.0
    %824 = vmatpush.msra.mxu0 0.0
    %825 = vmatpush.msra.mxu0 0.0
    %826 = vmatpush.msra.mxu0 0.0
    %827 = vmatpush.msra.mxu0 0.0
    %828 = vmatpush.msra.mxu0 0.0
    %829 = vmatpush.msra.mxu0 0.0
    %830 = vmatpush.msra.mxu0 0.0
    %831 = vmatpush.msra.mxu0 0.0
    %832 = vmatpush.msra.mxu0 0.0
    %833 = vmatpush.msra.mxu0 0.0
    %834 = vmatpush.msra.mxu0 0.0
    %835 = vmatpush.msra.mxu0 %v393
    %836 = vmatpush.msra.mxu0 %v390
    %837 = vmatmul.f32.gmra.mxu0 %v799
    %v838 = vpop.f32.mrf.mxu0
    %v839 = vadd.f32 %v397, %v838
    %840 = vdwg.mxu0
    %841 = vmatpush.msra.mxu0 0.0
    %842 = vmatpush.msra.mxu0 0.0
    %843 = vmatpush.msra.mxu0 0.0
    %844 = vmatpush.msra.mxu0 0.0
    %845 = vmatpush.msra.mxu0 0.0
    %846 = vmatpush.msra.mxu0 0.0
    %847 = vmatpush.msra.mxu0 0.0
    %848 = vmatpush.msra.mxu0 0.0
    %849 = vmatpush.msra.mxu0 0.0
    %850 = vmatpush.msra.mxu0 0.0
    %851 = vmatpush.msra.mxu0 0.0
    %852 = vmatpush.msra.mxu0 0.0
    %853 = vmatpush.msra.mxu0 0.0
    %854 = vmatpush.msra.mxu0 0.0
    %855 = vmatpush.msra.mxu0 %v394
    %856 = vmatpush.msra.mxu0 %v391
    %857 = vmatmul.f32.gmra.mxu0 %v799
    %v858 = vpop.f32.mrf.mxu0
    %v859 = vadd.f32 %v398, %v858
    %860 = vdwg.mxu0
    %861 = vmatpush.msra.mxu0 %v511
    %862 = vmatpush.msra.mxu0 %v508
    %863 = vmatpush.msra.mxu0 %v505
    %864 = vmatpush.msra.mxu0 %v502
    %865 = vmatpush.msra.mxu0 %v499
    %866 = vmatpush.msra.mxu0 %v496
    %867 = vmatpush.msra.mxu0 %v493
    %868 = vmatpush.msra.mxu0 %v490
    %869 = vmatpush.msra.mxu0 %v487
    %870 = vmatpush.msra.mxu0 %v484
    %871 = vmatpush.msra.mxu0 %v481
    %872 = vmatpush.msra.mxu0 %v478
    %873 = vmatpush.msra.mxu0 %v475
    %874 = vmatpush.msra.mxu0 %v472
    %875 = vmatpush.msra.mxu0 %v469
    %876 = vmatpush.msra.mxu0 %v466
    %877 = vmatmul.f32.gmra.mxu0 %v797
    %v878 = vpop.f32.mrf.mxu0
    %v879 = vadd.f32 %v515, %v878
    %880 = vdwg.mxu0
    %881 = vmatpush.msra.mxu0 %v512
    %882 = vmatpush.msra.mxu0 %v509
    %883 = vmatpush.msra.mxu0 %v506
    %884 = vmatpush.msra.mxu0 %v503
    %885 = vmatpush.msra.mxu0 %v500
    %886 = vmatpush.msra.mxu0 %v497
    %887 = vmatpush.msra.mxu0 %v494
    %888 = vmatpush.msra.mxu0 %v491
    %889 = vmatpush.msra.mxu0 %v488
    %890 = vmatpush.msra.mxu0 %v485
    %891 = vmatpush.msra.mxu0 %v482
    %892 = vmatpush.msra.mxu0 %v479
    %893 = vmatpush.msra.mxu0 %v476
    %894 = vmatpush.msra.mxu0 %v473
    %895 = vmatpush.msra.mxu0 %v470
    %896 = vmatpush.msra.mxu0 %v467
    %897 = vmatmul.f32.gmra.mxu0 %v797
    %v898 = vpop.f32.mrf.mxu0
    %v899 = vadd.f32 %v516, %v898
    %900 = vdwg.mxu0
    %901 = vmatpush.msra.mxu0 %v513
    %902 = vmatpush.msra.mxu0 %v510
    %903 = vmatpush.msra.mxu0 %v507
    %904 = vmatpush.msra.mxu0 %v504
    %905 = vmatpush.msra.mxu0 %v501
    %906 = vmatpush.msra.mxu0 %v498
    %907 = vmatpush.msra.mxu0 %v495
    %908 = vmatpush.msra.mxu0 %v492
    %909 = vmatpush.msra.mxu0 %v489
    %910 = vmatpush.msra.mxu0 %v486
    %911 = vmatpush.msra.mxu0 %v483
    %912 = vmatpush.msra.mxu0 %v480
    %913 = vmatpush.msra.mxu0 %v477
    %914 = vmatpush.msra.mxu0 %v474
    %915 = vmatpush.msra.mxu0 %v471
    %916 = vmatpush.msra.mxu0 %v468
    %917 = vmatmul.f32.gmra.mxu0 %v797
    %v918 = vpop.f32.mrf.mxu0
    %v919 = vadd.f32 %v517, %v918
    %920 = vdwg.mxu0
    %v921 = vadd.f32 %v819, %v879
    %v922 = vxor.u32 %v921, 2147483648
    %v923 = vmul.f32 %v922, 1.442695
    %v924 = vpow.pop %v923
    %v925 = vadd.f32 %v924, 1.0
    %v926 = vrcp.pop %v925
    %v927 = vmul.f32 %v925, %v926
    %v928 = vsub.f32 1.0, %v927
    %v929 = vmul.f32 %v926, %v928
    %v930 = vadd.f32 %v926, %v929
    %vm931 = vweird.f32 %v925
    %vm932 = vweird.f32 %v926
    %vm933 = vmor %vm931, %vm932
    %v934 = vsel %vm933, %v926, %v930
    %v935 = vand.u32 2147483647, %v925
    %vm936 = vcmp.eq.f32.partialorder %v935, 8.507059e+37
    %v937 = vand.u32 %v925, 2147483648
    %v938 = vor.u32 1.1754944e-38, %v937
    %v939 = vsel %vm936, %v938, %v934
    %v940 = vmul.f32 1.0, %v939
    %v941 = vadd.f32 %v839, %v899
    %v942 = vxor.u32 %v941, 2147483648
    %v943 = vmul.f32 %v942, 1.442695
    %v944 = vpow.pop %v943
    %v945 = vadd.f32 %v944, 1.0
    %v946 = vrcp.pop %v945
    %v947 = vmul.f32 %v945, %v946
    %v948 = vsub.f32 1.0, %v947
    %v949 = vmul.f32 %v946, %v948
    %v950 = vadd.f32 %v946, %v949
    %vm951 = vweird.f32 %v945
    %vm952 = vweird.f32 %v946
    %vm953 = vmor %vm951, %vm952
    %v954 = vsel %vm953, %v946, %v950
    %v955 = vand.u32 2147483647, %v945
    %vm956 = vcmp.eq.f32.partialorder %v955, 8.507059e+37
    %v957 = vand.u32 %v945, 2147483648
    %v958 = vor.u32 1.1754944e-38, %v957
    %v959 = vsel %vm956, %v958, %v954
    %v960 = vmul.f32 1.0, %v959
    %v961 = vmul.f32 %v940, %v919
    %v962 = vadd.f32 %v859, %v961
    %v963 = vtanh.pop %v962
    %v964 = vsub.f32 1.0, %v960
    %v965 = vmul.f32 %v964, %v963
    %v966 = vmul.f32 %v960, %v797
    %v967 = vadd.f32 %v965, %v966
    %v969 = vsel %vm402, %v334, 0
    %971 = vmatpush.msra.mxu0 0.0
    %972 = vmatpush.msra.mxu0 0.0
    %973 = vmatpush.msra.mxu0 0.0
    %974 = vmatpush.msra.mxu0 0.0
    %975 = vmatpush.msra.mxu0 0.0
    %976 = vmatpush.msra.mxu0 0.0
    %977 = vmatpush.msra.mxu0 0.0
    %978 = vmatpush.msra.mxu0 0.0
    %979 = vmatpush.msra.mxu0 0.0
    %980 = vmatpush.msra.mxu0 0.0
    %981 = vmatpush.msra.mxu0 0.0
    %982 = vmatpush.msra.mxu0 0.0
    %983 = vmatpush.msra.mxu0 0.0
    %984 = vmatpush.msra.mxu0 0.0
    %985 = vmatpush.msra.mxu0 %v392
    %986 = vmatpush.msra.mxu0 %v389
    %987 = vmatmul.f32.gmra.mxu0 %v969
    %v988 = vpop.f32.mrf.mxu0
    %v989 = vadd.f32 %v396, %v988
    %990 = vdwg.mxu0
    %991 = vmatpush.msra.mxu0 0.0
    %992 = vmatpush.msra.mxu0 0.0
    %993 = vmatpush.msra.mxu0 0.0
    %994 = vmatpush.msra.mxu0 0.0
    %995 = vmatpush.msra.mxu0 0.0
    %996 = vmatpush.msra.mxu0 0.0
    %997 = vmatpush.msra.mxu0 0.0
    %998 = vmatpush.msra.mxu0 0.0
    %999 = vmatpush.msra.mxu0 0.0
    %1000 = vmatpush.msra.mxu0 0.0
    %1001 = vmatpush.msra.mxu0 0.0
    %1002 = vmatpush.msra.mxu0 0.0
    %1003 = vmatpush.msra.mxu0 0.0
    %1004 = vmatpush.msra.mxu0 0.0
    %1005 = vmatpush.msra.mxu0 %v393
    %1006 = vmatpush.msra.mxu0 %v390
    %1007 = vmatmul.f32.gmra.mxu0 %v969
    %v1008 = vpop.f32.mrf.mxu0
    %v1009 = vadd.f32 %v397, %v1008
    %1010 = vdwg.mxu0
    %1011 = vmatpush.msra.mxu0 0.0
    %1012 = vmatpush.msra.mxu0 0.0
    %1013 = vmatpush.msra.mxu0 0.0
    %1014 = vmatpush.msra.mxu0 0.0
    %1015 = vmatpush.msra.mxu0 0.0
    %1016 = vmatpush.msra.mxu0 0.0
    %1017 = vmatpush.msra.mxu0 0.0
    %1018 = vmatpush.msra.mxu0 0.0
    %1019 = vmatpush.msra.mxu0 0.0
    %1020 = vmatpush.msra.mxu0 0.0
    %1021 = vmatpush.msra.mxu0 0.0
    %1022 = vmatpush.msra.mxu0 0.0
    %1023 = vmatpush.msra.mxu0 0.0
    %1024 = vmatpush.msra.mxu0 0.0
    %1025 = vmatpush.msra.mxu0 %v394
    %1026 = vmatpush.msra.mxu0 %v391
    %1027 = vmatmul.f32.gmra.mxu0 %v969
    %v1028 = vpop.f32.mrf.mxu0
    %v1029 = vadd.f32 %v398, %v1028
    %1030 = vdwg.mxu0
    %1031 = vmatpush.msra.mxu0 %v511
    %1032 = vmatpush.msra.mxu0 %v508
    %1033 = vmatpush.msra.mxu0 %v505
    %1034 = vmatpush.msra.mxu0 %v502
    %1035 = vmatpush.msra.mxu0 %v499
    %1036 = vmatpush.msra.mxu0 %v496
    %1037 = vmatpush.msra.mxu0 %v493
    %1038 = vmatpush.msra.mxu0 %v490
    %1039 = vmatpush.msra.mxu0 %v487
    %1040 = vmatpush.msra.mxu0 %v484
    %1041 = vmatpush.msra.mxu0 %v481
    %1042 = vmatpush.msra.mxu0 %v478
    %1043 = vmatpush.msra.mxu0 %v475
    %1044 = vmatpush.msra.mxu0 %v472
    %1045 = vmatpush.msra.mxu0 %v469
    %1046 = vmatpush.msra.mxu0 %v466
    %1047 = vmatmul.f32.gmra.mxu0 %v967
    %v1048 = vpop.f32.mrf.mxu0
    %v1049 = vadd.f32 %v515, %v1048
    %1050 = vdwg.mxu0
    %1051 = vmatpush.msra.mxu0 %v512
    %1052 = vmatpush.msra.mxu0 %v509
    %1053 = vmatpush.msra.mxu0 %v506
    %1054 = vmatpush.msra.mxu0 %v503
    %1055 = vmatpush.msra.mxu0 %v500
    %1056 = vmatpush.msra.mxu0 %v497
    %1057 = vmatpush.msra.mxu0 %v494
    %1058 = vmatpush.msra.mxu0 %v491
    %1059 = vmatpush.msra.mxu0 %v488
    %1060 = vmatpush.msra.mxu0 %v485
    %1061 = vmatpush.msra.mxu0 %v482
    %1062 = vmatpush.msra.mxu0 %v479
    %1063 = vmatpush.msra.mxu0 %v476
    %1064 = vmatpush.msra.mxu0 %v473
    %1065 = vmatpush.msra.mxu0 %v470
    %1066 = vmatpush.msra.mxu0 %v467
    %1067 = vmatmul.f32.gmra.mxu0 %v967
    %v1068 = vpop.f32.mrf.mxu0
    %v1069 = vadd.f32 %v516, %v1068
    %1070 = vdwg.mxu0
    %1071 = vmatpush.msra.mxu0 %v513
    %1072 = vmatpush.msra.mxu0 %v510
    %1073 = vmatpush.msra.mxu0 %v507
    %1074 = vmatpush.msra.mxu0 %v504
    %1075 = vmatpush.msra.mxu0 %v501
    %1076 = vmatpush.msra.mxu0 %v498
    %1077 = vmatpush.msra.mxu0 %v495
    %1078 = vmatpush.msra.mxu0 %v492
    %1079 = vmatpush.msra.mxu0 %v489
    %1080 = vmatpush.msra.mxu0 %v486
    %1081 = vmatpush.msra.mxu0 %v483
    %1082 = vmatpush.msra.mxu0 %v480
    %1083 = vmatpush.msra.mxu0 %v477
    %1084 = vmatpush.msra.mxu0 %v474
    %1085 = vmatpush.msra.mxu0 %v471
    %1086 = vmatpush.msra.mxu0 %v468
    %1087 = vmatmul.f32.gmra.mxu0 %v967
    %v1088 = vpop.f32.mrf.mxu0
    %v1089 = vadd.f32 %v517, %v1088
    %1090 = vdwg.mxu0
    %v1091 = vadd.f32 %v989, %v1049
    %v1092 = vxor.u32 %v1091, 2147483648
    %v1093 = vmul.f32 %v1092, 1.442695
    %v1094 = vpow.pop %v1093
    %v1095 = vadd.f32 %v1094, 1.0
    %v1096 = vrcp.pop %v1095
    %v1097 = vmul.f32 %v1095, %v1096
    %v1098 = vsub.f32 1.0, %v1097
    %v1099 = vmul.f32 %v1096, %v1098
    %v1100 = vadd.f32 %v1096, %v1099
    %vm1101 = vweird.f32 %v1095
    %vm1102 = vweird.f32 %v1096
    %vm1103 = vmor %vm1101, %vm1102
    %v1104 = vsel %vm1103, %v1096, %v1100
    %v1105 = vand.u32 2147483647, %v1095
    %vm1106 = vcmp.eq.f32.partialorder %v1105, 8.507059e+37
    %v1107 = vand.u32 %v1095, 2147483648
    %v1108 = vor.u32 1.1754944e-38, %v1107
    %v1109 = vsel %vm1106, %v1108, %v1104
    %v1110 = vmul.f32 1.0, %v1109
    %v1111 = vadd.f32 %v1009, %v1069
    %v1112 = vxor.u32 %v1111, 2147483648
    %v1113 = vmul.f32 %v1112, 1.442695
    %v1114 = vpow.pop %v1113
    %v1115 = vadd.f32 %v1114, 1.0
    %v1116 = vrcp.pop %v1115
    %v1117 = vmul.f32 %v1115, %v1116
    %v1118 = vsub.f32 1.0, %v1117
    %v1119 = vmul.f32 %v1116, %v1118
    %v1120 = vadd.f32 %v1116, %v1119
    %vm1121 = vweird.f32 %v1115
    %vm1122 = vweird.f32 %v1116
    %vm1123 = vmor %vm1121, %vm1122
    %v1124 = vsel %vm1123, %v1116, %v1120
    %v1125 = vand.u32 2147483647, %v1115
    %vm1126 = vcmp.eq.f32.partialorder %v1125, 8.507059e+37
    %v1127 = vand.u32 %v1115, 2147483648
    %v1128 = vor.u32 1.1754944e-38, %v1127
    %v1129 = vsel %vm1126, %v1128, %v1124
    %v1130 = vmul.f32 1.0, %v1129
    %v1131 = vmul.f32 %v1110, %v1089
    %v1132 = vadd.f32 %v1029, %v1131
    %v1133 = vtanh.pop %v1132
    %v1134 = vsub.f32 1.0, %v1130
    %v1135 = vmul.f32 %v1134, %v1133
    %v1136 = vmul.f32 %v1130, %v967
    %v1137 = vadd.f32 %v1135, %v1136
    %v1139 = vsel %vm402, %v360, 0
    %1141 = vmatpush.msra.mxu0 0.0
    %1142 = vmatpush.msra.mxu0 0.0
    %1143 = vmatpush.msra.mxu0 0.0
    %1144 = vmatpush.msra.mxu0 0.0
    %1145 = vmatpush.msra.mxu0 0.0
    %1146 = vmatpush.msra.mxu0 0.0
    %1147 = vmatpush.msra.mxu0 0.0
    %1148 = vmatpush.msra.mxu0 0.0
    %1149 = vmatpush.msra.mxu0 0.0
    %1150 = vmatpush.msra.mxu0 0.0
    %1151 = vmatpush.msra.mxu0 0.0
    %1152 = vmatpush.msra.mxu0 0.0
    %1153 = vmatpush.msra.mxu0 0.0
    %1154 = vmatpush.msra.mxu0 0.0
    %1155 = vmatpush.msra.mxu0 %v392
    %1156 = vmatpush.msra.mxu0 %v389
    %1157 = vmatmul.f32.gmra.mxu0 %v1139
    %v1158 = vpop.f32.mrf.mxu0
    %v1159 = vadd.f32 %v396, %v1158
    %1160 = vdwg.mxu0
    %1161 = vmatpush.msra.mxu0 0.0
    %1162 = vmatpush.msra.mxu0 0.0
    %1163 = vmatpush.msra.mxu0 0.0
    %1164 = vmatpush.msra.mxu0 0.0
    %1165 = vmatpush.msra.mxu0 0.0
    %1166 = vmatpush.msra.mxu0 0.0
    %1167 = vmatpush.msra.mxu0 0.0
    %1168 = vmatpush.msra.mxu0 0.0
    %1169 = vmatpush.msra.mxu0 0.0
    %1170 = vmatpush.msra.mxu0 0.0
    %1171 = vmatpush.msra.mxu0 0.0
    %1172 = vmatpush.msra.mxu0 0.0
    %1173 = vmatpush.msra.mxu0 0.0
    %1174 = vmatpush.msra.mxu0 0.0
    %1175 = vmatpush.msra.mxu0 %v393
    %1176 = vmatpush.msra.mxu0 %v390
    %1177 = vmatmul.f32.gmra.mxu0 %v1139
    %v1178 = vpop.f32.mrf.mxu0
    %v1179 = vadd.f32 %v397, %v1178
    %1180 = vdwg.mxu0
    %1181 = vmatpush.msra.mxu0 0.0
    %1182 = vmatpush.msra.mxu0 0.0
    %1183 = vmatpush.msra.mxu0 0.0
    %1184 = vmatpush.msra.mxu0 0.0
    %1185 = vmatpush.msra.mxu0 0.0
    %1186 = vmatpush.msra.mxu0 0.0
    %1187 = vmatpush.msra.mxu0 0.0
    %1188 = vmatpush.msra.mxu0 0.0
    %1189 = vmatpush.msra.mxu0 0.0
    %1190 = vmatpush.msra.mxu0 0.0
    %1191 = vmatpush.msra.mxu0 0.0
    %1192 = vmatpush.msra.mxu0 0.0
    %1193 = vmatpush.msra.mxu0 0.0
    %1194 = vmatpush.msra.mxu0 0.0
    %1195 = vmatpush.msra.mxu0 %v394
    %1196 = vmatpush.msra.mxu0 %v391
    %1197 = vmatmul.f32.gmra.mxu0 %v1139
    %v1198 = vpop.f32.mrf.mxu0
    %v1199 = vadd.f32 %v398, %v1198
    %1200 = vdwg.mxu0
    %1201 = vmatpush.msra.mxu0 %v511
    %1202 = vmatpush.msra.mxu0 %v508
    %1203 = vmatpush.msra.mxu0 %v505
    %1204 = vmatpush.msra.mxu0 %v502
    %1205 = vmatpush.msra.mxu0 %v499
    %1206 = vmatpush.msra.mxu0 %v496
    %1207 = vmatpush.msra.mxu0 %v493
    %1208 = vmatpush.msra.mxu0 %v490
    %1209 = vmatpush.msra.mxu0 %v487
    %1210 = vmatpush.msra.mxu0 %v484
    %1211 = vmatpush.msra.mxu0 %v481
    %1212 = vmatpush.msra.mxu0 %v478
    %1213 = vmatpush.msra.mxu0 %v475
    %1214 = vmatpush.msra.mxu0 %v472
    %1215 = vmatpush.msra.mxu0 %v469
    %1216 = vmatpush.msra.mxu0 %v466
    %1217 = vmatmul.f32.gmra.mxu0 %v1137
    %v1218 = vpop.f32.mrf.mxu0
    %v1219 = vadd.f32 %v515, %v1218
    %1220 = vdwg.mxu0
    %1221 = vmatpush.msra.mxu0 %v512
    %1222 = vmatpush.msra.mxu0 %v509
    %1223 = vmatpush.msra.mxu0 %v506
    %1224 = vmatpush.msra.mxu0 %v503
    %1225 = vmatpush.msra.mxu0 %v500
    %1226 = vmatpush.msra.mxu0 %v497
    %1227 = vmatpush.msra.mxu0 %v494
    %1228 = vmatpush.msra.mxu0 %v491
    %1229 = vmatpush.msra.mxu0 %v488
    %1230 = vmatpush.msra.mxu0 %v485
    %1231 = vmatpush.msra.mxu0 %v482
    %1232 = vmatpush.msra.mxu0 %v479
    %1233 = vmatpush.msra.mxu0 %v476
    %1234 = vmatpush.msra.mxu0 %v473
    %1235 = vmatpush.msra.mxu0 %v470
    %1236 = vmatpush.msra.mxu0 %v467
    %1237 = vmatmul.f32.gmra.mxu0 %v1137
    %v1238 = vpop.f32.mrf.mxu0
    %v1239 = vadd.f32 %v516, %v1238
    %1240 = vdwg.mxu0
    %1241 = vmatpush.msra.mxu0 %v513
    %1242 = vmatpush.msra.mxu0 %v510
    %1243 = vmatpush.msra.mxu0 %v507
    %1244 = vmatpush.msra.mxu0 %v504
    %1245 = vmatpush.msra.mxu0 %v501
    %1246 = vmatpush.msra.mxu0 %v498
    %1247 = vmatpush.msra.mxu0 %v495
    %1248 = vmatpush.msra.mxu0 %v492
    %1249 = vmatpush.msra.mxu0 %v489
    %1250 = vmatpush.msra.mxu0 %v486
    %1251 = vmatpush.msra.mxu0 %v483
    %1252 = vmatpush.msra.mxu0 %v480
    %1253 = vmatpush.msra.mxu0 %v477
    %1254 = vmatpush.msra.mxu0 %v474
    %1255 = vmatpush.msra.mxu0 %v471
    %1256 = vmatpush.msra.mxu0 %v468
    %1257 = vmatmul.f32.gmra.mxu0 %v1137
    %v1258 = vpop.f32.mrf.mxu0
    %v1259 = vadd.f32 %v517, %v1258
    %1260 = vdwg.mxu0
    %v1261 = vadd.f32 %v1159, %v1219
    %v1262 = vxor.u32 %v1261, 2147483648
    %v1263 = vmul.f32 %v1262, 1.442695
    %v1264 = vpow.pop %v1263
    %v1265 = vadd.f32 %v1264, 1.0
    %v1266 = vrcp.pop %v1265
    %v1267 = vmul.f32 %v1265, %v1266
    %v1268 = vsub.f32 1.0, %v1267
    %v1269 = vmul.f32 %v1266, %v1268
    %v1270 = vadd.f32 %v1266, %v1269
    %vm1271 = vweird.f32 %v1265
    %vm1272 = vweird.f32 %v1266
    %vm1273 = vmor %vm1271, %vm1272
    %v1274 = vsel %vm1273, %v1266, %v1270
    %v1275 = vand.u32 2147483647, %v1265
    %vm1276 = vcmp.eq.f32.partialorder %v1275, 8.507059e+37
    %v1277 = vand.u32 %v1265, 2147483648
    %v1278 = vor.u32 1.1754944e-38, %v1277
    %v1279 = vsel %vm1276, %v1278, %v1274
    %v1280 = vmul.f32 1.0, %v1279
    %v1281 = vadd.f32 %v1179, %v1239
    %v1282 = vxor.u32 %v1281, 2147483648
    %v1283 = vmul.f32 %v1282, 1.442695
    %v1284 = vpow.pop %v1283
    %v1285 = vadd.f32 %v1284, 1.0
    %v1286 = vrcp.pop %v1285
    %v1287 = vmul.f32 %v1285, %v1286
    %v1288 = vsub.f32 1.0, %v1287
    %v1289 = vmul.f32 %v1286, %v1288
    %v1290 = vadd.f32 %v1286, %v1289
    %vm1291 = vweird.f32 %v1285
    %vm1292 = vweird.f32 %v1286
    %vm1293 = vmor %vm1291, %vm1292
    %v1294 = vsel %vm1293, %v1286, %v1290
    %v1295 = vand.u32 2147483647, %v1285
    %vm1296 = vcmp.eq.f32.partialorder %v1295, 8.507059e+37
    %v1297 = vand.u32 %v1285, 2147483648
    %v1298 = vor.u32 1.1754944e-38, %v1297
    %v1299 = vsel %vm1296, %v1298, %v1294
    %v1300 = vmul.f32 1.0, %v1299
    %v1301 = vmul.f32 %v1280, %v1259
    %v1302 = vadd.f32 %v1199, %v1301
    %v1303 = vtanh.pop %v1302
    %v1304 = vsub.f32 1.0, %v1300
    %v1305 = vmul.f32 %v1304, %v1303
    %v1306 = vmul.f32 %v1300, %v1137
    %v1307 = vadd.f32 %v1305, %v1306
    %v1309 = vsel %vm402, %v386, 0
    %1311 = vmatpush.msra.mxu0 0.0
    %1312 = vmatpush.msra.mxu0 0.0
    %1313 = vmatpush.msra.mxu0 0.0
    %1314 = vmatpush.msra.mxu0 0.0
    %1315 = vmatpush.msra.mxu0 0.0
    %1316 = vmatpush.msra.mxu0 0.0
    %1317 = vmatpush.msra.mxu0 0.0
    %1318 = vmatpush.msra.mxu0 0.0
    %1319 = vmatpush.msra.mxu0 0.0
    %1320 = vmatpush.msra.mxu0 0.0
    %1321 = vmatpush.msra.mxu0 0.0
    %1322 = vmatpush.msra.mxu0 0.0
    %1323 = vmatpush.msra.mxu0 0.0
    %1324 = vmatpush.msra.mxu0 0.0
    %1325 = vmatpush.msra.mxu0 %v392
    %1326 = vmatpush.msra.mxu0 %v389
    %1327 = vmatmul.f32.gmra.mxu0 %v1309
    %v1328 = vpop.f32.mrf.mxu0
    %v1329 = vadd.f32 %v396, %v1328
    %1330 = vdwg.mxu0
    %1331 = vmatpush.msra.mxu0 0.0
    %1332 = vmatpush.msra.mxu0 0.0
    %1333 = vmatpush.msra.mxu0 0.0
    %1334 = vmatpush.msra.mxu0 0.0
    %1335 = vmatpush.msra.mxu0 0.0
    %1336 = vmatpush.msra.mxu0 0.0
    %1337 = vmatpush.msra.mxu0 0.0
    %1338 = vmatpush.msra.mxu0 0.0
    %1339 = vmatpush.msra.mxu0 0.0
    %1340 = vmatpush.msra.mxu0 0.0
    %1341 = vmatpush.msra.mxu0 0.0
    %1342 = vmatpush.msra.mxu0 0.0
    %1343 = vmatpush.msra.mxu0 0.0
    %1344 = vmatpush.msra.mxu0 0.0
    %1345 = vmatpush.msra.mxu0 %v393
    %1346 = vmatpush.msra.mxu0 %v390
    %1347 = vmatmul.f32.gmra.mxu0 %v1309
    %v1348 = vpop.f32.mrf.mxu0
    %v1349 = vadd.f32 %v397, %v1348
    %1350 = vdwg.mxu0
    %1351 = vmatpush.msra.mxu0 0.0
    %1352 = vmatpush.msra.mxu0 0.0
    %1353 = vmatpush.msra.mxu0 0.0
    %1354 = vmatpush.msra.mxu0 0.0
    %1355 = vmatpush.msra.mxu0 0.0
    %1356 = vmatpush.msra.mxu0 0.0
    %1357 = vmatpush.msra.mxu0 0.0
    %1358 = vmatpush.msra.mxu0 0.0
    %1359 = vmatpush.msra.mxu0 0.0
    %1360 = vmatpush.msra.mxu0 0.0
    %1361 = vmatpush.msra.mxu0 0.0
    %1362 = vmatpush.msra.mxu0 0.0
    %1363 = vmatpush.msra.mxu0 0.0
    %1364 = vmatpush.msra.mxu0 0.0
    %1365 = vmatpush.msra.mxu0 %v394
    %1366 = vmatpush.msra.mxu0 %v391
    %1367 = vmatmul.f32.gmra.mxu0 %v1309
    %v1368 = vpop.f32.mrf.mxu0
    %v1369 = vadd.f32 %v398, %v1368
    %1370 = vdwg.mxu0
    %1371 = vmatpush.msra.mxu0 %v511
    %1372 = vmatpush.msra.mxu0 %v508
    %1373 = vmatpush.msra.mxu0 %v505
    %1374 = vmatpush.msra.mxu0 %v502
    %1375 = vmatpush.msra.mxu0 %v499
    %1376 = vmatpush.msra.mxu0 %v496
    %1377 = vmatpush.msra.mxu0 %v493
    %1378 = vmatpush.msra.mxu0 %v490
    %1379 = vmatpush.msra.mxu0 %v487
    %1380 = vmatpush.msra.mxu0 %v484
    %1381 = vmatpush.msra.mxu0 %v481
    %1382 = vmatpush.msra.mxu0 %v478
    %1383 = vmatpush.msra.mxu0 %v475
    %1384 = vmatpush.msra.mxu0 %v472
    %1385 = vmatpush.msra.mxu0 %v469
    %1386 = vmatpush.msra.mxu0 %v466
    %1387 = vmatmul.f32.gmra.mxu0 %v1307
    %v1388 = vpop.f32.mrf.mxu0
    %v1389 = vadd.f32 %v515, %v1388
    %1390 = vdwg.mxu0
    %1391 = vmatpush.msra.mxu0 %v512
    %1392 = vmatpush.msra.mxu0 %v509
    %1393 = vmatpush.msra.mxu0 %v506
    %1394 = vmatpush.msra.mxu0 %v503
    %1395 = vmatpush.msra.mxu0 %v500
    %1396 = vmatpush.msra.mxu0 %v497
    %1397 = vmatpush.msra.mxu0 %v494
    %1398 = vmatpush.msra.mxu0 %v491
    %1399 = vmatpush.msra.mxu0 %v488
    %1400 = vmatpush.msra.mxu0 %v485
    %1401 = vmatpush.msra.mxu0 %v482
    %1402 = vmatpush.msra.mxu0 %v479
    %1403 = vmatpush.msra.mxu0 %v476
    %1404 = vmatpush.msra.mxu0 %v473
    %1405 = vmatpush.msra.mxu0 %v470
    %1406 = vmatpush.msra.mxu0 %v467
    %1407 = vmatmul.f32.gmra.mxu0 %v1307
    %v1408 = vpop.f32.mrf.mxu0
    %v1409 = vadd.f32 %v516, %v1408
    %1410 = vdwg.mxu0
    %1411 = vmatpush.msra.mxu0 %v513
    %1412 = vmatpush.msra.mxu0 %v510
    %1413 = vmatpush.msra.mxu0 %v507
    %1414 = vmatpush.msra.mxu0 %v504
    %1415 = vmatpush.msra.mxu0 %v501
    %1416 = vmatpush.msra.mxu0 %v498
    %1417 = vmatpush.msra.mxu0 %v495
    %1418 = vmatpush.msra.mxu0 %v492
    %1419 = vmatpush.msra.mxu0 %v489
    %1420 = vmatpush.msra.mxu0 %v486
    %1421 = vmatpush.msra.mxu0 %v483
    %1422 = vmatpush.msra.mxu0 %v480
    %1423 = vmatpush.msra.mxu0 %v477
    %1424 = vmatpush.msra.mxu0 %v474
    %1425 = vmatpush.msra.mxu0 %v471
    %1426 = vmatpush.msra.mxu0 %v468
    %1427 = vmatmul.f32.gmra.mxu0 %v1307
    %v1428 = vpop.f32.mrf.mxu0
    %v1429 = vadd.f32 %v517, %v1428
    %1430 = vdwg.mxu0
    %v1431 = vadd.f32 %v1329, %v1389
    %v1432 = vxor.u32 %v1431, 2147483648
    %v1433 = vmul.f32 %v1432, 1.442695
    %v1434 = vpow.pop %v1433
    %v1435 = vadd.f32 %v1434, 1.0
    %v1436 = vrcp.pop %v1435
    %v1437 = vmul.f32 %v1435, %v1436
    %v1438 = vsub.f32 1.0, %v1437
    %v1439 = vmul.f32 %v1436, %v1438
    %v1440 = vadd.f32 %v1436, %v1439
    %vm1441 = vweird.f32 %v1435
    %vm1442 = vweird.f32 %v1436
    %vm1443 = vmor %vm1441, %vm1442
    %v1444 = vsel %vm1443, %v1436, %v1440
    %v1445 = vand.u32 2147483647, %v1435
    %vm1446 = vcmp.eq.f32.partialorder %v1445, 8.507059e+37
    %v1447 = vand.u32 %v1435, 2147483648
    %v1448 = vor.u32 1.1754944e-38, %v1447
    %v1449 = vsel %vm1446, %v1448, %v1444
    %v1450 = vmul.f32 1.0, %v1449
    %v1451 = vadd.f32 %v1349, %v1409
    %v1452 = vxor.u32 %v1451, 2147483648
    %v1453 = vmul.f32 %v1452, 1.442695
    %v1454 = vpow.pop %v1453
    %v1455 = vadd.f32 %v1454, 1.0
    %v1456 = vrcp.pop %v1455
    %v1457 = vmul.f32 %v1455, %v1456
    %v1458 = vsub.f32 1.0, %v1457
    %v1459 = vmul.f32 %v1456, %v1458
    %v1460 = vadd.f32 %v1456, %v1459
    %vm1461 = vweird.f32 %v1455
    %vm1462 = vweird.f32 %v1456
    %vm1463 = vmor %vm1461, %vm1462
    %v1464 = vsel %vm1463, %v1456, %v1460
    %v1465 = vand.u32 2147483647, %v1455
    %vm1466 = vcmp.eq.f32.partialorder %v1465, 8.507059e+37
    %v1467 = vand.u32 %v1455, 2147483648
    %v1468 = vor.u32 1.1754944e-38, %v1467
    %v1469 = vsel %vm1466, %v1468, %v1464
    %v1470 = vmul.f32 1.0, %v1469
    %v1471 = vmul.f32 %v1450, %v1429
    %v1472 = vadd.f32 %v1369, %v1471
    %v1473 = vtanh.pop %v1472
    %v1474 = vsub.f32 1.0, %v1470
    %v1475 = vmul.f32 %v1474, %v1473
    %v1476 = vmul.f32 %v1470, %v1307
    %v1477 = vadd.f32 %v1475, %v1476
    %v1478 = vld [vmem:[%s23] sm:$0x7]
    %v1479 = vld [vmem:[%s25] sm:$0x7]
    %v1480 = vld [vmem:[#allocation5] sm:$0xff]
    %v1481 = vld [vmem:[#allocation5 + $0x8] sm:$0xff]
    %v1482 = vld [vmem:[#allocation5 + $0x10] sm:$0xff]
    %v1483 = vld [vmem:[#allocation5 + $0x18] sm:$0xff]
    %v1484 = vld [vmem:[#allocation5 + $0x20] sm:$0xff]
    %v1485 = vld [vmem:[#allocation5 + $0x28] sm:$0xff]
    %v1486 = vld [vmem:[#allocation5 + $0x30] sm:$0xff]
    %v1487 = vld [vmem:[#allocation5 + $0x38] sm:$0xff]
    %v1488 = vld [vmem:[#allocation5 + $0x40] sm:$0xff]
    %v1489 = vld [vmem:[#allocation5 + $0x48] sm:$0xff]
    %v1490 = vld [vmem:[#allocation5 + $0x50] sm:$0xff]
    %v1491 = vld [vmem:[#allocation5 + $0x58] sm:$0xff]
    %v1492 = vld [vmem:[#allocation5 + $0x60] sm:$0xff]
    %v1493 = vld [vmem:[#allocation5 + $0x68] sm:$0xff]
    %v1494 = vld [vmem:[#allocation5 + $0x70] sm:$0xff]
    %v1495 = vld [vmem:[#allocation5 + $0x78] sm:$0xff]
    %v1496 = vld [vmem:[#allocation5 + $0x80] sm:$0xff]
    %v1497 = vld [vmem:[#allocation5 + $0x88] sm:$0xff]
    %v1498 = vld [vmem:[#allocation5 + $0x90] sm:$0xff]
    %v1499 = vld [vmem:[#allocation5 + $0x98] sm:$0xff]
    %v1500 = vld [vmem:[#allocation5 + $0xa0] sm:$0xff]
    %v1501 = vld [vmem:[#allocation5 + $0xa8] sm:$0xff]
    %v1502 = vld [vmem:[#allocation5 + $0xb0] sm:$0xff]
    %v1503 = vld [vmem:[#allocation5 + $0xb8] sm:$0xff]
    %v1504 = vld [vmem:[#allocation5 + $0xc0] sm:$0xff]
    %v1505 = vld [vmem:[#allocation5 + $0xc8] sm:$0xff]
    %v1506 = vld [vmem:[#allocation5 + $0xd0] sm:$0xff]
    %v1507 = vld [vmem:[#allocation5 + $0xd8] sm:$0xff]
    %v1508 = vld [vmem:[#allocation5 + $0xe0] sm:$0xff]
    %v1509 = vld [vmem:[#allocation5 + $0xe8] sm:$0xff]
    %v1510 = vld [vmem:[#allocation5 + $0xf0] sm:$0xff]
    %v1511 = vld [vmem:[#allocation5 + $0xf8] sm:$0xff]
    %v1512 = vld [vmem:[#allocation5 + $0x100] sm:$0xff]
    %v1513 = vld [vmem:[#allocation5 + $0x108] sm:$0xff]
    %v1514 = vld [vmem:[#allocation5 + $0x110] sm:$0xff]
    %v1515 = vld [vmem:[#allocation5 + $0x118] sm:$0xff]
    %v1516 = vld [vmem:[#allocation5 + $0x120] sm:$0xff]
    %v1517 = vld [vmem:[#allocation5 + $0x128] sm:$0xff]
    %v1518 = vld [vmem:[#allocation5 + $0x130] sm:$0xff]
    %v1519 = vld [vmem:[#allocation5 + $0x138] sm:$0xff]
    %v1520 = vld [vmem:[#allocation5 + $0x140] sm:$0xff]
    %v1521 = vld [vmem:[#allocation5 + $0x148] sm:$0xff]
    %v1522 = vld [vmem:[#allocation5 + $0x150] sm:$0xff]
    %v1523 = vld [vmem:[#allocation5 + $0x158] sm:$0xff]
    %v1524 = vld [vmem:[#allocation5 + $0x160] sm:$0xff]
    %v1525 = vld [vmem:[#allocation5 + $0x168] sm:$0xff]
    %v1526 = vld [vmem:[#allocation5 + $0x170] sm:$0xff]
    %v1527 = vld [vmem:[#allocation5 + $0x178] sm:$0xff]
    %v1529 = vperm.slane %v1478, 0
    %v1530 = vperm.slane %v1478, 1
    %v1531 = vperm.slane %v1478, 2
    %1535 = vmatpush.msra.mxu0 %v1525
    %1536 = vmatpush.msra.mxu0 %v1522
    %1537 = vmatpush.msra.mxu0 %v1519
    %1538 = vmatpush.msra.mxu0 %v1516
    %1539 = vmatpush.msra.mxu0 %v1513
    %1540 = vmatpush.msra.mxu0 %v1510
    %1541 = vmatpush.msra.mxu0 %v1507
    %1542 = vmatpush.msra.mxu0 %v1504
    %1543 = vmatpush.msra.mxu0 %v1501
    %1544 = vmatpush.msra.mxu0 %v1498
    %1545 = vmatpush.msra.mxu0 %v1495
    %1546 = vmatpush.msra.mxu0 %v1492
    %1547 = vmatpush.msra.mxu0 %v1489
    %1548 = vmatpush.msra.mxu0 %v1486
    %1549 = vmatpush.msra.mxu0 %v1483
    %1550 = vmatpush.msra.mxu0 %v1480
    %1551 = vmatmul.f32.gmra.mxu0 %v627
    %v1552 = vpop.f32.mrf.mxu0
    %v1553 = vadd.f32 %v1529, %v1552
    %1554 = vdwg.mxu0
    %1555 = vmatpush.msra.mxu0 %v1526
    %1556 = vmatpush.msra.mxu0 %v1523
    %1557 = vmatpush.msra.mxu0 %v1520
    %1558 = vmatpush.msra.mxu0 %v1517
    %1559 = vmatpush.msra.mxu0 %v1514
    %1560 = vmatpush.msra.mxu0 %v1511
    %1561 = vmatpush.msra.mxu0 %v1508
    %1562 = vmatpush.msra.mxu0 %v1505
    %1563 = vmatpush.msra.mxu0 %v1502
    %1564 = vmatpush.msra.mxu0 %v1499
    %1565 = vmatpush.msra.mxu0 %v1496
    %1566 = vmatpush.msra.mxu0 %v1493
    %1567 = vmatpush.msra.mxu0 %v1490
    %1568 = vmatpush.msra.mxu0 %v1487
    %1569 = vmatpush.msra.mxu0 %v1484
    %1570 = vmatpush.msra.mxu0 %v1481
    %1571 = vmatmul.f32.gmra.mxu0 %v627
    %v1572 = vpop.f32.mrf.mxu0
    %v1573 = vadd.f32 %v1530, %v1572
    %1574 = vdwg.mxu0
    %1575 = vmatpush.msra.mxu0 %v1527
    %1576 = vmatpush.msra.mxu0 %v1524
    %1577 = vmatpush.msra.mxu0 %v1521
    %1578 = vmatpush.msra.mxu0 %v1518
    %1579 = vmatpush.msra.mxu0 %v1515
    %1580 = vmatpush.msra.mxu0 %v1512
    %1581 = vmatpush.msra.mxu0 %v1509
    %1582 = vmatpush.msra.mxu0 %v1506
    %1583 = vmatpush.msra.mxu0 %v1503
    %1584 = vmatpush.msra.mxu0 %v1500
    %1585 = vmatpush.msra.mxu0 %v1497
    %1586 = vmatpush.msra.mxu0 %v1494
    %1587 = vmatpush.msra.mxu0 %v1491
    %1588 = vmatpush.msra.mxu0 %v1488
    %1589 = vmatpush.msra.mxu0 %v1485
    %1590 = vmatpush.msra.mxu0 %v1482
    %1591 = vmatmul.f32.gmra.mxu0 %v627
    %v1592 = vpop.f32.mrf.mxu0
    %v1593 = vadd.f32 %v1531, %v1592
    %1594 = vdwg.mxu0
    %v1595 = vld [vmem:[#allocation7] sm:$0xff]
    %v1596 = vld [vmem:[#allocation7 + $0x8] sm:$0xff]
    %v1597 = vld [vmem:[#allocation7 + $0x10] sm:$0xff]
    %v1598 = vld [vmem:[#allocation7 + $0x18] sm:$0xff]
    %v1599 = vld [vmem:[#allocation7 + $0x20] sm:$0xff]
    %v1600 = vld [vmem:[#allocation7 + $0x28] sm:$0xff]
    %v1601 = vld [vmem:[#allocation7 + $0x30] sm:$0xff]
    %v1602 = vld [vmem:[#allocation7 + $0x38] sm:$0xff]
    %v1603 = vld [vmem:[#allocation7 + $0x40] sm:$0xff]
    %v1604 = vld [vmem:[#allocation7 + $0x48] sm:$0xff]
    %v1605 = vld [vmem:[#allocation7 + $0x50] sm:$0xff]
    %v1606 = vld [vmem:[#allocation7 + $0x58] sm:$0xff]
    %v1607 = vld [vmem:[#allocation7 + $0x60] sm:$0xff]
    %v1608 = vld [vmem:[#allocation7 + $0x68] sm:$0xff]
    %v1609 = vld [vmem:[#allocation7 + $0x70] sm:$0xff]
    %v1610 = vld [vmem:[#allocation7 + $0x78] sm:$0xff]
    %v1611 = vld [vmem:[#allocation7 + $0x80] sm:$0xff]
    %v1612 = vld [vmem:[#allocation7 + $0x88] sm:$0xff]
    %v1613 = vld [vmem:[#allocation7 + $0x90] sm:$0xff]
    %v1614 = vld [vmem:[#allocation7 + $0x98] sm:$0xff]
    %v1615 = vld [vmem:[#allocation7 + $0xa0] sm:$0xff]
    %v1616 = vld [vmem:[#allocation7 + $0xa8] sm:$0xff]
    %v1617 = vld [vmem:[#allocation7 + $0xb0] sm:$0xff]
    %v1618 = vld [vmem:[#allocation7 + $0xb8] sm:$0xff]
    %v1619 = vld [vmem:[#allocation7 + $0xc0] sm:$0xff]
    %v1620 = vld [vmem:[#allocation7 + $0xc8] sm:$0xff]
    %v1621 = vld [vmem:[#allocation7 + $0xd0] sm:$0xff]
    %v1622 = vld [vmem:[#allocation7 + $0xd8] sm:$0xff]
    %v1623 = vld [vmem:[#allocation7 + $0xe0] sm:$0xff]
    %v1624 = vld [vmem:[#allocation7 + $0xe8] sm:$0xff]
    %v1625 = vld [vmem:[#allocation7 + $0xf0] sm:$0xff]
    %v1626 = vld [vmem:[#allocation7 + $0xf8] sm:$0xff]
    %v1627 = vld [vmem:[#allocation7 + $0x100] sm:$0xff]
    %v1628 = vld [vmem:[#allocation7 + $0x108] sm:$0xff]
    %v1629 = vld [vmem:[#allocation7 + $0x110] sm:$0xff]
    %v1630 = vld [vmem:[#allocation7 + $0x118] sm:$0xff]
    %v1631 = vld [vmem:[#allocation7 + $0x120] sm:$0xff]
    %v1632 = vld [vmem:[#allocation7 + $0x128] sm:$0xff]
    %v1633 = vld [vmem:[#allocation7 + $0x130] sm:$0xff]
    %v1634 = vld [vmem:[#allocation7 + $0x138] sm:$0xff]
    %v1635 = vld [vmem:[#allocation7 + $0x140] sm:$0xff]
    %v1636 = vld [vmem:[#allocation7 + $0x148] sm:$0xff]
    %v1637 = vld [vmem:[#allocation7 + $0x150] sm:$0xff]
    %v1638 = vld [vmem:[#allocation7 + $0x158] sm:$0xff]
    %v1639 = vld [vmem:[#allocation7 + $0x160] sm:$0xff]
    %v1640 = vld [vmem:[#allocation7 + $0x168] sm:$0xff]
    %v1641 = vld [vmem:[#allocation7 + $0x170] sm:$0xff]
    %v1642 = vld [vmem:[#allocation7 + $0x178] sm:$0xff]
    %v1644 = vperm.slane %v1479, 0
    %v1645 = vperm.slane %v1479, 1
    %v1646 = vperm.slane %v1479, 2
    %1650 = vmatpush.msra.mxu0 %v1640
    %1651 = vmatpush.msra.mxu0 %v1637
    %1652 = vmatpush.msra.mxu0 %v1634
    %1653 = vmatpush.msra.mxu0 %v1631
    %1654 = vmatpush.msra.mxu0 %v1628
    %1655 = vmatpush.msra.mxu0 %v1625
    %1656 = vmatpush.msra.mxu0 %v1622
    %1657 = vmatpush.msra.mxu0 %v1619
    %1658 = vmatpush.msra.mxu0 %v1616
    %1659 = vmatpush.msra.mxu0 %v1613
    %1660 = vmatpush.msra.mxu0 %v1610
    %1661 = vmatpush.msra.mxu0 %v1607
    %1662 = vmatpush.msra.mxu0 %v1604
    %1663 = vmatpush.msra.mxu0 %v1601
    %1664 = vmatpush.msra.mxu0 %v1598
    %1665 = vmatpush.msra.mxu0 %v1595
    %1666 = vmatmul.f32.gmra.mxu0 0.0
    %v1667 = vpop.f32.mrf.mxu0
    %v1668 = vadd.f32 %v1644, %v1667
    %1669 = vdwg.mxu0
    %1670 = vmatpush.msra.mxu0 %v1641
    %1671 = vmatpush.msra.mxu0 %v1638
    %1672 = vmatpush.msra.mxu0 %v1635
    %1673 = vmatpush.msra.mxu0 %v1632
    %1674 = vmatpush.msra.mxu0 %v1629
    %1675 = vmatpush.msra.mxu0 %v1626
    %1676 = vmatpush.msra.mxu0 %v1623
    %1677 = vmatpush.msra.mxu0 %v1620
    %1678 = vmatpush.msra.mxu0 %v1617
    %1679 = vmatpush.msra.mxu0 %v1614
    %1680 = vmatpush.msra.mxu0 %v1611
    %1681 = vmatpush.msra.mxu0 %v1608
    %1682 = vmatpush.msra.mxu0 %v1605
    %1683 = vmatpush.msra.mxu0 %v1602
    %1684 = vmatpush.msra.mxu0 %v1599
    %1685 = vmatpush.msra.mxu0 %v1596
    %1686 = vmatmul.f32.gmra.mxu0 0.0
    %v1687 = vpop.f32.mrf.mxu0
    %v1688 = vadd.f32 %v1645, %v1687
    %1689 = vdwg.mxu0
    %1690 = vmatpush.msra.mxu0 %v1642
    %1691 = vmatpush.msra.mxu0 %v1639
    %1692 = vmatpush.msra.mxu0 %v1636
    %1693 = vmatpush.msra.mxu0 %v1633
    %1694 = vmatpush.msra.mxu0 %v1630
    %1695 = vmatpush.msra.mxu0 %v1627
    %1696 = vmatpush.msra.mxu0 %v1624
    %1697 = vmatpush.msra.mxu0 %v1621
    %1698 = vmatpush.msra.mxu0 %v1618
    %1699 = vmatpush.msra.mxu0 %v1615
    %1700 = vmatpush.msra.mxu0 %v1612
    %1701 = vmatpush.msra.mxu0 %v1609
    %1702 = vmatpush.msra.mxu0 %v1606
    %1703 = vmatpush.msra.mxu0 %v1603
    %1704 = vmatpush.msra.mxu0 %v1600
    %1705 = vmatpush.msra.mxu0 %v1597
    %1706 = vmatmul.f32.gmra.mxu0 0.0
    %v1707 = vpop.f32.mrf.mxu0
    %v1708 = vadd.f32 %v1646, %v1707
    %1709 = vdwg.mxu0
    %v1710 = vadd.f32 %v1553, %v1668
    %v1711 = vxor.u32 %v1710, 2147483648
    %v1712 = vmul.f32 %v1711, 1.442695
    %v1713 = vpow.pop %v1712
    %v1714 = vadd.f32 %v1713, 1.0
    %v1715 = vrcp.pop %v1714
    %v1716 = vmul.f32 %v1714, %v1715
    %v1717 = vsub.f32 1.0, %v1716
    %v1718 = vmul.f32 %v1715, %v1717
    %v1719 = vadd.f32 %v1715, %v1718
    %vm1720 = vweird.f32 %v1714
    %vm1721 = vweird.f32 %v1715
    %vm1722 = vmor %vm1720, %vm1721
    %v1723 = vsel %vm1722, %v1715, %v1719
    %v1724 = vand.u32 2147483647, %v1714
    %vm1725 = vcmp.eq.f32.partialorder %v1724, 8.507059e+37
    %v1726 = vand.u32 %v1714, 2147483648
    %v1727 = vor.u32 1.1754944e-38, %v1726
    %v1728 = vsel %vm1725, %v1727, %v1723
    %v1729 = vmul.f32 1.0, %v1728
    %v1730 = vadd.f32 %v1573, %v1688
    %v1731 = vxor.u32 %v1730, 2147483648
    %v1732 = vmul.f32 %v1731, 1.442695
    %v1733 = vpow.pop %v1732
    %v1734 = vadd.f32 %v1733, 1.0
    %v1735 = vrcp.pop %v1734
    %v1736 = vmul.f32 %v1734, %v1735
    %v1737 = vsub.f32 1.0, %v1736
    %v1738 = vmul.f32 %v1735, %v1737
    %v1739 = vadd.f32 %v1735, %v1738
    %vm1740 = vweird.f32 %v1734
    %vm1741 = vweird.f32 %v1735
    %vm1742 = vmor %vm1740, %vm1741
    %v1743 = vsel %vm1742, %v1735, %v1739
    %v1744 = vand.u32 2147483647, %v1734
    %vm1745 = vcmp.eq.f32.partialorder %v1744, 8.507059e+37
    %v1746 = vand.u32 %v1734, 2147483648
    %v1747 = vor.u32 1.1754944e-38, %v1746
    %v1748 = vsel %vm1745, %v1747, %v1743
    %v1749 = vmul.f32 1.0, %v1748
    %v1750 = vmul.f32 %v1729, %v1708
    %v1751 = vadd.f32 %v1593, %v1750
    %v1752 = vtanh.pop %v1751
    %v1753 = vsub.f32 1.0, %v1749
    %v1754 = vmul.f32 %v1753, %v1752
    %v1755 = vmul.f32 %v1749, 0.0
    %v1756 = vadd.f32 %v1754, %v1755
    %1757 = vmatpush.msra.mxu0 %v1525
    %1758 = vmatpush.msra.mxu0 %v1522
    %1759 = vmatpush.msra.mxu0 %v1519
    %1760 = vmatpush.msra.mxu0 %v1516
    %1761 = vmatpush.msra.mxu0 %v1513
    %1762 = vmatpush.msra.mxu0 %v1510
    %1763 = vmatpush.msra.mxu0 %v1507
    %1764 = vmatpush.msra.mxu0 %v1504
    %1765 = vmatpush.msra.mxu0 %v1501
    %1766 = vmatpush.msra.mxu0 %v1498
    %1767 = vmatpush.msra.mxu0 %v1495
    %1768 = vmatpush.msra.mxu0 %v1492
    %1769 = vmatpush.msra.mxu0 %v1489
    %1770 = vmatpush.msra.mxu0 %v1486
    %1771 = vmatpush.msra.mxu0 %v1483
    %1772 = vmatpush.msra.mxu0 %v1480
    %1773 = vmatmul.f32.gmra.mxu0 %v797
    %v1774 = vpop.f32.mrf.mxu0
    %v1775 = vadd.f32 %v1529, %v1774
    %1776 = vdwg.mxu0
    %1777 = vmatpush.msra.mxu0 %v1526
    %1778 = vmatpush.msra.mxu0 %v1523
    %1779 = vmatpush.msra.mxu0 %v1520
    %1780 = vmatpush.msra.mxu0 %v1517
    %1781 = vmatpush.msra.mxu0 %v1514
    %1782 = vmatpush.msra.mxu0 %v1511
    %1783 = vmatpush.msra.mxu0 %v1508
    %1784 = vmatpush.msra.mxu0 %v1505
    %1785 = vmatpush.msra.mxu0 %v1502
    %1786 = vmatpush.msra.mxu0 %v1499
    %1787 = vmatpush.msra.mxu0 %v1496
    %1788 = vmatpush.msra.mxu0 %v1493
    %1789 = vmatpush.msra.mxu0 %v1490
    %1790 = vmatpush.msra.mxu0 %v1487
    %1791 = vmatpush.msra.mxu0 %v1484
    %1792 = vmatpush.msra.mxu0 %v1481
    %1793 = vmatmul.f32.gmra.mxu0 %v797
    %v1794 = vpop.f32.mrf.mxu0
    %v1795 = vadd.f32 %v1530, %v1794
    %1796 = vdwg.mxu0
    %1797 = vmatpush.msra.mxu0 %v1527
    %1798 = vmatpush.msra.mxu0 %v1524
    %1799 = vmatpush.msra.mxu0 %v1521
    %1800 = vmatpush.msra.mxu0 %v1518
    %1801 = vmatpush.msra.mxu0 %v1515
    %1802 = vmatpush.msra.mxu0 %v1512
    %1803 = vmatpush.msra.mxu0 %v1509
    %1804 = vmatpush.msra.mxu0 %v1506
    %1805 = vmatpush.msra.mxu0 %v1503
    %1806 = vmatpush.msra.mxu0 %v1500
    %1807 = vmatpush.msra.mxu0 %v1497
    %1808 = vmatpush.msra.mxu0 %v1494
    %1809 = vmatpush.msra.mxu0 %v1491
    %1810 = vmatpush.msra.mxu0 %v1488
    %1811 = vmatpush.msra.mxu0 %v1485
    %1812 = vmatpush.msra.mxu0 %v1482
    %1813 = vmatmul.f32.gmra.mxu0 %v797
    %v1814 = vpop.f32.mrf.mxu0
    %v1815 = vadd.f32 %v1531, %v1814
    %1816 = vdwg.mxu0
    %1817 = vmatpush.msra.mxu0 %v1640
    %1818 = vmatpush.msra.mxu0 %v1637
    %1819 = vmatpush.msra.mxu0 %v1634
    %1820 = vmatpush.msra.mxu0 %v1631
    %1821 = vmatpush.msra.mxu0 %v1628
    %1822 = vmatpush.msra.mxu0 %v1625
    %1823 = vmatpush.msra.mxu0 %v1622
    %1824 = vmatpush.msra.mxu0 %v1619
    %1825 = vmatpush.msra.mxu0 %v1616
    %1826 = vmatpush.msra.mxu0 %v1613
    %1827 = vmatpush.msra.mxu0 %v1610
    %1828 = vmatpush.msra.mxu0 %v1607
    %1829 = vmatpush.msra.mxu0 %v1604
    %1830 = vmatpush.msra.mxu0 %v1601
    %1831 = vmatpush.msra.mxu0 %v1598
    %1832 = vmatpush.msra.mxu0 %v1595
    %1833 = vmatmul.f32.gmra.mxu0 %v1756
    %v1834 = vpop.f32.mrf.mxu0
    %v1835 = vadd.f32 %v1644, %v1834
    %1836 = vdwg.mxu0
    %1837 = vmatpush.msra.mxu0 %v1641
    %1838 = vmatpush.msra.mxu0 %v1638
    %1839 = vmatpush.msra.mxu0 %v1635
    %1840 = vmatpush.msra.mxu0 %v1632
    %1841 = vmatpush.msra.mxu0 %v1629
    %1842 = vmatpush.msra.mxu0 %v1626
    %1843 = vmatpush.msra.mxu0 %v1623
    %1844 = vmatpush.msra.mxu0 %v1620
    %1845 = vmatpush.msra.mxu0 %v1617
    %1846 = vmatpush.msra.mxu0 %v1614
    %1847 = vmatpush.msra.mxu0 %v1611
    %1848 = vmatpush.msra.mxu0 %v1608
    %1849 = vmatpush.msra.mxu0 %v1605
    %1850 = vmatpush.msra.mxu0 %v1602
    %1851 = vmatpush.msra.mxu0 %v1599
    %1852 = vmatpush.msra.mxu0 %v1596
    %1853 = vmatmul.f32.gmra.mxu0 %v1756
    %v1854 = vpop.f32.mrf.mxu0
    %v1855 = vadd.f32 %v1645, %v1854
    %1856 = vdwg.mxu0
    %1857 = vmatpush.msra.mxu0 %v1642
    %1858 = vmatpush.msra.mxu0 %v1639
    %1859 = vmatpush.msra.mxu0 %v1636
    %1860 = vmatpush.msra.mxu0 %v1633
    %1861 = vmatpush.msra.mxu0 %v1630
    %1862 = vmatpush.msra.mxu0 %v1627
    %1863 = vmatpush.msra.mxu0 %v1624
    %1864 = vmatpush.msra.mxu0 %v1621
    %1865 = vmatpush.msra.mxu0 %v1618
    %1866 = vmatpush.msra.mxu0 %v1615
    %1867 = vmatpush.msra.mxu0 %v1612
    %1868 = vmatpush.msra.mxu0 %v1609
    %1869 = vmatpush.msra.mxu0 %v1606
    %1870 = vmatpush.msra.mxu0 %v1603
    %1871 = vmatpush.msra.mxu0 %v1600
    %1872 = vmatpush.msra.mxu0 %v1597
    %1873 = vmatmul.f32.gmra.mxu0 %v1756
    %v1874 = vpop.f32.mrf.mxu0
    %v1875 = vadd.f32 %v1646, %v1874
    %1876 = vdwg.mxu0
    %v1877 = vadd.f32 %v1775, %v1835
    %v1878 = vxor.u32 %v1877, 2147483648
    %v1879 = vmul.f32 %v1878, 1.442695
    %v1880 = vpow.pop %v1879
    %v1881 = vadd.f32 %v1880, 1.0
    %v1882 = vrcp.pop %v1881
    %v1883 = vmul.f32 %v1881, %v1882
    %v1884 = vsub.f32 1.0, %v1883
    %v1885 = vmul.f32 %v1882, %v1884
    %v1886 = vadd.f32 %v1882, %v1885
    %vm1887 = vweird.f32 %v1881
    %vm1888 = vweird.f32 %v1882
    %vm1889 = vmor %vm1887, %vm1888
    %v1890 = vsel %vm1889, %v1882, %v1886
    %v1891 = vand.u32 2147483647, %v1881
    %vm1892 = vcmp.eq.f32.partialorder %v1891, 8.507059e+37
    %v1893 = vand.u32 %v1881, 2147483648
    %v1894 = vor.u32 1.1754944e-38, %v1893
    %v1895 = vsel %vm1892, %v1894, %v1890
    %v1896 = vmul.f32 1.0, %v1895
    %v1897 = vadd.f32 %v1795, %v1855
    %v1898 = vxor.u32 %v1897, 2147483648
    %v1899 = vmul.f32 %v1898, 1.442695
    %v1900 = vpow.pop %v1899
    %v1901 = vadd.f32 %v1900, 1.0
    %v1902 = vrcp.pop %v1901
    %v1903 = vmul.f32 %v1901, %v1902
    %v1904 = vsub.f32 1.0, %v1903
    %v1905 = vmul.f32 %v1902, %v1904
    %v1906 = vadd.f32 %v1902, %v1905
    %vm1907 = vweird.f32 %v1901
    %vm1908 = vweird.f32 %v1902
    %vm1909 = vmor %vm1907, %vm1908
    %v1910 = vsel %vm1909, %v1902, %v1906
    %v1911 = vand.u32 2147483647, %v1901
    %vm1912 = vcmp.eq.f32.partialorder %v1911, 8.507059e+37
    %v1913 = vand.u32 %v1901, 2147483648
    %v1914 = vor.u32 1.1754944e-38, %v1913
    %v1915 = vsel %vm1912, %v1914, %v1910
    %v1916 = vmul.f32 1.0, %v1915
    %v1917 = vmul.f32 %v1896, %v1875
    %v1918 = vadd.f32 %v1815, %v1917
    %v1919 = vtanh.pop %v1918
    %v1920 = vsub.f32 1.0, %v1916
    %v1921 = vmul.f32 %v1920, %v1919
    %v1922 = vmul.f32 %v1916, %v1756
    %v1923 = vadd.f32 %v1921, %v1922
    %1924 = vmatpush.msra.mxu0 %v1525
    %1925 = vmatpush.msra.mxu0 %v1522
    %1926 = vmatpush.msra.mxu0 %v1519
    %1927 = vmatpush.msra.mxu0 %v1516
    %1928 = vmatpush.msra.mxu0 %v1513
    %1929 = vmatpush.msra.mxu0 %v1510
    %1930 = vmatpush.msra.mxu0 %v1507
    %1931 = vmatpush.msra.mxu0 %v1504
    %1932 = vmatpush.msra.mxu0 %v1501
    %1933 = vmatpush.msra.mxu0 %v1498
    %1934 = vmatpush.msra.mxu0 %v1495
    %1935 = vmatpush.msra.mxu0 %v1492
    %1936 = vmatpush.msra.mxu0 %v1489
    %1937 = vmatpush.msra.mxu0 %v1486
    %1938 = vmatpush.msra.mxu0 %v1483
    %1939 = vmatpush.msra.mxu0 %v1480
    %1940 = vmatmul.f32.gmra.mxu0 %v967
    %v1941 = vpop.f32.mrf.mxu0
    %v1942 = vadd.f32 %v1529, %v1941
    %1943 = vdwg.mxu0
    %1944 = vmatpush.msra.mxu0 %v1526
    %1945 = vmatpush.msra.mxu0 %v1523
    %1946 = vmatpush.msra.mxu0 %v1520
    %1947 = vmatpush.msra.mxu0 %v1517
    %1948 = vmatpush.msra.mxu0 %v1514
    %1949 = vmatpush.msra.mxu0 %v1511
    %1950 = vmatpush.msra.mxu0 %v1508
    %1951 = vmatpush.msra.mxu0 %v1505
    %1952 = vmatpush.msra.mxu0 %v1502
    %1953 = vmatpush.msra.mxu0 %v1499
    %1954 = vmatpush.msra.mxu0 %v1496
    %1955 = vmatpush.msra.mxu0 %v1493
    %1956 = vmatpush.msra.mxu0 %v1490
    %1957 = vmatpush.msra.mxu0 %v1487
    %1958 = vmatpush.msra.mxu0 %v1484
    %1959 = vmatpush.msra.mxu0 %v1481
    %1960 = vmatmul.f32.gmra.mxu0 %v967
    %v1961 = vpop.f32.mrf.mxu0
    %v1962 = vadd.f32 %v1530, %v1961
    %1963 = vdwg.mxu0
    %1964 = vmatpush.msra.mxu0 %v1527
    %1965 = vmatpush.msra.mxu0 %v1524
    %1966 = vmatpush.msra.mxu0 %v1521
    %1967 = vmatpush.msra.mxu0 %v1518
    %1968 = vmatpush.msra.mxu0 %v1515
    %1969 = vmatpush.msra.mxu0 %v1512
    %1970 = vmatpush.msra.mxu0 %v1509
    %1971 = vmatpush.msra.mxu0 %v1506
    %1972 = vmatpush.msra.mxu0 %v1503
    %1973 = vmatpush.msra.mxu0 %v1500
    %1974 = vmatpush.msra.mxu0 %v1497
    %1975 = vmatpush.msra.mxu0 %v1494
    %1976 = vmatpush.msra.mxu0 %v1491
    %1977 = vmatpush.msra.mxu0 %v1488
    %1978 = vmatpush.msra.mxu0 %v1485
    %1979 = vmatpush.msra.mxu0 %v1482
    %1980 = vmatmul.f32.gmra.mxu0 %v967
    %v1981 = vpop.f32.mrf.mxu0
    %v1982 = vadd.f32 %v1531, %v1981
    %1983 = vdwg.mxu0
    %1984 = vmatpush.msra.mxu0 %v1640
    %1985 = vmatpush.msra.mxu0 %v1637
    %1986 = vmatpush.msra.mxu0 %v1634
    %1987 = vmatpush.msra.mxu0 %v1631
    %1988 = vmatpush.msra.mxu0 %v1628
    %1989 = vmatpush.msra.mxu0 %v1625
    %1990 = vmatpush.msra.mxu0 %v1622
    %1991 = vmatpush.msra.mxu0 %v1619
    %1992 = vmatpush.msra.mxu0 %v1616
    %1993 = vmatpush.msra.mxu0 %v1613
    %1994 = vmatpush.msra.mxu0 %v1610
    %1995 = vmatpush.msra.mxu0 %v1607
    %1996 = vmatpush.msra.mxu0 %v1604
    %1997 = vmatpush.msra.mxu0 %v1601
    %1998 = vmatpush.msra.mxu0 %v1598
    %1999 = vmatpush.msra.mxu0 %v1595
    %2000 = vmatmul.f32.gmra.mxu0 %v1923
    %v2001 = vpop.f32.mrf.mxu0
    %v2002 = vadd.f32 %v1644, %v2001
    %2003 = vdwg.mxu0
    %2004 = vmatpush.msra.mxu0 %v1641
    %2005 = vmatpush.msra.mxu0 %v1638
    %2006 = vmatpush.msra.mxu0 %v1635
    %2007 = vmatpush.msra.mxu0 %v1632
    %2008 = vmatpush.msra.mxu0 %v1629
    %2009 = vmatpush.msra.mxu0 %v1626
    %2010 = vmatpush.msra.mxu0 %v1623
    %2011 = vmatpush.msra.mxu0 %v1620
    %2012 = vmatpush.msra.mxu0 %v1617
    %2013 = vmatpush.msra.mxu0 %v1614
    %2014 = vmatpush.msra.mxu0 %v1611
    %2015 = vmatpush.msra.mxu0 %v1608
    %2016 = vmatpush.msra.mxu0 %v1605
    %2017 = vmatpush.msra.mxu0 %v1602
    %2018 = vmatpush.msra.mxu0 %v1599
    %2019 = vmatpush.msra.mxu0 %v1596
    %2020 = vmatmul.f32.gmra.mxu0 %v1923
    %v2021 = vpop.f32.mrf.mxu0
    %v2022 = vadd.f32 %v1645, %v2021
    %2023 = vdwg.mxu0
    %2024 = vmatpush.msra.mxu0 %v1642
    %2025 = vmatpush.msra.mxu0 %v1639
    %2026 = vmatpush.msra.mxu0 %v1636
    %2027 = vmatpush.msra.mxu0 %v1633
    %2028 = vmatpush.msra.mxu0 %v1630
    %2029 = vmatpush.msra.mxu0 %v1627
    %2030 = vmatpush.msra.mxu0 %v1624
    %2031 = vmatpush.msra.mxu0 %v1621
    %2032 = vmatpush.msra.mxu0 %v1618
    %2033 = vmatpush.msra.mxu0 %v1615
    %2034 = vmatpush.msra.mxu0 %v1612
    %2035 = vmatpush.msra.mxu0 %v1609
    %2036 = vmatpush.msra.mxu0 %v1606
    %2037 = vmatpush.msra.mxu0 %v1603
    %2038 = vmatpush.msra.mxu0 %v1600
    %2039 = vmatpush.msra.mxu0 %v1597
    %2040 = vmatmul.f32.gmra.mxu0 %v1923
    %v2041 = vpop.f32.mrf.mxu0
    %v2042 = vadd.f32 %v1646, %v2041
    %2043 = vdwg.mxu0
    %v2044 = vadd.f32 %v1942, %v2002
    %v2045 = vxor.u32 %v2044, 2147483648
    %v2046 = vmul.f32 %v2045, 1.442695
    %v2047 = vpow.pop %v2046
    %v2048 = vadd.f32 %v2047, 1.0
    %v2049 = vrcp.pop %v2048
    %v2050 = vmul.f32 %v2048, %v2049
    %v2051 = vsub.f32 1.0, %v2050
    %v2052 = vmul.f32 %v2049, %v2051
    %v2053 = vadd.f32 %v2049, %v2052
    %vm2054 = vweird.f32 %v2048
    %vm2055 = vweird.f32 %v2049
    %vm2056 = vmor %vm2054, %vm2055
    %v2057 = vsel %vm2056, %v2049, %v2053
    %v2058 = vand.u32 2147483647, %v2048
    %vm2059 = vcmp.eq.f32.partialorder %v2058, 8.507059e+37
    %v2060 = vand.u32 %v2048, 2147483648
    %v2061 = vor.u32 1.1754944e-38, %v2060
    %v2062 = vsel %vm2059, %v2061, %v2057
    %v2063 = vmul.f32 1.0, %v2062
    %v2064 = vadd.f32 %v1962, %v2022
    %v2065 = vxor.u32 %v2064, 2147483648
    %v2066 = vmul.f32 %v2065, 1.442695
    %v2067 = vpow.pop %v2066
    %v2068 = vadd.f32 %v2067, 1.0
    %v2069 = vrcp.pop %v2068
    %v2070 = vmul.f32 %v2068, %v2069
    %v2071 = vsub.f32 1.0, %v2070
    %v2072 = vmul.f32 %v2069, %v2071
    %v2073 = vadd.f32 %v2069, %v2072
    %vm2074 = vweird.f32 %v2068
    %vm2075 = vweird.f32 %v2069
    %vm2076 = vmor %vm2074, %vm2075
    %v2077 = vsel %vm2076, %v2069, %v2073
    %v2078 = vand.u32 2147483647, %v2068
    %vm2079 = vcmp.eq.f32.partialorder %v2078, 8.507059e+37
    %v2080 = vand.u32 %v2068, 2147483648
    %v2081 = vor.u32 1.1754944e-38, %v2080
    %v2082 = vsel %vm2079, %v2081, %v2077
    %v2083 = vmul.f32 1.0, %v2082
    %v2084 = vmul.f32 %v2063, %v2042
    %v2085 = vadd.f32 %v1982, %v2084
    %v2086 = vtanh.pop %v2085
    %v2087 = vsub.f32 1.0, %v2083
    %v2088 = vmul.f32 %v2087, %v2086
    %v2089 = vmul.f32 %v2083, %v1923
    %v2090 = vadd.f32 %v2088, %v2089
    %2091 = vmatpush.msra.mxu0 %v1525
    %2092 = vmatpush.msra.mxu0 %v1522
    %2093 = vmatpush.msra.mxu0 %v1519
    %2094 = vmatpush.msra.mxu0 %v1516
    %2095 = vmatpush.msra.mxu0 %v1513
    %2096 = vmatpush.msra.mxu0 %v1510
    %2097 = vmatpush.msra.mxu0 %v1507
    %2098 = vmatpush.msra.mxu0 %v1504
    %2099 = vmatpush.msra.mxu0 %v1501
    %2100 = vmatpush.msra.mxu0 %v1498
    %2101 = vmatpush.msra.mxu0 %v1495
    %2102 = vmatpush.msra.mxu0 %v1492
    %2103 = vmatpush.msra.mxu0 %v1489
    %2104 = vmatpush.msra.mxu0 %v1486
    %2105 = vmatpush.msra.mxu0 %v1483
    %2106 = vmatpush.msra.mxu0 %v1480
    %2107 = vmatmul.f32.gmra.mxu0 %v1137
    %v2108 = vpop.f32.mrf.mxu0
    %v2109 = vadd.f32 %v1529, %v2108
    %2110 = vdwg.mxu0
    %2111 = vmatpush.msra.mxu0 %v1526
    %2112 = vmatpush.msra.mxu0 %v1523
    %2113 = vmatpush.msra.mxu0 %v1520
    %2114 = vmatpush.msra.mxu0 %v1517
    %2115 = vmatpush.msra.mxu0 %v1514
    %2116 = vmatpush.msra.mxu0 %v1511
    %2117 = vmatpush.msra.mxu0 %v1508
    %2118 = vmatpush.msra.mxu0 %v1505
    %2119 = vmatpush.msra.mxu0 %v1502
    %2120 = vmatpush.msra.mxu0 %v1499
    %2121 = vmatpush.msra.mxu0 %v1496
    %2122 = vmatpush.msra.mxu0 %v1493
    %2123 = vmatpush.msra.mxu0 %v1490
    %2124 = vmatpush.msra.mxu0 %v1487
    %2125 = vmatpush.msra.mxu0 %v1484
    %2126 = vmatpush.msra.mxu0 %v1481
    %2127 = vmatmul.f32.gmra.mxu0 %v1137
    %v2128 = vpop.f32.mrf.mxu0
    %v2129 = vadd.f32 %v1530, %v2128
    %2130 = vdwg.mxu0
    %2131 = vmatpush.msra.mxu0 %v1527
    %2132 = vmatpush.msra.mxu0 %v1524
    %2133 = vmatpush.msra.mxu0 %v1521
    %2134 = vmatpush.msra.mxu0 %v1518
    %2135 = vmatpush.msra.mxu0 %v1515
    %2136 = vmatpush.msra.mxu0 %v1512
    %2137 = vmatpush.msra.mxu0 %v1509
    %2138 = vmatpush.msra.mxu0 %v1506
    %2139 = vmatpush.msra.mxu0 %v1503
    %2140 = vmatpush.msra.mxu0 %v1500
    %2141 = vmatpush.msra.mxu0 %v1497
    %2142 = vmatpush.msra.mxu0 %v1494
    %2143 = vmatpush.msra.mxu0 %v1491
    %2144 = vmatpush.msra.mxu0 %v1488
    %2145 = vmatpush.msra.mxu0 %v1485
    %2146 = vmatpush.msra.mxu0 %v1482
    %2147 = vmatmul.f32.gmra.mxu0 %v1137
    %v2148 = vpop.f32.mrf.mxu0
    %v2149 = vadd.f32 %v1531, %v2148
    %2150 = vdwg.mxu0
    %2151 = vmatpush.msra.mxu0 %v1640
    %2152 = vmatpush.msra.mxu0 %v1637
    %2153 = vmatpush.msra.mxu0 %v1634
    %2154 = vmatpush.msra.mxu0 %v1631
    %2155 = vmatpush.msra.mxu0 %v1628
    %2156 = vmatpush.msra.mxu0 %v1625
    %2157 = vmatpush.msra.mxu0 %v1622
    %2158 = vmatpush.msra.mxu0 %v1619
    %2159 = vmatpush.msra.mxu0 %v1616
    %2160 = vmatpush.msra.mxu0 %v1613
    %2161 = vmatpush.msra.mxu0 %v1610
    %2162 = vmatpush.msra.mxu0 %v1607
    %2163 = vmatpush.msra.mxu0 %v1604
    %2164 = vmatpush.msra.mxu0 %v1601
    %2165 = vmatpush.msra.mxu0 %v1598
    %2166 = vmatpush.msra.mxu0 %v1595
    %2167 = vmatmul.f32.gmra.mxu0 %v2090
    %v2168 = vpop.f32.mrf.mxu0
    %v2169 = vadd.f32 %v1644, %v2168
    %2170 = vdwg.mxu0
    %2171 = vmatpush.msra.mxu0 %v1641
    %2172 = vmatpush.msra.mxu0 %v1638
    %2173 = vmatpush.msra.mxu0 %v1635
    %2174 = vmatpush.msra.mxu0 %v1632
    %2175 = vmatpush.msra.mxu0 %v1629
    %2176 = vmatpush.msra.mxu0 %v1626
    %2177 = vmatpush.msra.mxu0 %v1623
    %2178 = vmatpush.msra.mxu0 %v1620
    %2179 = vmatpush.msra.mxu0 %v1617
    %2180 = vmatpush.msra.mxu0 %v1614
    %2181 = vmatpush.msra.mxu0 %v1611
    %2182 = vmatpush.msra.mxu0 %v1608
    %2183 = vmatpush.msra.mxu0 %v1605
    %2184 = vmatpush.msra.mxu0 %v1602
    %2185 = vmatpush.msra.mxu0 %v1599
    %2186 = vmatpush.msra.mxu0 %v1596
    %2187 = vmatmul.f32.gmra.mxu0 %v2090
    %v2188 = vpop.f32.mrf.mxu0
    %v2189 = vadd.f32 %v1645, %v2188
    %2190 = vdwg.mxu0
    %2191 = vmatpush.msra.mxu0 %v1642
    %2192 = vmatpush.msra.mxu0 %v1639
    %2193 = vmatpush.msra.mxu0 %v1636
    %2194 = vmatpush.msra.mxu0 %v1633
    %2195 = vmatpush.msra.mxu0 %v1630
    %2196 = vmatpush.msra.mxu0 %v1627
    %2197 = vmatpush.msra.mxu0 %v1624
    %2198 = vmatpush.msra.mxu0 %v1621
    %2199 = vmatpush.msra.mxu0 %v1618
    %2200 = vmatpush.msra.mxu0 %v1615
    %2201 = vmatpush.msra.mxu0 %v1612
    %2202 = vmatpush.msra.mxu0 %v1609
    %2203 = vmatpush.msra.mxu0 %v1606
    %2204 = vmatpush.msra.mxu0 %v1603
    %2205 = vmatpush.msra.mxu0 %v1600
    %2206 = vmatpush.msra.mxu0 %v1597
    %2207 = vmatmul.f32.gmra.mxu0 %v2090
    %v2208 = vpop.f32.mrf.mxu0
    %v2209 = vadd.f32 %v1646, %v2208
    %2210 = vdwg.mxu0
    %v2211 = vadd.f32 %v2109, %v2169
    %v2212 = vxor.u32 %v2211, 2147483648
    %v2213 = vmul.f32 %v2212, 1.442695
    %v2214 = vpow.pop %v2213
    %v2215 = vadd.f32 %v2214, 1.0
    %v2216 = vrcp.pop %v2215
    %v2217 = vmul.f32 %v2215, %v2216
    %v2218 = vsub.f32 1.0, %v2217
    %v2219 = vmul.f32 %v2216, %v2218
    %v2220 = vadd.f32 %v2216, %v2219
    %vm2221 = vweird.f32 %v2215
    %vm2222 = vweird.f32 %v2216
    %vm2223 = vmor %vm2221, %vm2222
    %v2224 = vsel %vm2223, %v2216, %v2220
    %v2225 = vand.u32 2147483647, %v2215
    %vm2226 = vcmp.eq.f32.partialorder %v2225, 8.507059e+37
    %v2227 = vand.u32 %v2215, 2147483648
    %v2228 = vor.u32 1.1754944e-38, %v2227
    %v2229 = vsel %vm2226, %v2228, %v2224
    %v2230 = vmul.f32 1.0, %v2229
    %v2231 = vadd.f32 %v2129, %v2189
    %v2232 = vxor.u32 %v2231, 2147483648
    %v2233 = vmul.f32 %v2232, 1.442695
    %v2234 = vpow.pop %v2233
    %v2235 = vadd.f32 %v2234, 1.0
    %v2236 = vrcp.pop %v2235
    %v2237 = vmul.f32 %v2235, %v2236
    %v2238 = vsub.f32 1.0, %v2237
    %v2239 = vmul.f32 %v2236, %v2238
    %v2240 = vadd.f32 %v2236, %v2239
    %vm2241 = vweird.f32 %v2235
    %vm2242 = vweird.f32 %v2236
    %vm2243 = vmor %vm2241, %vm2242
    %v2244 = vsel %vm2243, %v2236, %v2240
    %v2245 = vand.u32 2147483647, %v2235
    %vm2246 = vcmp.eq.f32.partialorder %v2245, 8.507059e+37
    %v2247 = vand.u32 %v2235, 2147483648
    %v2248 = vor.u32 1.1754944e-38, %v2247
    %v2249 = vsel %vm2246, %v2248, %v2244
    %v2250 = vmul.f32 1.0, %v2249
    %v2251 = vmul.f32 %v2230, %v2209
    %v2252 = vadd.f32 %v2149, %v2251
    %v2253 = vtanh.pop %v2252
    %v2254 = vsub.f32 1.0, %v2250
    %v2255 = vmul.f32 %v2254, %v2253
    %v2256 = vmul.f32 %v2250, %v2090
    %v2257 = vadd.f32 %v2255, %v2256
    %2258 = vmatpush.msra.mxu0 %v1525
    %2259 = vmatpush.msra.mxu0 %v1522
    %2260 = vmatpush.msra.mxu0 %v1519
    %2261 = vmatpush.msra.mxu0 %v1516
    %2262 = vmatpush.msra.mxu0 %v1513
    %2263 = vmatpush.msra.mxu0 %v1510
    %2264 = vmatpush.msra.mxu0 %v1507
    %2265 = vmatpush.msra.mxu0 %v1504
    %2266 = vmatpush.msra.mxu0 %v1501
    %2267 = vmatpush.msra.mxu0 %v1498
    %2268 = vmatpush.msra.mxu0 %v1495
    %2269 = vmatpush.msra.mxu0 %v1492
    %2270 = vmatpush.msra.mxu0 %v1489
    %2271 = vmatpush.msra.mxu0 %v1486
    %2272 = vmatpush.msra.mxu0 %v1483
    %2273 = vmatpush.msra.mxu0 %v1480
    %2274 = vmatmul.f32.gmra.mxu0 %v1307
    %v2275 = vpop.f32.mrf.mxu0
    %v2276 = vadd.f32 %v1529, %v2275
    %2277 = vdwg.mxu0
    %2278 = vmatpush.msra.mxu0 %v1526
    %2279 = vmatpush.msra.mxu0 %v1523
    %2280 = vmatpush.msra.mxu0 %v1520
    %2281 = vmatpush.msra.mxu0 %v1517
    %2282 = vmatpush.msra.mxu0 %v1514
    %2283 = vmatpush.msra.mxu0 %v1511
    %2284 = vmatpush.msra.mxu0 %v1508
    %2285 = vmatpush.msra.mxu0 %v1505
    %2286 = vmatpush.msra.mxu0 %v1502
    %2287 = vmatpush.msra.mxu0 %v1499
    %2288 = vmatpush.msra.mxu0 %v1496
    %2289 = vmatpush.msra.mxu0 %v1493
    %2290 = vmatpush.msra.mxu0 %v1490
    %2291 = vmatpush.msra.mxu0 %v1487
    %2292 = vmatpush.msra.mxu0 %v1484
    %2293 = vmatpush.msra.mxu0 %v1481
    %2294 = vmatmul.f32.gmra.mxu0 %v1307
    %v2295 = vpop.f32.mrf.mxu0
    %v2296 = vadd.f32 %v1530, %v2295
    %2297 = vdwg.mxu0
    %2298 = vmatpush.msra.mxu0 %v1527
    %2299 = vmatpush.msra.mxu0 %v1524
    %2300 = vmatpush.msra.mxu0 %v1521
    %2301 = vmatpush.msra.mxu0 %v1518
    %2302 = vmatpush.msra.mxu0 %v1515
    %2303 = vmatpush.msra.mxu0 %v1512
    %2304 = vmatpush.msra.mxu0 %v1509
    %2305 = vmatpush.msra.mxu0 %v1506
    %2306 = vmatpush.msra.mxu0 %v1503
    %2307 = vmatpush.msra.mxu0 %v1500
    %2308 = vmatpush.msra.mxu0 %v1497
    %2309 = vmatpush.msra.mxu0 %v1494
    %2310 = vmatpush.msra.mxu0 %v1491
    %2311 = vmatpush.msra.mxu0 %v1488
    %2312 = vmatpush.msra.mxu0 %v1485
    %2313 = vmatpush.msra.mxu0 %v1482
    %2314 = vmatmul.f32.gmra.mxu0 %v1307
    %v2315 = vpop.f32.mrf.mxu0
    %v2316 = vadd.f32 %v1531, %v2315
    %2317 = vdwg.mxu0
    %2318 = vmatpush.msra.mxu0 %v1640
    %2319 = vmatpush.msra.mxu0 %v1637
    %2320 = vmatpush.msra.mxu0 %v1634
    %2321 = vmatpush.msra.mxu0 %v1631
    %2322 = vmatpush.msra.mxu0 %v1628
    %2323 = vmatpush.msra.mxu0 %v1625
    %2324 = vmatpush.msra.mxu0 %v1622
    %2325 = vmatpush.msra.mxu0 %v1619
    %2326 = vmatpush.msra.mxu0 %v1616
    %2327 = vmatpush.msra.mxu0 %v1613
    %2328 = vmatpush.msra.mxu0 %v1610
    %2329 = vmatpush.msra.mxu0 %v1607
    %2330 = vmatpush.msra.mxu0 %v1604
    %2331 = vmatpush.msra.mxu0 %v1601
    %2332 = vmatpush.msra.mxu0 %v1598
    %2333 = vmatpush.msra.mxu0 %v1595
    %2334 = vmatmul.f32.gmra.mxu0 %v2257
    %v2335 = vpop.f32.mrf.mxu0
    %v2336 = vadd.f32 %v1644, %v2335
    %2337 = vdwg.mxu0
    %2338 = vmatpush.msra.mxu0 %v1641
    %2339 = vmatpush.msra.mxu0 %v1638
    %2340 = vmatpush.msra.mxu0 %v1635
    %2341 = vmatpush.msra.mxu0 %v1632
    %2342 = vmatpush.msra.mxu0 %v1629
    %2343 = vmatpush.msra.mxu0 %v1626
    %2344 = vmatpush.msra.mxu0 %v1623
    %2345 = vmatpush.msra.mxu0 %v1620
    %2346 = vmatpush.msra.mxu0 %v1617
    %2347 = vmatpush.msra.mxu0 %v1614
    %2348 = vmatpush.msra.mxu0 %v1611
    %2349 = vmatpush.msra.mxu0 %v1608
    %2350 = vmatpush.msra.mxu0 %v1605
    %2351 = vmatpush.msra.mxu0 %v1602
    %2352 = vmatpush.msra.mxu0 %v1599
    %2353 = vmatpush.msra.mxu0 %v1596
    %2354 = vmatmul.f32.gmra.mxu0 %v2257
    %v2355 = vpop.f32.mrf.mxu0
    %v2356 = vadd.f32 %v1645, %v2355
    %2357 = vdwg.mxu0
    %2358 = vmatpush.msra.mxu0 %v1642
    %2359 = vmatpush.msra.mxu0 %v1639
    %2360 = vmatpush.msra.mxu0 %v1636
    %2361 = vmatpush.msra.mxu0 %v1633
    %2362 = vmatpush.msra.mxu0 %v1630
    %2363 = vmatpush.msra.mxu0 %v1627
    %2364 = vmatpush.msra.mxu0 %v1624
    %2365 = vmatpush.msra.mxu0 %v1621
    %2366 = vmatpush.msra.mxu0 %v1618
    %2367 = vmatpush.msra.mxu0 %v1615
    %2368 = vmatpush.msra.mxu0 %v1612
    %2369 = vmatpush.msra.mxu0 %v1609
    %2370 = vmatpush.msra.mxu0 %v1606
    %2371 = vmatpush.msra.mxu0 %v1603
    %2372 = vmatpush.msra.mxu0 %v1600
    %2373 = vmatpush.msra.mxu0 %v1597
    %2374 = vmatmul.f32.gmra.mxu0 %v2257
    %v2375 = vpop.f32.mrf.mxu0
    %v2376 = vadd.f32 %v1646, %v2375
    %2377 = vdwg.mxu0
    %v2378 = vadd.f32 %v2276, %v2336
    %v2379 = vxor.u32 %v2378, 2147483648
    %v2380 = vmul.f32 %v2379, 1.442695
    %v2381 = vpow.pop %v2380
    %v2382 = vadd.f32 %v2381, 1.0
    %v2383 = vrcp.pop %v2382
    %v2384 = vmul.f32 %v2382, %v2383
    %v2385 = vsub.f32 1.0, %v2384
    %v2386 = vmul.f32 %v2383, %v2385
    %v2387 = vadd.f32 %v2383, %v2386
    %vm2388 = vweird.f32 %v2382
    %vm2389 = vweird.f32 %v2383
    %vm2390 = vmor %vm2388, %vm2389
    %v2391 = vsel %vm2390, %v2383, %v2387
    %v2392 = vand.u32 2147483647, %v2382
    %vm2393 = vcmp.eq.f32.partialorder %v2392, 8.507059e+37
    %v2394 = vand.u32 %v2382, 2147483648
    %v2395 = vor.u32 1.1754944e-38, %v2394
    %v2396 = vsel %vm2393, %v2395, %v2391
    %v2397 = vmul.f32 1.0, %v2396
    %v2398 = vadd.f32 %v2296, %v2356
    %v2399 = vxor.u32 %v2398, 2147483648
    %v2400 = vmul.f32 %v2399, 1.442695
    %v2401 = vpow.pop %v2400
    %v2402 = vadd.f32 %v2401, 1.0
    %v2403 = vrcp.pop %v2402
    %v2404 = vmul.f32 %v2402, %v2403
    %v2405 = vsub.f32 1.0, %v2404
    %v2406 = vmul.f32 %v2403, %v2405
    %v2407 = vadd.f32 %v2403, %v2406
    %vm2408 = vweird.f32 %v2402
    %vm2409 = vweird.f32 %v2403
    %vm2410 = vmor %vm2408, %vm2409
    %v2411 = vsel %vm2410, %v2403, %v2407
    %v2412 = vand.u32 2147483647, %v2402
    %vm2413 = vcmp.eq.f32.partialorder %v2412, 8.507059e+37
    %v2414 = vand.u32 %v2402, 2147483648
    %v2415 = vor.u32 1.1754944e-38, %v2414
    %v2416 = vsel %vm2413, %v2415, %v2411
    %v2417 = vmul.f32 1.0, %v2416
    %v2418 = vmul.f32 %v2397, %v2376
    %v2419 = vadd.f32 %v2316, %v2418
    %v2420 = vtanh.pop %v2419
    %v2421 = vsub.f32 1.0, %v2417
    %v2422 = vmul.f32 %v2421, %v2420
    %v2423 = vmul.f32 %v2417, %v2257
    %v2424 = vadd.f32 %v2422, %v2423
    %2425 = vmatpush.msra.mxu0 %v1525
    %2426 = vmatpush.msra.mxu0 %v1522
    %2427 = vmatpush.msra.mxu0 %v1519
    %2428 = vmatpush.msra.mxu0 %v1516
    %2429 = vmatpush.msra.mxu0 %v1513
    %2430 = vmatpush.msra.mxu0 %v1510
    %2431 = vmatpush.msra.mxu0 %v1507
    %2432 = vmatpush.msra.mxu0 %v1504
    %2433 = vmatpush.msra.mxu0 %v1501
    %2434 = vmatpush.msra.mxu0 %v1498
    %2435 = vmatpush.msra.mxu0 %v1495
    %2436 = vmatpush.msra.mxu0 %v1492
    %2437 = vmatpush.msra.mxu0 %v1489
    %2438 = vmatpush.msra.mxu0 %v1486
    %2439 = vmatpush.msra.mxu0 %v1483
    %2440 = vmatpush.msra.mxu0 %v1480
    %2441 = vmatmul.f32.gmra.mxu0 %v1477
    %v2442 = vpop.f32.mrf.mxu0
    %v2443 = vadd.f32 %v1529, %v2442
    %2444 = vdwg.mxu0
    %2445 = vmatpush.msra.mxu0 %v1526
    %2446 = vmatpush.msra.mxu0 %v1523
    %2447 = vmatpush.msra.mxu0 %v1520
    %2448 = vmatpush.msra.mxu0 %v1517
    %2449 = vmatpush.msra.mxu0 %v1514
    %2450 = vmatpush.msra.mxu0 %v1511
    %2451 = vmatpush.msra.mxu0 %v1508
    %2452 = vmatpush.msra.mxu0 %v1505
    %2453 = vmatpush.msra.mxu0 %v1502
    %2454 = vmatpush.msra.mxu0 %v1499
    %2455 = vmatpush.msra.mxu0 %v1496
    %2456 = vmatpush.msra.mxu0 %v1493
    %2457 = vmatpush.msra.mxu0 %v1490
    %2458 = vmatpush.msra.mxu0 %v1487
    %2459 = vmatpush.msra.mxu0 %v1484
    %2460 = vmatpush.msra.mxu0 %v1481
    %2461 = vmatmul.f32.gmra.mxu0 %v1477
    %v2462 = vpop.f32.mrf.mxu0
    %v2463 = vadd.f32 %v1530, %v2462
    %2464 = vdwg.mxu0
    %2465 = vmatpush.msra.mxu0 %v1527
    %2466 = vmatpush.msra.mxu0 %v1524
    %2467 = vmatpush.msra.mxu0 %v1521
    %2468 = vmatpush.msra.mxu0 %v1518
    %2469 = vmatpush.msra.mxu0 %v1515
    %2470 = vmatpush.msra.mxu0 %v1512
    %2471 = vmatpush.msra.mxu0 %v1509
    %2472 = vmatpush.msra.mxu0 %v1506
    %2473 = vmatpush.msra.mxu0 %v1503
    %2474 = vmatpush.msra.mxu0 %v1500
    %2475 = vmatpush.msra.mxu0 %v1497
    %2476 = vmatpush.msra.mxu0 %v1494
    %2477 = vmatpush.msra.mxu0 %v1491
    %2478 = vmatpush.msra.mxu0 %v1488
    %2479 = vmatpush.msra.mxu0 %v1485
    %2480 = vmatpush.msra.mxu0 %v1482
    %2481 = vmatmul.f32.gmra.mxu0 %v1477
    %v2482 = vpop.f32.mrf.mxu0
    %v2483 = vadd.f32 %v1531, %v2482
    %2484 = vdwg.mxu0
    %2485 = vmatpush.msra.mxu0 %v1640
    %2486 = vmatpush.msra.mxu0 %v1637
    %2487 = vmatpush.msra.mxu0 %v1634
    %2488 = vmatpush.msra.mxu0 %v1631
    %2489 = vmatpush.msra.mxu0 %v1628
    %2490 = vmatpush.msra.mxu0 %v1625
    %2491 = vmatpush.msra.mxu0 %v1622
    %2492 = vmatpush.msra.mxu0 %v1619
    %2493 = vmatpush.msra.mxu0 %v1616
    %2494 = vmatpush.msra.mxu0 %v1613
    %2495 = vmatpush.msra.mxu0 %v1610
    %2496 = vmatpush.msra.mxu0 %v1607
    %2497 = vmatpush.msra.mxu0 %v1604
    %2498 = vmatpush.msra.mxu0 %v1601
    %2499 = vmatpush.msra.mxu0 %v1598
    %2500 = vmatpush.msra.mxu0 %v1595
    %2501 = vmatmul.f32.gmra.mxu0 %v2424
    %v2502 = vpop.f32.mrf.mxu0
    %v2503 = vadd.f32 %v1644, %v2502
    %2504 = vdwg.mxu0
    %2505 = vmatpush.msra.mxu0 %v1641
    %2506 = vmatpush.msra.mxu0 %v1638
    %2507 = vmatpush.msra.mxu0 %v1635
    %2508 = vmatpush.msra.mxu0 %v1632
    %2509 = vmatpush.msra.mxu0 %v1629
    %2510 = vmatpush.msra.mxu0 %v1626
    %2511 = vmatpush.msra.mxu0 %v1623
    %2512 = vmatpush.msra.mxu0 %v1620
    %2513 = vmatpush.msra.mxu0 %v1617
    %2514 = vmatpush.msra.mxu0 %v1614
    %2515 = vmatpush.msra.mxu0 %v1611
    %2516 = vmatpush.msra.mxu0 %v1608
    %2517 = vmatpush.msra.mxu0 %v1605
    %2518 = vmatpush.msra.mxu0 %v1602
    %2519 = vmatpush.msra.mxu0 %v1599
    %2520 = vmatpush.msra.mxu0 %v1596
    %2521 = vmatmul.f32.gmra.mxu0 %v2424
    %v2522 = vpop.f32.mrf.mxu0
    %v2523 = vadd.f32 %v1645, %v2522
    %2524 = vdwg.mxu0
    %2525 = vmatpush.msra.mxu0 %v1642
    %2526 = vmatpush.msra.mxu0 %v1639
    %2527 = vmatpush.msra.mxu0 %v1636
    %2528 = vmatpush.msra.mxu0 %v1633
    %2529 = vmatpush.msra.mxu0 %v1630
    %2530 = vmatpush.msra.mxu0 %v1627
    %2531 = vmatpush.msra.mxu0 %v1624
    %2532 = vmatpush.msra.mxu0 %v1621
    %2533 = vmatpush.msra.mxu0 %v1618
    %2534 = vmatpush.msra.mxu0 %v1615
    %2535 = vmatpush.msra.mxu0 %v1612
    %2536 = vmatpush.msra.mxu0 %v1609
    %2537 = vmatpush.msra.mxu0 %v1606
    %2538 = vmatpush.msra.mxu0 %v1603
    %2539 = vmatpush.msra.mxu0 %v1600
    %2540 = vmatpush.msra.mxu0 %v1597
    %2541 = vmatmul.f32.gmra.mxu0 %v2424
    %v2542 = vpop.f32.mrf.mxu0
    %v2543 = vadd.f32 %v1646, %v2542
    %2544 = vdwg.mxu0
    %v2545 = vadd.f32 %v2443, %v2503
    %v2546 = vxor.u32 %v2545, 2147483648
    %v2547 = vmul.f32 %v2546, 1.442695
    %v2548 = vpow.pop %v2547
    %v2549 = vadd.f32 %v2548, 1.0
    %v2550 = vrcp.pop %v2549
    %v2551 = vmul.f32 %v2549, %v2550
    %v2552 = vsub.f32 1.0, %v2551
    %v2553 = vmul.f32 %v2550, %v2552
    %v2554 = vadd.f32 %v2550, %v2553
    %vm2555 = vweird.f32 %v2549
    %vm2556 = vweird.f32 %v2550
    %vm2557 = vmor %vm2555, %vm2556
    %v2558 = vsel %vm2557, %v2550, %v2554
    %v2559 = vand.u32 2147483647, %v2549
    %vm2560 = vcmp.eq.f32.partialorder %v2559, 8.507059e+37
    %v2561 = vand.u32 %v2549, 2147483648
    %v2562 = vor.u32 1.1754944e-38, %v2561
    %v2563 = vsel %vm2560, %v2562, %v2558
    %v2564 = vmul.f32 1.0, %v2563
    %v2565 = vadd.f32 %v2463, %v2523
    %v2566 = vxor.u32 %v2565, 2147483648
    %v2567 = vmul.f32 %v2566, 1.442695
    %v2568 = vpow.pop %v2567
    %v2569 = vadd.f32 %v2568, 1.0
    %v2570 = vrcp.pop %v2569
    %v2571 = vmul.f32 %v2569, %v2570
    %v2572 = vsub.f32 1.0, %v2571
    %v2573 = vmul.f32 %v2570, %v2572
    %v2574 = vadd.f32 %v2570, %v2573
    %vm2575 = vweird.f32 %v2569
    %vm2576 = vweird.f32 %v2570
    %vm2577 = vmor %vm2575, %vm2576
    %v2578 = vsel %vm2577, %v2570, %v2574
    %v2579 = vand.u32 2147483647, %v2569
    %vm2580 = vcmp.eq.f32.partialorder %v2579, 8.507059e+37
    %v2581 = vand.u32 %v2569, 2147483648
    %v2582 = vor.u32 1.1754944e-38, %v2581
    %v2583 = vsel %vm2580, %v2582, %v2578
    %v2584 = vmul.f32 1.0, %v2583
    %v2585 = vmul.f32 %v2564, %v2543
    %v2586 = vadd.f32 %v2483, %v2585
    %v2587 = vtanh.pop %v2586
    %v2588 = vsub.f32 1.0, %v2584
    %v2589 = vmul.f32 %v2588, %v2587
    %v2590 = vmul.f32 %v2584, %v2424
    %v2591 = vadd.f32 %v2589, %v2590
    %v2592 = vld [vmem:[%s27] sm:$0xff]
    %v2593 = vld [vmem:[%s27 + $0x8] sm:$0xff]
    %v2594 = vld [vmem:[%s27 + $0x10] sm:$0xff]
    %v2595 = vld [vmem:[%s27 + $0x18] sm:$0xff]
    %v2596 = vld [vmem:[%s27 + $0x20] sm:$0xff]
    %v2597 = vld [vmem:[%s27 + $0x28] sm:$0xff]
    %v2598 = vld [vmem:[%s27 + $0x30] sm:$0xff]
    %v2599 = vld [vmem:[%s27 + $0x38] sm:$0xff]
    %v2600 = vld [vmem:[%s27 + $0x40] sm:$0xff]
    %v2601 = vld [vmem:[%s27 + $0x48] sm:$0xff]
    %v2602 = vld [vmem:[%s27 + $0x50] sm:$0xff]
    %v2603 = vld [vmem:[%s27 + $0x58] sm:$0xff]
    %v2604 = vld [vmem:[%s27 + $0x60] sm:$0xff]
    %v2605 = vld [vmem:[%s27 + $0x68] sm:$0xff]
    %v2606 = vld [vmem:[%s27 + $0x70] sm:$0xff]
    %v2607 = vld [vmem:[%s27 + $0x78] sm:$0xff]
    %v2608 = vld [vmem:[%s29] sm:$0x1]
    %v2609 = vld [vmem:[%s31] sm:$0xff]
    %v2610 = vld [vmem:[%s31 + $0x8] sm:$0xff]
    %v2611 = vld [vmem:[%s33] sm:$0x1]
    %v2613 = vperm.slane %v2608, 0
    %2615 = vmatpush.msra.mxu0 %v2607
    %2616 = vmatpush.msra.mxu0 %v2606
    %2617 = vmatpush.msra.mxu0 %v2605
    %2618 = vmatpush.msra.mxu0 %v2604
    %2619 = vmatpush.msra.mxu0 %v2603
    %2620 = vmatpush.msra.mxu0 %v2602
    %2621 = vmatpush.msra.mxu0 %v2601
    %2622 = vmatpush.msra.mxu0 %v2600
    %2623 = vmatpush.msra.mxu0 %v2599
    %2624 = vmatpush.msra.mxu0 %v2598
    %2625 = vmatpush.msra.mxu0 %v2597
    %2626 = vmatpush.msra.mxu0 %v2596
    %2627 = vmatpush.msra.mxu0 %v2595
    %2628 = vmatpush.msra.mxu0 %v2594
    %2629 = vmatpush.msra.mxu0 %v2593
    %2630 = vmatpush.msra.mxu0 %v2592
    %2631 = vmatmul.f32.gmra.mxu0 %v1756
    %v2632 = vpop.f32.mrf.mxu0
    %v2633 = vadd.f32 %v2613, %v2632
    %2634 = vdwg.mxu0
    %v2635 = vmax.f32 %v2633, 0.0
    %v2637 = vperm.slane %v2611, 0
    %v2640 = vsel %vm402, %v2635, 0
    %2642 = vmatpush.msra.mxu0 0.0
    %2643 = vmatpush.msra.mxu0 0.0
    %2644 = vmatpush.msra.mxu0 0.0
    %2645 = vmatpush.msra.mxu0 0.0
    %2646 = vmatpush.msra.mxu0 0.0
    %2647 = vmatpush.msra.mxu0 0.0
    %2648 = vmatpush.msra.mxu0 0.0
    %2649 = vmatpush.msra.mxu0 0.0
    %2650 = vmatpush.msra.mxu0 0.0
    %2651 = vmatpush.msra.mxu0 0.0
    %2652 = vmatpush.msra.mxu0 0.0
    %2653 = vmatpush.msra.mxu0 0.0
    %2654 = vmatpush.msra.mxu0 0.0
    %2655 = vmatpush.msra.mxu0 0.0
    %2656 = vmatpush.msra.mxu0 %v2610
    %2657 = vmatpush.msra.mxu0 %v2609
    %2658 = vmatmul.f32.gmra.mxu0 %v2640
    %v2659 = vpop.f32.mrf.mxu0
    %v2660 = vadd.f32 %v2637, %v2659
    %2661 = vdwg.mxu0
    %2662 = vmatpush.msra.mxu0 %v2607
    %2663 = vmatpush.msra.mxu0 %v2606
    %2664 = vmatpush.msra.mxu0 %v2605
    %2665 = vmatpush.msra.mxu0 %v2604
    %2666 = vmatpush.msra.mxu0 %v2603
    %2667 = vmatpush.msra.mxu0 %v2602
    %2668 = vmatpush.msra.mxu0 %v2601
    %2669 = vmatpush.msra.mxu0 %v2600
    %2670 = vmatpush.msra.mxu0 %v2599
    %2671 = vmatpush.msra.mxu0 %v2598
    %2672 = vmatpush.msra.mxu0 %v2597
    %2673 = vmatpush.msra.mxu0 %v2596
    %2674 = vmatpush.msra.mxu0 %v2595
    %2675 = vmatpush.msra.mxu0 %v2594
    %2676 = vmatpush.msra.mxu0 %v2593
    %2677 = vmatpush.msra.mxu0 %v2592
    %2678 = vmatmul.f32.gmra.mxu0 %v1923
    %v2679 = vpop.f32.mrf.mxu0
    %v2680 = vadd.f32 %v2613, %v2679
    %2681 = vdwg.mxu0
    %v2682 = vmax.f32 %v2680, 0.0
    %v2684 = vsel %vm402, %v2682, 0
    %2686 = vmatpush.msra.mxu0 0.0
    %2687 = vmatpush.msra.mxu0 0.0
    %2688 = vmatpush.msra.mxu0 0.0
    %2689 = vmatpush.msra.mxu0 0.0
    %2690 = vmatpush.msra.mxu0 0.0
    %2691 = vmatpush.msra.mxu0 0.0
    %2692 = vmatpush.msra.mxu0 0.0
    %2693 = vmatpush.msra.mxu0 0.0
    %2694 = vmatpush.msra.mxu0 0.0
    %2695 = vmatpush.msra.mxu0 0.0
    %2696 = vmatpush.msra.mxu0 0.0
    %2697 = vmatpush.msra.mxu0 0.0
    %2698 = vmatpush.msra.mxu0 0.0
    %2699 = vmatpush.msra.mxu0 0.0
    %2700 = vmatpush.msra.mxu0 %v2610
    %2701 = vmatpush.msra.mxu0 %v2609
    %2702 = vmatmul.f32.gmra.mxu0 %v2684
    %v2703 = vpop.f32.mrf.mxu0
    %v2704 = vadd.f32 %v2637, %v2703
    %2705 = vdwg.mxu0
    %2706 = vmatpush.msra.mxu0 %v2607
    %2707 = vmatpush.msra.mxu0 %v2606
    %2708 = vmatpush.msra.mxu0 %v2605
    %2709 = vmatpush.msra.mxu0 %v2604
    %2710 = vmatpush.msra.mxu0 %v2603
    %2711 = vmatpush.msra.mxu0 %v2602
    %2712 = vmatpush.msra.mxu0 %v2601
    %2713 = vmatpush.msra.mxu0 %v2600
    %2714 = vmatpush.msra.mxu0 %v2599
    %2715 = vmatpush.msra.mxu0 %v2598
    %2716 = vmatpush.msra.mxu0 %v2597
    %2717 = vmatpush.msra.mxu0 %v2596
    %2718 = vmatpush.msra.mxu0 %v2595
    %2719 = vmatpush.msra.mxu0 %v2594
    %2720 = vmatpush.msra.mxu0 %v2593
    %2721 = vmatpush.msra.mxu0 %v2592
    %2722 = vmatmul.f32.gmra.mxu0 %v2090
    %v2723 = vpop.f32.mrf.mxu0
    %v2724 = vadd.f32 %v2613, %v2723
    %2725 = vdwg.mxu0
    %v2726 = vmax.f32 %v2724, 0.0
    %v2728 = vsel %vm402, %v2726, 0
    %2730 = vmatpush.msra.mxu0 0.0
    %2731 = vmatpush.msra.mxu0 0.0
    %2732 = vmatpush.msra.mxu0 0.0
    %2733 = vmatpush.msra.mxu0 0.0
    %2734 = vmatpush.msra.mxu0 0.0
    %2735 = vmatpush.msra.mxu0 0.0
    %2736 = vmatpush.msra.mxu0 0.0
    %2737 = vmatpush.msra.mxu0 0.0
    %2738 = vmatpush.msra.mxu0 0.0
    %2739 = vmatpush.msra.mxu0 0.0
    %2740 = vmatpush.msra.mxu0 0.0
    %2741 = vmatpush.msra.mxu0 0.0
    %2742 = vmatpush.msra.mxu0 0.0
    %2743 = vmatpush.msra.mxu0 0.0
    %2744 = vmatpush.msra.mxu0 %v2610
    %2745 = vmatpush.msra.mxu0 %v2609
    %2746 = vmatmul.f32.gmra.mxu0 %v2728
    %v2747 = vpop.f32.mrf.mxu0
    %v2748 = vadd.f32 %v2637, %v2747
    %2749 = vdwg.mxu0
    %2750 = vmatpush.msra.mxu0 %v2607
    %2751 = vmatpush.msra.mxu0 %v2606
    %2752 = vmatpush.msra.mxu0 %v2605
    %2753 = vmatpush.msra.mxu0 %v2604
    %2754 = vmatpush.msra.mxu0 %v2603
    %2755 = vmatpush.msra.mxu0 %v2602
    %2756 = vmatpush.msra.mxu0 %v2601
    %2757 = vmatpush.msra.mxu0 %v2600
    %2758 = vmatpush.msra.mxu0 %v2599
    %2759 = vmatpush.msra.mxu0 %v2598
    %2760 = vmatpush.msra.mxu0 %v2597
    %2761 = vmatpush.msra.mxu0 %v2596
    %2762 = vmatpush.msra.mxu0 %v2595
    %2763 = vmatpush.msra.mxu0 %v2594
    %2764 = vmatpush.msra.mxu0 %v2593
    %2765 = vmatpush.msra.mxu0 %v2592
    %2766 = vmatmul.f32.gmra.mxu0 %v2257
    %v2767 = vpop.f32.mrf.mxu0
    %v2768 = vadd.f32 %v2613, %v2767
    %2769 = vdwg.mxu0
    %v2770 = vmax.f32 %v2768, 0.0
    %v2772 = vsel %vm402, %v2770, 0
    %2774 = vmatpush.msra.mxu0 0.0
    %2775 = vmatpush.msra.mxu0 0.0
    %2776 = vmatpush.msra.mxu0 0.0
    %2777 = vmatpush.msra.mxu0 0.0
    %2778 = vmatpush.msra.mxu0 0.0
    %2779 = vmatpush.msra.mxu0 0.0
    %2780 = vmatpush.msra.mxu0 0.0
    %2781 = vmatpush.msra.mxu0 0.0
    %2782 = vmatpush.msra.mxu0 0.0
    %2783 = vmatpush.msra.mxu0 0.0
    %2784 = vmatpush.msra.mxu0 0.0
    %2785 = vmatpush.msra.mxu0 0.0
    %2786 = vmatpush.msra.mxu0 0.0
    %2787 = vmatpush.msra.mxu0 0.0
    %2788 = vmatpush.msra.mxu0 %v2610
    %2789 = vmatpush.msra.mxu0 %v2609
    %2790 = vmatmul.f32.gmra.mxu0 %v2772
    %v2791 = vpop.f32.mrf.mxu0
    %v2792 = vadd.f32 %v2637, %v2791
    %2793 = vdwg.mxu0
    %2794 = vmatpush.msra.mxu0 %v2607
    %2795 = vmatpush.msra.mxu0 %v2606
    %2796 = vmatpush.msra.mxu0 %v2605
    %2797 = vmatpush.msra.mxu0 %v2604
    %2798 = vmatpush.msra.mxu0 %v2603
    %2799 = vmatpush.msra.mxu0 %v2602
    %2800 = vmatpush.msra.mxu0 %v2601
    %2801 = vmatpush.msra.mxu0 %v2600
    %2802 = vmatpush.msra.mxu0 %v2599
    %2803 = vmatpush.msra.mxu0 %v2598
    %2804 = vmatpush.msra.mxu0 %v2597
    %2805 = vmatpush.msra.mxu0 %v2596
    %2806 = vmatpush.msra.mxu0 %v2595
    %2807 = vmatpush.msra.mxu0 %v2594
    %2808 = vmatpush.msra.mxu0 %v2593
    %2809 = vmatpush.msra.mxu0 %v2592
    %2810 = vmatmul.f32.gmra.mxu0 %v2424
    %v2811 = vpop.f32.mrf.mxu0
    %v2812 = vadd.f32 %v2613, %v2811
    %2813 = vdwg.mxu0
    %v2814 = vmax.f32 %v2812, 0.0
    %v2816 = vsel %vm402, %v2814, 0
    %2818 = vmatpush.msra.mxu0 0.0
    %2819 = vmatpush.msra.mxu0 0.0
    %2820 = vmatpush.msra.mxu0 0.0
    %2821 = vmatpush.msra.mxu0 0.0
    %2822 = vmatpush.msra.mxu0 0.0
    %2823 = vmatpush.msra.mxu0 0.0
    %2824 = vmatpush.msra.mxu0 0.0
    %2825 = vmatpush.msra.mxu0 0.0
    %2826 = vmatpush.msra.mxu0 0.0
    %2827 = vmatpush.msra.mxu0 0.0
    %2828 = vmatpush.msra.mxu0 0.0
    %2829 = vmatpush.msra.mxu0 0.0
    %2830 = vmatpush.msra.mxu0 0.0
    %2831 = vmatpush.msra.mxu0 0.0
    %2832 = vmatpush.msra.mxu0 %v2610
    %2833 = vmatpush.msra.mxu0 %v2609
    %2834 = vmatmul.f32.gmra.mxu0 %v2816
    %v2835 = vpop.f32.mrf.mxu0
    %v2836 = vadd.f32 %v2637, %v2835
    %2837 = vdwg.mxu0
    %2838 = vmatpush.msra.mxu0 %v2607
    %2839 = vmatpush.msra.mxu0 %v2606
    %2840 = vmatpush.msra.mxu0 %v2605
    %2841 = vmatpush.msra.mxu0 %v2604
    %2842 = vmatpush.msra.mxu0 %v2603
    %2843 = vmatpush.msra.mxu0 %v2602
    %2844 = vmatpush.msra.mxu0 %v2601
    %2845 = vmatpush.msra.mxu0 %v2600
    %2846 = vmatpush.msra.mxu0 %v2599
    %2847 = vmatpush.msra.mxu0 %v2598
    %2848 = vmatpush.msra.mxu0 %v2597
    %2849 = vmatpush.msra.mxu0 %v2596
    %2850 = vmatpush.msra.mxu0 %v2595
    %2851 = vmatpush.msra.mxu0 %v2594
    %2852 = vmatpush.msra.mxu0 %v2593
    %2853 = vmatpush.msra.mxu0 %v2592
    %2854 = vmatmul.f32.gmra.mxu0 %v2591
    %v2855 = vpop.f32.mrf.mxu0
    %v2856 = vadd.f32 %v2613, %v2855
    %2857 = vdwg.mxu0
    %v2858 = vmax.f32 %v2856, 0.0
    %v2860 = vsel %vm402, %v2858, 0
    %2862 = vmatpush.msra.mxu0 0.0
    %2863 = vmatpush.msra.mxu0 0.0
    %2864 = vmatpush.msra.mxu0 0.0
    %2865 = vmatpush.msra.mxu0 0.0
    %2866 = vmatpush.msra.mxu0 0.0
    %2867 = vmatpush.msra.mxu0 0.0
    %2868 = vmatpush.msra.mxu0 0.0
    %2869 = vmatpush.msra.mxu0 0.0
    %2870 = vmatpush.msra.mxu0 0.0
    %2871 = vmatpush.msra.mxu0 0.0
    %2872 = vmatpush.msra.mxu0 0.0
    %2873 = vmatpush.msra.mxu0 0.0
    %2874 = vmatpush.msra.mxu0 0.0
    %2875 = vmatpush.msra.mxu0 0.0
    %2876 = vmatpush.msra.mxu0 %v2610
    %2877 = vmatpush.msra.mxu0 %v2609
    %2878 = vmatmul.f32.gmra.mxu0 %v2860
    %v2879 = vpop.f32.mrf.mxu0
    %v2880 = vadd.f32 %v2637, %v2879
    %2881 = vdwg.mxu0
    %v2883 = vrot.slane %v2704, 6
    %v2886 = vrot.slane %v2748, 4
    %v2889 = vrot.slane %v2792, 2
    %v2892 = vrot.slane %v2880, 6
    %vm2894 = vcmask 1041408
    %v2895 = vsel %vm2894, %v2660, %v2883
    %vm2896 = vcmask 1043456
    %v2897 = vsel %vm2896, %v2895, %v2886
    %vm2898 = vcmask 1045504
    %v2899 = vsel %vm2898, %v2897, %v2889
    %v2900 = vsel %vm2894, %v2836, %v2892
    %v2901 = vld [vmem:[%s35] sm:$0x1]
    %v2902 = vld [vmem:[%s37] sm:$0x1]
    %v2903 = vld [vmem:[%s3] sm:$0xff]
    %v2904 = vld [vmem:[%s3 + $0x8] sm:$0xf]
    %2906 = vset.pattern.permute.xlu0 0
    %2907 = vperm.xlu0 %2906, %v2903
    %v2908 = vpop.permute.xlu0 %2907
    %2911 = vset.pattern.permute.xlu0 0
    %2912 = vperm.xlu0 %2911, %v2904
    %v2913 = vpop.permute.xlu0 %2912
    %v2916 = vperm.slane %v2901, 0
    %v2918 = vmul.f32 %v2908, %v2916
    %v2919 = vmul.f32 %v2913, %v2916
    %v2921 = vperm.slane %v2902, 0
    %v2923 = vadd.f32 %v2918, %v2921
    %v2924 = vadd.f32 %v2919, %v2921
    %v2925 = vmax.f32 %v2923, 0.0
    %v2926 = vmax.f32 %v2924, 0.0
    %2927 = vset.pattern.permute.xlu0 1
    %2928 = vperm.xlu0 %2927, %v2903
    %v2929 = vpop.permute.xlu0 %2928
    %2931 = vset.pattern.permute.xlu0 1
    %2932 = vperm.xlu0 %2931, %v2904
    %v2933 = vpop.permute.xlu0 %2932
    %v2935 = vmul.f32 %v2929, %v2916
    %v2936 = vmul.f32 %v2933, %v2916
    %v2937 = vadd.f32 %v2935, %v2921
    %v2938 = vadd.f32 %v2936, %v2921
    %v2939 = vmax.f32 %v2937, 0.0
    %v2940 = vmax.f32 %v2938, 0.0
    %2941 = vset.pattern.permute.xlu0 2
    %2942 = vperm.xlu0 %2941, %v2903
    %v2943 = vpop.permute.xlu0 %2942
    %2945 = vset.pattern.permute.xlu0 2
    %2946 = vperm.xlu0 %2945, %v2904
    %v2947 = vpop.permute.xlu0 %2946
    %v2949 = vmul.f32 %v2943, %v2916
    %v2950 = vmul.f32 %v2947, %v2916
    %v2951 = vadd.f32 %v2949, %v2921
    %v2952 = vadd.f32 %v2950, %v2921
    %v2953 = vmax.f32 %v2951, 0.0
    %v2954 = vmax.f32 %v2952, 0.0
    %2955 = vset.pattern.permute.xlu0 3
    %2956 = vperm.xlu0 %2955, %v2903
    %v2957 = vpop.permute.xlu0 %2956
    %2959 = vset.pattern.permute.xlu0 3
    %2960 = vperm.xlu0 %2959, %v2904
    %v2961 = vpop.permute.xlu0 %2960
    %v2963 = vmul.f32 %v2957, %v2916
    %v2964 = vmul.f32 %v2961, %v2916
    %v2965 = vadd.f32 %v2963, %v2921
    %v2966 = vadd.f32 %v2964, %v2921
    %v2967 = vmax.f32 %v2965, 0.0
    %v2968 = vmax.f32 %v2966, 0.0
    %2969 = vset.pattern.permute.xlu0 4
    %2970 = vperm.xlu0 %2969, %v2903
    %v2971 = vpop.permute.xlu0 %2970
    %2973 = vset.pattern.permute.xlu0 4
    %2974 = vperm.xlu0 %2973, %v2904
    %v2975 = vpop.permute.xlu0 %2974
    %v2977 = vmul.f32 %v2971, %v2916
    %v2978 = vmul.f32 %v2975, %v2916
    %v2979 = vadd.f32 %v2977, %v2921
    %v2980 = vadd.f32 %v2978, %v2921
    %v2981 = vmax.f32 %v2979, 0.0
    %v2982 = vmax.f32 %v2980, 0.0
    %2983 = vset.pattern.permute.xlu0 5
    %2984 = vperm.xlu0 %2983, %v2903
    %v2985 = vpop.permute.xlu0 %2984
    %2987 = vset.pattern.permute.xlu0 5
    %2988 = vperm.xlu0 %2987, %v2904
    %v2989 = vpop.permute.xlu0 %2988
    %v2991 = vmul.f32 %v2985, %v2916
    %v2992 = vmul.f32 %v2989, %v2916
    %v2993 = vadd.f32 %v2991, %v2921
    %v2994 = vadd.f32 %v2992, %v2921
    %v2995 = vmax.f32 %v2993, 0.0
    %v2996 = vmax.f32 %v2994, 0.0
    %2997 = vset.pattern.permute.xlu0 6
    %2998 = vperm.xlu0 %2997, %v2903
    %v2999 = vpop.permute.xlu0 %2998
    %3001 = vset.pattern.permute.xlu0 6
    %3002 = vperm.xlu0 %3001, %v2904
    %v3003 = vpop.permute.xlu0 %3002
    %v3005 = vmul.f32 %v2999, %v2916
    %v3006 = vmul.f32 %v3003, %v2916
    %v3007 = vadd.f32 %v3005, %v2921
    %v3008 = vadd.f32 %v3006, %v2921
    %v3009 = vmax.f32 %v3007, 0.0
    %v3010 = vmax.f32 %v3008, 0.0
    %3011 = vset.pattern.permute.xlu0 7
    %3012 = vperm.xlu0 %3011, %v2903
    %v3013 = vpop.permute.xlu0 %3012
    %3015 = vset.pattern.permute.xlu0 7
    %3016 = vperm.xlu0 %3015, %v2904
    %v3017 = vpop.permute.xlu0 %3016
    %v3019 = vmul.f32 %v3013, %v2916
    %v3020 = vmul.f32 %v3017, %v2916
    %v3021 = vadd.f32 %v3019, %v2921
    %v3022 = vadd.f32 %v3020, %v2921
    %v3023 = vmax.f32 %v3021, 0.0
    %v3024 = vmax.f32 %v3022, 0.0
    %v3025 = vld [vmem:[%s43] sm:$0x7]
    %v3026 = vld [vmem:[%s45] sm:$0x7]
    %v3027 = vld [vmem:[%s39] sm:$0xff]
    %v3028 = vld [vmem:[%s39 + $0x8] sm:$0xff]
    %v3029 = vld [vmem:[%s39 + $0x10] sm:$0xff]
    %v3031 = vperm.slane %v3025, 0
    %v3032 = vperm.slane %v3025, 1
    %v3033 = vperm.slane %v3025, 2
    %v3038 = vsel %vm232, %v2925, 0
    %v3041 = vsel %vm232, %v2926, 0
    %3043 = vmatpush.msra.mxu0 0.0
    %3044 = vmatpush.msra.mxu0 0.0
    %3045 = vmatpush.msra.mxu0 0.0
    %3046 = vmatpush.msra.mxu0 0.0
    %3047 = vmatpush.msra.mxu0 0.0
    %3048 = vmatpush.msra.mxu0 0.0
    %3049 = vmatpush.msra.mxu0 0.0
    %3050 = vmatpush.msra.mxu0 0.0
    %3051 = vmatpush.msra.mxu0 0.0
    %3052 = vmatpush.msra.mxu0 0.0
    %3053 = vmatpush.msra.mxu0 0.0
    %3054 = vmatpush.msra.mxu0 0.0
    %3055 = vmatpush.msra.mxu0 0.0
    %3056 = vmatpush.msra.mxu0 0.0
    %3057 = vmatpush.msra.mxu0 0.0
    %3058 = vmatpush.msra.mxu0 %v3027
    %3059 = vmatmul.f32.gmra.mxu0 %v3038
    %v3060 = vpop.f32.mrf.mxu0
    %v3061 = vadd.f32 %v3031, %v3060
    %3062 = vmatmul.f32.gmra.mxu0 %v3041
    %v3063 = vpop.f32.mrf.mxu0
    %v3064 = vadd.f32 %v3031, %v3063
    %3065 = vdwg.mxu0
    %3066 = vmatpush.msra.mxu0 0.0
    %3067 = vmatpush.msra.mxu0 0.0
    %3068 = vmatpush.msra.mxu0 0.0
    %3069 = vmatpush.msra.mxu0 0.0
    %3070 = vmatpush.msra.mxu0 0.0
    %3071 = vmatpush.msra.mxu0 0.0
    %3072 = vmatpush.msra.mxu0 0.0
    %3073 = vmatpush.msra.mxu0 0.0
    %3074 = vmatpush.msra.mxu0 0.0
    %3075 = vmatpush.msra.mxu0 0.0
    %3076 = vmatpush.msra.mxu0 0.0
    %3077 = vmatpush.msra.mxu0 0.0
    %3078 = vmatpush.msra.mxu0 0.0
    %3079 = vmatpush.msra.mxu0 0.0
    %3080 = vmatpush.msra.mxu0 0.0
    %3081 = vmatpush.msra.mxu0 %v3028
    %3082 = vmatmul.f32.gmra.mxu0 %v3038
    %v3083 = vpop.f32.mrf.mxu0
    %v3084 = vadd.f32 %v3032, %v3083
    %3085 = vmatmul.f32.gmra.mxu0 %v3041
    %v3086 = vpop.f32.mrf.mxu0
    %v3087 = vadd.f32 %v3032, %v3086
    %3088 = vdwg.mxu0
    %3089 = vmatpush.msra.mxu0 0.0
    %3090 = vmatpush.msra.mxu0 0.0
    %3091 = vmatpush.msra.mxu0 0.0
    %3092 = vmatpush.msra.mxu0 0.0
    %3093 = vmatpush.msra.mxu0 0.0
    %3094 = vmatpush.msra.mxu0 0.0
    %3095 = vmatpush.msra.mxu0 0.0
    %3096 = vmatpush.msra.mxu0 0.0
    %3097 = vmatpush.msra.mxu0 0.0
    %3098 = vmatpush.msra.mxu0 0.0
    %3099 = vmatpush.msra.mxu0 0.0
    %3100 = vmatpush.msra.mxu0 0.0
    %3101 = vmatpush.msra.mxu0 0.0
    %3102 = vmatpush.msra.mxu0 0.0
    %3103 = vmatpush.msra.mxu0 0.0
    %3104 = vmatpush.msra.mxu0 %v3029
    %3105 = vmatmul.f32.gmra.mxu0 %v3038
    %v3106 = vpop.f32.mrf.mxu0
    %v3107 = vadd.f32 %v3033, %v3106
    %3108 = vmatmul.f32.gmra.mxu0 %v3041
    %v3109 = vpop.f32.mrf.mxu0
    %v3110 = vadd.f32 %v3033, %v3109
    %3111 = vdwg.mxu0
    %v3112 = vld [vmem:[#allocation8] sm:$0xff]
    %v3113 = vld [vmem:[#allocation8 + $0x8] sm:$0xff]
    %v3114 = vld [vmem:[#allocation8 + $0x10] sm:$0xff]
    %v3115 = vld [vmem:[#allocation8 + $0x18] sm:$0xff]
    %v3116 = vld [vmem:[#allocation8 + $0x20] sm:$0xff]
    %v3117 = vld [vmem:[#allocation8 + $0x28] sm:$0xff]
    %v3118 = vld [vmem:[#allocation8 + $0x30] sm:$0xff]
    %v3119 = vld [vmem:[#allocation8 + $0x38] sm:$0xff]
    %v3120 = vld [vmem:[#allocation8 + $0x40] sm:$0xff]
    %v3121 = vld [vmem:[#allocation8 + $0x48] sm:$0xff]
    %v3122 = vld [vmem:[#allocation8 + $0x50] sm:$0xff]
    %v3123 = vld [vmem:[#allocation8 + $0x58] sm:$0xff]
    %v3124 = vld [vmem:[#allocation8 + $0x60] sm:$0xff]
    %v3125 = vld [vmem:[#allocation8 + $0x68] sm:$0xff]
    %v3126 = vld [vmem:[#allocation8 + $0x70] sm:$0xff]
    %v3127 = vld [vmem:[#allocation8 + $0x78] sm:$0xff]
    %v3128 = vld [vmem:[#allocation8 + $0x80] sm:$0xff]
    %v3129 = vld [vmem:[#allocation8 + $0x88] sm:$0xff]
    %v3130 = vld [vmem:[#allocation8 + $0x90] sm:$0xff]
    %v3131 = vld [vmem:[#allocation8 + $0x98] sm:$0xff]
    %v3132 = vld [vmem:[#allocation8 + $0xa0] sm:$0xff]
    %v3133 = vld [vmem:[#allocation8 + $0xa8] sm:$0xff]
    %v3134 = vld [vmem:[#allocation8 + $0xb0] sm:$0xff]
    %v3135 = vld [vmem:[#allocation8 + $0xb8] sm:$0xff]
    %v3136 = vld [vmem:[#allocation8 + $0xc0] sm:$0xff]
    %v3137 = vld [vmem:[#allocation8 + $0xc8] sm:$0xff]
    %v3138 = vld [vmem:[#allocation8 + $0xd0] sm:$0xff]
    %v3139 = vld [vmem:[#allocation8 + $0xd8] sm:$0xff]
    %v3140 = vld [vmem:[#allocation8 + $0xe0] sm:$0xff]
    %v3141 = vld [vmem:[#allocation8 + $0xe8] sm:$0xff]
    %v3142 = vld [vmem:[#allocation8 + $0xf0] sm:$0xff]
    %v3143 = vld [vmem:[#allocation8 + $0xf8] sm:$0xff]
    %v3144 = vld [vmem:[#allocation8 + $0x100] sm:$0xff]
    %v3145 = vld [vmem:[#allocation8 + $0x108] sm:$0xff]
    %v3146 = vld [vmem:[#allocation8 + $0x110] sm:$0xff]
    %v3147 = vld [vmem:[#allocation8 + $0x118] sm:$0xff]
    %v3148 = vld [vmem:[#allocation8 + $0x120] sm:$0xff]
    %v3149 = vld [vmem:[#allocation8 + $0x128] sm:$0xff]
    %v3150 = vld [vmem:[#allocation8 + $0x130] sm:$0xff]
    %v3151 = vld [vmem:[#allocation8 + $0x138] sm:$0xff]
    %v3152 = vld [vmem:[#allocation8 + $0x140] sm:$0xff]
    %v3153 = vld [vmem:[#allocation8 + $0x148] sm:$0xff]
    %v3154 = vld [vmem:[#allocation8 + $0x150] sm:$0xff]
    %v3155 = vld [vmem:[#allocation8 + $0x158] sm:$0xff]
    %v3156 = vld [vmem:[#allocation8 + $0x160] sm:$0xff]
    %v3157 = vld [vmem:[#allocation8 + $0x168] sm:$0xff]
    %v3158 = vld [vmem:[#allocation8 + $0x170] sm:$0xff]
    %v3159 = vld [vmem:[#allocation8 + $0x178] sm:$0xff]
    %v3161 = vperm.slane %v3026, 0
    %v3162 = vperm.slane %v3026, 1
    %v3163 = vperm.slane %v3026, 2
    %3167 = vmatpush.msra.mxu0 %v3157
    %3168 = vmatpush.msra.mxu0 %v3154
    %3169 = vmatpush.msra.mxu0 %v3151
    %3170 = vmatpush.msra.mxu0 %v3148
    %3171 = vmatpush.msra.mxu0 %v3145
    %3172 = vmatpush.msra.mxu0 %v3142
    %3173 = vmatpush.msra.mxu0 %v3139
    %3174 = vmatpush.msra.mxu0 %v3136
    %3175 = vmatpush.msra.mxu0 %v3133
    %3176 = vmatpush.msra.mxu0 %v3130
    %3177 = vmatpush.msra.mxu0 %v3127
    %3178 = vmatpush.msra.mxu0 %v3124
    %3179 = vmatpush.msra.mxu0 %v3121
    %3180 = vmatpush.msra.mxu0 %v3118
    %3181 = vmatpush.msra.mxu0 %v3115
    %3182 = vmatpush.msra.mxu0 %v3112
    %3183 = vmatmul.f32.gmra.mxu0 %v2899
    %v3184 = vpop.f32.mrf.mxu0
    %v3185 = vadd.f32 %v3161, %v3184
    %3186 = vmatmul.f32.gmra.mxu0 %v2900
    %v3187 = vpop.f32.mrf.mxu0
    %v3188 = vadd.f32 %v3161, %v3187
    %3189 = vdwg.mxu0
    %3190 = vmatpush.msra.mxu0 %v3158
    %3191 = vmatpush.msra.mxu0 %v3155
    %3192 = vmatpush.msra.mxu0 %v3152
    %3193 = vmatpush.msra.mxu0 %v3149
    %3194 = vmatpush.msra.mxu0 %v3146
    %3195 = vmatpush.msra.mxu0 %v3143
    %3196 = vmatpush.msra.mxu0 %v3140
    %3197 = vmatpush.msra.mxu0 %v3137
    %3198 = vmatpush.msra.mxu0 %v3134
    %3199 = vmatpush.msra.mxu0 %v3131
    %3200 = vmatpush.msra.mxu0 %v3128
    %3201 = vmatpush.msra.mxu0 %v3125
    %3202 = vmatpush.msra.mxu0 %v3122
    %3203 = vmatpush.msra.mxu0 %v3119
    %3204 = vmatpush.msra.mxu0 %v3116
    %3205 = vmatpush.msra.mxu0 %v3113
    %3206 = vmatmul.f32.gmra.mxu0 %v2899
    %v3207 = vpop.f32.mrf.mxu0
    %v3208 = vadd.f32 %v3162, %v3207
    %3209 = vmatmul.f32.gmra.mxu0 %v2900
    %v3210 = vpop.f32.mrf.mxu0
    %v3211 = vadd.f32 %v3162, %v3210
    %3212 = vdwg.mxu0
    %3213 = vmatpush.msra.mxu0 %v3159
    %3214 = vmatpush.msra.mxu0 %v3156
    %3215 = vmatpush.msra.mxu0 %v3153
    %3216 = vmatpush.msra.mxu0 %v3150
    %3217 = vmatpush.msra.mxu0 %v3147
    %3218 = vmatpush.msra.mxu0 %v3144
    %3219 = vmatpush.msra.mxu0 %v3141
    %3220 = vmatpush.msra.mxu0 %v3138
    %3221 = vmatpush.msra.mxu0 %v3135
    %3222 = vmatpush.msra.mxu0 %v3132
    %3223 = vmatpush.msra.mxu0 %v3129
    %3224 = vmatpush.msra.mxu0 %v3126
    %3225 = vmatpush.msra.mxu0 %v3123
    %3226 = vmatpush.msra.mxu0 %v3120
    %3227 = vmatpush.msra.mxu0 %v3117
    %3228 = vmatpush.msra.mxu0 %v3114
    %3229 = vmatmul.f32.gmra.mxu0 %v2899
    %v3230 = vpop.f32.mrf.mxu0
    %v3231 = vadd.f32 %v3163, %v3230
    %3232 = vmatmul.f32.gmra.mxu0 %v2900
    %v3233 = vpop.f32.mrf.mxu0
    %v3234 = vadd.f32 %v3163, %v3233
    %3235 = vdwg.mxu0
    %v3236 = vadd.f32 %v3061, %v3185
    %v3237 = vadd.f32 %v3064, %v3188
    %v3238 = vxor.u32 %v3236, 2147483648
    %v3239 = vxor.u32 %v3237, 2147483648
    %v3240 = vmul.f32 %v3238, 1.442695
    %v3241 = vpow.pop %v3240
    %v3242 = vmul.f32 %v3239, 1.442695
    %v3243 = vpow.pop %v3242
    %v3244 = vadd.f32 %v3241, 1.0
    %v3245 = vadd.f32 %v3243, 1.0
    %v3246 = vrcp.pop %v3244
    %v3247 = vmul.f32 %v3244, %v3246
    %v3248 = vsub.f32 1.0, %v3247
    %v3249 = vmul.f32 %v3246, %v3248
    %v3250 = vadd.f32 %v3246, %v3249
    %vm3251 = vweird.f32 %v3244
    %vm3252 = vweird.f32 %v3246
    %vm3253 = vmor %vm3251, %vm3252
    %v3254 = vsel %vm3253, %v3246, %v3250
    %v3255 = vand.u32 2147483647, %v3244
    %vm3256 = vcmp.eq.f32.partialorder %v3255, 8.507059e+37
    %v3257 = vand.u32 %v3244, 2147483648
    %v3258 = vor.u32 1.1754944e-38, %v3257
    %v3259 = vsel %vm3256, %v3258, %v3254
    %v3260 = vmul.f32 1.0, %v3259
    %v3261 = vrcp.pop %v3245
    %v3262 = vmul.f32 %v3245, %v3261
    %v3263 = vsub.f32 1.0, %v3262
    %v3264 = vmul.f32 %v3261, %v3263
    %v3265 = vadd.f32 %v3261, %v3264
    %vm3266 = vweird.f32 %v3245
    %vm3267 = vweird.f32 %v3261
    %vm3268 = vmor %vm3266, %vm3267
    %v3269 = vsel %vm3268, %v3261, %v3265
    %v3270 = vand.u32 2147483647, %v3245
    %vm3271 = vcmp.eq.f32.partialorder %v3270, 8.507059e+37
    %v3272 = vand.u32 %v3245, 2147483648
    %v3273 = vor.u32 1.1754944e-38, %v3272
    %v3274 = vsel %vm3271, %v3273, %v3269
    %v3275 = vmul.f32 1.0, %v3274
    %v3276 = vadd.f32 %v3084, %v3208
    %v3277 = vadd.f32 %v3087, %v3211
    %v3278 = vxor.u32 %v3276, 2147483648
    %v3279 = vxor.u32 %v3277, 2147483648
    %v3280 = vmul.f32 %v3278, 1.442695
    %v3281 = vpow.pop %v3280
    %v3282 = vmul.f32 %v3279, 1.442695
    %v3283 = vpow.pop %v3282
    %v3284 = vadd.f32 %v3281, 1.0
    %v3285 = vadd.f32 %v3283, 1.0
    %v3286 = vrcp.pop %v3284
    %v3287 = vmul.f32 %v3284, %v3286
    %v3288 = vsub.f32 1.0, %v3287
    %v3289 = vmul.f32 %v3286, %v3288
    %v3290 = vadd.f32 %v3286, %v3289
    %vm3291 = vweird.f32 %v3284
    %vm3292 = vweird.f32 %v3286
    %vm3293 = vmor %vm3291, %vm3292
    %v3294 = vsel %vm3293, %v3286, %v3290
    %v3295 = vand.u32 2147483647, %v3284
    %vm3296 = vcmp.eq.f32.partialorder %v3295, 8.507059e+37
    %v3297 = vand.u32 %v3284, 2147483648
    %v3298 = vor.u32 1.1754944e-38, %v3297
    %v3299 = vsel %vm3296, %v3298, %v3294
    %v3300 = vmul.f32 1.0, %v3299
    %v3301 = vrcp.pop %v3285
    %v3302 = vmul.f32 %v3285, %v3301
    %v3303 = vsub.f32 1.0, %v3302
    %v3304 = vmul.f32 %v3301, %v3303
    %v3305 = vadd.f32 %v3301, %v3304
    %vm3306 = vweird.f32 %v3285
    %vm3307 = vweird.f32 %v3301
    %vm3308 = vmor %vm3306, %vm3307
    %v3309 = vsel %vm3308, %v3301, %v3305
    %v3310 = vand.u32 2147483647, %v3285
    %vm3311 = vcmp.eq.f32.partialorder %v3310, 8.507059e+37
    %v3312 = vand.u32 %v3285, 2147483648
    %v3313 = vor.u32 1.1754944e-38, %v3312
    %v3314 = vsel %vm3311, %v3313, %v3309
    %v3315 = vmul.f32 1.0, %v3314
    %v3316 = vmul.f32 %v3260, %v3231
    %v3317 = vmul.f32 %v3275, %v3234
    %v3318 = vadd.f32 %v3107, %v3316
    %v3319 = vadd.f32 %v3110, %v3317
    %v3320 = vtanh.pop %v3318
    %v3321 = vtanh.pop %v3319
    %v3322 = vsub.f32 1.0, %v3300
    %v3323 = vsub.f32 1.0, %v3315
    %v3324 = vmul.f32 %v3322, %v3320
    %v3325 = vmul.f32 %v3323, %v3321
    %v3326 = vmul.f32 %v3300, %v2899
    %v3327 = vmul.f32 %v3315, %v2900
    %v3328 = vadd.f32 %v3324, %v3326
    %v3329 = vadd.f32 %v3325, %v3327
    %v3331 = vsel %vm232, %v2939, 0
    %v3334 = vsel %vm232, %v2940, 0
    %3336 = vmatpush.msra.mxu0 0.0
    %3337 = vmatpush.msra.mxu0 0.0
    %3338 = vmatpush.msra.mxu0 0.0
    %3339 = vmatpush.msra.mxu0 0.0
    %3340 = vmatpush.msra.mxu0 0.0
    %3341 = vmatpush.msra.mxu0 0.0
    %3342 = vmatpush.msra.mxu0 0.0
    %3343 = vmatpush.msra.mxu0 0.0
    %3344 = vmatpush.msra.mxu0 0.0
    %3345 = vmatpush.msra.mxu0 0.0
    %3346 = vmatpush.msra.mxu0 0.0
    %3347 = vmatpush.msra.mxu0 0.0
    %3348 = vmatpush.msra.mxu0 0.0
    %3349 = vmatpush.msra.mxu0 0.0
    %3350 = vmatpush.msra.mxu0 0.0
    %3351 = vmatpush.msra.mxu0 %v3027
    %3352 = vmatmul.f32.gmra.mxu0 %v3331
    %v3353 = vpop.f32.mrf.mxu0
    %v3354 = vadd.f32 %v3031, %v3353
    %3355 = vmatmul.f32.gmra.mxu0 %v3334
    %v3356 = vpop.f32.mrf.mxu0
    %v3357 = vadd.f32 %v3031, %v3356
    %3358 = vdwg.mxu0
    %3359 = vmatpush.msra.mxu0 0.0
    %3360 = vmatpush.msra.mxu0 0.0
    %3361 = vmatpush.msra.mxu0 0.0
    %3362 = vmatpush.msra.mxu0 0.0
    %3363 = vmatpush.msra.mxu0 0.0
    %3364 = vmatpush.msra.mxu0 0.0
    %3365 = vmatpush.msra.mxu0 0.0
    %3366 = vmatpush.msra.mxu0 0.0
    %3367 = vmatpush.msra.mxu0 0.0
    %3368 = vmatpush.msra.mxu0 0.0
    %3369 = vmatpush.msra.mxu0 0.0
    %3370 = vmatpush.msra.mxu0 0.0
    %3371 = vmatpush.msra.mxu0 0.0
    %3372 = vmatpush.msra.mxu0 0.0
    %3373 = vmatpush.msra.mxu0 0.0
    %3374 = vmatpush.msra.mxu0 %v3028
    %3375 = vmatmul.f32.gmra.mxu0 %v3331
    %v3376 = vpop.f32.mrf.mxu0
    %v3377 = vadd.f32 %v3032, %v3376
    %3378 = vmatmul.f32.gmra.mxu0 %v3334
    %v3379 = vpop.f32.mrf.mxu0
    %v3380 = vadd.f32 %v3032, %v3379
    %3381 = vdwg.mxu0
    %3382 = vmatpush.msra.mxu0 0.0
    %3383 = vmatpush.msra.mxu0 0.0
    %3384 = vmatpush.msra.mxu0 0.0
    %3385 = vmatpush.msra.mxu0 0.0
    %3386 = vmatpush.msra.mxu0 0.0
    %3387 = vmatpush.msra.mxu0 0.0
    %3388 = vmatpush.msra.mxu0 0.0
    %3389 = vmatpush.msra.mxu0 0.0
    %3390 = vmatpush.msra.mxu0 0.0
    %3391 = vmatpush.msra.mxu0 0.0
    %3392 = vmatpush.msra.mxu0 0.0
    %3393 = vmatpush.msra.mxu0 0.0
    %3394 = vmatpush.msra.mxu0 0.0
    %3395 = vmatpush.msra.mxu0 0.0
    %3396 = vmatpush.msra.mxu0 0.0
    %3397 = vmatpush.msra.mxu0 %v3029
    %3398 = vmatmul.f32.gmra.mxu0 %v3331
    %v3399 = vpop.f32.mrf.mxu0
    %v3400 = vadd.f32 %v3033, %v3399
    %3401 = vmatmul.f32.gmra.mxu0 %v3334
    %v3402 = vpop.f32.mrf.mxu0
    %v3403 = vadd.f32 %v3033, %v3402
    %3404 = vdwg.mxu0
    %3405 = vmatpush.msra.mxu0 %v3157
    %3406 = vmatpush.msra.mxu0 %v3154
    %3407 = vmatpush.msra.mxu0 %v3151
    %3408 = vmatpush.msra.mxu0 %v3148
    %3409 = vmatpush.msra.mxu0 %v3145
    %3410 = vmatpush.msra.mxu0 %v3142
    %3411 = vmatpush.msra.mxu0 %v3139
    %3412 = vmatpush.msra.mxu0 %v3136
    %3413 = vmatpush.msra.mxu0 %v3133
    %3414 = vmatpush.msra.mxu0 %v3130
    %3415 = vmatpush.msra.mxu0 %v3127
    %3416 = vmatpush.msra.mxu0 %v3124
    %3417 = vmatpush.msra.mxu0 %v3121
    %3418 = vmatpush.msra.mxu0 %v3118
    %3419 = vmatpush.msra.mxu0 %v3115
    %3420 = vmatpush.msra.mxu0 %v3112
    %3421 = vmatmul.f32.gmra.mxu0 %v3328
    %v3422 = vpop.f32.mrf.mxu0
    %v3423 = vadd.f32 %v3161, %v3422
    %3424 = vmatmul.f32.gmra.mxu0 %v3329
    %v3425 = vpop.f32.mrf.mxu0
    %v3426 = vadd.f32 %v3161, %v3425
    %3427 = vdwg.mxu0
    %3428 = vmatpush.msra.mxu0 %v3158
    %3429 = vmatpush.msra.mxu0 %v3155
    %3430 = vmatpush.msra.mxu0 %v3152
    %3431 = vmatpush.msra.mxu0 %v3149
    %3432 = vmatpush.msra.mxu0 %v3146
    %3433 = vmatpush.msra.mxu0 %v3143
    %3434 = vmatpush.msra.mxu0 %v3140
    %3435 = vmatpush.msra.mxu0 %v3137
    %3436 = vmatpush.msra.mxu0 %v3134
    %3437 = vmatpush.msra.mxu0 %v3131
    %3438 = vmatpush.msra.mxu0 %v3128
    %3439 = vmatpush.msra.mxu0 %v3125
    %3440 = vmatpush.msra.mxu0 %v3122
    %3441 = vmatpush.msra.mxu0 %v3119
    %3442 = vmatpush.msra.mxu0 %v3116
    %3443 = vmatpush.msra.mxu0 %v3113
    %3444 = vmatmul.f32.gmra.mxu0 %v3328
    %v3445 = vpop.f32.mrf.mxu0
    %v3446 = vadd.f32 %v3162, %v3445
    %3447 = vmatmul.f32.gmra.mxu0 %v3329
    %v3448 = vpop.f32.mrf.mxu0
    %v3449 = vadd.f32 %v3162, %v3448
    %3450 = vdwg.mxu0
    %3451 = vmatpush.msra.mxu0 %v3159
    %3452 = vmatpush.msra.mxu0 %v3156
    %3453 = vmatpush.msra.mxu0 %v3153
    %3454 = vmatpush.msra.mxu0 %v3150
    %3455 = vmatpush.msra.mxu0 %v3147
    %3456 = vmatpush.msra.mxu0 %v3144
    %3457 = vmatpush.msra.mxu0 %v3141
    %3458 = vmatpush.msra.mxu0 %v3138
    %3459 = vmatpush.msra.mxu0 %v3135
    %3460 = vmatpush.msra.mxu0 %v3132
    %3461 = vmatpush.msra.mxu0 %v3129
    %3462 = vmatpush.msra.mxu0 %v3126
    %3463 = vmatpush.msra.mxu0 %v3123
    %3464 = vmatpush.msra.mxu0 %v3120
    %3465 = vmatpush.msra.mxu0 %v3117
    %3466 = vmatpush.msra.mxu0 %v3114
    %3467 = vmatmul.f32.gmra.mxu0 %v3328
    %v3468 = vpop.f32.mrf.mxu0
    %v3469 = vadd.f32 %v3163, %v3468
    %3470 = vmatmul.f32.gmra.mxu0 %v3329
    %v3471 = vpop.f32.mrf.mxu0
    %v3472 = vadd.f32 %v3163, %v3471
    %3473 = vdwg.mxu0
    %v3474 = vadd.f32 %v3354, %v3423
    %v3475 = vadd.f32 %v3357, %v3426
    %v3476 = vxor.u32 %v3474, 2147483648
    %v3477 = vxor.u32 %v3475, 2147483648
    %v3478 = vmul.f32 %v3476, 1.442695
    %v3479 = vpow.pop %v3478
    %v3480 = vmul.f32 %v3477, 1.442695
    %v3481 = vpow.pop %v3480
    %v3482 = vadd.f32 %v3479, 1.0
    %v3483 = vadd.f32 %v3481, 1.0
    %v3484 = vrcp.pop %v3482
    %v3485 = vmul.f32 %v3482, %v3484
    %v3486 = vsub.f32 1.0, %v3485
    %v3487 = vmul.f32 %v3484, %v3486
    %v3488 = vadd.f32 %v3484, %v3487
    %vm3489 = vweird.f32 %v3482
    %vm3490 = vweird.f32 %v3484
    %vm3491 = vmor %vm3489, %vm3490
    %v3492 = vsel %vm3491, %v3484, %v3488
    %v3493 = vand.u32 2147483647, %v3482
    %vm3494 = vcmp.eq.f32.partialorder %v3493, 8.507059e+37
    %v3495 = vand.u32 %v3482, 2147483648
    %v3496 = vor.u32 1.1754944e-38, %v3495
    %v3497 = vsel %vm3494, %v3496, %v3492
    %v3498 = vmul.f32 1.0, %v3497
    %v3499 = vrcp.pop %v3483
    %v3500 = vmul.f32 %v3483, %v3499
    %v3501 = vsub.f32 1.0, %v3500
    %v3502 = vmul.f32 %v3499, %v3501
    %v3503 = vadd.f32 %v3499, %v3502
    %vm3504 = vweird.f32 %v3483
    %vm3505 = vweird.f32 %v3499
    %vm3506 = vmor %vm3504, %vm3505
    %v3507 = vsel %vm3506, %v3499, %v3503
    %v3508 = vand.u32 2147483647, %v3483
    %vm3509 = vcmp.eq.f32.partialorder %v3508, 8.507059e+37
    %v3510 = vand.u32 %v3483, 2147483648
    %v3511 = vor.u32 1.1754944e-38, %v3510
    %v3512 = vsel %vm3509, %v3511, %v3507
    %v3513 = vmul.f32 1.0, %v3512
    %v3514 = vadd.f32 %v3377, %v3446
    %v3515 = vadd.f32 %v3380, %v3449
    %v3516 = vxor.u32 %v3514, 2147483648
    %v3517 = vxor.u32 %v3515, 2147483648
    %v3518 = vmul.f32 %v3516, 1.442695
    %v3519 = vpow.pop %v3518
    %v3520 = vmul.f32 %v3517, 1.442695
    %v3521 = vpow.pop %v3520
    %v3522 = vadd.f32 %v3519, 1.0
    %v3523 = vadd.f32 %v3521, 1.0
    %v3524 = vrcp.pop %v3522
    %v3525 = vmul.f32 %v3522, %v3524
    %v3526 = vsub.f32 1.0, %v3525
    %v3527 = vmul.f32 %v3524, %v3526
    %v3528 = vadd.f32 %v3524, %v3527
    %vm3529 = vweird.f32 %v3522
    %vm3530 = vweird.f32 %v3524
    %vm3531 = vmor %vm3529, %vm3530
    %v3532 = vsel %vm3531, %v3524, %v3528
    %v3533 = vand.u32 2147483647, %v3522
    %vm3534 = vcmp.eq.f32.partialorder %v3533, 8.507059e+37
    %v3535 = vand.u32 %v3522, 2147483648
    %v3536 = vor.u32 1.1754944e-38, %v3535
    %v3537 = vsel %vm3534, %v3536, %v3532
    %v3538 = vmul.f32 1.0, %v3537
    %v3539 = vrcp.pop %v3523
    %v3540 = vmul.f32 %v3523, %v3539
    %v3541 = vsub.f32 1.0, %v3540
    %v3542 = vmul.f32 %v3539, %v3541
    %v3543 = vadd.f32 %v3539, %v3542
    %vm3544 = vweird.f32 %v3523
    %vm3545 = vweird.f32 %v3539
    %vm3546 = vmor %vm3544, %vm3545
    %v3547 = vsel %vm3546, %v3539, %v3543
    %v3548 = vand.u32 2147483647, %v3523
    %vm3549 = vcmp.eq.f32.partialorder %v3548, 8.507059e+37
    %v3550 = vand.u32 %v3523, 2147483648
    %v3551 = vor.u32 1.1754944e-38, %v3550
    %v3552 = vsel %vm3549, %v3551, %v3547
    %v3553 = vmul.f32 1.0, %v3552
    %v3554 = vmul.f32 %v3498, %v3469
    %v3555 = vmul.f32 %v3513, %v3472
    %v3556 = vadd.f32 %v3400, %v3554
    %v3557 = vadd.f32 %v3403, %v3555
    %v3558 = vtanh.pop %v3556
    %v3559 = vtanh.pop %v3557
    %v3560 = vsub.f32 1.0, %v3538
    %v3561 = vsub.f32 1.0, %v3553
    %v3562 = vmul.f32 %v3560, %v3558
    %v3563 = vmul.f32 %v3561, %v3559
    %v3564 = vmul.f32 %v3538, %v3328
    %v3565 = vmul.f32 %v3553, %v3329
    %v3566 = vadd.f32 %v3562, %v3564
    %v3567 = vadd.f32 %v3563, %v3565
    %v3569 = vsel %vm232, %v2953, 0
    %v3572 = vsel %vm232, %v2954, 0
    %3574 = vmatpush.msra.mxu0 0.0
    %3575 = vmatpush.msra.mxu0 0.0
    %3576 = vmatpush.msra.mxu0 0.0
    %3577 = vmatpush.msra.mxu0 0.0
    %3578 = vmatpush.msra.mxu0 0.0
    %3579 = vmatpush.msra.mxu0 0.0
    %3580 = vmatpush.msra.mxu0 0.0
    %3581 = vmatpush.msra.mxu0 0.0
    %3582 = vmatpush.msra.mxu0 0.0
    %3583 = vmatpush.msra.mxu0 0.0
    %3584 = vmatpush.msra.mxu0 0.0
    %3585 = vmatpush.msra.mxu0 0.0
    %3586 = vmatpush.msra.mxu0 0.0
    %3587 = vmatpush.msra.mxu0 0.0
    %3588 = vmatpush.msra.mxu0 0.0
    %3589 = vmatpush.msra.mxu0 %v3027
    %3590 = vmatmul.f32.gmra.mxu0 %v3569
    %v3591 = vpop.f32.mrf.mxu0
    %v3592 = vadd.f32 %v3031, %v3591
    %3593 = vmatmul.f32.gmra.mxu0 %v3572
    %v3594 = vpop.f32.mrf.mxu0
    %v3595 = vadd.f32 %v3031, %v3594
    %3596 = vdwg.mxu0
    %3597 = vmatpush.msra.mxu0 0.0
    %3598 = vmatpush.msra.mxu0 0.0
    %3599 = vmatpush.msra.mxu0 0.0
    %3600 = vmatpush.msra.mxu0 0.0
    %3601 = vmatpush.msra.mxu0 0.0
    %3602 = vmatpush.msra.mxu0 0.0
    %3603 = vmatpush.msra.mxu0 0.0
    %3604 = vmatpush.msra.mxu0 0.0
    %3605 = vmatpush.msra.mxu0 0.0
    %3606 = vmatpush.msra.mxu0 0.0
    %3607 = vmatpush.msra.mxu0 0.0
    %3608 = vmatpush.msra.mxu0 0.0
    %3609 = vmatpush.msra.mxu0 0.0
    %3610 = vmatpush.msra.mxu0 0.0
    %3611 = vmatpush.msra.mxu0 0.0
    %3612 = vmatpush.msra.mxu0 %v3028
    %3613 = vmatmul.f32.gmra.mxu0 %v3569
    %v3614 = vpop.f32.mrf.mxu0
    %v3615 = vadd.f32 %v3032, %v3614
    %3616 = vmatmul.f32.gmra.mxu0 %v3572
    %v3617 = vpop.f32.mrf.mxu0
    %v3618 = vadd.f32 %v3032, %v3617
    %3619 = vdwg.mxu0
    %3620 = vmatpush.msra.mxu0 0.0
    %3621 = vmatpush.msra.mxu0 0.0
    %3622 = vmatpush.msra.mxu0 0.0
    %3623 = vmatpush.msra.mxu0 0.0
    %3624 = vmatpush.msra.mxu0 0.0
    %3625 = vmatpush.msra.mxu0 0.0
    %3626 = vmatpush.msra.mxu0 0.0
    %3627 = vmatpush.msra.mxu0 0.0
    %3628 = vmatpush.msra.mxu0 0.0
    %3629 = vmatpush.msra.mxu0 0.0
    %3630 = vmatpush.msra.mxu0 0.0
    %3631 = vmatpush.msra.mxu0 0.0
    %3632 = vmatpush.msra.mxu0 0.0
    %3633 = vmatpush.msra.mxu0 0.0
    %3634 = vmatpush.msra.mxu0 0.0
    %3635 = vmatpush.msra.mxu0 %v3029
    %3636 = vmatmul.f32.gmra.mxu0 %v3569
    %v3637 = vpop.f32.mrf.mxu0
    %v3638 = vadd.f32 %v3033, %v3637
    %3639 = vmatmul.f32.gmra.mxu0 %v3572
    %v3640 = vpop.f32.mrf.mxu0
    %v3641 = vadd.f32 %v3033, %v3640
    %3642 = vdwg.mxu0
    %3643 = vmatpush.msra.mxu0 %v3157
    %3644 = vmatpush.msra.mxu0 %v3154
    %3645 = vmatpush.msra.mxu0 %v3151
    %3646 = vmatpush.msra.mxu0 %v3148
    %3647 = vmatpush.msra.mxu0 %v3145
    %3648 = vmatpush.msra.mxu0 %v3142
    %3649 = vmatpush.msra.mxu0 %v3139
    %3650 = vmatpush.msra.mxu0 %v3136
    %3651 = vmatpush.msra.mxu0 %v3133
    %3652 = vmatpush.msra.mxu0 %v3130
    %3653 = vmatpush.msra.mxu0 %v3127
    %3654 = vmatpush.msra.mxu0 %v3124
    %3655 = vmatpush.msra.mxu0 %v3121
    %3656 = vmatpush.msra.mxu0 %v3118
    %3657 = vmatpush.msra.mxu0 %v3115
    %3658 = vmatpush.msra.mxu0 %v3112
    %3659 = vmatmul.f32.gmra.mxu0 %v3566
    %v3660 = vpop.f32.mrf.mxu0
    %v3661 = vadd.f32 %v3161, %v3660
    %3662 = vmatmul.f32.gmra.mxu0 %v3567
    %v3663 = vpop.f32.mrf.mxu0
    %v3664 = vadd.f32 %v3161, %v3663
    %3665 = vdwg.mxu0
    %3666 = vmatpush.msra.mxu0 %v3158
    %3667 = vmatpush.msra.mxu0 %v3155
    %3668 = vmatpush.msra.mxu0 %v3152
    %3669 = vmatpush.msra.mxu0 %v3149
    %3670 = vmatpush.msra.mxu0 %v3146
    %3671 = vmatpush.msra.mxu0 %v3143
    %3672 = vmatpush.msra.mxu0 %v3140
    %3673 = vmatpush.msra.mxu0 %v3137
    %3674 = vmatpush.msra.mxu0 %v3134
    %3675 = vmatpush.msra.mxu0 %v3131
    %3676 = vmatpush.msra.mxu0 %v3128
    %3677 = vmatpush.msra.mxu0 %v3125
    %3678 = vmatpush.msra.mxu0 %v3122
    %3679 = vmatpush.msra.mxu0 %v3119
    %3680 = vmatpush.msra.mxu0 %v3116
    %3681 = vmatpush.msra.mxu0 %v3113
    %3682 = vmatmul.f32.gmra.mxu0 %v3566
    %v3683 = vpop.f32.mrf.mxu0
    %v3684 = vadd.f32 %v3162, %v3683
    %3685 = vmatmul.f32.gmra.mxu0 %v3567
    %v3686 = vpop.f32.mrf.mxu0
    %v3687 = vadd.f32 %v3162, %v3686
    %3688 = vdwg.mxu0
    %3689 = vmatpush.msra.mxu0 %v3159
    %3690 = vmatpush.msra.mxu0 %v3156
    %3691 = vmatpush.msra.mxu0 %v3153
    %3692 = vmatpush.msra.mxu0 %v3150
    %3693 = vmatpush.msra.mxu0 %v3147
    %3694 = vmatpush.msra.mxu0 %v3144
    %3695 = vmatpush.msra.mxu0 %v3141
    %3696 = vmatpush.msra.mxu0 %v3138
    %3697 = vmatpush.msra.mxu0 %v3135
    %3698 = vmatpush.msra.mxu0 %v3132
    %3699 = vmatpush.msra.mxu0 %v3129
    %3700 = vmatpush.msra.mxu0 %v3126
    %3701 = vmatpush.msra.mxu0 %v3123
    %3702 = vmatpush.msra.mxu0 %v3120
    %3703 = vmatpush.msra.mxu0 %v3117
    %3704 = vmatpush.msra.mxu0 %v3114
    %3705 = vmatmul.f32.gmra.mxu0 %v3566
    %v3706 = vpop.f32.mrf.mxu0
    %v3707 = vadd.f32 %v3163, %v3706
    %3708 = vmatmul.f32.gmra.mxu0 %v3567
    %v3709 = vpop.f32.mrf.mxu0
    %v3710 = vadd.f32 %v3163, %v3709
    %3711 = vdwg.mxu0
    %v3712 = vadd.f32 %v3592, %v3661
    %v3713 = vadd.f32 %v3595, %v3664
    %v3714 = vxor.u32 %v3712, 2147483648
    %v3715 = vxor.u32 %v3713, 2147483648
    %v3716 = vmul.f32 %v3714, 1.442695
    %v3717 = vpow.pop %v3716
    %v3718 = vmul.f32 %v3715, 1.442695
    %v3719 = vpow.pop %v3718
    %v3720 = vadd.f32 %v3717, 1.0
    %v3721 = vadd.f32 %v3719, 1.0
    %v3722 = vrcp.pop %v3720
    %v3723 = vmul.f32 %v3720, %v3722
    %v3724 = vsub.f32 1.0, %v3723
    %v3725 = vmul.f32 %v3722, %v3724
    %v3726 = vadd.f32 %v3722, %v3725
    %vm3727 = vweird.f32 %v3720
    %vm3728 = vweird.f32 %v3722
    %vm3729 = vmor %vm3727, %vm3728
    %v3730 = vsel %vm3729, %v3722, %v3726
    %v3731 = vand.u32 2147483647, %v3720
    %vm3732 = vcmp.eq.f32.partialorder %v3731, 8.507059e+37
    %v3733 = vand.u32 %v3720, 2147483648
    %v3734 = vor.u32 1.1754944e-38, %v3733
    %v3735 = vsel %vm3732, %v3734, %v3730
    %v3736 = vmul.f32 1.0, %v3735
    %v3737 = vrcp.pop %v3721
    %v3738 = vmul.f32 %v3721, %v3737
    %v3739 = vsub.f32 1.0, %v3738
    %v3740 = vmul.f32 %v3737, %v3739
    %v3741 = vadd.f32 %v3737, %v3740
    %vm3742 = vweird.f32 %v3721
    %vm3743 = vweird.f32 %v3737
    %vm3744 = vmor %vm3742, %vm3743
    %v3745 = vsel %vm3744, %v3737, %v3741
    %v3746 = vand.u32 2147483647, %v3721
    %vm3747 = vcmp.eq.f32.partialorder %v3746, 8.507059e+37
    %v3748 = vand.u32 %v3721, 2147483648
    %v3749 = vor.u32 1.1754944e-38, %v3748
    %v3750 = vsel %vm3747, %v3749, %v3745
    %v3751 = vmul.f32 1.0, %v3750
    %v3752 = vadd.f32 %v3615, %v3684
    %v3753 = vadd.f32 %v3618, %v3687
    %v3754 = vxor.u32 %v3752, 2147483648
    %v3755 = vxor.u32 %v3753, 2147483648
    %v3756 = vmul.f32 %v3754, 1.442695
    %v3757 = vpow.pop %v3756
    %v3758 = vmul.f32 %v3755, 1.442695
    %v3759 = vpow.pop %v3758
    %v3760 = vadd.f32 %v3757, 1.0
    %v3761 = vadd.f32 %v3759, 1.0
    %v3762 = vrcp.pop %v3760
    %v3763 = vmul.f32 %v3760, %v3762
    %v3764 = vsub.f32 1.0, %v3763
    %v3765 = vmul.f32 %v3762, %v3764
    %v3766 = vadd.f32 %v3762, %v3765
    %vm3767 = vweird.f32 %v3760
    %vm3768 = vweird.f32 %v3762
    %vm3769 = vmor %vm3767, %vm3768
    %v3770 = vsel %vm3769, %v3762, %v3766
    %v3771 = vand.u32 2147483647, %v3760
    %vm3772 = vcmp.eq.f32.partialorder %v3771, 8.507059e+37
    %v3773 = vand.u32 %v3760, 2147483648
    %v3774 = vor.u32 1.1754944e-38, %v3773
    %v3775 = vsel %vm3772, %v3774, %v3770
    %v3776 = vmul.f32 1.0, %v3775
    %v3777 = vrcp.pop %v3761
    %v3778 = vmul.f32 %v3761, %v3777
    %v3779 = vsub.f32 1.0, %v3778
    %v3780 = vmul.f32 %v3777, %v3779
    %v3781 = vadd.f32 %v3777, %v3780
    %vm3782 = vweird.f32 %v3761
    %vm3783 = vweird.f32 %v3777
    %vm3784 = vmor %vm3782, %vm3783
    %v3785 = vsel %vm3784, %v3777, %v3781
    %v3786 = vand.u32 2147483647, %v3761
    %vm3787 = vcmp.eq.f32.partialorder %v3786, 8.507059e+37
    %v3788 = vand.u32 %v3761, 2147483648
    %v3789 = vor.u32 1.1754944e-38, %v3788
    %v3790 = vsel %vm3787, %v3789, %v3785
    %v3791 = vmul.f32 1.0, %v3790
    %v3792 = vmul.f32 %v3736, %v3707
    %v3793 = vmul.f32 %v3751, %v3710
    %v3794 = vadd.f32 %v3638, %v3792
    %v3795 = vadd.f32 %v3641, %v3793
    %v3796 = vtanh.pop %v3794
    %v3797 = vtanh.pop %v3795
    %v3798 = vsub.f32 1.0, %v3776
    %v3799 = vsub.f32 1.0, %v3791
    %v3800 = vmul.f32 %v3798, %v3796
    %v3801 = vmul.f32 %v3799, %v3797
    %v3802 = vmul.f32 %v3776, %v3566
    %v3803 = vmul.f32 %v3791, %v3567
    %v3804 = vadd.f32 %v3800, %v3802
    %v3805 = vadd.f32 %v3801, %v3803
    %v3807 = vsel %vm232, %v2967, 0
    %v3810 = vsel %vm232, %v2968, 0
    %3812 = vmatpush.msra.mxu0 0.0
    %3813 = vmatpush.msra.mxu0 0.0
    %3814 = vmatpush.msra.mxu0 0.0
    %3815 = vmatpush.msra.mxu0 0.0
    %3816 = vmatpush.msra.mxu0 0.0
    %3817 = vmatpush.msra.mxu0 0.0
    %3818 = vmatpush.msra.mxu0 0.0
    %3819 = vmatpush.msra.mxu0 0.0
    %3820 = vmatpush.msra.mxu0 0.0
    %3821 = vmatpush.msra.mxu0 0.0
    %3822 = vmatpush.msra.mxu0 0.0
    %3823 = vmatpush.msra.mxu0 0.0
    %3824 = vmatpush.msra.mxu0 0.0
    %3825 = vmatpush.msra.mxu0 0.0
    %3826 = vmatpush.msra.mxu0 0.0
    %3827 = vmatpush.msra.mxu0 %v3027
    %3828 = vmatmul.f32.gmra.mxu0 %v3807
    %v3829 = vpop.f32.mrf.mxu0
    %v3830 = vadd.f32 %v3031, %v3829
    %3831 = vmatmul.f32.gmra.mxu0 %v3810
    %v3832 = vpop.f32.mrf.mxu0
    %v3833 = vadd.f32 %v3031, %v3832
    %3834 = vdwg.mxu0
    %3835 = vmatpush.msra.mxu0 0.0
    %3836 = vmatpush.msra.mxu0 0.0
    %3837 = vmatpush.msra.mxu0 0.0
    %3838 = vmatpush.msra.mxu0 0.0
    %3839 = vmatpush.msra.mxu0 0.0
    %3840 = vmatpush.msra.mxu0 0.0
    %3841 = vmatpush.msra.mxu0 0.0
    %3842 = vmatpush.msra.mxu0 0.0
    %3843 = vmatpush.msra.mxu0 0.0
    %3844 = vmatpush.msra.mxu0 0.0
    %3845 = vmatpush.msra.mxu0 0.0
    %3846 = vmatpush.msra.mxu0 0.0
    %3847 = vmatpush.msra.mxu0 0.0
    %3848 = vmatpush.msra.mxu0 0.0
    %3849 = vmatpush.msra.mxu0 0.0
    %3850 = vmatpush.msra.mxu0 %v3028
    %3851 = vmatmul.f32.gmra.mxu0 %v3807
    %v3852 = vpop.f32.mrf.mxu0
    %v3853 = vadd.f32 %v3032, %v3852
    %3854 = vmatmul.f32.gmra.mxu0 %v3810
    %v3855 = vpop.f32.mrf.mxu0
    %v3856 = vadd.f32 %v3032, %v3855
    %3857 = vdwg.mxu0
    %3858 = vmatpush.msra.mxu0 0.0
    %3859 = vmatpush.msra.mxu0 0.0
    %3860 = vmatpush.msra.mxu0 0.0
    %3861 = vmatpush.msra.mxu0 0.0
    %3862 = vmatpush.msra.mxu0 0.0
    %3863 = vmatpush.msra.mxu0 0.0
    %3864 = vmatpush.msra.mxu0 0.0
    %3865 = vmatpush.msra.mxu0 0.0
    %3866 = vmatpush.msra.mxu0 0.0
    %3867 = vmatpush.msra.mxu0 0.0
    %3868 = vmatpush.msra.mxu0 0.0
    %3869 = vmatpush.msra.mxu0 0.0
    %3870 = vmatpush.msra.mxu0 0.0
    %3871 = vmatpush.msra.mxu0 0.0
    %3872 = vmatpush.msra.mxu0 0.0
    %3873 = vmatpush.msra.mxu0 %v3029
    %3874 = vmatmul.f32.gmra.mxu0 %v3807
    %v3875 = vpop.f32.mrf.mxu0
    %v3876 = vadd.f32 %v3033, %v3875
    %3877 = vmatmul.f32.gmra.mxu0 %v3810
    %v3878 = vpop.f32.mrf.mxu0
    %v3879 = vadd.f32 %v3033, %v3878
    %3880 = vdwg.mxu0
    %3881 = vmatpush.msra.mxu0 %v3157
    %3882 = vmatpush.msra.mxu0 %v3154
    %3883 = vmatpush.msra.mxu0 %v3151
    %3884 = vmatpush.msra.mxu0 %v3148
    %3885 = vmatpush.msra.mxu0 %v3145
    %3886 = vmatpush.msra.mxu0 %v3142
    %3887 = vmatpush.msra.mxu0 %v3139
    %3888 = vmatpush.msra.mxu0 %v3136
    %3889 = vmatpush.msra.mxu0 %v3133
    %3890 = vmatpush.msra.mxu0 %v3130
    %3891 = vmatpush.msra.mxu0 %v3127
    %3892 = vmatpush.msra.mxu0 %v3124
    %3893 = vmatpush.msra.mxu0 %v3121
    %3894 = vmatpush.msra.mxu0 %v3118
    %3895 = vmatpush.msra.mxu0 %v3115
    %3896 = vmatpush.msra.mxu0 %v3112
    %3897 = vmatmul.f32.gmra.mxu0 %v3804
    %v3898 = vpop.f32.mrf.mxu0
    %v3899 = vadd.f32 %v3161, %v3898
    %3900 = vmatmul.f32.gmra.mxu0 %v3805
    %v3901 = vpop.f32.mrf.mxu0
    %v3902 = vadd.f32 %v3161, %v3901
    %3903 = vdwg.mxu0
    %3904 = vmatpush.msra.mxu0 %v3158
    %3905 = vmatpush.msra.mxu0 %v3155
    %3906 = vmatpush.msra.mxu0 %v3152
    %3907 = vmatpush.msra.mxu0 %v3149
    %3908 = vmatpush.msra.mxu0 %v3146
    %3909 = vmatpush.msra.mxu0 %v3143
    %3910 = vmatpush.msra.mxu0 %v3140
    %3911 = vmatpush.msra.mxu0 %v3137
    %3912 = vmatpush.msra.mxu0 %v3134
    %3913 = vmatpush.msra.mxu0 %v3131
    %3914 = vmatpush.msra.mxu0 %v3128
    %3915 = vmatpush.msra.mxu0 %v3125
    %3916 = vmatpush.msra.mxu0 %v3122
    %3917 = vmatpush.msra.mxu0 %v3119
    %3918 = vmatpush.msra.mxu0 %v3116
    %3919 = vmatpush.msra.mxu0 %v3113
    %3920 = vmatmul.f32.gmra.mxu0 %v3804
    %v3921 = vpop.f32.mrf.mxu0
    %v3922 = vadd.f32 %v3162, %v3921
    %3923 = vmatmul.f32.gmra.mxu0 %v3805
    %v3924 = vpop.f32.mrf.mxu0
    %v3925 = vadd.f32 %v3162, %v3924
    %3926 = vdwg.mxu0
    %3927 = vmatpush.msra.mxu0 %v3159
    %3928 = vmatpush.msra.mxu0 %v3156
    %3929 = vmatpush.msra.mxu0 %v3153
    %3930 = vmatpush.msra.mxu0 %v3150
    %3931 = vmatpush.msra.mxu0 %v3147
    %3932 = vmatpush.msra.mxu0 %v3144
    %3933 = vmatpush.msra.mxu0 %v3141
    %3934 = vmatpush.msra.mxu0 %v3138
    %3935 = vmatpush.msra.mxu0 %v3135
    %3936 = vmatpush.msra.mxu0 %v3132
    %3937 = vmatpush.msra.mxu0 %v3129
    %3938 = vmatpush.msra.mxu0 %v3126
    %3939 = vmatpush.msra.mxu0 %v3123
    %3940 = vmatpush.msra.mxu0 %v3120
    %3941 = vmatpush.msra.mxu0 %v3117
    %3942 = vmatpush.msra.mxu0 %v3114
    %3943 = vmatmul.f32.gmra.mxu0 %v3804
    %v3944 = vpop.f32.mrf.mxu0
    %v3945 = vadd.f32 %v3163, %v3944
    %3946 = vmatmul.f32.gmra.mxu0 %v3805
    %v3947 = vpop.f32.mrf.mxu0
    %v3948 = vadd.f32 %v3163, %v3947
    %3949 = vdwg.mxu0
    %v3950 = vadd.f32 %v3830, %v3899
    %v3951 = vadd.f32 %v3833, %v3902
    %v3952 = vxor.u32 %v3950, 2147483648
    %v3953 = vxor.u32 %v3951, 2147483648
    %v3954 = vmul.f32 %v3952, 1.442695
    %v3955 = vpow.pop %v3954
    %v3956 = vmul.f32 %v3953, 1.442695
    %v3957 = vpow.pop %v3956
    %v3958 = vadd.f32 %v3955, 1.0
    %v3959 = vadd.f32 %v3957, 1.0
    %v3960 = vrcp.pop %v3958
    %v3961 = vmul.f32 %v3958, %v3960
    %v3962 = vsub.f32 1.0, %v3961
    %v3963 = vmul.f32 %v3960, %v3962
    %v3964 = vadd.f32 %v3960, %v3963
    %vm3965 = vweird.f32 %v3958
    %vm3966 = vweird.f32 %v3960
    %vm3967 = vmor %vm3965, %vm3966
    %v3968 = vsel %vm3967, %v3960, %v3964
    %v3969 = vand.u32 2147483647, %v3958
    %vm3970 = vcmp.eq.f32.partialorder %v3969, 8.507059e+37
    %v3971 = vand.u32 %v3958, 2147483648
    %v3972 = vor.u32 1.1754944e-38, %v3971
    %v3973 = vsel %vm3970, %v3972, %v3968
    %v3974 = vmul.f32 1.0, %v3973
    %v3975 = vrcp.pop %v3959
    %v3976 = vmul.f32 %v3959, %v3975
    %v3977 = vsub.f32 1.0, %v3976
    %v3978 = vmul.f32 %v3975, %v3977
    %v3979 = vadd.f32 %v3975, %v3978
    %vm3980 = vweird.f32 %v3959
    %vm3981 = vweird.f32 %v3975
    %vm3982 = vmor %vm3980, %vm3981
    %v3983 = vsel %vm3982, %v3975, %v3979
    %v3984 = vand.u32 2147483647, %v3959
    %vm3985 = vcmp.eq.f32.partialorder %v3984, 8.507059e+37
    %v3986 = vand.u32 %v3959, 2147483648
    %v3987 = vor.u32 1.1754944e-38, %v3986
    %v3988 = vsel %vm3985, %v3987, %v3983
    %v3989 = vmul.f32 1.0, %v3988
    %v3990 = vadd.f32 %v3853, %v3922
    %v3991 = vadd.f32 %v3856, %v3925
    %v3992 = vxor.u32 %v3990, 2147483648
    %v3993 = vxor.u32 %v3991, 2147483648
    %v3994 = vmul.f32 %v3992, 1.442695
    %v3995 = vpow.pop %v3994
    %v3996 = vmul.f32 %v3993, 1.442695
    %v3997 = vpow.pop %v3996
    %v3998 = vadd.f32 %v3995, 1.0
    %v3999 = vadd.f32 %v3997, 1.0
    %v4000 = vrcp.pop %v3998
    %v4001 = vmul.f32 %v3998, %v4000
    %v4002 = vsub.f32 1.0, %v4001
    %v4003 = vmul.f32 %v4000, %v4002
    %v4004 = vadd.f32 %v4000, %v4003
    %vm4005 = vweird.f32 %v3998
    %vm4006 = vweird.f32 %v4000
    %vm4007 = vmor %vm4005, %vm4006
    %v4008 = vsel %vm4007, %v4000, %v4004
    %v4009 = vand.u32 2147483647, %v3998
    %vm4010 = vcmp.eq.f32.partialorder %v4009, 8.507059e+37
    %v4011 = vand.u32 %v3998, 2147483648
    %v4012 = vor.u32 1.1754944e-38, %v4011
    %v4013 = vsel %vm4010, %v4012, %v4008
    %v4014 = vmul.f32 1.0, %v4013
    %v4015 = vrcp.pop %v3999
    %v4016 = vmul.f32 %v3999, %v4015
    %v4017 = vsub.f32 1.0, %v4016
    %v4018 = vmul.f32 %v4015, %v4017
    %v4019 = vadd.f32 %v4015, %v4018
    %vm4020 = vweird.f32 %v3999
    %vm4021 = vweird.f32 %v4015
    %vm4022 = vmor %vm4020, %vm4021
    %v4023 = vsel %vm4022, %v4015, %v4019
    %v4024 = vand.u32 2147483647, %v3999
    %vm4025 = vcmp.eq.f32.partialorder %v4024, 8.507059e+37
    %v4026 = vand.u32 %v3999, 2147483648
    %v4027 = vor.u32 1.1754944e-38, %v4026
    %v4028 = vsel %vm4025, %v4027, %v4023
    %v4029 = vmul.f32 1.0, %v4028
    %v4030 = vmul.f32 %v3974, %v3945
    %v4031 = vmul.f32 %v3989, %v3948
    %v4032 = vadd.f32 %v3876, %v4030
    %v4033 = vadd.f32 %v3879, %v4031
    %v4034 = vtanh.pop %v4032
    %v4035 = vtanh.pop %v4033
    %v4036 = vsub.f32 1.0, %v4014
    %v4037 = vsub.f32 1.0, %v4029
    %v4038 = vmul.f32 %v4036, %v4034
    %v4039 = vmul.f32 %v4037, %v4035
    %v4040 = vmul.f32 %v4014, %v3804
    %v4041 = vmul.f32 %v4029, %v3805
    %v4042 = vadd.f32 %v4038, %v4040
    %v4043 = vadd.f32 %v4039, %v4041
    %v4045 = vsel %vm232, %v2981, 0
    %v4048 = vsel %vm232, %v2982, 0
    %4050 = vmatpush.msra.mxu0 0.0
    %4051 = vmatpush.msra.mxu0 0.0
    %4052 = vmatpush.msra.mxu0 0.0
    %4053 = vmatpush.msra.mxu0 0.0
    %4054 = vmatpush.msra.mxu0 0.0
    %4055 = vmatpush.msra.mxu0 0.0
    %4056 = vmatpush.msra.mxu0 0.0
    %4057 = vmatpush.msra.mxu0 0.0
    %4058 = vmatpush.msra.mxu0 0.0
    %4059 = vmatpush.msra.mxu0 0.0
    %4060 = vmatpush.msra.mxu0 0.0
    %4061 = vmatpush.msra.mxu0 0.0
    %4062 = vmatpush.msra.mxu0 0.0
    %4063 = vmatpush.msra.mxu0 0.0
    %4064 = vmatpush.msra.mxu0 0.0
    %4065 = vmatpush.msra.mxu0 %v3027
    %4066 = vmatmul.f32.gmra.mxu0 %v4045
    %v4067 = vpop.f32.mrf.mxu0
    %v4068 = vadd.f32 %v3031, %v4067
    %4069 = vmatmul.f32.gmra.mxu0 %v4048
    %v4070 = vpop.f32.mrf.mxu0
    %v4071 = vadd.f32 %v3031, %v4070
    %4072 = vdwg.mxu0
    %4073 = vmatpush.msra.mxu0 0.0
    %4074 = vmatpush.msra.mxu0 0.0
    %4075 = vmatpush.msra.mxu0 0.0
    %4076 = vmatpush.msra.mxu0 0.0
    %4077 = vmatpush.msra.mxu0 0.0
    %4078 = vmatpush.msra.mxu0 0.0
    %4079 = vmatpush.msra.mxu0 0.0
    %4080 = vmatpush.msra.mxu0 0.0
    %4081 = vmatpush.msra.mxu0 0.0
    %4082 = vmatpush.msra.mxu0 0.0
    %4083 = vmatpush.msra.mxu0 0.0
    %4084 = vmatpush.msra.mxu0 0.0
    %4085 = vmatpush.msra.mxu0 0.0
    %4086 = vmatpush.msra.mxu0 0.0
    %4087 = vmatpush.msra.mxu0 0.0
    %4088 = vmatpush.msra.mxu0 %v3028
    %4089 = vmatmul.f32.gmra.mxu0 %v4045
    %v4090 = vpop.f32.mrf.mxu0
    %v4091 = vadd.f32 %v3032, %v4090
    %4092 = vmatmul.f32.gmra.mxu0 %v4048
    %v4093 = vpop.f32.mrf.mxu0
    %v4094 = vadd.f32 %v3032, %v4093
    %4095 = vdwg.mxu0
    %4096 = vmatpush.msra.mxu0 0.0
    %4097 = vmatpush.msra.mxu0 0.0
    %4098 = vmatpush.msra.mxu0 0.0
    %4099 = vmatpush.msra.mxu0 0.0
    %4100 = vmatpush.msra.mxu0 0.0
    %4101 = vmatpush.msra.mxu0 0.0
    %4102 = vmatpush.msra.mxu0 0.0
    %4103 = vmatpush.msra.mxu0 0.0
    %4104 = vmatpush.msra.mxu0 0.0
    %4105 = vmatpush.msra.mxu0 0.0
    %4106 = vmatpush.msra.mxu0 0.0
    %4107 = vmatpush.msra.mxu0 0.0
    %4108 = vmatpush.msra.mxu0 0.0
    %4109 = vmatpush.msra.mxu0 0.0
    %4110 = vmatpush.msra.mxu0 0.0
    %4111 = vmatpush.msra.mxu0 %v3029
    %4112 = vmatmul.f32.gmra.mxu0 %v4045
    %v4113 = vpop.f32.mrf.mxu0
    %v4114 = vadd.f32 %v3033, %v4113
    %4115 = vmatmul.f32.gmra.mxu0 %v4048
    %v4116 = vpop.f32.mrf.mxu0
    %v4117 = vadd.f32 %v3033, %v4116
    %4118 = vdwg.mxu0
    %4119 = vmatpush.msra.mxu0 %v3157
    %4120 = vmatpush.msra.mxu0 %v3154
    %4121 = vmatpush.msra.mxu0 %v3151
    %4122 = vmatpush.msra.mxu0 %v3148
    %4123 = vmatpush.msra.mxu0 %v3145
    %4124 = vmatpush.msra.mxu0 %v3142
    %4125 = vmatpush.msra.mxu0 %v3139
    %4126 = vmatpush.msra.mxu0 %v3136
    %4127 = vmatpush.msra.mxu0 %v3133
    %4128 = vmatpush.msra.mxu0 %v3130
    %4129 = vmatpush.msra.mxu0 %v3127
    %4130 = vmatpush.msra.mxu0 %v3124
    %4131 = vmatpush.msra.mxu0 %v3121
    %4132 = vmatpush.msra.mxu0 %v3118
    %4133 = vmatpush.msra.mxu0 %v3115
    %4134 = vmatpush.msra.mxu0 %v3112
    %4135 = vmatmul.f32.gmra.mxu0 %v4042
    %v4136 = vpop.f32.mrf.mxu0
    %v4137 = vadd.f32 %v3161, %v4136
    %4138 = vmatmul.f32.gmra.mxu0 %v4043
    %v4139 = vpop.f32.mrf.mxu0
    %v4140 = vadd.f32 %v3161, %v4139
    %4141 = vdwg.mxu0
    %4142 = vmatpush.msra.mxu0 %v3158
    %4143 = vmatpush.msra.mxu0 %v3155
    %4144 = vmatpush.msra.mxu0 %v3152
    %4145 = vmatpush.msra.mxu0 %v3149
    %4146 = vmatpush.msra.mxu0 %v3146
    %4147 = vmatpush.msra.mxu0 %v3143
    %4148 = vmatpush.msra.mxu0 %v3140
    %4149 = vmatpush.msra.mxu0 %v3137
    %4150 = vmatpush.msra.mxu0 %v3134
    %4151 = vmatpush.msra.mxu0 %v3131
    %4152 = vmatpush.msra.mxu0 %v3128
    %4153 = vmatpush.msra.mxu0 %v3125
    %4154 = vmatpush.msra.mxu0 %v3122
    %4155 = vmatpush.msra.mxu0 %v3119
    %4156 = vmatpush.msra.mxu0 %v3116
    %4157 = vmatpush.msra.mxu0 %v3113
    %4158 = vmatmul.f32.gmra.mxu0 %v4042
    %v4159 = vpop.f32.mrf.mxu0
    %v4160 = vadd.f32 %v3162, %v4159
    %4161 = vmatmul.f32.gmra.mxu0 %v4043
    %v4162 = vpop.f32.mrf.mxu0
    %v4163 = vadd.f32 %v3162, %v4162
    %4164 = vdwg.mxu0
    %4165 = vmatpush.msra.mxu0 %v3159
    %4166 = vmatpush.msra.mxu0 %v3156
    %4167 = vmatpush.msra.mxu0 %v3153
    %4168 = vmatpush.msra.mxu0 %v3150
    %4169 = vmatpush.msra.mxu0 %v3147
    %4170 = vmatpush.msra.mxu0 %v3144
    %4171 = vmatpush.msra.mxu0 %v3141
    %4172 = vmatpush.msra.mxu0 %v3138
    %4173 = vmatpush.msra.mxu0 %v3135
    %4174 = vmatpush.msra.mxu0 %v3132
    %4175 = vmatpush.msra.mxu0 %v3129
    %4176 = vmatpush.msra.mxu0 %v3126
    %4177 = vmatpush.msra.mxu0 %v3123
    %4178 = vmatpush.msra.mxu0 %v3120
    %4179 = vmatpush.msra.mxu0 %v3117
    %4180 = vmatpush.msra.mxu0 %v3114
    %4181 = vmatmul.f32.gmra.mxu0 %v4042
    %v4182 = vpop.f32.mrf.mxu0
    %v4183 = vadd.f32 %v3163, %v4182
    %4184 = vmatmul.f32.gmra.mxu0 %v4043
    %v4185 = vpop.f32.mrf.mxu0
    %v4186 = vadd.f32 %v3163, %v4185
    %4187 = vdwg.mxu0
    %v4188 = vadd.f32 %v4068, %v4137
    %v4189 = vadd.f32 %v4071, %v4140
    %v4190 = vxor.u32 %v4188, 2147483648
    %v4191 = vxor.u32 %v4189, 2147483648
    %v4192 = vmul.f32 %v4190, 1.442695
    %v4193 = vpow.pop %v4192
    %v4194 = vmul.f32 %v4191, 1.442695
    %v4195 = vpow.pop %v4194
    %v4196 = vadd.f32 %v4193, 1.0
    %v4197 = vadd.f32 %v4195, 1.0
    %v4198 = vrcp.pop %v4196
    %v4199 = vmul.f32 %v4196, %v4198
    %v4200 = vsub.f32 1.0, %v4199
    %v4201 = vmul.f32 %v4198, %v4200
    %v4202 = vadd.f32 %v4198, %v4201
    %vm4203 = vweird.f32 %v4196
    %vm4204 = vweird.f32 %v4198
    %vm4205 = vmor %vm4203, %vm4204
    %v4206 = vsel %vm4205, %v4198, %v4202
    %v4207 = vand.u32 2147483647, %v4196
    %vm4208 = vcmp.eq.f32.partialorder %v4207, 8.507059e+37
    %v4209 = vand.u32 %v4196, 2147483648
    %v4210 = vor.u32 1.1754944e-38, %v4209
    %v4211 = vsel %vm4208, %v4210, %v4206
    %v4212 = vmul.f32 1.0, %v4211
    %v4213 = vrcp.pop %v4197
    %v4214 = vmul.f32 %v4197, %v4213
    %v4215 = vsub.f32 1.0, %v4214
    %v4216 = vmul.f32 %v4213, %v4215
    %v4217 = vadd.f32 %v4213, %v4216
    %vm4218 = vweird.f32 %v4197
    %vm4219 = vweird.f32 %v4213
    %vm4220 = vmor %vm4218, %vm4219
    %v4221 = vsel %vm4220, %v4213, %v4217
    %v4222 = vand.u32 2147483647, %v4197
    %vm4223 = vcmp.eq.f32.partialorder %v4222, 8.507059e+37
    %v4224 = vand.u32 %v4197, 2147483648
    %v4225 = vor.u32 1.1754944e-38, %v4224
    %v4226 = vsel %vm4223, %v4225, %v4221
    %v4227 = vmul.f32 1.0, %v4226
    %v4228 = vadd.f32 %v4091, %v4160
    %v4229 = vadd.f32 %v4094, %v4163
    %v4230 = vxor.u32 %v4228, 2147483648
    %v4231 = vxor.u32 %v4229, 2147483648
    %v4232 = vmul.f32 %v4230, 1.442695
    %v4233 = vpow.pop %v4232
    %v4234 = vmul.f32 %v4231, 1.442695
    %v4235 = vpow.pop %v4234
    %v4236 = vadd.f32 %v4233, 1.0
    %v4237 = vadd.f32 %v4235, 1.0
    %v4238 = vrcp.pop %v4236
    %v4239 = vmul.f32 %v4236, %v4238
    %v4240 = vsub.f32 1.0, %v4239
    %v4241 = vmul.f32 %v4238, %v4240
    %v4242 = vadd.f32 %v4238, %v4241
    %vm4243 = vweird.f32 %v4236
    %vm4244 = vweird.f32 %v4238
    %vm4245 = vmor %vm4243, %vm4244
    %v4246 = vsel %vm4245, %v4238, %v4242
    %v4247 = vand.u32 2147483647, %v4236
    %vm4248 = vcmp.eq.f32.partialorder %v4247, 8.507059e+37
    %v4249 = vand.u32 %v4236, 2147483648
    %v4250 = vor.u32 1.1754944e-38, %v4249
    %v4251 = vsel %vm4248, %v4250, %v4246
    %v4252 = vmul.f32 1.0, %v4251
    %v4253 = vrcp.pop %v4237
    %v4254 = vmul.f32 %v4237, %v4253
    %v4255 = vsub.f32 1.0, %v4254
    %v4256 = vmul.f32 %v4253, %v4255
    %v4257 = vadd.f32 %v4253, %v4256
    %vm4258 = vweird.f32 %v4237
    %vm4259 = vweird.f32 %v4253
    %vm4260 = vmor %vm4258, %vm4259
    %v4261 = vsel %vm4260, %v4253, %v4257
    %v4262 = vand.u32 2147483647, %v4237
    %vm4263 = vcmp.eq.f32.partialorder %v4262, 8.507059e+37
    %v4264 = vand.u32 %v4237, 2147483648
    %v4265 = vor.u32 1.1754944e-38, %v4264
    %v4266 = vsel %vm4263, %v4265, %v4261
    %v4267 = vmul.f32 1.0, %v4266
    %v4268 = vmul.f32 %v4212, %v4183
    %v4269 = vmul.f32 %v4227, %v4186
    %v4270 = vadd.f32 %v4114, %v4268
    %v4271 = vadd.f32 %v4117, %v4269
    %v4272 = vtanh.pop %v4270
    %v4273 = vtanh.pop %v4271
    %v4274 = vsub.f32 1.0, %v4252
    %v4275 = vsub.f32 1.0, %v4267
    %v4276 = vmul.f32 %v4274, %v4272
    %v4277 = vmul.f32 %v4275, %v4273
    %v4278 = vmul.f32 %v4252, %v4042
    %v4279 = vmul.f32 %v4267, %v4043
    %v4280 = vadd.f32 %v4276, %v4278
    %v4281 = vadd.f32 %v4277, %v4279
    %v4283 = vsel %vm232, %v2995, 0
    %v4286 = vsel %vm232, %v2996, 0
    %4288 = vmatpush.msra.mxu0 0.0
    %4289 = vmatpush.msra.mxu0 0.0
    %4290 = vmatpush.msra.mxu0 0.0
    %4291 = vmatpush.msra.mxu0 0.0
    %4292 = vmatpush.msra.mxu0 0.0
    %4293 = vmatpush.msra.mxu0 0.0
    %4294 = vmatpush.msra.mxu0 0.0
    %4295 = vmatpush.msra.mxu0 0.0
    %4296 = vmatpush.msra.mxu0 0.0
    %4297 = vmatpush.msra.mxu0 0.0
    %4298 = vmatpush.msra.mxu0 0.0
    %4299 = vmatpush.msra.mxu0 0.0
    %4300 = vmatpush.msra.mxu0 0.0
    %4301 = vmatpush.msra.mxu0 0.0
    %4302 = vmatpush.msra.mxu0 0.0
    %4303 = vmatpush.msra.mxu0 %v3027
    %4304 = vmatmul.f32.gmra.mxu0 %v4283
    %v4305 = vpop.f32.mrf.mxu0
    %v4306 = vadd.f32 %v3031, %v4305
    %4307 = vmatmul.f32.gmra.mxu0 %v4286
    %v4308 = vpop.f32.mrf.mxu0
    %v4309 = vadd.f32 %v3031, %v4308
    %4310 = vdwg.mxu0
    %4311 = vmatpush.msra.mxu0 0.0
    %4312 = vmatpush.msra.mxu0 0.0
    %4313 = vmatpush.msra.mxu0 0.0
    %4314 = vmatpush.msra.mxu0 0.0
    %4315 = vmatpush.msra.mxu0 0.0
    %4316 = vmatpush.msra.mxu0 0.0
    %4317 = vmatpush.msra.mxu0 0.0
    %4318 = vmatpush.msra.mxu0 0.0
    %4319 = vmatpush.msra.mxu0 0.0
    %4320 = vmatpush.msra.mxu0 0.0
    %4321 = vmatpush.msra.mxu0 0.0
    %4322 = vmatpush.msra.mxu0 0.0
    %4323 = vmatpush.msra.mxu0 0.0
    %4324 = vmatpush.msra.mxu0 0.0
    %4325 = vmatpush.msra.mxu0 0.0
    %4326 = vmatpush.msra.mxu0 %v3028
    %4327 = vmatmul.f32.gmra.mxu0 %v4283
    %v4328 = vpop.f32.mrf.mxu0
    %v4329 = vadd.f32 %v3032, %v4328
    %4330 = vmatmul.f32.gmra.mxu0 %v4286
    %v4331 = vpop.f32.mrf.mxu0
    %v4332 = vadd.f32 %v3032, %v4331
    %4333 = vdwg.mxu0
    %4334 = vmatpush.msra.mxu0 0.0
    %4335 = vmatpush.msra.mxu0 0.0
    %4336 = vmatpush.msra.mxu0 0.0
    %4337 = vmatpush.msra.mxu0 0.0
    %4338 = vmatpush.msra.mxu0 0.0
    %4339 = vmatpush.msra.mxu0 0.0
    %4340 = vmatpush.msra.mxu0 0.0
    %4341 = vmatpush.msra.mxu0 0.0
    %4342 = vmatpush.msra.mxu0 0.0
    %4343 = vmatpush.msra.mxu0 0.0
    %4344 = vmatpush.msra.mxu0 0.0
    %4345 = vmatpush.msra.mxu0 0.0
    %4346 = vmatpush.msra.mxu0 0.0
    %4347 = vmatpush.msra.mxu0 0.0
    %4348 = vmatpush.msra.mxu0 0.0
    %4349 = vmatpush.msra.mxu0 %v3029
    %4350 = vmatmul.f32.gmra.mxu0 %v4283
    %v4351 = vpop.f32.mrf.mxu0
    %v4352 = vadd.f32 %v3033, %v4351
    %4353 = vmatmul.f32.gmra.mxu0 %v4286
    %v4354 = vpop.f32.mrf.mxu0
    %v4355 = vadd.f32 %v3033, %v4354
    %4356 = vdwg.mxu0
    %4357 = vmatpush.msra.mxu0 %v3157
    %4358 = vmatpush.msra.mxu0 %v3154
    %4359 = vmatpush.msra.mxu0 %v3151
    %4360 = vmatpush.msra.mxu0 %v3148
    %4361 = vmatpush.msra.mxu0 %v3145
    %4362 = vmatpush.msra.mxu0 %v3142
    %4363 = vmatpush.msra.mxu0 %v3139
    %4364 = vmatpush.msra.mxu0 %v3136
    %4365 = vmatpush.msra.mxu0 %v3133
    %4366 = vmatpush.msra.mxu0 %v3130
    %4367 = vmatpush.msra.mxu0 %v3127
    %4368 = vmatpush.msra.mxu0 %v3124
    %4369 = vmatpush.msra.mxu0 %v3121
    %4370 = vmatpush.msra.mxu0 %v3118
    %4371 = vmatpush.msra.mxu0 %v3115
    %4372 = vmatpush.msra.mxu0 %v3112
    %4373 = vmatmul.f32.gmra.mxu0 %v4280
    %v4374 = vpop.f32.mrf.mxu0
    %v4375 = vadd.f32 %v3161, %v4374
    %4376 = vmatmul.f32.gmra.mxu0 %v4281
    %v4377 = vpop.f32.mrf.mxu0
    %v4378 = vadd.f32 %v3161, %v4377
    %4379 = vdwg.mxu0
    %4380 = vmatpush.msra.mxu0 %v3158
    %4381 = vmatpush.msra.mxu0 %v3155
    %4382 = vmatpush.msra.mxu0 %v3152
    %4383 = vmatpush.msra.mxu0 %v3149
    %4384 = vmatpush.msra.mxu0 %v3146
    %4385 = vmatpush.msra.mxu0 %v3143
    %4386 = vmatpush.msra.mxu0 %v3140
    %4387 = vmatpush.msra.mxu0 %v3137
    %4388 = vmatpush.msra.mxu0 %v3134
    %4389 = vmatpush.msra.mxu0 %v3131
    %4390 = vmatpush.msra.mxu0 %v3128
    %4391 = vmatpush.msra.mxu0 %v3125
    %4392 = vmatpush.msra.mxu0 %v3122
    %4393 = vmatpush.msra.mxu0 %v3119
    %4394 = vmatpush.msra.mxu0 %v3116
    %4395 = vmatpush.msra.mxu0 %v3113
    %4396 = vmatmul.f32.gmra.mxu0 %v4280
    %v4397 = vpop.f32.mrf.mxu0
    %v4398 = vadd.f32 %v3162, %v4397
    %4399 = vmatmul.f32.gmra.mxu0 %v4281
    %v4400 = vpop.f32.mrf.mxu0
    %v4401 = vadd.f32 %v3162, %v4400
    %4402 = vdwg.mxu0
    %4403 = vmatpush.msra.mxu0 %v3159
    %4404 = vmatpush.msra.mxu0 %v3156
    %4405 = vmatpush.msra.mxu0 %v3153
    %4406 = vmatpush.msra.mxu0 %v3150
    %4407 = vmatpush.msra.mxu0 %v3147
    %4408 = vmatpush.msra.mxu0 %v3144
    %4409 = vmatpush.msra.mxu0 %v3141
    %4410 = vmatpush.msra.mxu0 %v3138
    %4411 = vmatpush.msra.mxu0 %v3135
    %4412 = vmatpush.msra.mxu0 %v3132
    %4413 = vmatpush.msra.mxu0 %v3129
    %4414 = vmatpush.msra.mxu0 %v3126
    %4415 = vmatpush.msra.mxu0 %v3123
    %4416 = vmatpush.msra.mxu0 %v3120
    %4417 = vmatpush.msra.mxu0 %v3117
    %4418 = vmatpush.msra.mxu0 %v3114
    %4419 = vmatmul.f32.gmra.mxu0 %v4280
    %v4420 = vpop.f32.mrf.mxu0
    %v4421 = vadd.f32 %v3163, %v4420
    %4422 = vmatmul.f32.gmra.mxu0 %v4281
    %v4423 = vpop.f32.mrf.mxu0
    %v4424 = vadd.f32 %v3163, %v4423
    %4425 = vdwg.mxu0
    %v4426 = vadd.f32 %v4306, %v4375
    %v4427 = vadd.f32 %v4309, %v4378
    %v4428 = vxor.u32 %v4426, 2147483648
    %v4429 = vxor.u32 %v4427, 2147483648
    %v4430 = vmul.f32 %v4428, 1.442695
    %v4431 = vpow.pop %v4430
    %v4432 = vmul.f32 %v4429, 1.442695
    %v4433 = vpow.pop %v4432
    %v4434 = vadd.f32 %v4431, 1.0
    %v4435 = vadd.f32 %v4433, 1.0
    %v4436 = vrcp.pop %v4434
    %v4437 = vmul.f32 %v4434, %v4436
    %v4438 = vsub.f32 1.0, %v4437
    %v4439 = vmul.f32 %v4436, %v4438
    %v4440 = vadd.f32 %v4436, %v4439
    %vm4441 = vweird.f32 %v4434
    %vm4442 = vweird.f32 %v4436
    %vm4443 = vmor %vm4441, %vm4442
    %v4444 = vsel %vm4443, %v4436, %v4440
    %v4445 = vand.u32 2147483647, %v4434
    %vm4446 = vcmp.eq.f32.partialorder %v4445, 8.507059e+37
    %v4447 = vand.u32 %v4434, 2147483648
    %v4448 = vor.u32 1.1754944e-38, %v4447
    %v4449 = vsel %vm4446, %v4448, %v4444
    %v4450 = vmul.f32 1.0, %v4449
    %v4451 = vrcp.pop %v4435
    %v4452 = vmul.f32 %v4435, %v4451
    %v4453 = vsub.f32 1.0, %v4452
    %v4454 = vmul.f32 %v4451, %v4453
    %v4455 = vadd.f32 %v4451, %v4454
    %vm4456 = vweird.f32 %v4435
    %vm4457 = vweird.f32 %v4451
    %vm4458 = vmor %vm4456, %vm4457
    %v4459 = vsel %vm4458, %v4451, %v4455
    %v4460 = vand.u32 2147483647, %v4435
    %vm4461 = vcmp.eq.f32.partialorder %v4460, 8.507059e+37
    %v4462 = vand.u32 %v4435, 2147483648
    %v4463 = vor.u32 1.1754944e-38, %v4462
    %v4464 = vsel %vm4461, %v4463, %v4459
    %v4465 = vmul.f32 1.0, %v4464
    %v4466 = vadd.f32 %v4329, %v4398
    %v4467 = vadd.f32 %v4332, %v4401
    %v4468 = vxor.u32 %v4466, 2147483648
    %v4469 = vxor.u32 %v4467, 2147483648
    %v4470 = vmul.f32 %v4468, 1.442695
    %v4471 = vpow.pop %v4470
    %v4472 = vmul.f32 %v4469, 1.442695
    %v4473 = vpow.pop %v4472
    %v4474 = vadd.f32 %v4471, 1.0
    %v4475 = vadd.f32 %v4473, 1.0
    %v4476 = vrcp.pop %v4474
    %v4477 = vmul.f32 %v4474, %v4476
    %v4478 = vsub.f32 1.0, %v4477
    %v4479 = vmul.f32 %v4476, %v4478
    %v4480 = vadd.f32 %v4476, %v4479
    %vm4481 = vweird.f32 %v4474
    %vm4482 = vweird.f32 %v4476
    %vm4483 = vmor %vm4481, %vm4482
    %v4484 = vsel %vm4483, %v4476, %v4480
    %v4485 = vand.u32 2147483647, %v4474
    %vm4486 = vcmp.eq.f32.partialorder %v4485, 8.507059e+37
    %v4487 = vand.u32 %v4474, 2147483648
    %v4488 = vor.u32 1.1754944e-38, %v4487
    %v4489 = vsel %vm4486, %v4488, %v4484
    %v4490 = vmul.f32 1.0, %v4489
    %v4491 = vrcp.pop %v4475
    %v4492 = vmul.f32 %v4475, %v4491
    %v4493 = vsub.f32 1.0, %v4492
    %v4494 = vmul.f32 %v4491, %v4493
    %v4495 = vadd.f32 %v4491, %v4494
    %vm4496 = vweird.f32 %v4475
    %vm4497 = vweird.f32 %v4491
    %vm4498 = vmor %vm4496, %vm4497
    %v4499 = vsel %vm4498, %v4491, %v4495
    %v4500 = vand.u32 2147483647, %v4475
    %vm4501 = vcmp.eq.f32.partialorder %v4500, 8.507059e+37
    %v4502 = vand.u32 %v4475, 2147483648
    %v4503 = vor.u32 1.1754944e-38, %v4502
    %v4504 = vsel %vm4501, %v4503, %v4499
    %v4505 = vmul.f32 1.0, %v4504
    %v4506 = vmul.f32 %v4450, %v4421
    %v4507 = vmul.f32 %v4465, %v4424
    %v4508 = vadd.f32 %v4352, %v4506
    %v4509 = vadd.f32 %v4355, %v4507
    %v4510 = vtanh.pop %v4508
    %v4511 = vtanh.pop %v4509
    %v4512 = vsub.f32 1.0, %v4490
    %v4513 = vsub.f32 1.0, %v4505
    %v4514 = vmul.f32 %v4512, %v4510
    %v4515 = vmul.f32 %v4513, %v4511
    %v4516 = vmul.f32 %v4490, %v4280
    %v4517 = vmul.f32 %v4505, %v4281
    %v4518 = vadd.f32 %v4514, %v4516
    %v4519 = vadd.f32 %v4515, %v4517
    %v4521 = vsel %vm232, %v3009, 0
    %v4524 = vsel %vm232, %v3010, 0
    %4526 = vmatpush.msra.mxu0 0.0
    %4527 = vmatpush.msra.mxu0 0.0
    %4528 = vmatpush.msra.mxu0 0.0
    %4529 = vmatpush.msra.mxu0 0.0
    %4530 = vmatpush.msra.mxu0 0.0
    %4531 = vmatpush.msra.mxu0 0.0
    %4532 = vmatpush.msra.mxu0 0.0
    %4533 = vmatpush.msra.mxu0 0.0
    %4534 = vmatpush.msra.mxu0 0.0
    %4535 = vmatpush.msra.mxu0 0.0
    %4536 = vmatpush.msra.mxu0 0.0
    %4537 = vmatpush.msra.mxu0 0.0
    %4538 = vmatpush.msra.mxu0 0.0
    %4539 = vmatpush.msra.mxu0 0.0
    %4540 = vmatpush.msra.mxu0 0.0
    %4541 = vmatpush.msra.mxu0 %v3027
    %4542 = vmatmul.f32.gmra.mxu0 %v4521
    %v4543 = vpop.f32.mrf.mxu0
    %v4544 = vadd.f32 %v3031, %v4543
    %4545 = vmatmul.f32.gmra.mxu0 %v4524
    %v4546 = vpop.f32.mrf.mxu0
    %v4547 = vadd.f32 %v3031, %v4546
    %4548 = vdwg.mxu0
    %4549 = vmatpush.msra.mxu0 0.0
    %4550 = vmatpush.msra.mxu0 0.0
    %4551 = vmatpush.msra.mxu0 0.0
    %4552 = vmatpush.msra.mxu0 0.0
    %4553 = vmatpush.msra.mxu0 0.0
    %4554 = vmatpush.msra.mxu0 0.0
    %4555 = vmatpush.msra.mxu0 0.0
    %4556 = vmatpush.msra.mxu0 0.0
    %4557 = vmatpush.msra.mxu0 0.0
    %4558 = vmatpush.msra.mxu0 0.0
    %4559 = vmatpush.msra.mxu0 0.0
    %4560 = vmatpush.msra.mxu0 0.0
    %4561 = vmatpush.msra.mxu0 0.0
    %4562 = vmatpush.msra.mxu0 0.0
    %4563 = vmatpush.msra.mxu0 0.0
    %4564 = vmatpush.msra.mxu0 %v3028
    %4565 = vmatmul.f32.gmra.mxu0 %v4521
    %v4566 = vpop.f32.mrf.mxu0
    %v4567 = vadd.f32 %v3032, %v4566
    %4568 = vmatmul.f32.gmra.mxu0 %v4524
    %v4569 = vpop.f32.mrf.mxu0
    %v4570 = vadd.f32 %v3032, %v4569
    %4571 = vdwg.mxu0
    %4572 = vmatpush.msra.mxu0 0.0
    %4573 = vmatpush.msra.mxu0 0.0
    %4574 = vmatpush.msra.mxu0 0.0
    %4575 = vmatpush.msra.mxu0 0.0
    %4576 = vmatpush.msra.mxu0 0.0
    %4577 = vmatpush.msra.mxu0 0.0
    %4578 = vmatpush.msra.mxu0 0.0
    %4579 = vmatpush.msra.mxu0 0.0
    %4580 = vmatpush.msra.mxu0 0.0
    %4581 = vmatpush.msra.mxu0 0.0
    %4582 = vmatpush.msra.mxu0 0.0
    %4583 = vmatpush.msra.mxu0 0.0
    %4584 = vmatpush.msra.mxu0 0.0
    %4585 = vmatpush.msra.mxu0 0.0
    %4586 = vmatpush.msra.mxu0 0.0
    %4587 = vmatpush.msra.mxu0 %v3029
    %4588 = vmatmul.f32.gmra.mxu0 %v4521
    %v4589 = vpop.f32.mrf.mxu0
    %v4590 = vadd.f32 %v3033, %v4589
    %4591 = vmatmul.f32.gmra.mxu0 %v4524
    %v4592 = vpop.f32.mrf.mxu0
    %v4593 = vadd.f32 %v3033, %v4592
    %4594 = vdwg.mxu0
    %4595 = vmatpush.msra.mxu0 %v3157
    %4596 = vmatpush.msra.mxu0 %v3154
    %4597 = vmatpush.msra.mxu0 %v3151
    %4598 = vmatpush.msra.mxu0 %v3148
    %4599 = vmatpush.msra.mxu0 %v3145
    %4600 = vmatpush.msra.mxu0 %v3142
    %4601 = vmatpush.msra.mxu0 %v3139
    %4602 = vmatpush.msra.mxu0 %v3136
    %4603 = vmatpush.msra.mxu0 %v3133
    %4604 = vmatpush.msra.mxu0 %v3130
    %4605 = vmatpush.msra.mxu0 %v3127
    %4606 = vmatpush.msra.mxu0 %v3124
    %4607 = vmatpush.msra.mxu0 %v3121
    %4608 = vmatpush.msra.mxu0 %v3118
    %4609 = vmatpush.msra.mxu0 %v3115
    %4610 = vmatpush.msra.mxu0 %v3112
    %4611 = vmatmul.f32.gmra.mxu0 %v4518
    %v4612 = vpop.f32.mrf.mxu0
    %v4613 = vadd.f32 %v3161, %v4612
    %4614 = vmatmul.f32.gmra.mxu0 %v4519
    %v4615 = vpop.f32.mrf.mxu0
    %v4616 = vadd.f32 %v3161, %v4615
    %4617 = vdwg.mxu0
    %4618 = vmatpush.msra.mxu0 %v3158
    %4619 = vmatpush.msra.mxu0 %v3155
    %4620 = vmatpush.msra.mxu0 %v3152
    %4621 = vmatpush.msra.mxu0 %v3149
    %4622 = vmatpush.msra.mxu0 %v3146
    %4623 = vmatpush.msra.mxu0 %v3143
    %4624 = vmatpush.msra.mxu0 %v3140
    %4625 = vmatpush.msra.mxu0 %v3137
    %4626 = vmatpush.msra.mxu0 %v3134
    %4627 = vmatpush.msra.mxu0 %v3131
    %4628 = vmatpush.msra.mxu0 %v3128
    %4629 = vmatpush.msra.mxu0 %v3125
    %4630 = vmatpush.msra.mxu0 %v3122
    %4631 = vmatpush.msra.mxu0 %v3119
    %4632 = vmatpush.msra.mxu0 %v3116
    %4633 = vmatpush.msra.mxu0 %v3113
    %4634 = vmatmul.f32.gmra.mxu0 %v4518
    %v4635 = vpop.f32.mrf.mxu0
    %v4636 = vadd.f32 %v3162, %v4635
    %4637 = vmatmul.f32.gmra.mxu0 %v4519
    %v4638 = vpop.f32.mrf.mxu0
    %v4639 = vadd.f32 %v3162, %v4638
    %4640 = vdwg.mxu0
    %4641 = vmatpush.msra.mxu0 %v3159
    %4642 = vmatpush.msra.mxu0 %v3156
    %4643 = vmatpush.msra.mxu0 %v3153
    %4644 = vmatpush.msra.mxu0 %v3150
    %4645 = vmatpush.msra.mxu0 %v3147
    %4646 = vmatpush.msra.mxu0 %v3144
    %4647 = vmatpush.msra.mxu0 %v3141
    %4648 = vmatpush.msra.mxu0 %v3138
    %4649 = vmatpush.msra.mxu0 %v3135
    %4650 = vmatpush.msra.mxu0 %v3132
    %4651 = vmatpush.msra.mxu0 %v3129
    %4652 = vmatpush.msra.mxu0 %v3126
    %4653 = vmatpush.msra.mxu0 %v3123
    %4654 = vmatpush.msra.mxu0 %v3120
    %4655 = vmatpush.msra.mxu0 %v3117
    %4656 = vmatpush.msra.mxu0 %v3114
    %4657 = vmatmul.f32.gmra.mxu0 %v4518
    %v4658 = vpop.f32.mrf.mxu0
    %v4659 = vadd.f32 %v3163, %v4658
    %4660 = vmatmul.f32.gmra.mxu0 %v4519
    %v4661 = vpop.f32.mrf.mxu0
    %v4662 = vadd.f32 %v3163, %v4661
    %4663 = vdwg.mxu0
    %v4664 = vadd.f32 %v4544, %v4613
    %v4665 = vadd.f32 %v4547, %v4616
    %v4666 = vxor.u32 %v4664, 2147483648
    %v4667 = vxor.u32 %v4665, 2147483648
    %v4668 = vmul.f32 %v4666, 1.442695
    %v4669 = vpow.pop %v4668
    %v4670 = vmul.f32 %v4667, 1.442695
    %v4671 = vpow.pop %v4670
    %v4672 = vadd.f32 %v4669, 1.0
    %v4673 = vadd.f32 %v4671, 1.0
    %v4674 = vrcp.pop %v4672
    %v4675 = vmul.f32 %v4672, %v4674
    %v4676 = vsub.f32 1.0, %v4675
    %v4677 = vmul.f32 %v4674, %v4676
    %v4678 = vadd.f32 %v4674, %v4677
    %vm4679 = vweird.f32 %v4672
    %vm4680 = vweird.f32 %v4674
    %vm4681 = vmor %vm4679, %vm4680
    %v4682 = vsel %vm4681, %v4674, %v4678
    %v4683 = vand.u32 2147483647, %v4672
    %vm4684 = vcmp.eq.f32.partialorder %v4683, 8.507059e+37
    %v4685 = vand.u32 %v4672, 2147483648
    %v4686 = vor.u32 1.1754944e-38, %v4685
    %v4687 = vsel %vm4684, %v4686, %v4682
    %v4688 = vmul.f32 1.0, %v4687
    %v4689 = vrcp.pop %v4673
    %v4690 = vmul.f32 %v4673, %v4689
    %v4691 = vsub.f32 1.0, %v4690
    %v4692 = vmul.f32 %v4689, %v4691
    %v4693 = vadd.f32 %v4689, %v4692
    %vm4694 = vweird.f32 %v4673
    %vm4695 = vweird.f32 %v4689
    %vm4696 = vmor %vm4694, %vm4695
    %v4697 = vsel %vm4696, %v4689, %v4693
    %v4698 = vand.u32 2147483647, %v4673
    %vm4699 = vcmp.eq.f32.partialorder %v4698, 8.507059e+37
    %v4700 = vand.u32 %v4673, 2147483648
    %v4701 = vor.u32 1.1754944e-38, %v4700
    %v4702 = vsel %vm4699, %v4701, %v4697
    %v4703 = vmul.f32 1.0, %v4702
    %v4704 = vadd.f32 %v4567, %v4636
    %v4705 = vadd.f32 %v4570, %v4639
    %v4706 = vxor.u32 %v4704, 2147483648
    %v4707 = vxor.u32 %v4705, 2147483648
    %v4708 = vmul.f32 %v4706, 1.442695
    %v4709 = vpow.pop %v4708
    %v4710 = vmul.f32 %v4707, 1.442695
    %v4711 = vpow.pop %v4710
    %v4712 = vadd.f32 %v4709, 1.0
    %v4713 = vadd.f32 %v4711, 1.0
    %v4714 = vrcp.pop %v4712
    %v4715 = vmul.f32 %v4712, %v4714
    %v4716 = vsub.f32 1.0, %v4715
    %v4717 = vmul.f32 %v4714, %v4716
    %v4718 = vadd.f32 %v4714, %v4717
    %vm4719 = vweird.f32 %v4712
    %vm4720 = vweird.f32 %v4714
    %vm4721 = vmor %vm4719, %vm4720
    %v4722 = vsel %vm4721, %v4714, %v4718
    %v4723 = vand.u32 2147483647, %v4712
    %vm4724 = vcmp.eq.f32.partialorder %v4723, 8.507059e+37
    %v4725 = vand.u32 %v4712, 2147483648
    %v4726 = vor.u32 1.1754944e-38, %v4725
    %v4727 = vsel %vm4724, %v4726, %v4722
    %v4728 = vmul.f32 1.0, %v4727
    %v4729 = vrcp.pop %v4713
    %v4730 = vmul.f32 %v4713, %v4729
    %v4731 = vsub.f32 1.0, %v4730
    %v4732 = vmul.f32 %v4729, %v4731
    %v4733 = vadd.f32 %v4729, %v4732
    %vm4734 = vweird.f32 %v4713
    %vm4735 = vweird.f32 %v4729
    %vm4736 = vmor %vm4734, %vm4735
    %v4737 = vsel %vm4736, %v4729, %v4733
    %v4738 = vand.u32 2147483647, %v4713
    %vm4739 = vcmp.eq.f32.partialorder %v4738, 8.507059e+37
    %v4740 = vand.u32 %v4713, 2147483648
    %v4741 = vor.u32 1.1754944e-38, %v4740
    %v4742 = vsel %vm4739, %v4741, %v4737
    %v4743 = vmul.f32 1.0, %v4742
    %v4744 = vmul.f32 %v4688, %v4659
    %v4745 = vmul.f32 %v4703, %v4662
    %v4746 = vadd.f32 %v4590, %v4744
    %v4747 = vadd.f32 %v4593, %v4745
    %v4748 = vtanh.pop %v4746
    %v4749 = vtanh.pop %v4747
    %v4750 = vsub.f32 1.0, %v4728
    %v4751 = vsub.f32 1.0, %v4743
    %v4752 = vmul.f32 %v4750, %v4748
    %v4753 = vmul.f32 %v4751, %v4749
    %v4754 = vmul.f32 %v4728, %v4518
    %v4755 = vmul.f32 %v4743, %v4519
    %v4756 = vadd.f32 %v4752, %v4754
    %v4757 = vadd.f32 %v4753, %v4755
    %v4759 = vsel %vm232, %v3023, 0
    %v4762 = vsel %vm232, %v3024, 0
    %4764 = vmatpush.msra.mxu0 0.0
    %4765 = vmatpush.msra.mxu0 0.0
    %4766 = vmatpush.msra.mxu0 0.0
    %4767 = vmatpush.msra.mxu0 0.0
    %4768 = vmatpush.msra.mxu0 0.0
    %4769 = vmatpush.msra.mxu0 0.0
    %4770 = vmatpush.msra.mxu0 0.0
    %4771 = vmatpush.msra.mxu0 0.0
    %4772 = vmatpush.msra.mxu0 0.0
    %4773 = vmatpush.msra.mxu0 0.0
    %4774 = vmatpush.msra.mxu0 0.0
    %4775 = vmatpush.msra.mxu0 0.0
    %4776 = vmatpush.msra.mxu0 0.0
    %4777 = vmatpush.msra.mxu0 0.0
    %4778 = vmatpush.msra.mxu0 0.0
    %4779 = vmatpush.msra.mxu0 %v3027
    %4780 = vmatmul.f32.gmra.mxu0 %v4759
    %v4781 = vpop.f32.mrf.mxu0
    %v4782 = vadd.f32 %v3031, %v4781
    %4783 = vmatmul.f32.gmra.mxu0 %v4762
    %v4784 = vpop.f32.mrf.mxu0
    %v4785 = vadd.f32 %v3031, %v4784
    %4786 = vdwg.mxu0
    %4787 = vmatpush.msra.mxu0 0.0
    %4788 = vmatpush.msra.mxu0 0.0
    %4789 = vmatpush.msra.mxu0 0.0
    %4790 = vmatpush.msra.mxu0 0.0
    %4791 = vmatpush.msra.mxu0 0.0
    %4792 = vmatpush.msra.mxu0 0.0
    %4793 = vmatpush.msra.mxu0 0.0
    %4794 = vmatpush.msra.mxu0 0.0
    %4795 = vmatpush.msra.mxu0 0.0
    %4796 = vmatpush.msra.mxu0 0.0
    %4797 = vmatpush.msra.mxu0 0.0
    %4798 = vmatpush.msra.mxu0 0.0
    %4799 = vmatpush.msra.mxu0 0.0
    %4800 = vmatpush.msra.mxu0 0.0
    %4801 = vmatpush.msra.mxu0 0.0
    %4802 = vmatpush.msra.mxu0 %v3028
    %4803 = vmatmul.f32.gmra.mxu0 %v4759
    %v4804 = vpop.f32.mrf.mxu0
    %v4805 = vadd.f32 %v3032, %v4804
    %4806 = vmatmul.f32.gmra.mxu0 %v4762
    %v4807 = vpop.f32.mrf.mxu0
    %v4808 = vadd.f32 %v3032, %v4807
    %4809 = vdwg.mxu0
    %4810 = vmatpush.msra.mxu0 0.0
    %4811 = vmatpush.msra.mxu0 0.0
    %4812 = vmatpush.msra.mxu0 0.0
    %4813 = vmatpush.msra.mxu0 0.0
    %4814 = vmatpush.msra.mxu0 0.0
    %4815 = vmatpush.msra.mxu0 0.0
    %4816 = vmatpush.msra.mxu0 0.0
    %4817 = vmatpush.msra.mxu0 0.0
    %4818 = vmatpush.msra.mxu0 0.0
    %4819 = vmatpush.msra.mxu0 0.0
    %4820 = vmatpush.msra.mxu0 0.0
    %4821 = vmatpush.msra.mxu0 0.0
    %4822 = vmatpush.msra.mxu0 0.0
    %4823 = vmatpush.msra.mxu0 0.0
    %4824 = vmatpush.msra.mxu0 0.0
    %4825 = vmatpush.msra.mxu0 %v3029
    %4826 = vmatmul.f32.gmra.mxu0 %v4759
    %v4827 = vpop.f32.mrf.mxu0
    %v4828 = vadd.f32 %v3033, %v4827
    %4829 = vmatmul.f32.gmra.mxu0 %v4762
    %v4830 = vpop.f32.mrf.mxu0
    %v4831 = vadd.f32 %v3033, %v4830
    %4832 = vdwg.mxu0
    %4833 = vmatpush.msra.mxu0 %v3157
    %4834 = vmatpush.msra.mxu0 %v3154
    %4835 = vmatpush.msra.mxu0 %v3151
    %4836 = vmatpush.msra.mxu0 %v3148
    %4837 = vmatpush.msra.mxu0 %v3145
    %4838 = vmatpush.msra.mxu0 %v3142
    %4839 = vmatpush.msra.mxu0 %v3139
    %4840 = vmatpush.msra.mxu0 %v3136
    %4841 = vmatpush.msra.mxu0 %v3133
    %4842 = vmatpush.msra.mxu0 %v3130
    %4843 = vmatpush.msra.mxu0 %v3127
    %4844 = vmatpush.msra.mxu0 %v3124
    %4845 = vmatpush.msra.mxu0 %v3121
    %4846 = vmatpush.msra.mxu0 %v3118
    %4847 = vmatpush.msra.mxu0 %v3115
    %4848 = vmatpush.msra.mxu0 %v3112
    %4849 = vmatmul.f32.gmra.mxu0 %v4756
    %v4850 = vpop.f32.mrf.mxu0
    %v4851 = vadd.f32 %v3161, %v4850
    %4852 = vmatmul.f32.gmra.mxu0 %v4757
    %v4853 = vpop.f32.mrf.mxu0
    %v4854 = vadd.f32 %v3161, %v4853
    %4855 = vdwg.mxu0
    %4856 = vmatpush.msra.mxu0 %v3158
    %4857 = vmatpush.msra.mxu0 %v3155
    %4858 = vmatpush.msra.mxu0 %v3152
    %4859 = vmatpush.msra.mxu0 %v3149
    %4860 = vmatpush.msra.mxu0 %v3146
    %4861 = vmatpush.msra.mxu0 %v3143
    %4862 = vmatpush.msra.mxu0 %v3140
    %4863 = vmatpush.msra.mxu0 %v3137
    %4864 = vmatpush.msra.mxu0 %v3134
    %4865 = vmatpush.msra.mxu0 %v3131
    %4866 = vmatpush.msra.mxu0 %v3128
    %4867 = vmatpush.msra.mxu0 %v3125
    %4868 = vmatpush.msra.mxu0 %v3122
    %4869 = vmatpush.msra.mxu0 %v3119
    %4870 = vmatpush.msra.mxu0 %v3116
    %4871 = vmatpush.msra.mxu0 %v3113
    %4872 = vmatmul.f32.gmra.mxu0 %v4756
    %v4873 = vpop.f32.mrf.mxu0
    %v4874 = vadd.f32 %v3162, %v4873
    %4875 = vmatmul.f32.gmra.mxu0 %v4757
    %v4876 = vpop.f32.mrf.mxu0
    %v4877 = vadd.f32 %v3162, %v4876
    %4878 = vdwg.mxu0
    %4879 = vmatpush.msra.mxu0 %v3159
    %4880 = vmatpush.msra.mxu0 %v3156
    %4881 = vmatpush.msra.mxu0 %v3153
    %4882 = vmatpush.msra.mxu0 %v3150
    %4883 = vmatpush.msra.mxu0 %v3147
    %4884 = vmatpush.msra.mxu0 %v3144
    %4885 = vmatpush.msra.mxu0 %v3141
    %4886 = vmatpush.msra.mxu0 %v3138
    %4887 = vmatpush.msra.mxu0 %v3135
    %4888 = vmatpush.msra.mxu0 %v3132
    %4889 = vmatpush.msra.mxu0 %v3129
    %4890 = vmatpush.msra.mxu0 %v3126
    %4891 = vmatpush.msra.mxu0 %v3123
    %4892 = vmatpush.msra.mxu0 %v3120
    %4893 = vmatpush.msra.mxu0 %v3117
    %4894 = vmatpush.msra.mxu0 %v3114
    %4895 = vmatmul.f32.gmra.mxu0 %v4756
    %v4896 = vpop.f32.mrf.mxu0
    %v4897 = vadd.f32 %v3163, %v4896
    %4898 = vmatmul.f32.gmra.mxu0 %v4757
    %v4899 = vpop.f32.mrf.mxu0
    %v4900 = vadd.f32 %v3163, %v4899
    %4901 = vdwg.mxu0
    %v4902 = vadd.f32 %v4782, %v4851
    %v4903 = vadd.f32 %v4785, %v4854
    %v4904 = vxor.u32 %v4902, 2147483648
    %v4905 = vxor.u32 %v4903, 2147483648
    %v4906 = vmul.f32 %v4904, 1.442695
    %v4907 = vpow.pop %v4906
    %v4908 = vmul.f32 %v4905, 1.442695
    %v4909 = vpow.pop %v4908
    %v4910 = vadd.f32 %v4907, 1.0
    %v4911 = vadd.f32 %v4909, 1.0
    %v4912 = vrcp.pop %v4910
    %v4913 = vmul.f32 %v4910, %v4912
    %v4914 = vsub.f32 1.0, %v4913
    %v4915 = vmul.f32 %v4912, %v4914
    %v4916 = vadd.f32 %v4912, %v4915
    %vm4917 = vweird.f32 %v4910
    %vm4918 = vweird.f32 %v4912
    %vm4919 = vmor %vm4917, %vm4918
    %v4920 = vsel %vm4919, %v4912, %v4916
    %v4921 = vand.u32 2147483647, %v4910
    %vm4922 = vcmp.eq.f32.partialorder %v4921, 8.507059e+37
    %v4923 = vand.u32 %v4910, 2147483648
    %v4924 = vor.u32 1.1754944e-38, %v4923
    %v4925 = vsel %vm4922, %v4924, %v4920
    %v4926 = vmul.f32 1.0, %v4925
    %v4927 = vrcp.pop %v4911
    %v4928 = vmul.f32 %v4911, %v4927
    %v4929 = vsub.f32 1.0, %v4928
    %v4930 = vmul.f32 %v4927, %v4929
    %v4931 = vadd.f32 %v4927, %v4930
    %vm4932 = vweird.f32 %v4911
    %vm4933 = vweird.f32 %v4927
    %vm4934 = vmor %vm4932, %vm4933
    %v4935 = vsel %vm4934, %v4927, %v4931
    %v4936 = vand.u32 2147483647, %v4911
    %vm4937 = vcmp.eq.f32.partialorder %v4936, 8.507059e+37
    %v4938 = vand.u32 %v4911, 2147483648
    %v4939 = vor.u32 1.1754944e-38, %v4938
    %v4940 = vsel %vm4937, %v4939, %v4935
    %v4941 = vmul.f32 1.0, %v4940
    %v4942 = vadd.f32 %v4805, %v4874
    %v4943 = vadd.f32 %v4808, %v4877
    %v4944 = vxor.u32 %v4942, 2147483648
    %v4945 = vxor.u32 %v4943, 2147483648
    %v4946 = vmul.f32 %v4944, 1.442695
    %v4947 = vpow.pop %v4946
    %v4948 = vmul.f32 %v4945, 1.442695
    %v4949 = vpow.pop %v4948
    %v4950 = vadd.f32 %v4947, 1.0
    %v4951 = vadd.f32 %v4949, 1.0
    %v4952 = vrcp.pop %v4950
    %v4953 = vmul.f32 %v4950, %v4952
    %v4954 = vsub.f32 1.0, %v4953
    %v4955 = vmul.f32 %v4952, %v4954
    %v4956 = vadd.f32 %v4952, %v4955
    %vm4957 = vweird.f32 %v4950
    %vm4958 = vweird.f32 %v4952
    %vm4959 = vmor %vm4957, %vm4958
    %v4960 = vsel %vm4959, %v4952, %v4956
    %v4961 = vand.u32 2147483647, %v4950
    %vm4962 = vcmp.eq.f32.partialorder %v4961, 8.507059e+37
    %v4963 = vand.u32 %v4950, 2147483648
    %v4964 = vor.u32 1.1754944e-38, %v4963
    %v4965 = vsel %vm4962, %v4964, %v4960
    %v4966 = vmul.f32 1.0, %v4965
    %v4967 = vrcp.pop %v4951
    %v4968 = vmul.f32 %v4951, %v4967
    %v4969 = vsub.f32 1.0, %v4968
    %v4970 = vmul.f32 %v4967, %v4969
    %v4971 = vadd.f32 %v4967, %v4970
    %vm4972 = vweird.f32 %v4951
    %vm4973 = vweird.f32 %v4967
    %vm4974 = vmor %vm4972, %vm4973
    %v4975 = vsel %vm4974, %v4967, %v4971
    %v4976 = vand.u32 2147483647, %v4951
    %vm4977 = vcmp.eq.f32.partialorder %v4976, 8.507059e+37
    %v4978 = vand.u32 %v4951, 2147483648
    %v4979 = vor.u32 1.1754944e-38, %v4978
    %v4980 = vsel %vm4977, %v4979, %v4975
    %v4981 = vmul.f32 1.0, %v4980
    %v4982 = vmul.f32 %v4926, %v4897
    %v4983 = vmul.f32 %v4941, %v4900
    %v4984 = vadd.f32 %v4828, %v4982
    %v4985 = vadd.f32 %v4831, %v4983
    %v4986 = vtanh.pop %v4984
    %v4987 = vtanh.pop %v4985
    %v4988 = vsub.f32 1.0, %v4966
    %v4989 = vsub.f32 1.0, %v4981
    %v4990 = vmul.f32 %v4988, %v4986
    %v4991 = vmul.f32 %v4989, %v4987
    %v4992 = vmul.f32 %v4966, %v4756
    %v4993 = vmul.f32 %v4981, %v4757
    %v4994 = vadd.f32 %v4990, %v4992
    %v4995 = vadd.f32 %v4991, %v4993
    %v4996 = vld [vmem:[%s51] sm:$0x7]
    %v4997 = vld [vmem:[%s53] sm:$0x7]
    %v4998 = vld [vmem:[#allocation10] sm:$0xff]
    %v4999 = vld [vmem:[#allocation10 + $0x8] sm:$0xff]
    %v5000 = vld [vmem:[#allocation10 + $0x10] sm:$0xff]
    %v5001 = vld [vmem:[#allocation10 + $0x18] sm:$0xff]
    %v5002 = vld [vmem:[#allocation10 + $0x20] sm:$0xff]
    %v5003 = vld [vmem:[#allocation10 + $0x28] sm:$0xff]
    %v5004 = vld [vmem:[#allocation10 + $0x30] sm:$0xff]
    %v5005 = vld [vmem:[#allocation10 + $0x38] sm:$0xff]
    %v5006 = vld [vmem:[#allocation10 + $0x40] sm:$0xff]
    %v5007 = vld [vmem:[#allocation10 + $0x48] sm:$0xff]
    %v5008 = vld [vmem:[#allocation10 + $0x50] sm:$0xff]
    %v5009 = vld [vmem:[#allocation10 + $0x58] sm:$0xff]
    %v5010 = vld [vmem:[#allocation10 + $0x60] sm:$0xff]
    %v5011 = vld [vmem:[#allocation10 + $0x68] sm:$0xff]
    %v5012 = vld [vmem:[#allocation10 + $0x70] sm:$0xff]
    %v5013 = vld [vmem:[#allocation10 + $0x78] sm:$0xff]
    %v5014 = vld [vmem:[#allocation10 + $0x80] sm:$0xff]
    %v5015 = vld [vmem:[#allocation10 + $0x88] sm:$0xff]
    %v5016 = vld [vmem:[#allocation10 + $0x90] sm:$0xff]
    %v5017 = vld [vmem:[#allocation10 + $0x98] sm:$0xff]
    %v5018 = vld [vmem:[#allocation10 + $0xa0] sm:$0xff]
    %v5019 = vld [vmem:[#allocation10 + $0xa8] sm:$0xff]
    %v5020 = vld [vmem:[#allocation10 + $0xb0] sm:$0xff]
    %v5021 = vld [vmem:[#allocation10 + $0xb8] sm:$0xff]
    %v5022 = vld [vmem:[#allocation10 + $0xc0] sm:$0xff]
    %v5023 = vld [vmem:[#allocation10 + $0xc8] sm:$0xff]
    %v5024 = vld [vmem:[#allocation10 + $0xd0] sm:$0xff]
    %v5025 = vld [vmem:[#allocation10 + $0xd8] sm:$0xff]
    %v5026 = vld [vmem:[#allocation10 + $0xe0] sm:$0xff]
    %v5027 = vld [vmem:[#allocation10 + $0xe8] sm:$0xff]
    %v5028 = vld [vmem:[#allocation10 + $0xf0] sm:$0xff]
    %v5029 = vld [vmem:[#allocation10 + $0xf8] sm:$0xff]
    %v5030 = vld [vmem:[#allocation10 + $0x100] sm:$0xff]
    %v5031 = vld [vmem:[#allocation10 + $0x108] sm:$0xff]
    %v5032 = vld [vmem:[#allocation10 + $0x110] sm:$0xff]
    %v5033 = vld [vmem:[#allocation10 + $0x118] sm:$0xff]
    %v5034 = vld [vmem:[#allocation10 + $0x120] sm:$0xff]
    %v5035 = vld [vmem:[#allocation10 + $0x128] sm:$0xff]
    %v5036 = vld [vmem:[#allocation10 + $0x130] sm:$0xff]
    %v5037 = vld [vmem:[#allocation10 + $0x138] sm:$0xff]
    %v5038 = vld [vmem:[#allocation10 + $0x140] sm:$0xff]
    %v5039 = vld [vmem:[#allocation10 + $0x148] sm:$0xff]
    %v5040 = vld [vmem:[#allocation10 + $0x150] sm:$0xff]
    %v5041 = vld [vmem:[#allocation10 + $0x158] sm:$0xff]
    %v5042 = vld [vmem:[#allocation10 + $0x160] sm:$0xff]
    %v5043 = vld [vmem:[#allocation10 + $0x168] sm:$0xff]
    %v5044 = vld [vmem:[#allocation10 + $0x170] sm:$0xff]
    %v5045 = vld [vmem:[#allocation10 + $0x178] sm:$0xff]
    %v5047 = vperm.slane %v4996, 0
    %v5048 = vperm.slane %v4996, 1
    %v5049 = vperm.slane %v4996, 2
    %5053 = vmatpush.msra.mxu0 %v5043
    %5054 = vmatpush.msra.mxu0 %v5040
    %5055 = vmatpush.msra.mxu0 %v5037
    %5056 = vmatpush.msra.mxu0 %v5034
    %5057 = vmatpush.msra.mxu0 %v5031
    %5058 = vmatpush.msra.mxu0 %v5028
    %5059 = vmatpush.msra.mxu0 %v5025
    %5060 = vmatpush.msra.mxu0 %v5022
    %5061 = vmatpush.msra.mxu0 %v5019
    %5062 = vmatpush.msra.mxu0 %v5016
    %5063 = vmatpush.msra.mxu0 %v5013
    %5064 = vmatpush.msra.mxu0 %v5010
    %5065 = vmatpush.msra.mxu0 %v5007
    %5066 = vmatpush.msra.mxu0 %v5004
    %5067 = vmatpush.msra.mxu0 %v5001
    %5068 = vmatpush.msra.mxu0 %v4998
    %5069 = vmatmul.f32.gmra.mxu0 %v3328
    %v5070 = vpop.f32.mrf.mxu0
    %v5071 = vadd.f32 %v5047, %v5070
    %5072 = vmatmul.f32.gmra.mxu0 %v3329
    %v5073 = vpop.f32.mrf.mxu0
    %v5074 = vadd.f32 %v5047, %v5073
    %5075 = vdwg.mxu0
    %5076 = vmatpush.msra.mxu0 %v5044
    %5077 = vmatpush.msra.mxu0 %v5041
    %5078 = vmatpush.msra.mxu0 %v5038
    %5079 = vmatpush.msra.mxu0 %v5035
    %5080 = vmatpush.msra.mxu0 %v5032
    %5081 = vmatpush.msra.mxu0 %v5029
    %5082 = vmatpush.msra.mxu0 %v5026
    %5083 = vmatpush.msra.mxu0 %v5023
    %5084 = vmatpush.msra.mxu0 %v5020
    %5085 = vmatpush.msra.mxu0 %v5017
    %5086 = vmatpush.msra.mxu0 %v5014
    %5087 = vmatpush.msra.mxu0 %v5011
    %5088 = vmatpush.msra.mxu0 %v5008
    %5089 = vmatpush.msra.mxu0 %v5005
    %5090 = vmatpush.msra.mxu0 %v5002
    %5091 = vmatpush.msra.mxu0 %v4999
    %5092 = vmatmul.f32.gmra.mxu0 %v3328
    %v5093 = vpop.f32.mrf.mxu0
    %v5094 = vadd.f32 %v5048, %v5093
    %5095 = vmatmul.f32.gmra.mxu0 %v3329
    %v5096 = vpop.f32.mrf.mxu0
    %v5097 = vadd.f32 %v5048, %v5096
    %5098 = vdwg.mxu0
    %5099 = vmatpush.msra.mxu0 %v5045
    %5100 = vmatpush.msra.mxu0 %v5042
    %5101 = vmatpush.msra.mxu0 %v5039
    %5102 = vmatpush.msra.mxu0 %v5036
    %5103 = vmatpush.msra.mxu0 %v5033
    %5104 = vmatpush.msra.mxu0 %v5030
    %5105 = vmatpush.msra.mxu0 %v5027
    %5106 = vmatpush.msra.mxu0 %v5024
    %5107 = vmatpush.msra.mxu0 %v5021
    %5108 = vmatpush.msra.mxu0 %v5018
    %5109 = vmatpush.msra.mxu0 %v5015
    %5110 = vmatpush.msra.mxu0 %v5012
    %5111 = vmatpush.msra.mxu0 %v5009
    %5112 = vmatpush.msra.mxu0 %v5006
    %5113 = vmatpush.msra.mxu0 %v5003
    %5114 = vmatpush.msra.mxu0 %v5000
    %5115 = vmatmul.f32.gmra.mxu0 %v3328
    %v5116 = vpop.f32.mrf.mxu0
    %v5117 = vadd.f32 %v5049, %v5116
    %5118 = vmatmul.f32.gmra.mxu0 %v3329
    %v5119 = vpop.f32.mrf.mxu0
    %v5120 = vadd.f32 %v5049, %v5119
    %5121 = vdwg.mxu0
    %v5122 = vld [vmem:[#allocation11] sm:$0xff]
    %v5123 = vld [vmem:[#allocation11 + $0x8] sm:$0xff]
    %v5124 = vld [vmem:[#allocation11 + $0x10] sm:$0xff]
    %v5125 = vld [vmem:[#allocation11 + $0x18] sm:$0xff]
    %v5126 = vld [vmem:[#allocation11 + $0x20] sm:$0xff]
    %v5127 = vld [vmem:[#allocation11 + $0x28] sm:$0xff]
    %v5128 = vld [vmem:[#allocation11 + $0x30] sm:$0xff]
    %v5129 = vld [vmem:[#allocation11 + $0x38] sm:$0xff]
    %v5130 = vld [vmem:[#allocation11 + $0x40] sm:$0xff]
    %v5131 = vld [vmem:[#allocation11 + $0x48] sm:$0xff]
    %v5132 = vld [vmem:[#allocation11 + $0x50] sm:$0xff]
    %v5133 = vld [vmem:[#allocation11 + $0x58] sm:$0xff]
    %v5134 = vld [vmem:[#allocation11 + $0x60] sm:$0xff]
    %v5135 = vld [vmem:[#allocation11 + $0x68] sm:$0xff]
    %v5136 = vld [vmem:[#allocation11 + $0x70] sm:$0xff]
    %v5137 = vld [vmem:[#allocation11 + $0x78] sm:$0xff]
    %v5138 = vld [vmem:[#allocation11 + $0x80] sm:$0xff]
    %v5139 = vld [vmem:[#allocation11 + $0x88] sm:$0xff]
    %v5140 = vld [vmem:[#allocation11 + $0x90] sm:$0xff]
    %v5141 = vld [vmem:[#allocation11 + $0x98] sm:$0xff]
    %v5142 = vld [vmem:[#allocation11 + $0xa0] sm:$0xff]
    %v5143 = vld [vmem:[#allocation11 + $0xa8] sm:$0xff]
    %v5144 = vld [vmem:[#allocation11 + $0xb0] sm:$0xff]
    %v5145 = vld [vmem:[#allocation11 + $0xb8] sm:$0xff]
    %v5146 = vld [vmem:[#allocation11 + $0xc0] sm:$0xff]
    %v5147 = vld [vmem:[#allocation11 + $0xc8] sm:$0xff]
    %v5148 = vld [vmem:[#allocation11 + $0xd0] sm:$0xff]
    %v5149 = vld [vmem:[#allocation11 + $0xd8] sm:$0xff]
    %v5150 = vld [vmem:[#allocation11 + $0xe0] sm:$0xff]
    %v5151 = vld [vmem:[#allocation11 + $0xe8] sm:$0xff]
    %v5152 = vld [vmem:[#allocation11 + $0xf0] sm:$0xff]
    %v5153 = vld [vmem:[#allocation11 + $0xf8] sm:$0xff]
    %v5154 = vld [vmem:[#allocation11 + $0x100] sm:$0xff]
    %v5155 = vld [vmem:[#allocation11 + $0x108] sm:$0xff]
    %v5156 = vld [vmem:[#allocation11 + $0x110] sm:$0xff]
    %v5157 = vld [vmem:[#allocation11 + $0x118] sm:$0xff]
    %v5158 = vld [vmem:[#allocation11 + $0x120] sm:$0xff]
    %v5159 = vld [vmem:[#allocation11 + $0x128] sm:$0xff]
    %v5160 = vld [vmem:[#allocation11 + $0x130] sm:$0xff]
    %v5161 = vld [vmem:[#allocation11 + $0x138] sm:$0xff]
    %v5162 = vld [vmem:[#allocation11 + $0x140] sm:$0xff]
    %v5163 = vld [vmem:[#allocation11 + $0x148] sm:$0xff]
    %v5164 = vld [vmem:[#allocation11 + $0x150] sm:$0xff]
    %v5165 = vld [vmem:[#allocation11 + $0x158] sm:$0xff]
    %v5166 = vld [vmem:[#allocation11 + $0x160] sm:$0xff]
    %v5167 = vld [vmem:[#allocation11 + $0x168] sm:$0xff]
    %v5168 = vld [vmem:[#allocation11 + $0x170] sm:$0xff]
    %v5169 = vld [vmem:[#allocation11 + $0x178] sm:$0xff]
    %v5171 = vperm.slane %v4997, 0
    %v5172 = vperm.slane %v4997, 1
    %v5173 = vperm.slane %v4997, 2
    %5177 = vmatpush.msra.mxu0 %v5167
    %5178 = vmatpush.msra.mxu0 %v5164
    %5179 = vmatpush.msra.mxu0 %v5161
    %5180 = vmatpush.msra.mxu0 %v5158
    %5181 = vmatpush.msra.mxu0 %v5155
    %5182 = vmatpush.msra.mxu0 %v5152
    %5183 = vmatpush.msra.mxu0 %v5149
    %5184 = vmatpush.msra.mxu0 %v5146
    %5185 = vmatpush.msra.mxu0 %v5143
    %5186 = vmatpush.msra.mxu0 %v5140
    %5187 = vmatpush.msra.mxu0 %v5137
    %5188 = vmatpush.msra.mxu0 %v5134
    %5189 = vmatpush.msra.mxu0 %v5131
    %5190 = vmatpush.msra.mxu0 %v5128
    %5191 = vmatpush.msra.mxu0 %v5125
    %5192 = vmatpush.msra.mxu0 %v5122
    %5193 = vmatmul.f32.gmra.mxu0 0.0
    %v5194 = vpop.f32.mrf.mxu0
    %v5195 = vadd.f32 %v5171, %v5194
    %5196 = vmatmul.f32.gmra.mxu0 0.0
    %v5197 = vpop.f32.mrf.mxu0
    %v5198 = vadd.f32 %v5171, %v5197
    %5199 = vdwg.mxu0
    %5200 = vmatpush.msra.mxu0 %v5168
    %5201 = vmatpush.msra.mxu0 %v5165
    %5202 = vmatpush.msra.mxu0 %v5162
    %5203 = vmatpush.msra.mxu0 %v5159
    %5204 = vmatpush.msra.mxu0 %v5156
    %5205 = vmatpush.msra.mxu0 %v5153
    %5206 = vmatpush.msra.mxu0 %v5150
    %5207 = vmatpush.msra.mxu0 %v5147
    %5208 = vmatpush.msra.mxu0 %v5144
    %5209 = vmatpush.msra.mxu0 %v5141
    %5210 = vmatpush.msra.mxu0 %v5138
    %5211 = vmatpush.msra.mxu0 %v5135
    %5212 = vmatpush.msra.mxu0 %v5132
    %5213 = vmatpush.msra.mxu0 %v5129
    %5214 = vmatpush.msra.mxu0 %v5126
    %5215 = vmatpush.msra.mxu0 %v5123
    %5216 = vmatmul.f32.gmra.mxu0 0.0
    %v5217 = vpop.f32.mrf.mxu0
    %v5218 = vadd.f32 %v5172, %v5217
    %5219 = vmatmul.f32.gmra.mxu0 0.0
    %v5220 = vpop.f32.mrf.mxu0
    %v5221 = vadd.f32 %v5172, %v5220
    %5222 = vdwg.mxu0
    %5223 = vmatpush.msra.mxu0 %v5169
    %5224 = vmatpush.msra.mxu0 %v5166
    %5225 = vmatpush.msra.mxu0 %v5163
    %5226 = vmatpush.msra.mxu0 %v5160
    %5227 = vmatpush.msra.mxu0 %v5157
    %5228 = vmatpush.msra.mxu0 %v5154
    %5229 = vmatpush.msra.mxu0 %v5151
    %5230 = vmatpush.msra.mxu0 %v5148
    %5231 = vmatpush.msra.mxu0 %v5145
    %5232 = vmatpush.msra.mxu0 %v5142
    %5233 = vmatpush.msra.mxu0 %v5139
    %5234 = vmatpush.msra.mxu0 %v5136
    %5235 = vmatpush.msra.mxu0 %v5133
    %5236 = vmatpush.msra.mxu0 %v5130
    %5237 = vmatpush.msra.mxu0 %v5127
    %5238 = vmatpush.msra.mxu0 %v5124
    %5239 = vmatmul.f32.gmra.mxu0 0.0
    %v5240 = vpop.f32.mrf.mxu0
    %v5241 = vadd.f32 %v5173, %v5240
    %5242 = vmatmul.f32.gmra.mxu0 0.0
    %v5243 = vpop.f32.mrf.mxu0
    %v5244 = vadd.f32 %v5173, %v5243
    %5245 = vdwg.mxu0
    %v5246 = vadd.f32 %v5071, %v5195
    %v5247 = vadd.f32 %v5074, %v5198
    %v5248 = vxor.u32 %v5246, 2147483648
    %v5249 = vxor.u32 %v5247, 2147483648
    %v5250 = vmul.f32 %v5248, 1.442695
    %v5251 = vpow.pop %v5250
    %v5252 = vmul.f32 %v5249, 1.442695
    %v5253 = vpow.pop %v5252
    %v5254 = vadd.f32 %v5251, 1.0
    %v5255 = vadd.f32 %v5253, 1.0
    %v5256 = vrcp.pop %v5254
    %v5257 = vmul.f32 %v5254, %v5256
    %v5258 = vsub.f32 1.0, %v5257
    %v5259 = vmul.f32 %v5256, %v5258
    %v5260 = vadd.f32 %v5256, %v5259
    %vm5261 = vweird.f32 %v5254
    %vm5262 = vweird.f32 %v5256
    %vm5263 = vmor %vm5261, %vm5262
    %v5264 = vsel %vm5263, %v5256, %v5260
    %v5265 = vand.u32 2147483647, %v5254
    %vm5266 = vcmp.eq.f32.partialorder %v5265, 8.507059e+37
    %v5267 = vand.u32 %v5254, 2147483648
    %v5268 = vor.u32 1.1754944e-38, %v5267
    %v5269 = vsel %vm5266, %v5268, %v5264
    %v5270 = vmul.f32 1.0, %v5269
    %v5271 = vrcp.pop %v5255
    %v5272 = vmul.f32 %v5255, %v5271
    %v5273 = vsub.f32 1.0, %v5272
    %v5274 = vmul.f32 %v5271, %v5273
    %v5275 = vadd.f32 %v5271, %v5274
    %vm5276 = vweird.f32 %v5255
    %vm5277 = vweird.f32 %v5271
    %vm5278 = vmor %vm5276, %vm5277
    %v5279 = vsel %vm5278, %v5271, %v5275
    %v5280 = vand.u32 2147483647, %v5255
    %vm5281 = vcmp.eq.f32.partialorder %v5280, 8.507059e+37
    %v5282 = vand.u32 %v5255, 2147483648
    %v5283 = vor.u32 1.1754944e-38, %v5282
    %v5284 = vsel %vm5281, %v5283, %v5279
    %v5285 = vmul.f32 1.0, %v5284
    %v5286 = vadd.f32 %v5094, %v5218
    %v5287 = vadd.f32 %v5097, %v5221
    %v5288 = vxor.u32 %v5286, 2147483648
    %v5289 = vxor.u32 %v5287, 2147483648
    %v5290 = vmul.f32 %v5288, 1.442695
    %v5291 = vpow.pop %v5290
    %v5292 = vmul.f32 %v5289, 1.442695
    %v5293 = vpow.pop %v5292
    %v5294 = vadd.f32 %v5291, 1.0
    %v5295 = vadd.f32 %v5293, 1.0
    %v5296 = vrcp.pop %v5294
    %v5297 = vmul.f32 %v5294, %v5296
    %v5298 = vsub.f32 1.0, %v5297
    %v5299 = vmul.f32 %v5296, %v5298
    %v5300 = vadd.f32 %v5296, %v5299
    %vm5301 = vweird.f32 %v5294
    %vm5302 = vweird.f32 %v5296
    %vm5303 = vmor %vm5301, %vm5302
    %v5304 = vsel %vm5303, %v5296, %v5300
    %v5305 = vand.u32 2147483647, %v5294
    %vm5306 = vcmp.eq.f32.partialorder %v5305, 8.507059e+37
    %v5307 = vand.u32 %v5294, 2147483648
    %v5308 = vor.u32 1.1754944e-38, %v5307
    %v5309 = vsel %vm5306, %v5308, %v5304
    %v5310 = vmul.f32 1.0, %v5309
    %v5311 = vrcp.pop %v5295
    %v5312 = vmul.f32 %v5295, %v5311
    %v5313 = vsub.f32 1.0, %v5312
    %v5314 = vmul.f32 %v5311, %v5313
    %v5315 = vadd.f32 %v5311, %v5314
    %vm5316 = vweird.f32 %v5295
    %vm5317 = vweird.f32 %v5311
    %vm5318 = vmor %vm5316, %vm5317
    %v5319 = vsel %vm5318, %v5311, %v5315
    %v5320 = vand.u32 2147483647, %v5295
    %vm5321 = vcmp.eq.f32.partialorder %v5320, 8.507059e+37
    %v5322 = vand.u32 %v5295, 2147483648
    %v5323 = vor.u32 1.1754944e-38, %v5322
    %v5324 = vsel %vm5321, %v5323, %v5319
    %v5325 = vmul.f32 1.0, %v5324
    %v5326 = vmul.f32 %v5270, %v5241
    %v5327 = vmul.f32 %v5285, %v5244
    %v5328 = vadd.f32 %v5117, %v5326
    %v5329 = vadd.f32 %v5120, %v5327
    %v5330 = vtanh.pop %v5328
    %v5331 = vtanh.pop %v5329
    %v5332 = vsub.f32 1.0, %v5310
    %v5333 = vsub.f32 1.0, %v5325
    %v5334 = vmul.f32 %v5332, %v5330
    %v5335 = vmul.f32 %v5333, %v5331
    %v5336 = vmul.f32 %v5310, 0.0
    %v5337 = vmul.f32 %v5325, 0.0
    %v5338 = vadd.f32 %v5334, %v5336
    %v5339 = vadd.f32 %v5335, %v5337
    %5340 = vmatpush.msra.mxu0 %v5043
    %5341 = vmatpush.msra.mxu0 %v5040
    %5342 = vmatpush.msra.mxu0 %v5037
    %5343 = vmatpush.msra.mxu0 %v5034
    %5344 = vmatpush.msra.mxu0 %v5031
    %5345 = vmatpush.msra.mxu0 %v5028
    %5346 = vmatpush.msra.mxu0 %v5025
    %5347 = vmatpush.msra.mxu0 %v5022
    %5348 = vmatpush.msra.mxu0 %v5019
    %5349 = vmatpush.msra.mxu0 %v5016
    %5350 = vmatpush.msra.mxu0 %v5013
    %5351 = vmatpush.msra.mxu0 %v5010
    %5352 = vmatpush.msra.mxu0 %v5007
    %5353 = vmatpush.msra.mxu0 %v5004
    %5354 = vmatpush.msra.mxu0 %v5001
    %5355 = vmatpush.msra.mxu0 %v4998
    %5356 = vmatmul.f32.gmra.mxu0 %v3566
    %v5357 = vpop.f32.mrf.mxu0
    %v5358 = vadd.f32 %v5047, %v5357
    %5359 = vmatmul.f32.gmra.mxu0 %v3567
    %v5360 = vpop.f32.mrf.mxu0
    %v5361 = vadd.f32 %v5047, %v5360
    %5362 = vdwg.mxu0
    %5363 = vmatpush.msra.mxu0 %v5044
    %5364 = vmatpush.msra.mxu0 %v5041
    %5365 = vmatpush.msra.mxu0 %v5038
    %5366 = vmatpush.msra.mxu0 %v5035
    %5367 = vmatpush.msra.mxu0 %v5032
    %5368 = vmatpush.msra.mxu0 %v5029
    %5369 = vmatpush.msra.mxu0 %v5026
    %5370 = vmatpush.msra.mxu0 %v5023
    %5371 = vmatpush.msra.mxu0 %v5020
    %5372 = vmatpush.msra.mxu0 %v5017
    %5373 = vmatpush.msra.mxu0 %v5014
    %5374 = vmatpush.msra.mxu0 %v5011
    %5375 = vmatpush.msra.mxu0 %v5008
    %5376 = vmatpush.msra.mxu0 %v5005
    %5377 = vmatpush.msra.mxu0 %v5002
    %5378 = vmatpush.msra.mxu0 %v4999
    %5379 = vmatmul.f32.gmra.mxu0 %v3566
    %v5380 = vpop.f32.mrf.mxu0
    %v5381 = vadd.f32 %v5048, %v5380
    %5382 = vmatmul.f32.gmra.mxu0 %v3567
    %v5383 = vpop.f32.mrf.mxu0
    %v5384 = vadd.f32 %v5048, %v5383
    %5385 = vdwg.mxu0
    %5386 = vmatpush.msra.mxu0 %v5045
    %5387 = vmatpush.msra.mxu0 %v5042
    %5388 = vmatpush.msra.mxu0 %v5039
    %5389 = vmatpush.msra.mxu0 %v5036
    %5390 = vmatpush.msra.mxu0 %v5033
    %5391 = vmatpush.msra.mxu0 %v5030
    %5392 = vmatpush.msra.mxu0 %v5027
    %5393 = vmatpush.msra.mxu0 %v5024
    %5394 = vmatpush.msra.mxu0 %v5021
    %5395 = vmatpush.msra.mxu0 %v5018
    %5396 = vmatpush.msra.mxu0 %v5015
    %5397 = vmatpush.msra.mxu0 %v5012
    %5398 = vmatpush.msra.mxu0 %v5009
    %5399 = vmatpush.msra.mxu0 %v5006
    %5400 = vmatpush.msra.mxu0 %v5003
    %5401 = vmatpush.msra.mxu0 %v5000
    %5402 = vmatmul.f32.gmra.mxu0 %v3566
    %v5403 = vpop.f32.mrf.mxu0
    %v5404 = vadd.f32 %v5049, %v5403
    %5405 = vmatmul.f32.gmra.mxu0 %v3567
    %v5406 = vpop.f32.mrf.mxu0
    %v5407 = vadd.f32 %v5049, %v5406
    %5408 = vdwg.mxu0
    %5409 = vmatpush.msra.mxu0 %v5167
    %5410 = vmatpush.msra.mxu0 %v5164
    %5411 = vmatpush.msra.mxu0 %v5161
    %5412 = vmatpush.msra.mxu0 %v5158
    %5413 = vmatpush.msra.mxu0 %v5155
    %5414 = vmatpush.msra.mxu0 %v5152
    %5415 = vmatpush.msra.mxu0 %v5149
    %5416 = vmatpush.msra.mxu0 %v5146
    %5417 = vmatpush.msra.mxu0 %v5143
    %5418 = vmatpush.msra.mxu0 %v5140
    %5419 = vmatpush.msra.mxu0 %v5137
    %5420 = vmatpush.msra.mxu0 %v5134
    %5421 = vmatpush.msra.mxu0 %v5131
    %5422 = vmatpush.msra.mxu0 %v5128
    %5423 = vmatpush.msra.mxu0 %v5125
    %5424 = vmatpush.msra.mxu0 %v5122
    %5425 = vmatmul.f32.gmra.mxu0 %v5338
    %v5426 = vpop.f32.mrf.mxu0
    %v5427 = vadd.f32 %v5171, %v5426
    %5428 = vmatmul.f32.gmra.mxu0 %v5339
    %v5429 = vpop.f32.mrf.mxu0
    %v5430 = vadd.f32 %v5171, %v5429
    %5431 = vdwg.mxu0
    %5432 = vmatpush.msra.mxu0 %v5168
    %5433 = vmatpush.msra.mxu0 %v5165
    %5434 = vmatpush.msra.mxu0 %v5162
    %5435 = vmatpush.msra.mxu0 %v5159
    %5436 = vmatpush.msra.mxu0 %v5156
    %5437 = vmatpush.msra.mxu0 %v5153
    %5438 = vmatpush.msra.mxu0 %v5150
    %5439 = vmatpush.msra.mxu0 %v5147
    %5440 = vmatpush.msra.mxu0 %v5144
    %5441 = vmatpush.msra.mxu0 %v5141
    %5442 = vmatpush.msra.mxu0 %v5138
    %5443 = vmatpush.msra.mxu0 %v5135
    %5444 = vmatpush.msra.mxu0 %v5132
    %5445 = vmatpush.msra.mxu0 %v5129
    %5446 = vmatpush.msra.mxu0 %v5126
    %5447 = vmatpush.msra.mxu0 %v5123
    %5448 = vmatmul.f32.gmra.mxu0 %v5338
    %v5449 = vpop.f32.mrf.mxu0
    %v5450 = vadd.f32 %v5172, %v5449
    %5451 = vmatmul.f32.gmra.mxu0 %v5339
    %v5452 = vpop.f32.mrf.mxu0
    %v5453 = vadd.f32 %v5172, %v5452
    %5454 = vdwg.mxu0
    %5455 = vmatpush.msra.mxu0 %v5169
    %5456 = vmatpush.msra.mxu0 %v5166
    %5457 = vmatpush.msra.mxu0 %v5163
    %5458 = vmatpush.msra.mxu0 %v5160
    %5459 = vmatpush.msra.mxu0 %v5157
    %5460 = vmatpush.msra.mxu0 %v5154
    %5461 = vmatpush.msra.mxu0 %v5151
    %5462 = vmatpush.msra.mxu0 %v5148
    %5463 = vmatpush.msra.mxu0 %v5145
    %5464 = vmatpush.msra.mxu0 %v5142
    %5465 = vmatpush.msra.mxu0 %v5139
    %5466 = vmatpush.msra.mxu0 %v5136
    %5467 = vmatpush.msra.mxu0 %v5133
    %5468 = vmatpush.msra.mxu0 %v5130
    %5469 = vmatpush.msra.mxu0 %v5127
    %5470 = vmatpush.msra.mxu0 %v5124
    %5471 = vmatmul.f32.gmra.mxu0 %v5338
    %v5472 = vpop.f32.mrf.mxu0
    %v5473 = vadd.f32 %v5173, %v5472
    %5474 = vmatmul.f32.gmra.mxu0 %v5339
    %v5475 = vpop.f32.mrf.mxu0
    %v5476 = vadd.f32 %v5173, %v5475
    %5477 = vdwg.mxu0
    %v5478 = vadd.f32 %v5358, %v5427
    %v5479 = vadd.f32 %v5361, %v5430
    %v5480 = vxor.u32 %v5478, 2147483648
    %v5481 = vxor.u32 %v5479, 2147483648
    %v5482 = vmul.f32 %v5480, 1.442695
    %v5483 = vpow.pop %v5482
    %v5484 = vmul.f32 %v5481, 1.442695
    %v5485 = vpow.pop %v5484
    %v5486 = vadd.f32 %v5483, 1.0
    %v5487 = vadd.f32 %v5485, 1.0
    %v5488 = vrcp.pop %v5486
    %v5489 = vmul.f32 %v5486, %v5488
    %v5490 = vsub.f32 1.0, %v5489
    %v5491 = vmul.f32 %v5488, %v5490
    %v5492 = vadd.f32 %v5488, %v5491
    %vm5493 = vweird.f32 %v5486
    %vm5494 = vweird.f32 %v5488
    %vm5495 = vmor %vm5493, %vm5494
    %v5496 = vsel %vm5495, %v5488, %v5492
    %v5497 = vand.u32 2147483647, %v5486
    %vm5498 = vcmp.eq.f32.partialorder %v5497, 8.507059e+37
    %v5499 = vand.u32 %v5486, 2147483648
    %v5500 = vor.u32 1.1754944e-38, %v5499
    %v5501 = vsel %vm5498, %v5500, %v5496
    %v5502 = vmul.f32 1.0, %v5501
    %v5503 = vrcp.pop %v5487
    %v5504 = vmul.f32 %v5487, %v5503
    %v5505 = vsub.f32 1.0, %v5504
    %v5506 = vmul.f32 %v5503, %v5505
    %v5507 = vadd.f32 %v5503, %v5506
    %vm5508 = vweird.f32 %v5487
    %vm5509 = vweird.f32 %v5503
    %vm5510 = vmor %vm5508, %vm5509
    %v5511 = vsel %vm5510, %v5503, %v5507
    %v5512 = vand.u32 2147483647, %v5487
    %vm5513 = vcmp.eq.f32.partialorder %v5512, 8.507059e+37
    %v5514 = vand.u32 %v5487, 2147483648
    %v5515 = vor.u32 1.1754944e-38, %v5514
    %v5516 = vsel %vm5513, %v5515, %v5511
    %v5517 = vmul.f32 1.0, %v5516
    %v5518 = vadd.f32 %v5381, %v5450
    %v5519 = vadd.f32 %v5384, %v5453
    %v5520 = vxor.u32 %v5518, 2147483648
    %v5521 = vxor.u32 %v5519, 2147483648
    %v5522 = vmul.f32 %v5520, 1.442695
    %v5523 = vpow.pop %v5522
    %v5524 = vmul.f32 %v5521, 1.442695
    %v5525 = vpow.pop %v5524
    %v5526 = vadd.f32 %v5523, 1.0
    %v5527 = vadd.f32 %v5525, 1.0
    %v5528 = vrcp.pop %v5526
    %v5529 = vmul.f32 %v5526, %v5528
    %v5530 = vsub.f32 1.0, %v5529
    %v5531 = vmul.f32 %v5528, %v5530
    %v5532 = vadd.f32 %v5528, %v5531
    %vm5533 = vweird.f32 %v5526
    %vm5534 = vweird.f32 %v5528
    %vm5535 = vmor %vm5533, %vm5534
    %v5536 = vsel %vm5535, %v5528, %v5532
    %v5537 = vand.u32 2147483647, %v5526
    %vm5538 = vcmp.eq.f32.partialorder %v5537, 8.507059e+37
    %v5539 = vand.u32 %v5526, 2147483648
    %v5540 = vor.u32 1.1754944e-38, %v5539
    %v5541 = vsel %vm5538, %v5540, %v5536
    %v5542 = vmul.f32 1.0, %v5541
    %v5543 = vrcp.pop %v5527
    %v5544 = vmul.f32 %v5527, %v5543
    %v5545 = vsub.f32 1.0, %v5544
    %v5546 = vmul.f32 %v5543, %v5545
    %v5547 = vadd.f32 %v5543, %v5546
    %vm5548 = vweird.f32 %v5527
    %vm5549 = vweird.f32 %v5543
    %vm5550 = vmor %vm5548, %vm5549
    %v5551 = vsel %vm5550, %v5543, %v5547
    %v5552 = vand.u32 2147483647, %v5527
    %vm5553 = vcmp.eq.f32.partialorder %v5552, 8.507059e+37
    %v5554 = vand.u32 %v5527, 2147483648
    %v5555 = vor.u32 1.1754944e-38, %v5554
    %v5556 = vsel %vm5553, %v5555, %v5551
    %v5557 = vmul.f32 1.0, %v5556
    %v5558 = vmul.f32 %v5502, %v5473
    %v5559 = vmul.f32 %v5517, %v5476
    %v5560 = vadd.f32 %v5404, %v5558
    %v5561 = vadd.f32 %v5407, %v5559
    %v5562 = vtanh.pop %v5560
    %v5563 = vtanh.pop %v5561
    %v5564 = vsub.f32 1.0, %v5542
    %v5565 = vsub.f32 1.0, %v5557
    %v5566 = vmul.f32 %v5564, %v5562
    %v5567 = vmul.f32 %v5565, %v5563
    %v5568 = vmul.f32 %v5542, %v5338
    %v5569 = vmul.f32 %v5557, %v5339
    %v5570 = vadd.f32 %v5566, %v5568
    %v5571 = vadd.f32 %v5567, %v5569
    %5572 = vmatpush.msra.mxu0 %v5043
    %5573 = vmatpush.msra.mxu0 %v5040
    %5574 = vmatpush.msra.mxu0 %v5037
    %5575 = vmatpush.msra.mxu0 %v5034
    %5576 = vmatpush.msra.mxu0 %v5031
    %5577 = vmatpush.msra.mxu0 %v5028
    %5578 = vmatpush.msra.mxu0 %v5025
    %5579 = vmatpush.msra.mxu0 %v5022
    %5580 = vmatpush.msra.mxu0 %v5019
    %5581 = vmatpush.msra.mxu0 %v5016
    %5582 = vmatpush.msra.mxu0 %v5013
    %5583 = vmatpush.msra.mxu0 %v5010
    %5584 = vmatpush.msra.mxu0 %v5007
    %5585 = vmatpush.msra.mxu0 %v5004
    %5586 = vmatpush.msra.mxu0 %v5001
    %5587 = vmatpush.msra.mxu0 %v4998
    %5588 = vmatmul.f32.gmra.mxu0 %v3804
    %v5589 = vpop.f32.mrf.mxu0
    %v5590 = vadd.f32 %v5047, %v5589
    %5591 = vmatmul.f32.gmra.mxu0 %v3805
    %v5592 = vpop.f32.mrf.mxu0
    %v5593 = vadd.f32 %v5047, %v5592
    %5594 = vdwg.mxu0
    %5595 = vmatpush.msra.mxu0 %v5044
    %5596 = vmatpush.msra.mxu0 %v5041
    %5597 = vmatpush.msra.mxu0 %v5038
    %5598 = vmatpush.msra.mxu0 %v5035
    %5599 = vmatpush.msra.mxu0 %v5032
    %5600 = vmatpush.msra.mxu0 %v5029
    %5601 = vmatpush.msra.mxu0 %v5026
    %5602 = vmatpush.msra.mxu0 %v5023
    %5603 = vmatpush.msra.mxu0 %v5020
    %5604 = vmatpush.msra.mxu0 %v5017
    %5605 = vmatpush.msra.mxu0 %v5014
    %5606 = vmatpush.msra.mxu0 %v5011
    %5607 = vmatpush.msra.mxu0 %v5008
    %5608 = vmatpush.msra.mxu0 %v5005
    %5609 = vmatpush.msra.mxu0 %v5002
    %5610 = vmatpush.msra.mxu0 %v4999
    %5611 = vmatmul.f32.gmra.mxu0 %v3804
    %v5612 = vpop.f32.mrf.mxu0
    %v5613 = vadd.f32 %v5048, %v5612
    %5614 = vmatmul.f32.gmra.mxu0 %v3805
    %v5615 = vpop.f32.mrf.mxu0
    %v5616 = vadd.f32 %v5048, %v5615
    %5617 = vdwg.mxu0
    %5618 = vmatpush.msra.mxu0 %v5045
    %5619 = vmatpush.msra.mxu0 %v5042
    %5620 = vmatpush.msra.mxu0 %v5039
    %5621 = vmatpush.msra.mxu0 %v5036
    %5622 = vmatpush.msra.mxu0 %v5033
    %5623 = vmatpush.msra.mxu0 %v5030
    %5624 = vmatpush.msra.mxu0 %v5027
    %5625 = vmatpush.msra.mxu0 %v5024
    %5626 = vmatpush.msra.mxu0 %v5021
    %5627 = vmatpush.msra.mxu0 %v5018
    %5628 = vmatpush.msra.mxu0 %v5015
    %5629 = vmatpush.msra.mxu0 %v5012
    %5630 = vmatpush.msra.mxu0 %v5009
    %5631 = vmatpush.msra.mxu0 %v5006
    %5632 = vmatpush.msra.mxu0 %v5003
    %5633 = vmatpush.msra.mxu0 %v5000
    %5634 = vmatmul.f32.gmra.mxu0 %v3804
    %v5635 = vpop.f32.mrf.mxu0
    %v5636 = vadd.f32 %v5049, %v5635
    %5637 = vmatmul.f32.gmra.mxu0 %v3805
    %v5638 = vpop.f32.mrf.mxu0
    %v5639 = vadd.f32 %v5049, %v5638
    %5640 = vdwg.mxu0
    %5641 = vmatpush.msra.mxu0 %v5167
    %5642 = vmatpush.msra.mxu0 %v5164
    %5643 = vmatpush.msra.mxu0 %v5161
    %5644 = vmatpush.msra.mxu0 %v5158
    %5645 = vmatpush.msra.mxu0 %v5155
    %5646 = vmatpush.msra.mxu0 %v5152
    %5647 = vmatpush.msra.mxu0 %v5149
    %5648 = vmatpush.msra.mxu0 %v5146
    %5649 = vmatpush.msra.mxu0 %v5143
    %5650 = vmatpush.msra.mxu0 %v5140
    %5651 = vmatpush.msra.mxu0 %v5137
    %5652 = vmatpush.msra.mxu0 %v5134
    %5653 = vmatpush.msra.mxu0 %v5131
    %5654 = vmatpush.msra.mxu0 %v5128
    %5655 = vmatpush.msra.mxu0 %v5125
    %5656 = vmatpush.msra.mxu0 %v5122
    %5657 = vmatmul.f32.gmra.mxu0 %v5570
    %v5658 = vpop.f32.mrf.mxu0
    %v5659 = vadd.f32 %v5171, %v5658
    %5660 = vmatmul.f32.gmra.mxu0 %v5571
    %v5661 = vpop.f32.mrf.mxu0
    %v5662 = vadd.f32 %v5171, %v5661
    %5663 = vdwg.mxu0
    %5664 = vmatpush.msra.mxu0 %v5168
    %5665 = vmatpush.msra.mxu0 %v5165
    %5666 = vmatpush.msra.mxu0 %v5162
    %5667 = vmatpush.msra.mxu0 %v5159
    %5668 = vmatpush.msra.mxu0 %v5156
    %5669 = vmatpush.msra.mxu0 %v5153
    %5670 = vmatpush.msra.mxu0 %v5150
    %5671 = vmatpush.msra.mxu0 %v5147
    %5672 = vmatpush.msra.mxu0 %v5144
    %5673 = vmatpush.msra.mxu0 %v5141
    %5674 = vmatpush.msra.mxu0 %v5138
    %5675 = vmatpush.msra.mxu0 %v5135
    %5676 = vmatpush.msra.mxu0 %v5132
    %5677 = vmatpush.msra.mxu0 %v5129
    %5678 = vmatpush.msra.mxu0 %v5126
    %5679 = vmatpush.msra.mxu0 %v5123
    %5680 = vmatmul.f32.gmra.mxu0 %v5570
    %v5681 = vpop.f32.mrf.mxu0
    %v5682 = vadd.f32 %v5172, %v5681
    %5683 = vmatmul.f32.gmra.mxu0 %v5571
    %v5684 = vpop.f32.mrf.mxu0
    %v5685 = vadd.f32 %v5172, %v5684
    %5686 = vdwg.mxu0
    %5687 = vmatpush.msra.mxu0 %v5169
    %5688 = vmatpush.msra.mxu0 %v5166
    %5689 = vmatpush.msra.mxu0 %v5163
    %5690 = vmatpush.msra.mxu0 %v5160
    %5691 = vmatpush.msra.mxu0 %v5157
    %5692 = vmatpush.msra.mxu0 %v5154
    %5693 = vmatpush.msra.mxu0 %v5151
    %5694 = vmatpush.msra.mxu0 %v5148
    %5695 = vmatpush.msra.mxu0 %v5145
    %5696 = vmatpush.msra.mxu0 %v5142
    %5697 = vmatpush.msra.mxu0 %v5139
    %5698 = vmatpush.msra.mxu0 %v5136
    %5699 = vmatpush.msra.mxu0 %v5133
    %5700 = vmatpush.msra.mxu0 %v5130
    %5701 = vmatpush.msra.mxu0 %v5127
    %5702 = vmatpush.msra.mxu0 %v5124
    %5703 = vmatmul.f32.gmra.mxu0 %v5570
    %v5704 = vpop.f32.mrf.mxu0
    %v5705 = vadd.f32 %v5173, %v5704
    %5706 = vmatmul.f32.gmra.mxu0 %v5571
    %v5707 = vpop.f32.mrf.mxu0
    %v5708 = vadd.f32 %v5173, %v5707
    %5709 = vdwg.mxu0
    %v5710 = vadd.f32 %v5590, %v5659
    %v5711 = vadd.f32 %v5593, %v5662
    %v5712 = vxor.u32 %v5710, 2147483648
    %v5713 = vxor.u32 %v5711, 2147483648
    %v5714 = vmul.f32 %v5712, 1.442695
    %v5715 = vpow.pop %v5714
    %v5716 = vmul.f32 %v5713, 1.442695
    %v5717 = vpow.pop %v5716
    %v5718 = vadd.f32 %v5715, 1.0
    %v5719 = vadd.f32 %v5717, 1.0
    %v5720 = vrcp.pop %v5718
    %v5721 = vmul.f32 %v5718, %v5720
    %v5722 = vsub.f32 1.0, %v5721
    %v5723 = vmul.f32 %v5720, %v5722
    %v5724 = vadd.f32 %v5720, %v5723
    %vm5725 = vweird.f32 %v5718
    %vm5726 = vweird.f32 %v5720
    %vm5727 = vmor %vm5725, %vm5726
    %v5728 = vsel %vm5727, %v5720, %v5724
    %v5729 = vand.u32 2147483647, %v5718
    %vm5730 = vcmp.eq.f32.partialorder %v5729, 8.507059e+37
    %v5731 = vand.u32 %v5718, 2147483648
    %v5732 = vor.u32 1.1754944e-38, %v5731
    %v5733 = vsel %vm5730, %v5732, %v5728
    %v5734 = vmul.f32 1.0, %v5733
    %v5735 = vrcp.pop %v5719
    %v5736 = vmul.f32 %v5719, %v5735
    %v5737 = vsub.f32 1.0, %v5736
    %v5738 = vmul.f32 %v5735, %v5737
    %v5739 = vadd.f32 %v5735, %v5738
    %vm5740 = vweird.f32 %v5719
    %vm5741 = vweird.f32 %v5735
    %vm5742 = vmor %vm5740, %vm5741
    %v5743 = vsel %vm5742, %v5735, %v5739
    %v5744 = vand.u32 2147483647, %v5719
    %vm5745 = vcmp.eq.f32.partialorder %v5744, 8.507059e+37
    %v5746 = vand.u32 %v5719, 2147483648
    %v5747 = vor.u32 1.1754944e-38, %v5746
    %v5748 = vsel %vm5745, %v5747, %v5743
    %v5749 = vmul.f32 1.0, %v5748
    %v5750 = vadd.f32 %v5613, %v5682
    %v5751 = vadd.f32 %v5616, %v5685
    %v5752 = vxor.u32 %v5750, 2147483648
    %v5753 = vxor.u32 %v5751, 2147483648
    %v5754 = vmul.f32 %v5752, 1.442695
    %v5755 = vpow.pop %v5754
    %v5756 = vmul.f32 %v5753, 1.442695
    %v5757 = vpow.pop %v5756
    %v5758 = vadd.f32 %v5755, 1.0
    %v5759 = vadd.f32 %v5757, 1.0
    %v5760 = vrcp.pop %v5758
    %v5761 = vmul.f32 %v5758, %v5760
    %v5762 = vsub.f32 1.0, %v5761
    %v5763 = vmul.f32 %v5760, %v5762
    %v5764 = vadd.f32 %v5760, %v5763
    %vm5765 = vweird.f32 %v5758
    %vm5766 = vweird.f32 %v5760
    %vm5767 = vmor %vm5765, %vm5766
    %v5768 = vsel %vm5767, %v5760, %v5764
    %v5769 = vand.u32 2147483647, %v5758
    %vm5770 = vcmp.eq.f32.partialorder %v5769, 8.507059e+37
    %v5771 = vand.u32 %v5758, 2147483648
    %v5772 = vor.u32 1.1754944e-38, %v5771
    %v5773 = vsel %vm5770, %v5772, %v5768
    %v5774 = vmul.f32 1.0, %v5773
    %v5775 = vrcp.pop %v5759
    %v5776 = vmul.f32 %v5759, %v5775
    %v5777 = vsub.f32 1.0, %v5776
    %v5778 = vmul.f32 %v5775, %v5777
    %v5779 = vadd.f32 %v5775, %v5778
    %vm5780 = vweird.f32 %v5759
    %vm5781 = vweird.f32 %v5775
    %vm5782 = vmor %vm5780, %vm5781
    %v5783 = vsel %vm5782, %v5775, %v5779
    %v5784 = vand.u32 2147483647, %v5759
    %vm5785 = vcmp.eq.f32.partialorder %v5784, 8.507059e+37
    %v5786 = vand.u32 %v5759, 2147483648
    %v5787 = vor.u32 1.1754944e-38, %v5786
    %v5788 = vsel %vm5785, %v5787, %v5783
    %v5789 = vmul.f32 1.0, %v5788
    %v5790 = vmul.f32 %v5734, %v5705
    %v5791 = vmul.f32 %v5749, %v5708
    %v5792 = vadd.f32 %v5636, %v5790
    %v5793 = vadd.f32 %v5639, %v5791
    %v5794 = vtanh.pop %v5792
    %v5795 = vtanh.pop %v5793
    %v5796 = vsub.f32 1.0, %v5774
    %v5797 = vsub.f32 1.0, %v5789
    %v5798 = vmul.f32 %v5796, %v5794
    %v5799 = vmul.f32 %v5797, %v5795
    %v5800 = vmul.f32 %v5774, %v5570
    %v5801 = vmul.f32 %v5789, %v5571
    %v5802 = vadd.f32 %v5798, %v5800
    %v5803 = vadd.f32 %v5799, %v5801
    %5804 = vmatpush.msra.mxu0 %v5043
    %5805 = vmatpush.msra.mxu0 %v5040
    %5806 = vmatpush.msra.mxu0 %v5037
    %5807 = vmatpush.msra.mxu0 %v5034
    %5808 = vmatpush.msra.mxu0 %v5031
    %5809 = vmatpush.msra.mxu0 %v5028
    %5810 = vmatpush.msra.mxu0 %v5025
    %5811 = vmatpush.msra.mxu0 %v5022
    %5812 = vmatpush.msra.mxu0 %v5019
    %5813 = vmatpush.msra.mxu0 %v5016
    %5814 = vmatpush.msra.mxu0 %v5013
    %5815 = vmatpush.msra.mxu0 %v5010
    %5816 = vmatpush.msra.mxu0 %v5007
    %5817 = vmatpush.msra.mxu0 %v5004
    %5818 = vmatpush.msra.mxu0 %v5001
    %5819 = vmatpush.msra.mxu0 %v4998
    %5820 = vmatmul.f32.gmra.mxu0 %v4042
    %v5821 = vpop.f32.mrf.mxu0
    %v5822 = vadd.f32 %v5047, %v5821
    %5823 = vmatmul.f32.gmra.mxu0 %v4043
    %v5824 = vpop.f32.mrf.mxu0
    %v5825 = vadd.f32 %v5047, %v5824
    %5826 = vdwg.mxu0
    %5827 = vmatpush.msra.mxu0 %v5044
    %5828 = vmatpush.msra.mxu0 %v5041
    %5829 = vmatpush.msra.mxu0 %v5038
    %5830 = vmatpush.msra.mxu0 %v5035
    %5831 = vmatpush.msra.mxu0 %v5032
    %5832 = vmatpush.msra.mxu0 %v5029
    %5833 = vmatpush.msra.mxu0 %v5026
    %5834 = vmatpush.msra.mxu0 %v5023
    %5835 = vmatpush.msra.mxu0 %v5020
    %5836 = vmatpush.msra.mxu0 %v5017
    %5837 = vmatpush.msra.mxu0 %v5014
    %5838 = vmatpush.msra.mxu0 %v5011
    %5839 = vmatpush.msra.mxu0 %v5008
    %5840 = vmatpush.msra.mxu0 %v5005
    %5841 = vmatpush.msra.mxu0 %v5002
    %5842 = vmatpush.msra.mxu0 %v4999
    %5843 = vmatmul.f32.gmra.mxu0 %v4042
    %v5844 = vpop.f32.mrf.mxu0
    %v5845 = vadd.f32 %v5048, %v5844
    %5846 = vmatmul.f32.gmra.mxu0 %v4043
    %v5847 = vpop.f32.mrf.mxu0
    %v5848 = vadd.f32 %v5048, %v5847
    %5849 = vdwg.mxu0
    %5850 = vmatpush.msra.mxu0 %v5045
    %5851 = vmatpush.msra.mxu0 %v5042
    %5852 = vmatpush.msra.mxu0 %v5039
    %5853 = vmatpush.msra.mxu0 %v5036
    %5854 = vmatpush.msra.mxu0 %v5033
    %5855 = vmatpush.msra.mxu0 %v5030
    %5856 = vmatpush.msra.mxu0 %v5027
    %5857 = vmatpush.msra.mxu0 %v5024
    %5858 = vmatpush.msra.mxu0 %v5021
    %5859 = vmatpush.msra.mxu0 %v5018
    %5860 = vmatpush.msra.mxu0 %v5015
    %5861 = vmatpush.msra.mxu0 %v5012
    %5862 = vmatpush.msra.mxu0 %v5009
    %5863 = vmatpush.msra.mxu0 %v5006
    %5864 = vmatpush.msra.mxu0 %v5003
    %5865 = vmatpush.msra.mxu0 %v5000
    %5866 = vmatmul.f32.gmra.mxu0 %v4042
    %v5867 = vpop.f32.mrf.mxu0
    %v5868 = vadd.f32 %v5049, %v5867
    %5869 = vmatmul.f32.gmra.mxu0 %v4043
    %v5870 = vpop.f32.mrf.mxu0
    %v5871 = vadd.f32 %v5049, %v5870
    %5872 = vdwg.mxu0
    %5873 = vmatpush.msra.mxu0 %v5167
    %5874 = vmatpush.msra.mxu0 %v5164
    %5875 = vmatpush.msra.mxu0 %v5161
    %5876 = vmatpush.msra.mxu0 %v5158
    %5877 = vmatpush.msra.mxu0 %v5155
    %5878 = vmatpush.msra.mxu0 %v5152
    %5879 = vmatpush.msra.mxu0 %v5149
    %5880 = vmatpush.msra.mxu0 %v5146
    %5881 = vmatpush.msra.mxu0 %v5143
    %5882 = vmatpush.msra.mxu0 %v5140
    %5883 = vmatpush.msra.mxu0 %v5137
    %5884 = vmatpush.msra.mxu0 %v5134
    %5885 = vmatpush.msra.mxu0 %v5131
    %5886 = vmatpush.msra.mxu0 %v5128
    %5887 = vmatpush.msra.mxu0 %v5125
    %5888 = vmatpush.msra.mxu0 %v5122
    %5889 = vmatmul.f32.gmra.mxu0 %v5802
    %v5890 = vpop.f32.mrf.mxu0
    %v5891 = vadd.f32 %v5171, %v5890
    %5892 = vmatmul.f32.gmra.mxu0 %v5803
    %v5893 = vpop.f32.mrf.mxu0
    %v5894 = vadd.f32 %v5171, %v5893
    %5895 = vdwg.mxu0
    %5896 = vmatpush.msra.mxu0 %v5168
    %5897 = vmatpush.msra.mxu0 %v5165
    %5898 = vmatpush.msra.mxu0 %v5162
    %5899 = vmatpush.msra.mxu0 %v5159
    %5900 = vmatpush.msra.mxu0 %v5156
    %5901 = vmatpush.msra.mxu0 %v5153
    %5902 = vmatpush.msra.mxu0 %v5150
    %5903 = vmatpush.msra.mxu0 %v5147
    %5904 = vmatpush.msra.mxu0 %v5144
    %5905 = vmatpush.msra.mxu0 %v5141
    %5906 = vmatpush.msra.mxu0 %v5138
    %5907 = vmatpush.msra.mxu0 %v5135
    %5908 = vmatpush.msra.mxu0 %v5132
    %5909 = vmatpush.msra.mxu0 %v5129
    %5910 = vmatpush.msra.mxu0 %v5126
    %5911 = vmatpush.msra.mxu0 %v5123
    %5912 = vmatmul.f32.gmra.mxu0 %v5802
    %v5913 = vpop.f32.mrf.mxu0
    %v5914 = vadd.f32 %v5172, %v5913
    %5915 = vmatmul.f32.gmra.mxu0 %v5803
    %v5916 = vpop.f32.mrf.mxu0
    %v5917 = vadd.f32 %v5172, %v5916
    %5918 = vdwg.mxu0
    %5919 = vmatpush.msra.mxu0 %v5169
    %5920 = vmatpush.msra.mxu0 %v5166
    %5921 = vmatpush.msra.mxu0 %v5163
    %5922 = vmatpush.msra.mxu0 %v5160
    %5923 = vmatpush.msra.mxu0 %v5157
    %5924 = vmatpush.msra.mxu0 %v5154
    %5925 = vmatpush.msra.mxu0 %v5151
    %5926 = vmatpush.msra.mxu0 %v5148
    %5927 = vmatpush.msra.mxu0 %v5145
    %5928 = vmatpush.msra.mxu0 %v5142
    %5929 = vmatpush.msra.mxu0 %v5139
    %5930 = vmatpush.msra.mxu0 %v5136
    %5931 = vmatpush.msra.mxu0 %v5133
    %5932 = vmatpush.msra.mxu0 %v5130
    %5933 = vmatpush.msra.mxu0 %v5127
    %5934 = vmatpush.msra.mxu0 %v5124
    %5935 = vmatmul.f32.gmra.mxu0 %v5802
    %v5936 = vpop.f32.mrf.mxu0
    %v5937 = vadd.f32 %v5173, %v5936
    %5938 = vmatmul.f32.gmra.mxu0 %v5803
    %v5939 = vpop.f32.mrf.mxu0
    %v5940 = vadd.f32 %v5173, %v5939
    %5941 = vdwg.mxu0
    %v5942 = vadd.f32 %v5822, %v5891
    %v5943 = vadd.f32 %v5825, %v5894
    %v5944 = vxor.u32 %v5942, 2147483648
    %v5945 = vxor.u32 %v5943, 2147483648
    %v5946 = vmul.f32 %v5944, 1.442695
    %v5947 = vpow.pop %v5946
    %v5948 = vmul.f32 %v5945, 1.442695
    %v5949 = vpow.pop %v5948
    %v5950 = vadd.f32 %v5947, 1.0
    %v5951 = vadd.f32 %v5949, 1.0
    %v5952 = vrcp.pop %v5950
    %v5953 = vmul.f32 %v5950, %v5952
    %v5954 = vsub.f32 1.0, %v5953
    %v5955 = vmul.f32 %v5952, %v5954
    %v5956 = vadd.f32 %v5952, %v5955
    %vm5957 = vweird.f32 %v5950
    %vm5958 = vweird.f32 %v5952
    %vm5959 = vmor %vm5957, %vm5958
    %v5960 = vsel %vm5959, %v5952, %v5956
    %v5961 = vand.u32 2147483647, %v5950
    %vm5962 = vcmp.eq.f32.partialorder %v5961, 8.507059e+37
    %v5963 = vand.u32 %v5950, 2147483648
    %v5964 = vor.u32 1.1754944e-38, %v5963
    %v5965 = vsel %vm5962, %v5964, %v5960
    %v5966 = vmul.f32 1.0, %v5965
    %v5967 = vrcp.pop %v5951
    %v5968 = vmul.f32 %v5951, %v5967
    %v5969 = vsub.f32 1.0, %v5968
    %v5970 = vmul.f32 %v5967, %v5969
    %v5971 = vadd.f32 %v5967, %v5970
    %vm5972 = vweird.f32 %v5951
    %vm5973 = vweird.f32 %v5967
    %vm5974 = vmor %vm5972, %vm5973
    %v5975 = vsel %vm5974, %v5967, %v5971
    %v5976 = vand.u32 2147483647, %v5951
    %vm5977 = vcmp.eq.f32.partialorder %v5976, 8.507059e+37
    %v5978 = vand.u32 %v5951, 2147483648
    %v5979 = vor.u32 1.1754944e-38, %v5978
    %v5980 = vsel %vm5977, %v5979, %v5975
    %v5981 = vmul.f32 1.0, %v5980
    %v5982 = vadd.f32 %v5845, %v5914
    %v5983 = vadd.f32 %v5848, %v5917
    %v5984 = vxor.u32 %v5982, 2147483648
    %v5985 = vxor.u32 %v5983, 2147483648
    %v5986 = vmul.f32 %v5984, 1.442695
    %v5987 = vpow.pop %v5986
    %v5988 = vmul.f32 %v5985, 1.442695
    %v5989 = vpow.pop %v5988
    %v5990 = vadd.f32 %v5987, 1.0
    %v5991 = vadd.f32 %v5989, 1.0
    %v5992 = vrcp.pop %v5990
    %v5993 = vmul.f32 %v5990, %v5992
    %v5994 = vsub.f32 1.0, %v5993
    %v5995 = vmul.f32 %v5992, %v5994
    %v5996 = vadd.f32 %v5992, %v5995
    %vm5997 = vweird.f32 %v5990
    %vm5998 = vweird.f32 %v5992
    %vm5999 = vmor %vm5997, %vm5998
    %v6000 = vsel %vm5999, %v5992, %v5996
    %v6001 = vand.u32 2147483647, %v5990
    %vm6002 = vcmp.eq.f32.partialorder %v6001, 8.507059e+37
    %v6003 = vand.u32 %v5990, 2147483648
    %v6004 = vor.u32 1.1754944e-38, %v6003
    %v6005 = vsel %vm6002, %v6004, %v6000
    %v6006 = vmul.f32 1.0, %v6005
    %v6007 = vrcp.pop %v5991
    %v6008 = vmul.f32 %v5991, %v6007
    %v6009 = vsub.f32 1.0, %v6008
    %v6010 = vmul.f32 %v6007, %v6009
    %v6011 = vadd.f32 %v6007, %v6010
    %vm6012 = vweird.f32 %v5991
    %vm6013 = vweird.f32 %v6007
    %vm6014 = vmor %vm6012, %vm6013
    %v6015 = vsel %vm6014, %v6007, %v6011
    %v6016 = vand.u32 2147483647, %v5991
    %vm6017 = vcmp.eq.f32.partialorder %v6016, 8.507059e+37
    %v6018 = vand.u32 %v5991, 2147483648
    %v6019 = vor.u32 1.1754944e-38, %v6018
    %v6020 = vsel %vm6017, %v6019, %v6015
    %v6021 = vmul.f32 1.0, %v6020
    %v6022 = vmul.f32 %v5966, %v5937
    %v6023 = vmul.f32 %v5981, %v5940
    %v6024 = vadd.f32 %v5868, %v6022
    %v6025 = vadd.f32 %v5871, %v6023
    %v6026 = vtanh.pop %v6024
    %v6027 = vtanh.pop %v6025
    %v6028 = vsub.f32 1.0, %v6006
    %v6029 = vsub.f32 1.0, %v6021
    %v6030 = vmul.f32 %v6028, %v6026
    %v6031 = vmul.f32 %v6029, %v6027
    %v6032 = vmul.f32 %v6006, %v5802
    %v6033 = vmul.f32 %v6021, %v5803
    %v6034 = vadd.f32 %v6030, %v6032
    %v6035 = vadd.f32 %v6031, %v6033
    %6036 = vmatpush.msra.mxu0 %v5043
    %6037 = vmatpush.msra.mxu0 %v5040
    %6038 = vmatpush.msra.mxu0 %v5037
    %6039 = vmatpush.msra.mxu0 %v5034
    %6040 = vmatpush.msra.mxu0 %v5031
    %6041 = vmatpush.msra.mxu0 %v5028
    %6042 = vmatpush.msra.mxu0 %v5025
    %6043 = vmatpush.msra.mxu0 %v5022
    %6044 = vmatpush.msra.mxu0 %v5019
    %6045 = vmatpush.msra.mxu0 %v5016
    %6046 = vmatpush.msra.mxu0 %v5013
    %6047 = vmatpush.msra.mxu0 %v5010
    %6048 = vmatpush.msra.mxu0 %v5007
    %6049 = vmatpush.msra.mxu0 %v5004
    %6050 = vmatpush.msra.mxu0 %v5001
    %6051 = vmatpush.msra.mxu0 %v4998
    %6052 = vmatmul.f32.gmra.mxu0 %v4280
    %v6053 = vpop.f32.mrf.mxu0
    %v6054 = vadd.f32 %v5047, %v6053
    %6055 = vmatmul.f32.gmra.mxu0 %v4281
    %v6056 = vpop.f32.mrf.mxu0
    %v6057 = vadd.f32 %v5047, %v6056
    %6058 = vdwg.mxu0
    %6059 = vmatpush.msra.mxu0 %v5044
    %6060 = vmatpush.msra.mxu0 %v5041
    %6061 = vmatpush.msra.mxu0 %v5038
    %6062 = vmatpush.msra.mxu0 %v5035
    %6063 = vmatpush.msra.mxu0 %v5032
    %6064 = vmatpush.msra.mxu0 %v5029
    %6065 = vmatpush.msra.mxu0 %v5026
    %6066 = vmatpush.msra.mxu0 %v5023
    %6067 = vmatpush.msra.mxu0 %v5020
    %6068 = vmatpush.msra.mxu0 %v5017
    %6069 = vmatpush.msra.mxu0 %v5014
    %6070 = vmatpush.msra.mxu0 %v5011
    %6071 = vmatpush.msra.mxu0 %v5008
    %6072 = vmatpush.msra.mxu0 %v5005
    %6073 = vmatpush.msra.mxu0 %v5002
    %6074 = vmatpush.msra.mxu0 %v4999
    %6075 = vmatmul.f32.gmra.mxu0 %v4280
    %v6076 = vpop.f32.mrf.mxu0
    %v6077 = vadd.f32 %v5048, %v6076
    %6078 = vmatmul.f32.gmra.mxu0 %v4281
    %v6079 = vpop.f32.mrf.mxu0
    %v6080 = vadd.f32 %v5048, %v6079
    %6081 = vdwg.mxu0
    %6082 = vmatpush.msra.mxu0 %v5045
    %6083 = vmatpush.msra.mxu0 %v5042
    %6084 = vmatpush.msra.mxu0 %v5039
    %6085 = vmatpush.msra.mxu0 %v5036
    %6086 = vmatpush.msra.mxu0 %v5033
    %6087 = vmatpush.msra.mxu0 %v5030
    %6088 = vmatpush.msra.mxu0 %v5027
    %6089 = vmatpush.msra.mxu0 %v5024
    %6090 = vmatpush.msra.mxu0 %v5021
    %6091 = vmatpush.msra.mxu0 %v5018
    %6092 = vmatpush.msra.mxu0 %v5015
    %6093 = vmatpush.msra.mxu0 %v5012
    %6094 = vmatpush.msra.mxu0 %v5009
    %6095 = vmatpush.msra.mxu0 %v5006
    %6096 = vmatpush.msra.mxu0 %v5003
    %6097 = vmatpush.msra.mxu0 %v5000
    %6098 = vmatmul.f32.gmra.mxu0 %v4280
    %v6099 = vpop.f32.mrf.mxu0
    %v6100 = vadd.f32 %v5049, %v6099
    %6101 = vmatmul.f32.gmra.mxu0 %v4281
    %v6102 = vpop.f32.mrf.mxu0
    %v6103 = vadd.f32 %v5049, %v6102
    %6104 = vdwg.mxu0
    %6105 = vmatpush.msra.mxu0 %v5167
    %6106 = vmatpush.msra.mxu0 %v5164
    %6107 = vmatpush.msra.mxu0 %v5161
    %6108 = vmatpush.msra.mxu0 %v5158
    %6109 = vmatpush.msra.mxu0 %v5155
    %6110 = vmatpush.msra.mxu0 %v5152
    %6111 = vmatpush.msra.mxu0 %v5149
    %6112 = vmatpush.msra.mxu0 %v5146
    %6113 = vmatpush.msra.mxu0 %v5143
    %6114 = vmatpush.msra.mxu0 %v5140
    %6115 = vmatpush.msra.mxu0 %v5137
    %6116 = vmatpush.msra.mxu0 %v5134
    %6117 = vmatpush.msra.mxu0 %v5131
    %6118 = vmatpush.msra.mxu0 %v5128
    %6119 = vmatpush.msra.mxu0 %v5125
    %6120 = vmatpush.msra.mxu0 %v5122
    %6121 = vmatmul.f32.gmra.mxu0 %v6034
    %v6122 = vpop.f32.mrf.mxu0
    %v6123 = vadd.f32 %v5171, %v6122
    %6124 = vmatmul.f32.gmra.mxu0 %v6035
    %v6125 = vpop.f32.mrf.mxu0
    %v6126 = vadd.f32 %v5171, %v6125
    %6127 = vdwg.mxu0
    %6128 = vmatpush.msra.mxu0 %v5168
    %6129 = vmatpush.msra.mxu0 %v5165
    %6130 = vmatpush.msra.mxu0 %v5162
    %6131 = vmatpush.msra.mxu0 %v5159
    %6132 = vmatpush.msra.mxu0 %v5156
    %6133 = vmatpush.msra.mxu0 %v5153
    %6134 = vmatpush.msra.mxu0 %v5150
    %6135 = vmatpush.msra.mxu0 %v5147
    %6136 = vmatpush.msra.mxu0 %v5144
    %6137 = vmatpush.msra.mxu0 %v5141
    %6138 = vmatpush.msra.mxu0 %v5138
    %6139 = vmatpush.msra.mxu0 %v5135
    %6140 = vmatpush.msra.mxu0 %v5132
    %6141 = vmatpush.msra.mxu0 %v5129
    %6142 = vmatpush.msra.mxu0 %v5126
    %6143 = vmatpush.msra.mxu0 %v5123
    %6144 = vmatmul.f32.gmra.mxu0 %v6034
    %v6145 = vpop.f32.mrf.mxu0
    %v6146 = vadd.f32 %v5172, %v6145
    %6147 = vmatmul.f32.gmra.mxu0 %v6035
    %v6148 = vpop.f32.mrf.mxu0
    %v6149 = vadd.f32 %v5172, %v6148
    %6150 = vdwg.mxu0
    %6151 = vmatpush.msra.mxu0 %v5169
    %6152 = vmatpush.msra.mxu0 %v5166
    %6153 = vmatpush.msra.mxu0 %v5163
    %6154 = vmatpush.msra.mxu0 %v5160
    %6155 = vmatpush.msra.mxu0 %v5157
    %6156 = vmatpush.msra.mxu0 %v5154
    %6157 = vmatpush.msra.mxu0 %v5151
    %6158 = vmatpush.msra.mxu0 %v5148
    %6159 = vmatpush.msra.mxu0 %v5145
    %6160 = vmatpush.msra.mxu0 %v5142
    %6161 = vmatpush.msra.mxu0 %v5139
    %6162 = vmatpush.msra.mxu0 %v5136
    %6163 = vmatpush.msra.mxu0 %v5133
    %6164 = vmatpush.msra.mxu0 %v5130
    %6165 = vmatpush.msra.mxu0 %v5127
    %6166 = vmatpush.msra.mxu0 %v5124
    %6167 = vmatmul.f32.gmra.mxu0 %v6034
    %v6168 = vpop.f32.mrf.mxu0
    %v6169 = vadd.f32 %v5173, %v6168
    %6170 = vmatmul.f32.gmra.mxu0 %v6035
    %v6171 = vpop.f32.mrf.mxu0
    %v6172 = vadd.f32 %v5173, %v6171
    %6173 = vdwg.mxu0
    %v6174 = vadd.f32 %v6054, %v6123
    %v6175 = vadd.f32 %v6057, %v6126
    %v6176 = vxor.u32 %v6174, 2147483648
    %v6177 = vxor.u32 %v6175, 2147483648
    %v6178 = vmul.f32 %v6176, 1.442695
    %v6179 = vpow.pop %v6178
    %v6180 = vmul.f32 %v6177, 1.442695
    %v6181 = vpow.pop %v6180
    %v6182 = vadd.f32 %v6179, 1.0
    %v6183 = vadd.f32 %v6181, 1.0
    %v6184 = vrcp.pop %v6182
    %v6185 = vmul.f32 %v6182, %v6184
    %v6186 = vsub.f32 1.0, %v6185
    %v6187 = vmul.f32 %v6184, %v6186
    %v6188 = vadd.f32 %v6184, %v6187
    %vm6189 = vweird.f32 %v6182
    %vm6190 = vweird.f32 %v6184
    %vm6191 = vmor %vm6189, %vm6190
    %v6192 = vsel %vm6191, %v6184, %v6188
    %v6193 = vand.u32 2147483647, %v6182
    %vm6194 = vcmp.eq.f32.partialorder %v6193, 8.507059e+37
    %v6195 = vand.u32 %v6182, 2147483648
    %v6196 = vor.u32 1.1754944e-38, %v6195
    %v6197 = vsel %vm6194, %v6196, %v6192
    %v6198 = vmul.f32 1.0, %v6197
    %v6199 = vrcp.pop %v6183
    %v6200 = vmul.f32 %v6183, %v6199
    %v6201 = vsub.f32 1.0, %v6200
    %v6202 = vmul.f32 %v6199, %v6201
    %v6203 = vadd.f32 %v6199, %v6202
    %vm6204 = vweird.f32 %v6183
    %vm6205 = vweird.f32 %v6199
    %vm6206 = vmor %vm6204, %vm6205
    %v6207 = vsel %vm6206, %v6199, %v6203
    %v6208 = vand.u32 2147483647, %v6183
    %vm6209 = vcmp.eq.f32.partialorder %v6208, 8.507059e+37
    %v6210 = vand.u32 %v6183, 2147483648
    %v6211 = vor.u32 1.1754944e-38, %v6210
    %v6212 = vsel %vm6209, %v6211, %v6207
    %v6213 = vmul.f32 1.0, %v6212
    %v6214 = vadd.f32 %v6077, %v6146
    %v6215 = vadd.f32 %v6080, %v6149
    %v6216 = vxor.u32 %v6214, 2147483648
    %v6217 = vxor.u32 %v6215, 2147483648
    %v6218 = vmul.f32 %v6216, 1.442695
    %v6219 = vpow.pop %v6218
    %v6220 = vmul.f32 %v6217, 1.442695
    %v6221 = vpow.pop %v6220
    %v6222 = vadd.f32 %v6219, 1.0
    %v6223 = vadd.f32 %v6221, 1.0
    %v6224 = vrcp.pop %v6222
    %v6225 = vmul.f32 %v6222, %v6224
    %v6226 = vsub.f32 1.0, %v6225
    %v6227 = vmul.f32 %v6224, %v6226
    %v6228 = vadd.f32 %v6224, %v6227
    %vm6229 = vweird.f32 %v6222
    %vm6230 = vweird.f32 %v6224
    %vm6231 = vmor %vm6229, %vm6230
    %v6232 = vsel %vm6231, %v6224, %v6228
    %v6233 = vand.u32 2147483647, %v6222
    %vm6234 = vcmp.eq.f32.partialorder %v6233, 8.507059e+37
    %v6235 = vand.u32 %v6222, 2147483648
    %v6236 = vor.u32 1.1754944e-38, %v6235
    %v6237 = vsel %vm6234, %v6236, %v6232
    %v6238 = vmul.f32 1.0, %v6237
    %v6239 = vrcp.pop %v6223
    %v6240 = vmul.f32 %v6223, %v6239
    %v6241 = vsub.f32 1.0, %v6240
    %v6242 = vmul.f32 %v6239, %v6241
    %v6243 = vadd.f32 %v6239, %v6242
    %vm6244 = vweird.f32 %v6223
    %vm6245 = vweird.f32 %v6239
    %vm6246 = vmor %vm6244, %vm6245
    %v6247 = vsel %vm6246, %v6239, %v6243
    %v6248 = vand.u32 2147483647, %v6223
    %vm6249 = vcmp.eq.f32.partialorder %v6248, 8.507059e+37
    %v6250 = vand.u32 %v6223, 2147483648
    %v6251 = vor.u32 1.1754944e-38, %v6250
    %v6252 = vsel %vm6249, %v6251, %v6247
    %v6253 = vmul.f32 1.0, %v6252
    %v6254 = vmul.f32 %v6198, %v6169
    %v6255 = vmul.f32 %v6213, %v6172
    %v6256 = vadd.f32 %v6100, %v6254
    %v6257 = vadd.f32 %v6103, %v6255
    %v6258 = vtanh.pop %v6256
    %v6259 = vtanh.pop %v6257
    %v6260 = vsub.f32 1.0, %v6238
    %v6261 = vsub.f32 1.0, %v6253
    %v6262 = vmul.f32 %v6260, %v6258
    %v6263 = vmul.f32 %v6261, %v6259
    %v6264 = vmul.f32 %v6238, %v6034
    %v6265 = vmul.f32 %v6253, %v6035
    %v6266 = vadd.f32 %v6262, %v6264
    %v6267 = vadd.f32 %v6263, %v6265
    %6268 = vmatpush.msra.mxu0 %v5043
    %6269 = vmatpush.msra.mxu0 %v5040
    %6270 = vmatpush.msra.mxu0 %v5037
    %6271 = vmatpush.msra.mxu0 %v5034
    %6272 = vmatpush.msra.mxu0 %v5031
    %6273 = vmatpush.msra.mxu0 %v5028
    %6274 = vmatpush.msra.mxu0 %v5025
    %6275 = vmatpush.msra.mxu0 %v5022
    %6276 = vmatpush.msra.mxu0 %v5019
    %6277 = vmatpush.msra.mxu0 %v5016
    %6278 = vmatpush.msra.mxu0 %v5013
    %6279 = vmatpush.msra.mxu0 %v5010
    %6280 = vmatpush.msra.mxu0 %v5007
    %6281 = vmatpush.msra.mxu0 %v5004
    %6282 = vmatpush.msra.mxu0 %v5001
    %6283 = vmatpush.msra.mxu0 %v4998
    %6284 = vmatmul.f32.gmra.mxu0 %v4518
    %v6285 = vpop.f32.mrf.mxu0
    %v6286 = vadd.f32 %v5047, %v6285
    %6287 = vmatmul.f32.gmra.mxu0 %v4519
    %v6288 = vpop.f32.mrf.mxu0
    %v6289 = vadd.f32 %v5047, %v6288
    %6290 = vdwg.mxu0
    %6291 = vmatpush.msra.mxu0 %v5044
    %6292 = vmatpush.msra.mxu0 %v5041
    %6293 = vmatpush.msra.mxu0 %v5038
    %6294 = vmatpush.msra.mxu0 %v5035
    %6295 = vmatpush.msra.mxu0 %v5032
    %6296 = vmatpush.msra.mxu0 %v5029
    %6297 = vmatpush.msra.mxu0 %v5026
    %6298 = vmatpush.msra.mxu0 %v5023
    %6299 = vmatpush.msra.mxu0 %v5020
    %6300 = vmatpush.msra.mxu0 %v5017
    %6301 = vmatpush.msra.mxu0 %v5014
    %6302 = vmatpush.msra.mxu0 %v5011
    %6303 = vmatpush.msra.mxu0 %v5008
    %6304 = vmatpush.msra.mxu0 %v5005
    %6305 = vmatpush.msra.mxu0 %v5002
    %6306 = vmatpush.msra.mxu0 %v4999
    %6307 = vmatmul.f32.gmra.mxu0 %v4518
    %v6308 = vpop.f32.mrf.mxu0
    %v6309 = vadd.f32 %v5048, %v6308
    %6310 = vmatmul.f32.gmra.mxu0 %v4519
    %v6311 = vpop.f32.mrf.mxu0
    %v6312 = vadd.f32 %v5048, %v6311
    %6313 = vdwg.mxu0
    %6314 = vmatpush.msra.mxu0 %v5045
    %6315 = vmatpush.msra.mxu0 %v5042
    %6316 = vmatpush.msra.mxu0 %v5039
    %6317 = vmatpush.msra.mxu0 %v5036
    %6318 = vmatpush.msra.mxu0 %v5033
    %6319 = vmatpush.msra.mxu0 %v5030
    %6320 = vmatpush.msra.mxu0 %v5027
    %6321 = vmatpush.msra.mxu0 %v5024
    %6322 = vmatpush.msra.mxu0 %v5021
    %6323 = vmatpush.msra.mxu0 %v5018
    %6324 = vmatpush.msra.mxu0 %v5015
    %6325 = vmatpush.msra.mxu0 %v5012
    %6326 = vmatpush.msra.mxu0 %v5009
    %6327 = vmatpush.msra.mxu0 %v5006
    %6328 = vmatpush.msra.mxu0 %v5003
    %6329 = vmatpush.msra.mxu0 %v5000
    %6330 = vmatmul.f32.gmra.mxu0 %v4518
    %v6331 = vpop.f32.mrf.mxu0
    %v6332 = vadd.f32 %v5049, %v6331
    %6333 = vmatmul.f32.gmra.mxu0 %v4519
    %v6334 = vpop.f32.mrf.mxu0
    %v6335 = vadd.f32 %v5049, %v6334
    %6336 = vdwg.mxu0
    %6337 = vmatpush.msra.mxu0 %v5167
    %6338 = vmatpush.msra.mxu0 %v5164
    %6339 = vmatpush.msra.mxu0 %v5161
    %6340 = vmatpush.msra.mxu0 %v5158
    %6341 = vmatpush.msra.mxu0 %v5155
    %6342 = vmatpush.msra.mxu0 %v5152
    %6343 = vmatpush.msra.mxu0 %v5149
    %6344 = vmatpush.msra.mxu0 %v5146
    %6345 = vmatpush.msra.mxu0 %v5143
    %6346 = vmatpush.msra.mxu0 %v5140
    %6347 = vmatpush.msra.mxu0 %v5137
    %6348 = vmatpush.msra.mxu0 %v5134
    %6349 = vmatpush.msra.mxu0 %v5131
    %6350 = vmatpush.msra.mxu0 %v5128
    %6351 = vmatpush.msra.mxu0 %v5125
    %6352 = vmatpush.msra.mxu0 %v5122
    %6353 = vmatmul.f32.gmra.mxu0 %v6266
    %v6354 = vpop.f32.mrf.mxu0
    %v6355 = vadd.f32 %v5171, %v6354
    %6356 = vmatmul.f32.gmra.mxu0 %v6267
    %v6357 = vpop.f32.mrf.mxu0
    %v6358 = vadd.f32 %v5171, %v6357
    %6359 = vdwg.mxu0
    %6360 = vmatpush.msra.mxu0 %v5168
    %6361 = vmatpush.msra.mxu0 %v5165
    %6362 = vmatpush.msra.mxu0 %v5162
    %6363 = vmatpush.msra.mxu0 %v5159
    %6364 = vmatpush.msra.mxu0 %v5156
    %6365 = vmatpush.msra.mxu0 %v5153
    %6366 = vmatpush.msra.mxu0 %v5150
    %6367 = vmatpush.msra.mxu0 %v5147
    %6368 = vmatpush.msra.mxu0 %v5144
    %6369 = vmatpush.msra.mxu0 %v5141
    %6370 = vmatpush.msra.mxu0 %v5138
    %6371 = vmatpush.msra.mxu0 %v5135
    %6372 = vmatpush.msra.mxu0 %v5132
    %6373 = vmatpush.msra.mxu0 %v5129
    %6374 = vmatpush.msra.mxu0 %v5126
    %6375 = vmatpush.msra.mxu0 %v5123
    %6376 = vmatmul.f32.gmra.mxu0 %v6266
    %v6377 = vpop.f32.mrf.mxu0
    %v6378 = vadd.f32 %v5172, %v6377
    %6379 = vmatmul.f32.gmra.mxu0 %v6267
    %v6380 = vpop.f32.mrf.mxu0
    %v6381 = vadd.f32 %v5172, %v6380
    %6382 = vdwg.mxu0
    %6383 = vmatpush.msra.mxu0 %v5169
    %6384 = vmatpush.msra.mxu0 %v5166
    %6385 = vmatpush.msra.mxu0 %v5163
    %6386 = vmatpush.msra.mxu0 %v5160
    %6387 = vmatpush.msra.mxu0 %v5157
    %6388 = vmatpush.msra.mxu0 %v5154
    %6389 = vmatpush.msra.mxu0 %v5151
    %6390 = vmatpush.msra.mxu0 %v5148
    %6391 = vmatpush.msra.mxu0 %v5145
    %6392 = vmatpush.msra.mxu0 %v5142
    %6393 = vmatpush.msra.mxu0 %v5139
    %6394 = vmatpush.msra.mxu0 %v5136
    %6395 = vmatpush.msra.mxu0 %v5133
    %6396 = vmatpush.msra.mxu0 %v5130
    %6397 = vmatpush.msra.mxu0 %v5127
    %6398 = vmatpush.msra.mxu0 %v5124
    %6399 = vmatmul.f32.gmra.mxu0 %v6266
    %v6400 = vpop.f32.mrf.mxu0
    %v6401 = vadd.f32 %v5173, %v6400
    %6402 = vmatmul.f32.gmra.mxu0 %v6267
    %v6403 = vpop.f32.mrf.mxu0
    %v6404 = vadd.f32 %v5173, %v6403
    %6405 = vdwg.mxu0
    %v6406 = vadd.f32 %v6286, %v6355
    %v6407 = vadd.f32 %v6289, %v6358
    %v6408 = vxor.u32 %v6406, 2147483648
    %v6409 = vxor.u32 %v6407, 2147483648
    %v6410 = vmul.f32 %v6408, 1.442695
    %v6411 = vpow.pop %v6410
    %v6412 = vmul.f32 %v6409, 1.442695
    %v6413 = vpow.pop %v6412
    %v6414 = vadd.f32 %v6411, 1.0
    %v6415 = vadd.f32 %v6413, 1.0
    %v6416 = vrcp.pop %v6414
    %v6417 = vmul.f32 %v6414, %v6416
    %v6418 = vsub.f32 1.0, %v6417
    %v6419 = vmul.f32 %v6416, %v6418
    %v6420 = vadd.f32 %v6416, %v6419
    %vm6421 = vweird.f32 %v6414
    %vm6422 = vweird.f32 %v6416
    %vm6423 = vmor %vm6421, %vm6422
    %v6424 = vsel %vm6423, %v6416, %v6420
    %v6425 = vand.u32 2147483647, %v6414
    %vm6426 = vcmp.eq.f32.partialorder %v6425, 8.507059e+37
    %v6427 = vand.u32 %v6414, 2147483648
    %v6428 = vor.u32 1.1754944e-38, %v6427
    %v6429 = vsel %vm6426, %v6428, %v6424
    %v6430 = vmul.f32 1.0, %v6429
    %v6431 = vrcp.pop %v6415
    %v6432 = vmul.f32 %v6415, %v6431
    %v6433 = vsub.f32 1.0, %v6432
    %v6434 = vmul.f32 %v6431, %v6433
    %v6435 = vadd.f32 %v6431, %v6434
    %vm6436 = vweird.f32 %v6415
    %vm6437 = vweird.f32 %v6431
    %vm6438 = vmor %vm6436, %vm6437
    %v6439 = vsel %vm6438, %v6431, %v6435
    %v6440 = vand.u32 2147483647, %v6415
    %vm6441 = vcmp.eq.f32.partialorder %v6440, 8.507059e+37
    %v6442 = vand.u32 %v6415, 2147483648
    %v6443 = vor.u32 1.1754944e-38, %v6442
    %v6444 = vsel %vm6441, %v6443, %v6439
    %v6445 = vmul.f32 1.0, %v6444
    %v6446 = vadd.f32 %v6309, %v6378
    %v6447 = vadd.f32 %v6312, %v6381
    %v6448 = vxor.u32 %v6446, 2147483648
    %v6449 = vxor.u32 %v6447, 2147483648
    %v6450 = vmul.f32 %v6448, 1.442695
    %v6451 = vpow.pop %v6450
    %v6452 = vmul.f32 %v6449, 1.442695
    %v6453 = vpow.pop %v6452
    %v6454 = vadd.f32 %v6451, 1.0
    %v6455 = vadd.f32 %v6453, 1.0
    %v6456 = vrcp.pop %v6454
    %v6457 = vmul.f32 %v6454, %v6456
    %v6458 = vsub.f32 1.0, %v6457
    %v6459 = vmul.f32 %v6456, %v6458
    %v6460 = vadd.f32 %v6456, %v6459
    %vm6461 = vweird.f32 %v6454
    %vm6462 = vweird.f32 %v6456
    %vm6463 = vmor %vm6461, %vm6462
    %v6464 = vsel %vm6463, %v6456, %v6460
    %v6465 = vand.u32 2147483647, %v6454
    %vm6466 = vcmp.eq.f32.partialorder %v6465, 8.507059e+37
    %v6467 = vand.u32 %v6454, 2147483648
    %v6468 = vor.u32 1.1754944e-38, %v6467
    %v6469 = vsel %vm6466, %v6468, %v6464
    %v6470 = vmul.f32 1.0, %v6469
    %v6471 = vrcp.pop %v6455
    %v6472 = vmul.f32 %v6455, %v6471
    %v6473 = vsub.f32 1.0, %v6472
    %v6474 = vmul.f32 %v6471, %v6473
    %v6475 = vadd.f32 %v6471, %v6474
    %vm6476 = vweird.f32 %v6455
    %vm6477 = vweird.f32 %v6471
    %vm6478 = vmor %vm6476, %vm6477
    %v6479 = vsel %vm6478, %v6471, %v6475
    %v6480 = vand.u32 2147483647, %v6455
    %vm6481 = vcmp.eq.f32.partialorder %v6480, 8.507059e+37
    %v6482 = vand.u32 %v6455, 2147483648
    %v6483 = vor.u32 1.1754944e-38, %v6482
    %v6484 = vsel %vm6481, %v6483, %v6479
    %v6485 = vmul.f32 1.0, %v6484
    %v6486 = vmul.f32 %v6430, %v6401
    %v6487 = vmul.f32 %v6445, %v6404
    %v6488 = vadd.f32 %v6332, %v6486
    %v6489 = vadd.f32 %v6335, %v6487
    %v6490 = vtanh.pop %v6488
    %v6491 = vtanh.pop %v6489
    %v6492 = vsub.f32 1.0, %v6470
    %v6493 = vsub.f32 1.0, %v6485
    %v6494 = vmul.f32 %v6492, %v6490
    %v6495 = vmul.f32 %v6493, %v6491
    %v6496 = vmul.f32 %v6470, %v6266
    %v6497 = vmul.f32 %v6485, %v6267
    %v6498 = vadd.f32 %v6494, %v6496
    %v6499 = vadd.f32 %v6495, %v6497
    %6500 = vmatpush.msra.mxu0 %v5043
    %6501 = vmatpush.msra.mxu0 %v5040
    %6502 = vmatpush.msra.mxu0 %v5037
    %6503 = vmatpush.msra.mxu0 %v5034
    %6504 = vmatpush.msra.mxu0 %v5031
    %6505 = vmatpush.msra.mxu0 %v5028
    %6506 = vmatpush.msra.mxu0 %v5025
    %6507 = vmatpush.msra.mxu0 %v5022
    %6508 = vmatpush.msra.mxu0 %v5019
    %6509 = vmatpush.msra.mxu0 %v5016
    %6510 = vmatpush.msra.mxu0 %v5013
    %6511 = vmatpush.msra.mxu0 %v5010
    %6512 = vmatpush.msra.mxu0 %v5007
    %6513 = vmatpush.msra.mxu0 %v5004
    %6514 = vmatpush.msra.mxu0 %v5001
    %6515 = vmatpush.msra.mxu0 %v4998
    %6516 = vmatmul.f32.gmra.mxu0 %v4756
    %v6517 = vpop.f32.mrf.mxu0
    %v6518 = vadd.f32 %v5047, %v6517
    %6519 = vmatmul.f32.gmra.mxu0 %v4757
    %v6520 = vpop.f32.mrf.mxu0
    %v6521 = vadd.f32 %v5047, %v6520
    %6522 = vdwg.mxu0
    %6523 = vmatpush.msra.mxu0 %v5044
    %6524 = vmatpush.msra.mxu0 %v5041
    %6525 = vmatpush.msra.mxu0 %v5038
    %6526 = vmatpush.msra.mxu0 %v5035
    %6527 = vmatpush.msra.mxu0 %v5032
    %6528 = vmatpush.msra.mxu0 %v5029
    %6529 = vmatpush.msra.mxu0 %v5026
    %6530 = vmatpush.msra.mxu0 %v5023
    %6531 = vmatpush.msra.mxu0 %v5020
    %6532 = vmatpush.msra.mxu0 %v5017
    %6533 = vmatpush.msra.mxu0 %v5014
    %6534 = vmatpush.msra.mxu0 %v5011
    %6535 = vmatpush.msra.mxu0 %v5008
    %6536 = vmatpush.msra.mxu0 %v5005
    %6537 = vmatpush.msra.mxu0 %v5002
    %6538 = vmatpush.msra.mxu0 %v4999
    %6539 = vmatmul.f32.gmra.mxu0 %v4756
    %v6540 = vpop.f32.mrf.mxu0
    %v6541 = vadd.f32 %v5048, %v6540
    %6542 = vmatmul.f32.gmra.mxu0 %v4757
    %v6543 = vpop.f32.mrf.mxu0
    %v6544 = vadd.f32 %v5048, %v6543
    %6545 = vdwg.mxu0
    %6546 = vmatpush.msra.mxu0 %v5045
    %6547 = vmatpush.msra.mxu0 %v5042
    %6548 = vmatpush.msra.mxu0 %v5039
    %6549 = vmatpush.msra.mxu0 %v5036
    %6550 = vmatpush.msra.mxu0 %v5033
    %6551 = vmatpush.msra.mxu0 %v5030
    %6552 = vmatpush.msra.mxu0 %v5027
    %6553 = vmatpush.msra.mxu0 %v5024
    %6554 = vmatpush.msra.mxu0 %v5021
    %6555 = vmatpush.msra.mxu0 %v5018
    %6556 = vmatpush.msra.mxu0 %v5015
    %6557 = vmatpush.msra.mxu0 %v5012
    %6558 = vmatpush.msra.mxu0 %v5009
    %6559 = vmatpush.msra.mxu0 %v5006
    %6560 = vmatpush.msra.mxu0 %v5003
    %6561 = vmatpush.msra.mxu0 %v5000
    %6562 = vmatmul.f32.gmra.mxu0 %v4756
    %v6563 = vpop.f32.mrf.mxu0
    %v6564 = vadd.f32 %v5049, %v6563
    %6565 = vmatmul.f32.gmra.mxu0 %v4757
    %v6566 = vpop.f32.mrf.mxu0
    %v6567 = vadd.f32 %v5049, %v6566
    %6568 = vdwg.mxu0
    %6569 = vmatpush.msra.mxu0 %v5167
    %6570 = vmatpush.msra.mxu0 %v5164
    %6571 = vmatpush.msra.mxu0 %v5161
    %6572 = vmatpush.msra.mxu0 %v5158
    %6573 = vmatpush.msra.mxu0 %v5155
    %6574 = vmatpush.msra.mxu0 %v5152
    %6575 = vmatpush.msra.mxu0 %v5149
    %6576 = vmatpush.msra.mxu0 %v5146
    %6577 = vmatpush.msra.mxu0 %v5143
    %6578 = vmatpush.msra.mxu0 %v5140
    %6579 = vmatpush.msra.mxu0 %v5137
    %6580 = vmatpush.msra.mxu0 %v5134
    %6581 = vmatpush.msra.mxu0 %v5131
    %6582 = vmatpush.msra.mxu0 %v5128
    %6583 = vmatpush.msra.mxu0 %v5125
    %6584 = vmatpush.msra.mxu0 %v5122
    %6585 = vmatmul.f32.gmra.mxu0 %v6498
    %v6586 = vpop.f32.mrf.mxu0
    %v6587 = vadd.f32 %v5171, %v6586
    %6588 = vmatmul.f32.gmra.mxu0 %v6499
    %v6589 = vpop.f32.mrf.mxu0
    %v6590 = vadd.f32 %v5171, %v6589
    %6591 = vdwg.mxu0
    %6592 = vmatpush.msra.mxu0 %v5168
    %6593 = vmatpush.msra.mxu0 %v5165
    %6594 = vmatpush.msra.mxu0 %v5162
    %6595 = vmatpush.msra.mxu0 %v5159
    %6596 = vmatpush.msra.mxu0 %v5156
    %6597 = vmatpush.msra.mxu0 %v5153
    %6598 = vmatpush.msra.mxu0 %v5150
    %6599 = vmatpush.msra.mxu0 %v5147
    %6600 = vmatpush.msra.mxu0 %v5144
    %6601 = vmatpush.msra.mxu0 %v5141
    %6602 = vmatpush.msra.mxu0 %v5138
    %6603 = vmatpush.msra.mxu0 %v5135
    %6604 = vmatpush.msra.mxu0 %v5132
    %6605 = vmatpush.msra.mxu0 %v5129
    %6606 = vmatpush.msra.mxu0 %v5126
    %6607 = vmatpush.msra.mxu0 %v5123
    %6608 = vmatmul.f32.gmra.mxu0 %v6498
    %v6609 = vpop.f32.mrf.mxu0
    %v6610 = vadd.f32 %v5172, %v6609
    %6611 = vmatmul.f32.gmra.mxu0 %v6499
    %v6612 = vpop.f32.mrf.mxu0
    %v6613 = vadd.f32 %v5172, %v6612
    %6614 = vdwg.mxu0
    %6615 = vmatpush.msra.mxu0 %v5169
    %6616 = vmatpush.msra.mxu0 %v5166
    %6617 = vmatpush.msra.mxu0 %v5163
    %6618 = vmatpush.msra.mxu0 %v5160
    %6619 = vmatpush.msra.mxu0 %v5157
    %6620 = vmatpush.msra.mxu0 %v5154
    %6621 = vmatpush.msra.mxu0 %v5151
    %6622 = vmatpush.msra.mxu0 %v5148
    %6623 = vmatpush.msra.mxu0 %v5145
    %6624 = vmatpush.msra.mxu0 %v5142
    %6625 = vmatpush.msra.mxu0 %v5139
    %6626 = vmatpush.msra.mxu0 %v5136
    %6627 = vmatpush.msra.mxu0 %v5133
    %6628 = vmatpush.msra.mxu0 %v5130
    %6629 = vmatpush.msra.mxu0 %v5127
    %6630 = vmatpush.msra.mxu0 %v5124
    %6631 = vmatmul.f32.gmra.mxu0 %v6498
    %v6632 = vpop.f32.mrf.mxu0
    %v6633 = vadd.f32 %v5173, %v6632
    %6634 = vmatmul.f32.gmra.mxu0 %v6499
    %v6635 = vpop.f32.mrf.mxu0
    %v6636 = vadd.f32 %v5173, %v6635
    %6637 = vdwg.mxu0
    %v6638 = vadd.f32 %v6518, %v6587
    %v6639 = vadd.f32 %v6521, %v6590
    %v6640 = vxor.u32 %v6638, 2147483648
    %v6641 = vxor.u32 %v6639, 2147483648
    %v6642 = vmul.f32 %v6640, 1.442695
    %v6643 = vpow.pop %v6642
    %v6644 = vmul.f32 %v6641, 1.442695
    %v6645 = vpow.pop %v6644
    %v6646 = vadd.f32 %v6643, 1.0
    %v6647 = vadd.f32 %v6645, 1.0
    %v6648 = vrcp.pop %v6646
    %v6649 = vmul.f32 %v6646, %v6648
    %v6650 = vsub.f32 1.0, %v6649
    %v6651 = vmul.f32 %v6648, %v6650
    %v6652 = vadd.f32 %v6648, %v6651
    %vm6653 = vweird.f32 %v6646
    %vm6654 = vweird.f32 %v6648
    %vm6655 = vmor %vm6653, %vm6654
    %v6656 = vsel %vm6655, %v6648, %v6652
    %v6657 = vand.u32 2147483647, %v6646
    %vm6658 = vcmp.eq.f32.partialorder %v6657, 8.507059e+37
    %v6659 = vand.u32 %v6646, 2147483648
    %v6660 = vor.u32 1.1754944e-38, %v6659
    %v6661 = vsel %vm6658, %v6660, %v6656
    %v6662 = vmul.f32 1.0, %v6661
    %v6663 = vrcp.pop %v6647
    %v6664 = vmul.f32 %v6647, %v6663
    %v6665 = vsub.f32 1.0, %v6664
    %v6666 = vmul.f32 %v6663, %v6665
    %v6667 = vadd.f32 %v6663, %v6666
    %vm6668 = vweird.f32 %v6647
    %vm6669 = vweird.f32 %v6663
    %vm6670 = vmor %vm6668, %vm6669
    %v6671 = vsel %vm6670, %v6663, %v6667
    %v6672 = vand.u32 2147483647, %v6647
    %vm6673 = vcmp.eq.f32.partialorder %v6672, 8.507059e+37
    %v6674 = vand.u32 %v6647, 2147483648
    %v6675 = vor.u32 1.1754944e-38, %v6674
    %v6676 = vsel %vm6673, %v6675, %v6671
    %v6677 = vmul.f32 1.0, %v6676
    %v6678 = vadd.f32 %v6541, %v6610
    %v6679 = vadd.f32 %v6544, %v6613
    %v6680 = vxor.u32 %v6678, 2147483648
    %v6681 = vxor.u32 %v6679, 2147483648
    %v6682 = vmul.f32 %v6680, 1.442695
    %v6683 = vpow.pop %v6682
    %v6684 = vmul.f32 %v6681, 1.442695
    %v6685 = vpow.pop %v6684
    %v6686 = vadd.f32 %v6683, 1.0
    %v6687 = vadd.f32 %v6685, 1.0
    %v6688 = vrcp.pop %v6686
    %v6689 = vmul.f32 %v6686, %v6688
    %v6690 = vsub.f32 1.0, %v6689
    %v6691 = vmul.f32 %v6688, %v6690
    %v6692 = vadd.f32 %v6688, %v6691
    %vm6693 = vweird.f32 %v6686
    %vm6694 = vweird.f32 %v6688
    %vm6695 = vmor %vm6693, %vm6694
    %v6696 = vsel %vm6695, %v6688, %v6692
    %v6697 = vand.u32 2147483647, %v6686
    %vm6698 = vcmp.eq.f32.partialorder %v6697, 8.507059e+37
    %v6699 = vand.u32 %v6686, 2147483648
    %v6700 = vor.u32 1.1754944e-38, %v6699
    %v6701 = vsel %vm6698, %v6700, %v6696
    %v6702 = vmul.f32 1.0, %v6701
    %v6703 = vrcp.pop %v6687
    %v6704 = vmul.f32 %v6687, %v6703
    %v6705 = vsub.f32 1.0, %v6704
    %v6706 = vmul.f32 %v6703, %v6705
    %v6707 = vadd.f32 %v6703, %v6706
    %vm6708 = vweird.f32 %v6687
    %vm6709 = vweird.f32 %v6703
    %vm6710 = vmor %vm6708, %vm6709
    %v6711 = vsel %vm6710, %v6703, %v6707
    %v6712 = vand.u32 2147483647, %v6687
    %vm6713 = vcmp.eq.f32.partialorder %v6712, 8.507059e+37
    %v6714 = vand.u32 %v6687, 2147483648
    %v6715 = vor.u32 1.1754944e-38, %v6714
    %v6716 = vsel %vm6713, %v6715, %v6711
    %v6717 = vmul.f32 1.0, %v6716
    %v6718 = vmul.f32 %v6662, %v6633
    %v6719 = vmul.f32 %v6677, %v6636
    %v6720 = vadd.f32 %v6564, %v6718
    %v6721 = vadd.f32 %v6567, %v6719
    %v6722 = vtanh.pop %v6720
    %v6723 = vtanh.pop %v6721
    %v6724 = vsub.f32 1.0, %v6702
    %v6725 = vsub.f32 1.0, %v6717
    %v6726 = vmul.f32 %v6724, %v6722
    %v6727 = vmul.f32 %v6725, %v6723
    %v6728 = vmul.f32 %v6702, %v6498
    %v6729 = vmul.f32 %v6717, %v6499
    %v6730 = vadd.f32 %v6726, %v6728
    %v6731 = vadd.f32 %v6727, %v6729
    %6732 = vmatpush.msra.mxu0 %v5043
    %6733 = vmatpush.msra.mxu0 %v5040
    %6734 = vmatpush.msra.mxu0 %v5037
    %6735 = vmatpush.msra.mxu0 %v5034
    %6736 = vmatpush.msra.mxu0 %v5031
    %6737 = vmatpush.msra.mxu0 %v5028
    %6738 = vmatpush.msra.mxu0 %v5025
    %6739 = vmatpush.msra.mxu0 %v5022
    %6740 = vmatpush.msra.mxu0 %v5019
    %6741 = vmatpush.msra.mxu0 %v5016
    %6742 = vmatpush.msra.mxu0 %v5013
    %6743 = vmatpush.msra.mxu0 %v5010
    %6744 = vmatpush.msra.mxu0 %v5007
    %6745 = vmatpush.msra.mxu0 %v5004
    %6746 = vmatpush.msra.mxu0 %v5001
    %6747 = vmatpush.msra.mxu0 %v4998
    %6748 = vmatmul.f32.gmra.mxu0 %v4994
    %v6749 = vpop.f32.mrf.mxu0
    %v6750 = vadd.f32 %v5047, %v6749
    %6751 = vmatmul.f32.gmra.mxu0 %v4995
    %v6752 = vpop.f32.mrf.mxu0
    %v6753 = vadd.f32 %v5047, %v6752
    %6754 = vdwg.mxu0
    %6755 = vmatpush.msra.mxu0 %v5044
    %6756 = vmatpush.msra.mxu0 %v5041
    %6757 = vmatpush.msra.mxu0 %v5038
    %6758 = vmatpush.msra.mxu0 %v5035
    %6759 = vmatpush.msra.mxu0 %v5032
    %6760 = vmatpush.msra.mxu0 %v5029
    %6761 = vmatpush.msra.mxu0 %v5026
    %6762 = vmatpush.msra.mxu0 %v5023
    %6763 = vmatpush.msra.mxu0 %v5020
    %6764 = vmatpush.msra.mxu0 %v5017
    %6765 = vmatpush.msra.mxu0 %v5014
    %6766 = vmatpush.msra.mxu0 %v5011
    %6767 = vmatpush.msra.mxu0 %v5008
    %6768 = vmatpush.msra.mxu0 %v5005
    %6769 = vmatpush.msra.mxu0 %v5002
    %6770 = vmatpush.msra.mxu0 %v4999
    %6771 = vmatmul.f32.gmra.mxu0 %v4994
    %v6772 = vpop.f32.mrf.mxu0
    %v6773 = vadd.f32 %v5048, %v6772
    %6774 = vmatmul.f32.gmra.mxu0 %v4995
    %v6775 = vpop.f32.mrf.mxu0
    %v6776 = vadd.f32 %v5048, %v6775
    %6777 = vdwg.mxu0
    %6778 = vmatpush.msra.mxu0 %v5045
    %6779 = vmatpush.msra.mxu0 %v5042
    %6780 = vmatpush.msra.mxu0 %v5039
    %6781 = vmatpush.msra.mxu0 %v5036
    %6782 = vmatpush.msra.mxu0 %v5033
    %6783 = vmatpush.msra.mxu0 %v5030
    %6784 = vmatpush.msra.mxu0 %v5027
    %6785 = vmatpush.msra.mxu0 %v5024
    %6786 = vmatpush.msra.mxu0 %v5021
    %6787 = vmatpush.msra.mxu0 %v5018
    %6788 = vmatpush.msra.mxu0 %v5015
    %6789 = vmatpush.msra.mxu0 %v5012
    %6790 = vmatpush.msra.mxu0 %v5009
    %6791 = vmatpush.msra.mxu0 %v5006
    %6792 = vmatpush.msra.mxu0 %v5003
    %6793 = vmatpush.msra.mxu0 %v5000
    %6794 = vmatmul.f32.gmra.mxu0 %v4994
    %v6795 = vpop.f32.mrf.mxu0
    %v6796 = vadd.f32 %v5049, %v6795
    %6797 = vmatmul.f32.gmra.mxu0 %v4995
    %v6798 = vpop.f32.mrf.mxu0
    %v6799 = vadd.f32 %v5049, %v6798
    %6800 = vdwg.mxu0
    %6801 = vmatpush.msra.mxu0 %v5167
    %6802 = vmatpush.msra.mxu0 %v5164
    %6803 = vmatpush.msra.mxu0 %v5161
    %6804 = vmatpush.msra.mxu0 %v5158
    %6805 = vmatpush.msra.mxu0 %v5155
    %6806 = vmatpush.msra.mxu0 %v5152
    %6807 = vmatpush.msra.mxu0 %v5149
    %6808 = vmatpush.msra.mxu0 %v5146
    %6809 = vmatpush.msra.mxu0 %v5143
    %6810 = vmatpush.msra.mxu0 %v5140
    %6811 = vmatpush.msra.mxu0 %v5137
    %6812 = vmatpush.msra.mxu0 %v5134
    %6813 = vmatpush.msra.mxu0 %v5131
    %6814 = vmatpush.msra.mxu0 %v5128
    %6815 = vmatpush.msra.mxu0 %v5125
    %6816 = vmatpush.msra.mxu0 %v5122
    %6817 = vmatmul.f32.gmra.mxu0 %v6730
    %v6818 = vpop.f32.mrf.mxu0
    %v6819 = vadd.f32 %v5171, %v6818
    %6820 = vmatmul.f32.gmra.mxu0 %v6731
    %v6821 = vpop.f32.mrf.mxu0
    %v6822 = vadd.f32 %v5171, %v6821
    %6823 = vdwg.mxu0
    %6824 = vmatpush.msra.mxu0 %v5168
    %6825 = vmatpush.msra.mxu0 %v5165
    %6826 = vmatpush.msra.mxu0 %v5162
    %6827 = vmatpush.msra.mxu0 %v5159
    %6828 = vmatpush.msra.mxu0 %v5156
    %6829 = vmatpush.msra.mxu0 %v5153
    %6830 = vmatpush.msra.mxu0 %v5150
    %6831 = vmatpush.msra.mxu0 %v5147
    %6832 = vmatpush.msra.mxu0 %v5144
    %6833 = vmatpush.msra.mxu0 %v5141
    %6834 = vmatpush.msra.mxu0 %v5138
    %6835 = vmatpush.msra.mxu0 %v5135
    %6836 = vmatpush.msra.mxu0 %v5132
    %6837 = vmatpush.msra.mxu0 %v5129
    %6838 = vmatpush.msra.mxu0 %v5126
    %6839 = vmatpush.msra.mxu0 %v5123
    %6840 = vmatmul.f32.gmra.mxu0 %v6730
    %v6841 = vpop.f32.mrf.mxu0
    %v6842 = vadd.f32 %v5172, %v6841
    %6843 = vmatmul.f32.gmra.mxu0 %v6731
    %v6844 = vpop.f32.mrf.mxu0
    %v6845 = vadd.f32 %v5172, %v6844
    %6846 = vdwg.mxu0
    %6847 = vmatpush.msra.mxu0 %v5169
    %6848 = vmatpush.msra.mxu0 %v5166
    %6849 = vmatpush.msra.mxu0 %v5163
    %6850 = vmatpush.msra.mxu0 %v5160
    %6851 = vmatpush.msra.mxu0 %v5157
    %6852 = vmatpush.msra.mxu0 %v5154
    %6853 = vmatpush.msra.mxu0 %v5151
    %6854 = vmatpush.msra.mxu0 %v5148
    %6855 = vmatpush.msra.mxu0 %v5145
    %6856 = vmatpush.msra.mxu0 %v5142
    %6857 = vmatpush.msra.mxu0 %v5139
    %6858 = vmatpush.msra.mxu0 %v5136
    %6859 = vmatpush.msra.mxu0 %v5133
    %6860 = vmatpush.msra.mxu0 %v5130
    %6861 = vmatpush.msra.mxu0 %v5127
    %6862 = vmatpush.msra.mxu0 %v5124
    %6863 = vmatmul.f32.gmra.mxu0 %v6730
    %v6864 = vpop.f32.mrf.mxu0
    %v6865 = vadd.f32 %v5173, %v6864
    %6866 = vmatmul.f32.gmra.mxu0 %v6731
    %v6867 = vpop.f32.mrf.mxu0
    %v6868 = vadd.f32 %v5173, %v6867
    %6869 = vdwg.mxu0
    %v6870 = vadd.f32 %v6750, %v6819
    %v6871 = vadd.f32 %v6753, %v6822
    %v6872 = vxor.u32 %v6870, 2147483648
    %v6873 = vxor.u32 %v6871, 2147483648
    %v6874 = vmul.f32 %v6872, 1.442695
    %v6875 = vpow.pop %v6874
    %v6876 = vmul.f32 %v6873, 1.442695
    %v6877 = vpow.pop %v6876
    %v6878 = vadd.f32 %v6875, 1.0
    %v6879 = vadd.f32 %v6877, 1.0
    %v6880 = vrcp.pop %v6878
    %v6881 = vmul.f32 %v6878, %v6880
    %v6882 = vsub.f32 1.0, %v6881
    %v6883 = vmul.f32 %v6880, %v6882
    %v6884 = vadd.f32 %v6880, %v6883
    %vm6885 = vweird.f32 %v6878
    %vm6886 = vweird.f32 %v6880
    %vm6887 = vmor %vm6885, %vm6886
    %v6888 = vsel %vm6887, %v6880, %v6884
    %v6889 = vand.u32 2147483647, %v6878
    %vm6890 = vcmp.eq.f32.partialorder %v6889, 8.507059e+37
    %v6891 = vand.u32 %v6878, 2147483648
    %v6892 = vor.u32 1.1754944e-38, %v6891
    %v6893 = vsel %vm6890, %v6892, %v6888
    %v6894 = vmul.f32 1.0, %v6893
    %v6895 = vrcp.pop %v6879
    %v6896 = vmul.f32 %v6879, %v6895
    %v6897 = vsub.f32 1.0, %v6896
    %v6898 = vmul.f32 %v6895, %v6897
    %v6899 = vadd.f32 %v6895, %v6898
    %vm6900 = vweird.f32 %v6879
    %vm6901 = vweird.f32 %v6895
    %vm6902 = vmor %vm6900, %vm6901
    %v6903 = vsel %vm6902, %v6895, %v6899
    %v6904 = vand.u32 2147483647, %v6879
    %vm6905 = vcmp.eq.f32.partialorder %v6904, 8.507059e+37
    %v6906 = vand.u32 %v6879, 2147483648
    %v6907 = vor.u32 1.1754944e-38, %v6906
    %v6908 = vsel %vm6905, %v6907, %v6903
    %v6909 = vmul.f32 1.0, %v6908
    %v6910 = vadd.f32 %v6773, %v6842
    %v6911 = vadd.f32 %v6776, %v6845
    %v6912 = vxor.u32 %v6910, 2147483648
    %v6913 = vxor.u32 %v6911, 2147483648
    %v6914 = vmul.f32 %v6912, 1.442695
    %v6915 = vpow.pop %v6914
    %v6916 = vmul.f32 %v6913, 1.442695
    %v6917 = vpow.pop %v6916
    %v6918 = vadd.f32 %v6915, 1.0
    %v6919 = vadd.f32 %v6917, 1.0
    %v6920 = vrcp.pop %v6918
    %v6921 = vmul.f32 %v6918, %v6920
    %v6922 = vsub.f32 1.0, %v6921
    %v6923 = vmul.f32 %v6920, %v6922
    %v6924 = vadd.f32 %v6920, %v6923
    %vm6925 = vweird.f32 %v6918
    %vm6926 = vweird.f32 %v6920
    %vm6927 = vmor %vm6925, %vm6926
    %v6928 = vsel %vm6927, %v6920, %v6924
    %v6929 = vand.u32 2147483647, %v6918
    %vm6930 = vcmp.eq.f32.partialorder %v6929, 8.507059e+37
    %v6931 = vand.u32 %v6918, 2147483648
    %v6932 = vor.u32 1.1754944e-38, %v6931
    %v6933 = vsel %vm6930, %v6932, %v6928
    %v6934 = vmul.f32 1.0, %v6933
    %v6935 = vrcp.pop %v6919
    %v6936 = vmul.f32 %v6919, %v6935
    %v6937 = vsub.f32 1.0, %v6936
    %v6938 = vmul.f32 %v6935, %v6937
    %v6939 = vadd.f32 %v6935, %v6938
    %vm6940 = vweird.f32 %v6919
    %vm6941 = vweird.f32 %v6935
    %vm6942 = vmor %vm6940, %vm6941
    %v6943 = vsel %vm6942, %v6935, %v6939
    %v6944 = vand.u32 2147483647, %v6919
    %vm6945 = vcmp.eq.f32.partialorder %v6944, 8.507059e+37
    %v6946 = vand.u32 %v6919, 2147483648
    %v6947 = vor.u32 1.1754944e-38, %v6946
    %v6948 = vsel %vm6945, %v6947, %v6943
    %v6949 = vmul.f32 1.0, %v6948
    %v6950 = vmul.f32 %v6894, %v6865
    %v6951 = vmul.f32 %v6909, %v6868
    %v6952 = vadd.f32 %v6796, %v6950
    %v6953 = vadd.f32 %v6799, %v6951
    %v6954 = vtanh.pop %v6952
    %v6955 = vtanh.pop %v6953
    %v6956 = vsub.f32 1.0, %v6934
    %v6957 = vsub.f32 1.0, %v6949
    %v6958 = vmul.f32 %v6956, %v6954
    %v6959 = vmul.f32 %v6957, %v6955
    %v6960 = vmul.f32 %v6934, %v6730
    %v6961 = vmul.f32 %v6949, %v6731
    %v6962 = vadd.f32 %v6958, %v6960
    %v6963 = vadd.f32 %v6959, %v6961
    %v6964 = vld [vmem:[%s55] sm:$0xff]
    %v6965 = vld [vmem:[%s55 + $0x8] sm:$0xff]
    %v6966 = vld [vmem:[%s55 + $0x10] sm:$0xff]
    %v6967 = vld [vmem:[%s55 + $0x18] sm:$0xff]
    %v6968 = vld [vmem:[%s55 + $0x20] sm:$0xff]
    %v6969 = vld [vmem:[%s55 + $0x28] sm:$0xff]
    %v6970 = vld [vmem:[%s55 + $0x30] sm:$0xff]
    %v6971 = vld [vmem:[%s55 + $0x38] sm:$0xff]
    %v6972 = vld [vmem:[%s55 + $0x40] sm:$0xff]
    %v6973 = vld [vmem:[%s55 + $0x48] sm:$0xff]
    %v6974 = vld [vmem:[%s55 + $0x50] sm:$0xff]
    %v6975 = vld [vmem:[%s55 + $0x58] sm:$0xff]
    %v6976 = vld [vmem:[%s55 + $0x60] sm:$0xff]
    %v6977 = vld [vmem:[%s55 + $0x68] sm:$0xff]
    %v6978 = vld [vmem:[%s55 + $0x70] sm:$0xff]
    %v6979 = vld [vmem:[%s55 + $0x78] sm:$0xff]
    %v6980 = vld [vmem:[%s57] sm:$0x1]
    %v6981 = vld [vmem:[%s59] sm:$0x1]
    %v6982 = vld [vmem:[#allocation2] sm:$0x1]
    %v6983 = vld [vmem:[%s5] sm:$0xff]
    %v6984 = vld [vmem:[%s5 + $0x8] sm:$0xf]
    %v6986 = vperm.slane %v6980, 0
    %6988 = vmatpush.msra.mxu0 %v6979
    %6989 = vmatpush.msra.mxu0 %v6978
    %6990 = vmatpush.msra.mxu0 %v6977
    %6991 = vmatpush.msra.mxu0 %v6976
    %6992 = vmatpush.msra.mxu0 %v6975
    %6993 = vmatpush.msra.mxu0 %v6974
    %6994 = vmatpush.msra.mxu0 %v6973
    %6995 = vmatpush.msra.mxu0 %v6972
    %6996 = vmatpush.msra.mxu0 %v6971
    %6997 = vmatpush.msra.mxu0 %v6970
    %6998 = vmatpush.msra.mxu0 %v6969
    %6999 = vmatpush.msra.mxu0 %v6968
    %7000 = vmatpush.msra.mxu0 %v6967
    %7001 = vmatpush.msra.mxu0 %v6966
    %7002 = vmatpush.msra.mxu0 %v6965
    %7003 = vmatpush.msra.mxu0 %v6964
    %7004 = vmatmul.f32.gmra.mxu0 %v5338
    %v7005 = vpop.f32.mrf.mxu0
    %v7006 = vadd.f32 %v6986, %v7005
    %7007 = vmatmul.f32.gmra.mxu0 %v5339
    %v7008 = vpop.f32.mrf.mxu0
    %v7009 = vadd.f32 %v6986, %v7008
    %7010 = vdwg.mxu0
    %v7011 = vmax.f32 %v7006, 0.0
    %v7012 = vmax.f32 %v7009, 0.0
    %v7014 = vperm.slane %v6981, 0
    %v7016 = vmul.f32 %v7011, %v7014
    %v7017 = vmul.f32 %v7012, %v7014
    %v7018 = vsel %vm232, %v7016, 0.0
    %7019 = vadd.xlane.f32.xlu0 %v7018
    %v7020 = vpop.xlane.xlu0 %7019
    %vm7021 = vcmask 60416
    %v7022 = vsel %vm7021, %v7017, 0.0
    %7023 = vadd.xlane.f32.xlu0 %v7022
    %v7024 = vpop.xlane.xlu0 %7023
    %v7026 = vperm.slane %v6982, 0
    %v7028 = vadd.f32 %v7020, %v7026
    %v7029 = vadd.f32 %v7024, %v7026
    %v7030 = vxor.u32 %v7028, 2147483648
    %v7031 = vxor.u32 %v7029, 2147483648
    %v7032 = vmul.f32 %v7030, 1.442695
    %v7033 = vpow.pop %v7032
    %v7034 = vmul.f32 %v7031, 1.442695
    %v7035 = vpow.pop %v7034
    %v7036 = vadd.f32 %v7033, 1.0
    %v7037 = vadd.f32 %v7035, 1.0
    %v7038 = vrcp.pop %v7036
    %v7039 = vmul.f32 %v7036, %v7038
    %v7040 = vsub.f32 1.0, %v7039
    %v7041 = vmul.f32 %v7038, %v7040
    %v7042 = vadd.f32 %v7038, %v7041
    %vm7043 = vweird.f32 %v7036
    %vm7044 = vweird.f32 %v7038
    %vm7045 = vmor %vm7043, %vm7044
    %v7046 = vsel %vm7045, %v7038, %v7042
    %v7047 = vand.u32 2147483647, %v7036
    %vm7048 = vcmp.eq.f32.partialorder %v7047, 8.507059e+37
    %v7049 = vand.u32 %v7036, 2147483648
    %v7050 = vor.u32 1.1754944e-38, %v7049
    %v7051 = vsel %vm7048, %v7050, %v7046
    %v7052 = vmul.f32 1.0, %v7051
    %v7053 = vrcp.pop %v7037
    %v7054 = vmul.f32 %v7037, %v7053
    %v7055 = vsub.f32 1.0, %v7054
    %v7056 = vmul.f32 %v7053, %v7055
    %v7057 = vadd.f32 %v7053, %v7056
    %vm7058 = vweird.f32 %v7037
    %vm7059 = vweird.f32 %v7053
    %vm7060 = vmor %vm7058, %vm7059
    %v7061 = vsel %vm7060, %v7053, %v7057
    %v7062 = vand.u32 2147483647, %v7037
    %vm7063 = vcmp.eq.f32.partialorder %v7062, 8.507059e+37
    %v7064 = vand.u32 %v7037, 2147483648
    %v7065 = vor.u32 1.1754944e-38, %v7064
    %v7066 = vsel %vm7063, %v7065, %v7061
    %v7067 = vmul.f32 1.0, %v7066
    %v7068 = vmul.f32 %v7052, %v6983
    %v7069 = vmul.f32 %v7067, %v6984
    %vm7070 = vcmask 7168
    %7071 = vst.msk [vmem:[%s63] sm:$0xff] %vm7070, %v7068
    %vm7072 = vcmask 3072
    %7073 = vst.msk [vmem:[%s63 + $0x8] sm:$0xf] %vm7072, %v7069
    %7074 = vmatpush.msra.mxu0 %v6979
    %7075 = vmatpush.msra.mxu0 %v6978
    %7076 = vmatpush.msra.mxu0 %v6977
    %7077 = vmatpush.msra.mxu0 %v6976
    %7078 = vmatpush.msra.mxu0 %v6975
    %7079 = vmatpush.msra.mxu0 %v6974
    %7080 = vmatpush.msra.mxu0 %v6973
    %7081 = vmatpush.msra.mxu0 %v6972
    %7082 = vmatpush.msra.mxu0 %v6971
    %7083 = vmatpush.msra.mxu0 %v6970
    %7084 = vmatpush.msra.mxu0 %v6969
    %7085 = vmatpush.msra.mxu0 %v6968
    %7086 = vmatpush.msra.mxu0 %v6967
    %7087 = vmatpush.msra.mxu0 %v6966
    %7088 = vmatpush.msra.mxu0 %v6965
    %7089 = vmatpush.msra.mxu0 %v6964
    %7090 = vmatmul.f32.gmra.mxu0 %v5570
    %v7091 = vpop.f32.mrf.mxu0
    %v7092 = vadd.f32 %v6986, %v7091
    %7093 = vmatmul.f32.gmra.mxu0 %v5571
    %v7094 = vpop.f32.mrf.mxu0
    %v7095 = vadd.f32 %v6986, %v7094
    %7096 = vdwg.mxu0
    %v7097 = vmax.f32 %v7092, 0.0
    %v7098 = vmax.f32 %v7095, 0.0
    %v7099 = vmul.f32 %v7097, %v7014
    %v7100 = vmul.f32 %v7098, %v7014
    %v7101 = vsel %vm232, %v7099, 0.0
    %7102 = vadd.xlane.f32.xlu0 %v7101
    %v7103 = vpop.xlane.xlu0 %7102
    %v7104 = vsel %vm7021, %v7100, 0.0
    %7105 = vadd.xlane.f32.xlu0 %v7104
    %v7106 = vpop.xlane.xlu0 %7105
    %v7107 = vadd.f32 %v7103, %v7026
    %v7108 = vadd.f32 %v7106, %v7026
    %v7109 = vxor.u32 %v7107, 2147483648
    %v7110 = vxor.u32 %v7108, 2147483648
    %v7111 = vmul.f32 %v7109, 1.442695
    %v7112 = vpow.pop %v7111
    %v7113 = vmul.f32 %v7110, 1.442695
    %v7114 = vpow.pop %v7113
    %v7115 = vadd.f32 %v7112, 1.0
    %v7116 = vadd.f32 %v7114, 1.0
    %v7117 = vrcp.pop %v7115
    %v7118 = vmul.f32 %v7115, %v7117
    %v7119 = vsub.f32 1.0, %v7118
    %v7120 = vmul.f32 %v7117, %v7119
    %v7121 = vadd.f32 %v7117, %v7120
    %vm7122 = vweird.f32 %v7115
    %vm7123 = vweird.f32 %v7117
    %vm7124 = vmor %vm7122, %vm7123
    %v7125 = vsel %vm7124, %v7117, %v7121
    %v7126 = vand.u32 2147483647, %v7115
    %vm7127 = vcmp.eq.f32.partialorder %v7126, 8.507059e+37
    %v7128 = vand.u32 %v7115, 2147483648
    %v7129 = vor.u32 1.1754944e-38, %v7128
    %v7130 = vsel %vm7127, %v7129, %v7125
    %v7131 = vmul.f32 1.0, %v7130
    %v7132 = vrcp.pop %v7116
    %v7133 = vmul.f32 %v7116, %v7132
    %v7134 = vsub.f32 1.0, %v7133
    %v7135 = vmul.f32 %v7132, %v7134
    %v7136 = vadd.f32 %v7132, %v7135
    %vm7137 = vweird.f32 %v7116
    %vm7138 = vweird.f32 %v7132
    %vm7139 = vmor %vm7137, %vm7138
    %v7140 = vsel %vm7139, %v7132, %v7136
    %v7141 = vand.u32 2147483647, %v7116
    %vm7142 = vcmp.eq.f32.partialorder %v7141, 8.507059e+37
    %v7143 = vand.u32 %v7116, 2147483648
    %v7144 = vor.u32 1.1754944e-38, %v7143
    %v7145 = vsel %vm7142, %v7144, %v7140
    %v7146 = vmul.f32 1.0, %v7145
    %v7147 = vmul.f32 %v7131, %v6983
    %v7148 = vmul.f32 %v7146, %v6984
    %7151 = vrot.lane.b32.xlu0 %v7147, 1
    %v7152 = vpop.permute.xlu0 %7151
    %7153 = vrot.lane.b32.xlu0 %v7148, 1
    %v7154 = vpop.permute.xlu0 %7153
    %vm7157 = vcmask 15368
    %7158 = vst.msk [vmem:[%s63] sm:$0xff] %vm7157, %v7152
    %vm7159 = vcmask 11272
    %7160 = vst.msk [vmem:[%s63 + $0x8] sm:$0xf] %vm7159, %v7154
    %7161 = vmatpush.msra.mxu0 %v6979
    %7162 = vmatpush.msra.mxu0 %v6978
    %7163 = vmatpush.msra.mxu0 %v6977
    %7164 = vmatpush.msra.mxu0 %v6976
    %7165 = vmatpush.msra.mxu0 %v6975
    %7166 = vmatpush.msra.mxu0 %v6974
    %7167 = vmatpush.msra.mxu0 %v6973
    %7168 = vmatpush.msra.mxu0 %v6972
    %7169 = vmatpush.msra.mxu0 %v6971
    %7170 = vmatpush.msra.mxu0 %v6970
    %7171 = vmatpush.msra.mxu0 %v6969
    %7172 = vmatpush.msra.mxu0 %v6968
    %7173 = vmatpush.msra.mxu0 %v6967
    %7174 = vmatpush.msra.mxu0 %v6966
    %7175 = vmatpush.msra.mxu0 %v6965
    %7176 = vmatpush.msra.mxu0 %v6964
    %7177 = vmatmul.f32.gmra.mxu0 %v5802
    %v7178 = vpop.f32.mrf.mxu0
    %v7179 = vadd.f32 %v6986, %v7178
    %7180 = vmatmul.f32.gmra.mxu0 %v5803
    %v7181 = vpop.f32.mrf.mxu0
    %v7182 = vadd.f32 %v6986, %v7181
    %7183 = vdwg.mxu0
    %v7184 = vmax.f32 %v7179, 0.0
    %v7185 = vmax.f32 %v7182, 0.0
    %v7186 = vmul.f32 %v7184, %v7014
    %v7187 = vmul.f32 %v7185, %v7014
    %v7188 = vsel %vm232, %v7186, 0.0
    %7189 = vadd.xlane.f32.xlu0 %v7188
    %v7190 = vpop.xlane.xlu0 %7189
    %v7191 = vsel %vm7021, %v7187, 0.0
    %7192 = vadd.xlane.f32.xlu0 %v7191
    %v7193 = vpop.xlane.xlu0 %7192
    %v7194 = vadd.f32 %v7190, %v7026
    %v7195 = vadd.f32 %v7193, %v7026
    %v7196 = vxor.u32 %v7194, 2147483648
    %v7197 = vxor.u32 %v7195, 2147483648
    %v7198 = vmul.f32 %v7196, 1.442695
    %v7199 = vpow.pop %v7198
    %v7200 = vmul.f32 %v7197, 1.442695
    %v7201 = vpow.pop %v7200
    %v7202 = vadd.f32 %v7199, 1.0
    %v7203 = vadd.f32 %v7201, 1.0
    %v7204 = vrcp.pop %v7202
    %v7205 = vmul.f32 %v7202, %v7204
    %v7206 = vsub.f32 1.0, %v7205
    %v7207 = vmul.f32 %v7204, %v7206
    %v7208 = vadd.f32 %v7204, %v7207
    %vm7209 = vweird.f32 %v7202
    %vm7210 = vweird.f32 %v7204
    %vm7211 = vmor %vm7209, %vm7210
    %v7212 = vsel %vm7211, %v7204, %v7208
    %v7213 = vand.u32 2147483647, %v7202
    %vm7214 = vcmp.eq.f32.partialorder %v7213, 8.507059e+37
    %v7215 = vand.u32 %v7202, 2147483648
    %v7216 = vor.u32 1.1754944e-38, %v7215
    %v7217 = vsel %vm7214, %v7216, %v7212
    %v7218 = vmul.f32 1.0, %v7217
    %v7219 = vrcp.pop %v7203
    %v7220 = vmul.f32 %v7203, %v7219
    %v7221 = vsub.f32 1.0, %v7220
    %v7222 = vmul.f32 %v7219, %v7221
    %v7223 = vadd.f32 %v7219, %v7222
    %vm7224 = vweird.f32 %v7203
    %vm7225 = vweird.f32 %v7219
    %vm7226 = vmor %vm7224, %vm7225
    %v7227 = vsel %vm7226, %v7219, %v7223
    %v7228 = vand.u32 2147483647, %v7203
    %vm7229 = vcmp.eq.f32.partialorder %v7228, 8.507059e+37
    %v7230 = vand.u32 %v7203, 2147483648
    %v7231 = vor.u32 1.1754944e-38, %v7230
    %v7232 = vsel %vm7229, %v7231, %v7227
    %v7233 = vmul.f32 1.0, %v7232
    %v7234 = vmul.f32 %v7218, %v6983
    %v7235 = vmul.f32 %v7233, %v6984
    %7238 = vrot.lane.b32.xlu0 %v7234, 2
    %v7239 = vpop.permute.xlu0 %7238
    %7240 = vrot.lane.b32.xlu0 %v7235, 2
    %v7241 = vpop.permute.xlu0 %7240
    %vm7244 = vcmask 23568
    %7245 = vst.msk [vmem:[%s63] sm:$0xff] %vm7244, %v7239
    %vm7246 = vcmask 19472
    %7247 = vst.msk [vmem:[%s63 + $0x8] sm:$0xf] %vm7246, %v7241
    %7248 = vmatpush.msra.mxu0 %v6979
    %7249 = vmatpush.msra.mxu0 %v6978
    %7250 = vmatpush.msra.mxu0 %v6977
    %7251 = vmatpush.msra.mxu0 %v6976
    %7252 = vmatpush.msra.mxu0 %v6975
    %7253 = vmatpush.msra.mxu0 %v6974
    %7254 = vmatpush.msra.mxu0 %v6973
    %7255 = vmatpush.msra.mxu0 %v6972
    %7256 = vmatpush.msra.mxu0 %v6971
    %7257 = vmatpush.msra.mxu0 %v6970
    %7258 = vmatpush.msra.mxu0 %v6969
    %7259 = vmatpush.msra.mxu0 %v6968
    %7260 = vmatpush.msra.mxu0 %v6967
    %7261 = vmatpush.msra.mxu0 %v6966
    %7262 = vmatpush.msra.mxu0 %v6965
    %7263 = vmatpush.msra.mxu0 %v6964
    %7264 = vmatmul.f32.gmra.mxu0 %v6034
    %v7265 = vpop.f32.mrf.mxu0
    %v7266 = vadd.f32 %v6986, %v7265
    %7267 = vmatmul.f32.gmra.mxu0 %v6035
    %v7268 = vpop.f32.mrf.mxu0
    %v7269 = vadd.f32 %v6986, %v7268
    %7270 = vdwg.mxu0
    %v7271 = vmax.f32 %v7266, 0.0
    %v7272 = vmax.f32 %v7269, 0.0
    %v7273 = vmul.f32 %v7271, %v7014
    %v7274 = vmul.f32 %v7272, %v7014
    %v7275 = vsel %vm232, %v7273, 0.0
    %7276 = vadd.xlane.f32.xlu0 %v7275
    %v7277 = vpop.xlane.xlu0 %7276
    %v7278 = vsel %vm7021, %v7274, 0.0
    %7279 = vadd.xlane.f32.xlu0 %v7278
    %v7280 = vpop.xlane.xlu0 %7279
    %v7281 = vadd.f32 %v7277, %v7026
    %v7282 = vadd.f32 %v7280, %v7026
    %v7283 = vxor.u32 %v7281, 2147483648
    %v7284 = vxor.u32 %v7282, 2147483648
    %v7285 = vmul.f32 %v7283, 1.442695
    %v7286 = vpow.pop %v7285
    %v7287 = vmul.f32 %v7284, 1.442695
    %v7288 = vpow.pop %v7287
    %v7289 = vadd.f32 %v7286, 1.0
    %v7290 = vadd.f32 %v7288, 1.0
    %v7291 = vrcp.pop %v7289
    %v7292 = vmul.f32 %v7289, %v7291
    %v7293 = vsub.f32 1.0, %v7292
    %v7294 = vmul.f32 %v7291, %v7293
    %v7295 = vadd.f32 %v7291, %v7294
    %vm7296 = vweird.f32 %v7289
    %vm7297 = vweird.f32 %v7291
    %vm7298 = vmor %vm7296, %vm7297
    %v7299 = vsel %vm7298, %v7291, %v7295
    %v7300 = vand.u32 2147483647, %v7289
    %vm7301 = vcmp.eq.f32.partialorder %v7300, 8.507059e+37
    %v7302 = vand.u32 %v7289, 2147483648
    %v7303 = vor.u32 1.1754944e-38, %v7302
    %v7304 = vsel %vm7301, %v7303, %v7299
    %v7305 = vmul.f32 1.0, %v7304
    %v7306 = vrcp.pop %v7290
    %v7307 = vmul.f32 %v7290, %v7306
    %v7308 = vsub.f32 1.0, %v7307
    %v7309 = vmul.f32 %v7306, %v7308
    %v7310 = vadd.f32 %v7306, %v7309
    %vm7311 = vweird.f32 %v7290
    %vm7312 = vweird.f32 %v7306
    %vm7313 = vmor %vm7311, %vm7312
    %v7314 = vsel %vm7313, %v7306, %v7310
    %v7315 = vand.u32 2147483647, %v7290
    %vm7316 = vcmp.eq.f32.partialorder %v7315, 8.507059e+37
    %v7317 = vand.u32 %v7290, 2147483648
    %v7318 = vor.u32 1.1754944e-38, %v7317
    %v7319 = vsel %vm7316, %v7318, %v7314
    %v7320 = vmul.f32 1.0, %v7319
    %v7321 = vmul.f32 %v7305, %v6983
    %v7322 = vmul.f32 %v7320, %v6984
    %7325 = vrot.lane.b32.xlu0 %v7321, 3
    %v7326 = vpop.permute.xlu0 %7325
    %7327 = vrot.lane.b32.xlu0 %v7322, 3
    %v7328 = vpop.permute.xlu0 %7327
    %vm7331 = vcmask 31768
    %7332 = vst.msk [vmem:[%s63] sm:$0xff] %vm7331, %v7326
    %vm7333 = vcmask 27672
    %7334 = vst.msk [vmem:[%s63 + $0x8] sm:$0xf] %vm7333, %v7328
    %7335 = vmatpush.msra.mxu0 %v6979
    %7336 = vmatpush.msra.mxu0 %v6978
    %7337 = vmatpush.msra.mxu0 %v6977
    %7338 = vmatpush.msra.mxu0 %v6976
    %7339 = vmatpush.msra.mxu0 %v6975
    %7340 = vmatpush.msra.mxu0 %v6974
    %7341 = vmatpush.msra.mxu0 %v6973
    %7342 = vmatpush.msra.mxu0 %v6972
    %7343 = vmatpush.msra.mxu0 %v6971
    %7344 = vmatpush.msra.mxu0 %v6970
    %7345 = vmatpush.msra.mxu0 %v6969
    %7346 = vmatpush.msra.mxu0 %v6968
    %7347 = vmatpush.msra.mxu0 %v6967
    %7348 = vmatpush.msra.mxu0 %v6966
    %7349 = vmatpush.msra.mxu0 %v6965
    %7350 = vmatpush.msra.mxu0 %v6964
    %7351 = vmatmul.f32.gmra.mxu0 %v6266
    %v7352 = vpop.f32.mrf.mxu0
    %v7353 = vadd.f32 %v6986, %v7352
    %7354 = vmatmul.f32.gmra.mxu0 %v6267
    %v7355 = vpop.f32.mrf.mxu0
    %v7356 = vadd.f32 %v6986, %v7355
    %7357 = vdwg.mxu0
    %v7358 = vmax.f32 %v7353, 0.0
    %v7359 = vmax.f32 %v7356, 0.0
    %v7360 = vmul.f32 %v7358, %v7014
    %v7361 = vmul.f32 %v7359, %v7014
    %v7362 = vsel %vm232, %v7360, 0.0
    %7363 = vadd.xlane.f32.xlu0 %v7362
    %v7364 = vpop.xlane.xlu0 %7363
    %v7365 = vsel %vm7021, %v7361, 0.0
    %7366 = vadd.xlane.f32.xlu0 %v7365
    %v7367 = vpop.xlane.xlu0 %7366
    %v7368 = vadd.f32 %v7364, %v7026
    %v7369 = vadd.f32 %v7367, %v7026
    %v7370 = vxor.u32 %v7368, 2147483648
    %v7371 = vxor.u32 %v7369, 2147483648
    %v7372 = vmul.f32 %v7370, 1.442695
    %v7373 = vpow.pop %v7372
    %v7374 = vmul.f32 %v7371, 1.442695
    %v7375 = vpow.pop %v7374
    %v7376 = vadd.f32 %v7373, 1.0
    %v7377 = vadd.f32 %v7375, 1.0
    %v7378 = vrcp.pop %v7376
    %v7379 = vmul.f32 %v7376, %v7378
    %v7380 = vsub.f32 1.0, %v7379
    %v7381 = vmul.f32 %v7378, %v7380
    %v7382 = vadd.f32 %v7378, %v7381
    %vm7383 = vweird.f32 %v7376
    %vm7384 = vweird.f32 %v7378
    %vm7385 = vmor %vm7383, %vm7384
    %v7386 = vsel %vm7385, %v7378, %v7382
    %v7387 = vand.u32 2147483647, %v7376
    %vm7388 = vcmp.eq.f32.partialorder %v7387, 8.507059e+37
    %v7389 = vand.u32 %v7376, 2147483648
    %v7390 = vor.u32 1.1754944e-38, %v7389
    %v7391 = vsel %vm7388, %v7390, %v7386
    %v7392 = vmul.f32 1.0, %v7391
    %v7393 = vrcp.pop %v7377
    %v7394 = vmul.f32 %v7377, %v7393
    %v7395 = vsub.f32 1.0, %v7394
    %v7396 = vmul.f32 %v7393, %v7395
    %v7397 = vadd.f32 %v7393, %v7396
    %vm7398 = vweird.f32 %v7377
    %vm7399 = vweird.f32 %v7393
    %vm7400 = vmor %vm7398, %vm7399
    %v7401 = vsel %vm7400, %v7393, %v7397
    %v7402 = vand.u32 2147483647, %v7377
    %vm7403 = vcmp.eq.f32.partialorder %v7402, 8.507059e+37
    %v7404 = vand.u32 %v7377, 2147483648
    %v7405 = vor.u32 1.1754944e-38, %v7404
    %v7406 = vsel %vm7403, %v7405, %v7401
    %v7407 = vmul.f32 1.0, %v7406
    %v7408 = vmul.f32 %v7392, %v6983
    %v7409 = vmul.f32 %v7407, %v6984
    %7412 = vrot.lane.b32.xlu0 %v7408, 4
    %v7413 = vpop.permute.xlu0 %7412
    %7414 = vrot.lane.b32.xlu0 %v7409, 4
    %v7415 = vpop.permute.xlu0 %7414
    %vm7418 = vcmask 39968
    %7419 = vst.msk [vmem:[%s63] sm:$0xff] %vm7418, %v7413
    %vm7420 = vcmask 35872
    %7421 = vst.msk [vmem:[%s63 + $0x8] sm:$0xf] %vm7420, %v7415
    %7422 = vmatpush.msra.mxu0 %v6979
    %7423 = vmatpush.msra.mxu0 %v6978
    %7424 = vmatpush.msra.mxu0 %v6977
    %7425 = vmatpush.msra.mxu0 %v6976
    %7426 = vmatpush.msra.mxu0 %v6975
    %7427 = vmatpush.msra.mxu0 %v6974
    %7428 = vmatpush.msra.mxu0 %v6973
    %7429 = vmatpush.msra.mxu0 %v6972
    %7430 = vmatpush.msra.mxu0 %v6971
    %7431 = vmatpush.msra.mxu0 %v6970
    %7432 = vmatpush.msra.mxu0 %v6969
    %7433 = vmatpush.msra.mxu0 %v6968
    %7434 = vmatpush.msra.mxu0 %v6967
    %7435 = vmatpush.msra.mxu0 %v6966
    %7436 = vmatpush.msra.mxu0 %v6965
    %7437 = vmatpush.msra.mxu0 %v6964
    %7438 = vmatmul.f32.gmra.mxu0 %v6498
    %v7439 = vpop.f32.mrf.mxu0
    %v7440 = vadd.f32 %v6986, %v7439
    %7441 = vmatmul.f32.gmra.mxu0 %v6499
    %v7442 = vpop.f32.mrf.mxu0
    %v7443 = vadd.f32 %v6986, %v7442
    %7444 = vdwg.mxu0
    %v7445 = vmax.f32 %v7440, 0.0
    %v7446 = vmax.f32 %v7443, 0.0
    %v7447 = vmul.f32 %v7445, %v7014
    %v7448 = vmul.f32 %v7446, %v7014
    %v7449 = vsel %vm232, %v7447, 0.0
    %7450 = vadd.xlane.f32.xlu0 %v7449
    %v7451 = vpop.xlane.xlu0 %7450
    %v7452 = vsel %vm7021, %v7448, 0.0
    %7453 = vadd.xlane.f32.xlu0 %v7452
    %v7454 = vpop.xlane.xlu0 %7453
    %v7455 = vadd.f32 %v7451, %v7026
    %v7456 = vadd.f32 %v7454, %v7026
    %v7457 = vxor.u32 %v7455, 2147483648
    %v7458 = vxor.u32 %v7456, 2147483648
    %v7459 = vmul.f32 %v7457, 1.442695
    %v7460 = vpow.pop %v7459
    %v7461 = vmul.f32 %v7458, 1.442695
    %v7462 = vpow.pop %v7461
    %v7463 = vadd.f32 %v7460, 1.0
    %v7464 = vadd.f32 %v7462, 1.0
    %v7465 = vrcp.pop %v7463
    %v7466 = vmul.f32 %v7463, %v7465
    %v7467 = vsub.f32 1.0, %v7466
    %v7468 = vmul.f32 %v7465, %v7467
    %v7469 = vadd.f32 %v7465, %v7468
    %vm7470 = vweird.f32 %v7463
    %vm7471 = vweird.f32 %v7465
    %vm7472 = vmor %vm7470, %vm7471
    %v7473 = vsel %vm7472, %v7465, %v7469
    %v7474 = vand.u32 2147483647, %v7463
    %vm7475 = vcmp.eq.f32.partialorder %v7474, 8.507059e+37
    %v7476 = vand.u32 %v7463, 2147483648
    %v7477 = vor.u32 1.1754944e-38, %v7476
    %v7478 = vsel %vm7475, %v7477, %v7473
    %v7479 = vmul.f32 1.0, %v7478
    %v7480 = vrcp.pop %v7464
    %v7481 = vmul.f32 %v7464, %v7480
    %v7482 = vsub.f32 1.0, %v7481
    %v7483 = vmul.f32 %v7480, %v7482
    %v7484 = vadd.f32 %v7480, %v7483
    %vm7485 = vweird.f32 %v7464
    %vm7486 = vweird.f32 %v7480
    %vm7487 = vmor %vm7485, %vm7486
    %v7488 = vsel %vm7487, %v7480, %v7484
    %v7489 = vand.u32 2147483647, %v7464
    %vm7490 = vcmp.eq.f32.partialorder %v7489, 8.507059e+37
    %v7491 = vand.u32 %v7464, 2147483648
    %v7492 = vor.u32 1.1754944e-38, %v7491
    %v7493 = vsel %vm7490, %v7492, %v7488
    %v7494 = vmul.f32 1.0, %v7493
    %v7495 = vmul.f32 %v7479, %v6983
    %v7496 = vmul.f32 %v7494, %v6984
    %7499 = vrot.lane.b32.xlu0 %v7495, 5
    %v7500 = vpop.permute.xlu0 %7499
    %7501 = vrot.lane.b32.xlu0 %v7496, 5
    %v7502 = vpop.permute.xlu0 %7501
    %vm7505 = vcmask 48168
    %7506 = vst.msk [vmem:[%s63] sm:$0xff] %vm7505, %v7500
    %vm7507 = vcmask 44072
    %7508 = vst.msk [vmem:[%s63 + $0x8] sm:$0xf] %vm7507, %v7502
    %7509 = vmatpush.msra.mxu0 %v6979
    %7510 = vmatpush.msra.mxu0 %v6978
    %7511 = vmatpush.msra.mxu0 %v6977
    %7512 = vmatpush.msra.mxu0 %v6976
    %7513 = vmatpush.msra.mxu0 %v6975
    %7514 = vmatpush.msra.mxu0 %v6974
    %7515 = vmatpush.msra.mxu0 %v6973
    %7516 = vmatpush.msra.mxu0 %v6972
    %7517 = vmatpush.msra.mxu0 %v6971
    %7518 = vmatpush.msra.mxu0 %v6970
    %7519 = vmatpush.msra.mxu0 %v6969
    %7520 = vmatpush.msra.mxu0 %v6968
    %7521 = vmatpush.msra.mxu0 %v6967
    %7522 = vmatpush.msra.mxu0 %v6966
    %7523 = vmatpush.msra.mxu0 %v6965
    %7524 = vmatpush.msra.mxu0 %v6964
    %7525 = vmatmul.f32.gmra.mxu0 %v6730
    %v7526 = vpop.f32.mrf.mxu0
    %v7527 = vadd.f32 %v6986, %v7526
    %7528 = vmatmul.f32.gmra.mxu0 %v6731
    %v7529 = vpop.f32.mrf.mxu0
    %v7530 = vadd.f32 %v6986, %v7529
    %7531 = vdwg.mxu0
    %v7532 = vmax.f32 %v7527, 0.0
    %v7533 = vmax.f32 %v7530, 0.0
    %v7534 = vmul.f32 %v7532, %v7014
    %v7535 = vmul.f32 %v7533, %v7014
    %v7536 = vsel %vm232, %v7534, 0.0
    %7537 = vadd.xlane.f32.xlu0 %v7536
    %v7538 = vpop.xlane.xlu0 %7537
    %v7539 = vsel %vm7021, %v7535, 0.0
    %7540 = vadd.xlane.f32.xlu0 %v7539
    %v7541 = vpop.xlane.xlu0 %7540
    %v7542 = vadd.f32 %v7538, %v7026
    %v7543 = vadd.f32 %v7541, %v7026
    %v7544 = vxor.u32 %v7542, 2147483648
    %v7545 = vxor.u32 %v7543, 2147483648
    %v7546 = vmul.f32 %v7544, 1.442695
    %v7547 = vpow.pop %v7546
    %v7548 = vmul.f32 %v7545, 1.442695
    %v7549 = vpow.pop %v7548
    %v7550 = vadd.f32 %v7547, 1.0
    %v7551 = vadd.f32 %v7549, 1.0
    %v7552 = vrcp.pop %v7550
    %v7553 = vmul.f32 %v7550, %v7552
    %v7554 = vsub.f32 1.0, %v7553
    %v7555 = vmul.f32 %v7552, %v7554
    %v7556 = vadd.f32 %v7552, %v7555
    %vm7557 = vweird.f32 %v7550
    %vm7558 = vweird.f32 %v7552
    %vm7559 = vmor %vm7557, %vm7558
    %v7560 = vsel %vm7559, %v7552, %v7556
    %v7561 = vand.u32 2147483647, %v7550
    %vm7562 = vcmp.eq.f32.partialorder %v7561, 8.507059e+37
    %v7563 = vand.u32 %v7550, 2147483648
    %v7564 = vor.u32 1.1754944e-38, %v7563
    %v7565 = vsel %vm7562, %v7564, %v7560
    %v7566 = vmul.f32 1.0, %v7565
    %v7567 = vrcp.pop %v7551
    %v7568 = vmul.f32 %v7551, %v7567
    %v7569 = vsub.f32 1.0, %v7568
    %v7570 = vmul.f32 %v7567, %v7569
    %v7571 = vadd.f32 %v7567, %v7570
    %vm7572 = vweird.f32 %v7551
    %vm7573 = vweird.f32 %v7567
    %vm7574 = vmor %vm7572, %vm7573
    %v7575 = vsel %vm7574, %v7567, %v7571
    %v7576 = vand.u32 2147483647, %v7551
    %vm7577 = vcmp.eq.f32.partialorder %v7576, 8.507059e+37
    %v7578 = vand.u32 %v7551, 2147483648
    %v7579 = vor.u32 1.1754944e-38, %v7578
    %v7580 = vsel %vm7577, %v7579, %v7575
    %v7581 = vmul.f32 1.0, %v7580
    %v7582 = vmul.f32 %v7566, %v6983
    %v7583 = vmul.f32 %v7581, %v6984
    %7586 = vrot.lane.b32.xlu0 %v7582, 6
    %v7587 = vpop.permute.xlu0 %7586
    %7588 = vrot.lane.b32.xlu0 %v7583, 6
    %v7589 = vpop.permute.xlu0 %7588
    %vm7592 = vcmask 56368
    %7593 = vst.msk [vmem:[%s63] sm:$0xff] %vm7592, %v7587
    %vm7594 = vcmask 52272
    %7595 = vst.msk [vmem:[%s63 + $0x8] sm:$0xf] %vm7594, %v7589
    %7596 = vmatpush.msra.mxu0 %v6979
    %7597 = vmatpush.msra.mxu0 %v6978
    %7598 = vmatpush.msra.mxu0 %v6977
    %7599 = vmatpush.msra.mxu0 %v6976
    %7600 = vmatpush.msra.mxu0 %v6975
    %7601 = vmatpush.msra.mxu0 %v6974
    %7602 = vmatpush.msra.mxu0 %v6973
    %7603 = vmatpush.msra.mxu0 %v6972
    %7604 = vmatpush.msra.mxu0 %v6971
    %7605 = vmatpush.msra.mxu0 %v6970
    %7606 = vmatpush.msra.mxu0 %v6969
    %7607 = vmatpush.msra.mxu0 %v6968
    %7608 = vmatpush.msra.mxu0 %v6967
    %7609 = vmatpush.msra.mxu0 %v6966
    %7610 = vmatpush.msra.mxu0 %v6965
    %7611 = vmatpush.msra.mxu0 %v6964
    %7612 = vmatmul.f32.gmra.mxu0 %v6962
    %v7613 = vpop.f32.mrf.mxu0
    %v7614 = vadd.f32 %v6986, %v7613
    %7615 = vmatmul.f32.gmra.mxu0 %v6963
    %v7616 = vpop.f32.mrf.mxu0
    %v7617 = vadd.f32 %v6986, %v7616
    %7618 = vdwg.mxu0
    %v7619 = vmax.f32 %v7614, 0.0
    %v7620 = vmax.f32 %v7617, 0.0
    %v7621 = vmul.f32 %v7619, %v7014
    %v7622 = vmul.f32 %v7620, %v7014
    %v7623 = vsel %vm232, %v7621, 0.0
    %7624 = vadd.xlane.f32.xlu0 %v7623
    %v7625 = vpop.xlane.xlu0 %7624
    %v7626 = vsel %vm7021, %v7622, 0.0
    %7627 = vadd.xlane.f32.xlu0 %v7626
    %v7628 = vpop.xlane.xlu0 %7627
    %v7629 = vadd.f32 %v7625, %v7026
    %v7630 = vadd.f32 %v7628, %v7026
    %v7631 = vxor.u32 %v7629, 2147483648
    %v7632 = vxor.u32 %v7630, 2147483648
    %v7633 = vmul.f32 %v7631, 1.442695
    %v7634 = vpow.pop %v7633
    %v7635 = vmul.f32 %v7632, 1.442695
    %v7636 = vpow.pop %v7635
    %v7637 = vadd.f32 %v7634, 1.0
    %v7638 = vadd.f32 %v7636, 1.0
    %v7639 = vrcp.pop %v7637
    %v7640 = vmul.f32 %v7637, %v7639
    %v7641 = vsub.f32 1.0, %v7640
    %v7642 = vmul.f32 %v7639, %v7641
    %v7643 = vadd.f32 %v7639, %v7642
    %vm7644 = vweird.f32 %v7637
    %vm7645 = vweird.f32 %v7639
    %vm7646 = vmor %vm7644, %vm7645
    %v7647 = vsel %vm7646, %v7639, %v7643
    %v7648 = vand.u32 2147483647, %v7637
    %vm7649 = vcmp.eq.f32.partialorder %v7648, 8.507059e+37
    %v7650 = vand.u32 %v7637, 2147483648
    %v7651 = vor.u32 1.1754944e-38, %v7650
    %v7652 = vsel %vm7649, %v7651, %v7647
    %v7653 = vmul.f32 1.0, %v7652
    %v7654 = vrcp.pop %v7638
    %v7655 = vmul.f32 %v7638, %v7654
    %v7656 = vsub.f32 1.0, %v7655
    %v7657 = vmul.f32 %v7654, %v7656
    %v7658 = vadd.f32 %v7654, %v7657
    %vm7659 = vweird.f32 %v7638
    %vm7660 = vweird.f32 %v7654
    %vm7661 = vmor %vm7659, %vm7660
    %v7662 = vsel %vm7661, %v7654, %v7658
    %v7663 = vand.u32 2147483647, %v7638
    %vm7664 = vcmp.eq.f32.partialorder %v7663, 8.507059e+37
    %v7665 = vand.u32 %v7638, 2147483648
    %v7666 = vor.u32 1.1754944e-38, %v7665
    %v7667 = vsel %vm7664, %v7666, %v7662
    %v7668 = vmul.f32 1.0, %v7667
    %v7669 = vmul.f32 %v7653, %v6983
    %v7670 = vmul.f32 %v7668, %v6984
    %7673 = vrot.lane.b32.xlu0 %v7669, 7
    %v7674 = vpop.permute.xlu0 %7673
    %7675 = vrot.lane.b32.xlu0 %v7670, 7
    %v7676 = vpop.permute.xlu0 %7675
    %vm7679 = vcmask 64568
    %7680 = vst.msk [vmem:[%s63] sm:$0xff] %vm7679, %v7674
    %vm7681 = vcmask 60472
    %7682 = vst.msk [vmem:[%s63 + $0x8] sm:$0xf] %vm7681, %v7676
    // Predicated region
    $region150: #{graphrnn_forward.1} parent=1 // pred_check
      _
    $region151: #{graphrnn_forward.1} parent=1 // pred_check_branch
      %7684 = sbr.rel (0) target = $region153
    $region152: #{graphrnn_forward.1} parent=1 // pred_region
      _
    $region153: #{graphrnn_forward.1} parent=1 // pred_fallthru
      _
    // Predicated region
    $region154: #{graphrnn_forward.1} parent=1 // pred_check
      _
    $region155: #{graphrnn_forward.1} parent=1 // pred_check_branch
      %7686 = sbr.rel (0) target = $region157
    $region156: #{graphrnn_forward.1} parent=1 // pred_region
      _
    $region157: #{graphrnn_forward.1} parent=1 // pred_fallthru
      _
    %7687 = vsyncpa [#allocation4], 1
    %7688 = vsyncpa [#allocation6], 1
    %7689 = vsyncpa [#allocation9], 1
    %7690 = vsyncpa [#allocation12], 1

</llo_original>
